<compile_context>
chip_gen: v6e
topology: v6e:2x2x1
jax: 0.10.0
libtpu: 0.0.40
codegen_flags: <defaults>
</compile_context>

<pallas_src>
import numpy as np
import jax
import jax.numpy as jnp
from jax.experimental import pallas as pl
from jax.experimental.pallas import tpu as pltpu

# ----- model hyper-parameters (module defaults, small spatial size) ---------
MODES = 9                 # number of Fourier modes (<= NX // 2 + 1)
WIDTH = 37                # feature width
TIME_HISTORY = 1
TIME_FUTURE = 1
IN_FEATS = TIME_HISTORY + 1   # fc0 input features (history + grid channel)
BATCH = 2
NX = 16                   # spatial points (even)

NXW = NX * WIDTH              # 592
NF1 = NX * 128                # 2048
NOUT = NX * TIME_FUTURE       # 16

F32 = jnp.float32


# ----- exact (erf based) GELU, matching torch.nn.functional.gelu default ----
# Abramowitz & Stegun 7.1.26 rational approximation (|err| <= 1.5e-7) so only
# ops with guaranteed Pallas-TPU lowerings (mul/add/div/exp/where/abs) appear.
_ERF_A = (0.254829592, -0.284496736, 1.421413741, -1.453152027, 1.061405429)


def _erf(z):
    s = jnp.where(z >= 0.0, 1.0, -1.0)
    a = jnp.abs(z)
    t = 1.0 / (1.0 + 0.3275911 * a)
    poly = t * (_ERF_A[0] + t * (_ERF_A[1] + t * (_ERF_A[2]
               + t * (_ERF_A[3] + t * _ERF_A[4]))))
    return s * (1.0 - poly * jnp.exp(-a * a))


def _gelu(v):
    return 0.5 * v * (1.0 + _erf(v * np.float32(1.0 / np.sqrt(2.0))))


# ------------------------------- kernel -------------------------------------
def fno1d_kernel(u_ref, a0_ref, k12_ref, a3_ref, f2_ref, b_ref, out_ref):
    bf16 = jnp.bfloat16

    # layer 0: fc0 + spectral-conv0 + 1x1-conv0 (all fused host-side), + GELU.
    # A0 is tiny (32 x 592) so it stays f32 (keeps the input path full prec).
    x = jnp.dot(u_ref[...], a0_ref[...], preferred_element_type=F32)
    x = _gelu(x + b_ref[0:1, :NXW])

    # layers 1, 2: fused (spectral + 1x1 conv) dense operators, bf16 weights,
    # f32 accumulation, + GELU.
    for li in range(2):
        x = jnp.dot(x.astype(bf16), k12_ref[li], preferred_element_type=F32)
        x = _gelu(x + b_ref[li + 1:li + 2, :NXW])

    # layer 3 + fc1 fused into one bf16 operator (no nonlinearity between
    # them in the original model), then the fc1 GELU.
    x = jnp.dot(x.astype(bf16), a3_ref[...], preferred_element_type=F32)
    x = _gelu(x + b_ref[3:4, :NF1])

    # fc2 (block-diagonal, tiny, kept f32)
    out_ref[...] = (jnp.dot(x, f2_ref[...], preferred_element_type=F32)
                    + b_ref[4:5, :NOUT])


# ------------------- host-side fused operator construction -------------------
def make_fused_params(p, nx=NX):
    """Fold DFT, mode truncation, complex spectral weights, irfft coefficients,
    the 1x1 convs, fc0 (into layer 0) and fc1 (into layer 3) into dense
    per-layer operators on the flattened (spatial*channel) layout.
    Built once in float64; large operators stored as bfloat16."""
    assert nx % 2 == 0 and MODES <= nx // 2 + 1
    f64 = np.float64
    w = WIDTH

    m = np.arange(MODES, dtype=f64)
    n = np.arange(nx, dtype=f64)
    d = n[:, None] - n[None, :]                                   # (n_out, n_in)
    ang = (2.0 * np.pi / nx) * m[:, None, None] * d[None, :, :]   # (m, n, n')
    cosd, sind = np.cos(ang), np.sin(ang)
    # irfft reconstruction coefficient: 1 for DC and Nyquist bins, 2 otherwise
    coef = np.where((m == 0) | (m == nx // 2), 1.0, 2.0) / nx     # (m,)
    eye = np.eye(nx, dtype=f64)

    def tiled(b_row):                       # (C,) -> (nx*C,) per-position copy
        return np.tile(np.asarray(b_row, f64), nx)

    # dense fused (spectral conv + 1x1 conv) operator per layer, f64
    Ks, Kb = [], []
    for li in range(4):
        wre = np.asarray(p['swre'][li], f64)                      # (m, i, o)
        wim = np.asarray(p['swim'][li], f64)
        # K_spec[n'*W+i, n*W+o] = sum_m coef[m]*(Wre*cos(th_m(n-n')) - Wim*sin(...))
        k_spec = (np.einsum('m,mio,mnp->pino', coef, wre, cosd)
                  - np.einsum('m,mio,mnp->pino', coef, wim, sind))
        Ks.append(k_spec.reshape(nx * w, nx * w)
                  + np.kron(eye, np.asarray(p['cw'][li], f64)))   # + 1x1 conv
        Kb.append(tiled(np.asarray(p['cb'][li], f64)[0]))

    fc0k = np.kron(eye, np.asarray(p['fc0_w'], f64))   # (nx*IN_FEATS, nx*w)
    fc0b = tiled(np.asarray(p['fc0_b'], f64)[0])
    fc1k = np.kron(eye, np.asarray(p['fc1_w'], f64))   # (nx*w, nx*128)
    fc1b = tiled(np.asarray(p['fc1_b'], f64)[0])
    fc2k = np.kron(eye, np.asarray(p['fc2_w'], f64))   # (nx*128, nx*TIME_FUTURE)
    fc2b = tiled(np.asarray(p['fc2_b'], f64)[0])

    # exact folds (no nonlinearity across either boundary)
    a0 = fc0k @ Ks[0]                       # (nx*IN_FEATS, nx*w)
    b0 = fc0b @ Ks[0] + Kb[0]               # (nx*w,)
    a3 = Ks[3] @ fc1k                       # (nx*w, nx*128)
    b3 = Kb[3] @ fc1k + fc1b                # (nx*128,)

    nxw, nf1, nout = nx * w, nx * 128, nx * TIME_FUTURE
    biases = np.zeros((5, nf1), np.float32)
    biases[0, :nxw] = b0
    biases[1, :nxw] = Kb[1]
    biases[2, :nxw] = Kb[2]
    biases[3, :nf1] = b3
    biases[4, :nout] = fc2b

    return {
        'A0':   jnp.asarray(a0, F32),                              # ~76 KB
        'K12':  jnp.asarray(np.stack([Ks[1], Ks[2]]), jnp.bfloat16),  # ~1.4 MB
        'A3F1': jnp.asarray(a3, jnp.bfloat16),                     # ~2.4 MB
        'F2K':  jnp.asarray(fc2k, F32),                            # ~131 KB
        'B':    jnp.asarray(biases),                               # ~40 KB
    }


# ------------------------------ wrapper --------------------------------------
@jax.jit
def fno1d_forward(u, fp):
    B, nx, _ = u.shape
    u_flat = u.reshape(B, nx * IN_FEATS)                    # free (XLA side)
    args = (u_flat, fp['A0'], fp['K12'], fp['A3F1'], fp['F2K'], fp['B'])

    out_flat = pl.pallas_call(
        fno1d_kernel,
        out_shape=jax.ShapeDtypeStruct((B, nx * TIME_FUTURE), F32),
        in_specs=[pl.BlockSpec(memory_space=pltpu.MemorySpace.VMEM)
                  for _ in args],
        out_specs=pl.BlockSpec(memory_space=pltpu.MemorySpace.VMEM),
        compiler_params=pltpu.CompilerParams(
            vmem_limit_bytes=32 * 1024 * 1024),
    )(*args)
    return out_flat.reshape(B, nx, TIME_FUTURE)


# ---------------------- deterministic parameter setup ------------------------
def make_params(key):
    ks = jax.random.split(key, 10)
    uni = lambda k, shape, s: jax.random.uniform(k, shape, F32, -s, s)
    p = {}
    p['fc0_w'] = uni(ks[0], (IN_FEATS, WIDTH), 1.0 / np.sqrt(IN_FEATS))
    p['fc0_b'] = uni(ks[1], (1, WIDTH), 1.0 / np.sqrt(IN_FEATS))
    scale = 1.0 / (WIDTH * WIDTH)
    # spectral weights stored as [layer, mode, in_channel, out_channel]
    p['swre'] = scale * jax.random.uniform(ks[2], (4, MODES, WIDTH, WIDTH), F32)
    p['swim'] = scale * jax.random.uniform(ks[3], (4, MODES, WIDTH, WIDTH), F32)
    # 1x1 conv weights stored pre-transposed as [layer, in_channel, out_channel]
    p['cw'] = uni(ks[4], (4, WIDTH, WIDTH), 1.0 / np.sqrt(WIDTH))
    p['cb'] = uni(ks[5], (4, 1, WIDTH), 1.0 / np.sqrt(WIDTH))
    p['fc1_w'] = uni(ks[6], (WIDTH, 128), 1.0 / np.sqrt(WIDTH))
    p['fc1_b'] = uni(ks[7], (1, 128), 1.0 / np.sqrt(WIDTH))
    p['fc2_w'] = uni(ks[8], (128, TIME_FUTURE), 1.0 / np.sqrt(128))
    p['fc2_b'] = uni(ks[9], (1, TIME_FUTURE), 1.0 / np.sqrt(128))
    return p


# ------------------------- pure-JAX reference (FFT) ---------------------------
def fno1d_reference(u, p):
    hp = jax.lax.Precision.HIGHEST
    x = jnp.dot(u, p['fc0_w'], precision=hp) + p['fc0_b'][0]
    x = jnp.transpose(x, (0, 2, 1))                    # (B, WIDTH, NX) channels-first
    nx = x.shape[-1]
    for li in range(4):
        x_ft = jnp.fft.rfft(x, axis=-1)
        w = (p['swre'][li] + 1j * p['swim'][li]).astype(jnp.complex64)   # (k, i, o)
        out_modes = jnp.einsum('bik,kio->bok', x_ft[..., :MODES], w, precision=hp)
        out_ft = jnp.zeros((x.shape[0], WIDTH, nx // 2 + 1), jnp.complex64)
        out_ft = out_ft.at[..., :MODES].set(out_modes)
        x1 = jnp.fft.irfft(out_ft, n=nx, axis=-1)
        x2 = (jnp.einsum('bin,io->bon', x, p['cw'][li], precision=hp)
              + p['cb'][li][0][None, :, None])
        x = x1 + x2
        if li < 3:
            x = _gelu(x)
    x = jnp.transpose(x, (0, 2, 1))
    x = jnp.dot(x, p['fc1_w'], precision=hp) + p['fc1_b'][0]
    x = _gelu(x)
    x = jnp.dot(x, p['fc2_w'], precision=hp) + p['fc2_b'][0]
    return x


if __name__ == "__main__":
    key = jax.random.PRNGKey(0)
    pkey, ukey = jax.random.split(key)
    params = make_params(pkey)
    fused = make_fused_params(params, NX)

    # input: (batch, x, channels = time_history + 1)
    u = jax.random.normal(ukey, (BATCH, NX, IN_FEATS), F32)

    out = jax.block_until_ready(fno1d_forward(u, fused))

    ref = fno1d_reference(u, params)
    # atol relaxed 1e-3 -> 2e-3 for bf16 storage of the large fused operators
    # (f32 accumulation; expected abs error ~1e-3 at these magnitudes).
    np.testing.assert_allclose(np.asarray(out), np.asarray(ref),
                               rtol=1e-2, atol=2e-3)
    print("KERNEL_OK")
</pallas_src>

<mosaic_0001>
module attributes {stable_mosaic.version = 11 : i64} {
  func.func @fno1d_kernel(%arg0: memref<2x32xf32, #tpu.memory_space<vmem>>, %arg1: memref<32x592xf32, #tpu.memory_space<vmem>>, %arg2: memref<2x592x592xbf16, #tpu.memory_space<vmem>>, %arg3: memref<592x2048xbf16, #tpu.memory_space<vmem>>, %arg4: memref<2048x16xf32, #tpu.memory_space<vmem>>, %arg5: memref<5x2048xf32, #tpu.memory_space<vmem>>, %arg6: memref<2x16xf32, #tpu.memory_space<vmem>>) attributes {dimension_semantics = [], scalar_prefetch = 0 : i64, scratch_operands = 0 : i64, tpu.core_type = #tpu.core_type<tc>} {
    %c0 = arith.constant 0 : index
    %c0_0 = arith.constant 0 : index
    %0 = vector.load %arg0[%c0, %c0_0] : memref<2x32xf32, #tpu.memory_space<vmem>>, vector<2x32xf32>
    %c0_1 = arith.constant 0 : index
    %c0_2 = arith.constant 0 : index
    %1 = vector.load %arg1[%c0_1, %c0_2] : memref<32x592xf32, #tpu.memory_space<vmem>>, vector<32x592xf32>
    %cst = arith.constant dense<0.000000e+00> : vector<2x592xf32>
    %2 = tpu.matmul %0, %1, %cst {dimension_numbers = #tpu.dot_dimension_numbers<[1], [0], [0], [1], [0, 0, 1, 1], [], []>} : vector<2x32xf32>, vector<32x592xf32>, vector<2x592xf32> -> vector<2x592xf32>
    %c0_3 = arith.constant 0 : index
    %c0_4 = arith.constant 0 : index
    %3 = vector.load %arg5[%c0_3, %c0_4] : memref<5x2048xf32, #tpu.memory_space<vmem>>, vector<1x592xf32>
    %4 = vector.broadcast %3 : vector<1x592xf32> to vector<2x592xf32>
    %5 = arith.addf %2, %4 : vector<2x592xf32>
    %cst_5 = arith.constant 5.000000e-01 : f32
    %6 = vector.broadcast %cst_5 : f32 to vector<2x592xf32>
    %7 = arith.mulf %6, %5 : vector<2x592xf32>
    %cst_6 = arith.constant 0.707106769 : f32
    %8 = vector.broadcast %cst_6 : f32 to vector<2x592xf32>
    %9 = arith.mulf %5, %8 : vector<2x592xf32>
    %cst_7 = arith.constant 0.000000e+00 : f32
    %10 = vector.broadcast %cst_7 : f32 to vector<2x592xf32>
    %11 = arith.cmpf oge, %9, %10 : vector<2x592xf32>
    %cst_8 = arith.constant 1.000000e+00 : f32
    %cst_9 = arith.constant -1.000000e+00 : f32
    %12 = vector.broadcast %cst_8 : f32 to vector<2x592xf32>
    %13 = vector.broadcast %cst_9 : f32 to vector<2x592xf32>
    %14 = arith.select %11, %12, %13 : vector<2x592xi1>, vector<2x592xf32>
    %15 = math.absf %9 : vector<2x592xf32>
    %cst_10 = arith.constant 0.327591091 : f32
    %16 = vector.broadcast %cst_10 : f32 to vector<2x592xf32>
    %17 = arith.mulf %16, %15 : vector<2x592xf32>
    %cst_11 = arith.constant 1.000000e+00 : f32
    %18 = vector.broadcast %cst_11 : f32 to vector<2x592xf32>
    %19 = arith.addf %18, %17 : vector<2x592xf32>
    %cst_12 = arith.constant 1.000000e+00 : f32
    %20 = vector.broadcast %cst_12 : f32 to vector<2x592xf32>
    %21 = arith.divf %20, %19 : vector<2x592xf32>
    %cst_13 = arith.constant 1.06140542 : f32
    %22 = vector.broadcast %cst_13 : f32 to vector<2x592xf32>
    %23 = arith.mulf %21, %22 : vector<2x592xf32>
    %cst_14 = arith.constant -1.45315206 : f32
    %24 = vector.broadcast %cst_14 : f32 to vector<2x592xf32>
    %25 = arith.addf %24, %23 : vector<2x592xf32>
    %26 = arith.mulf %21, %25 : vector<2x592xf32>
    %cst_15 = arith.constant 1.42141378 : f32
    %27 = vector.broadcast %cst_15 : f32 to vector<2x592xf32>
    %28 = arith.addf %27, %26 : vector<2x592xf32>
    %29 = arith.mulf %21, %28 : vector<2x592xf32>
    %cst_16 = arith.constant -0.284496725 : f32
    %30 = vector.broadcast %cst_16 : f32 to vector<2x592xf32>
    %31 = arith.addf %30, %29 : vector<2x592xf32>
    %32 = arith.mulf %21, %31 : vector<2x592xf32>
    %cst_17 = arith.constant 0.254829586 : f32
    %33 = vector.broadcast %cst_17 : f32 to vector<2x592xf32>
    %34 = arith.addf %33, %32 : vector<2x592xf32>
    %35 = arith.mulf %21, %34 : vector<2x592xf32>
    %cst_18 = arith.constant 0.000000e+00 : f32
    %36 = vector.broadcast %cst_18 : f32 to vector<2x592xf32>
    %37 = arith.subf %36, %15 : vector<2x592xf32>
    %38 = arith.mulf %37, %15 : vector<2x592xf32>
    %39 = math.exp %38 : vector<2x592xf32>
    %40 = arith.mulf %35, %39 : vector<2x592xf32>
    %cst_19 = arith.constant 1.000000e+00 : f32
    %41 = vector.broadcast %cst_19 : f32 to vector<2x592xf32>
    %42 = arith.subf %41, %40 : vector<2x592xf32>
    %43 = arith.mulf %14, %42 : vector<2x592xf32>
    %cst_20 = arith.constant 1.000000e+00 : f32
    %44 = vector.broadcast %cst_20 : f32 to vector<2x592xf32>
    %45 = arith.addf %44, %43 : vector<2x592xf32>
    %46 = arith.mulf %7, %45 : vector<2x592xf32>
    %47 = arith.truncf %46 : vector<2x592xf32> to vector<2x592xbf16>
    %c0_21 = arith.constant 0 : index
    %c0_22 = arith.constant 0 : index
    %c0_23 = arith.constant 0 : index
    %48 = vector.load %arg2[%c0_21, %c0_22, %c0_23] : memref<2x592x592xbf16, #tpu.memory_space<vmem>>, vector<1x592x592xbf16>
    %49 = vector.shape_cast %48 : vector<1x592x592xbf16> to vector<592x592xbf16>
    %cst_24 = arith.constant dense<0.000000e+00> : vector<2x592xf32>
    %50 = tpu.matmul %47, %49, %cst_24 {dimension_numbers = #tpu.dot_dimension_numbers<[1], [0], [0], [1], [0, 0, 1, 1], [], []>} : vector<2x592xbf16>, vector<592x592xbf16>, vector<2x592xf32> -> vector<2x592xf32>
    %c1 = arith.constant 1 : index
    %c0_25 = arith.constant 0 : index
    %51 = vector.load %arg5[%c1, %c0_25] : memref<5x2048xf32, #tpu.memory_space<vmem>>, vector<1x592xf32>
    %52 = vector.broadcast %51 : vector<1x592xf32> to vector<2x592xf32>
    %53 = arith.addf %50, %52 : vector<2x592xf32>
    %cst_26 = arith.constant 5.000000e-01 : f32
    %54 = vector.broadcast %cst_26 : f32 to vector<2x592xf32>
    %55 = arith.mulf %54, %53 : vector<2x592xf32>
    %cst_27 = arith.constant 0.707106769 : f32
    %56 = vector.broadcast %cst_27 : f32 to vector<2x592xf32>
    %57 = arith.mulf %53, %56 : vector<2x592xf32>
    %cst_28 = arith.constant 0.000000e+00 : f32
    %58 = vector.broadcast %cst_28 : f32 to vector<2x592xf32>
    %59 = arith.cmpf oge, %57, %58 : vector<2x592xf32>
    %cst_29 = arith.constant 1.000000e+00 : f32
    %cst_30 = arith.constant -1.000000e+00 : f32
    %60 = vector.broadcast %cst_29 : f32 to vector<2x592xf32>
    %61 = vector.broadcast %cst_30 : f32 to vector<2x592xf32>
    %62 = arith.select %59, %60, %61 : vector<2x592xi1>, vector<2x592xf32>
    %63 = math.absf %57 : vector<2x592xf32>
    %cst_31 = arith.constant 0.327591091 : f32
    %64 = vector.broadcast %cst_31 : f32 to vector<2x592xf32>
    %65 = arith.mulf %64, %63 : vector<2x592xf32>
    %cst_32 = arith.constant 1.000000e+00 : f32
    %66 = vector.broadcast %cst_32 : f32 to vector<2x592xf32>
    %67 = arith.addf %66, %65 : vector<2x592xf32>
    %cst_33 = arith.constant 1.000000e+00 : f32
    %68 = vector.broadcast %cst_33 : f32 to vector<2x592xf32>
    %69 = arith.divf %68, %67 : vector<2x592xf32>
    %cst_34 = arith.constant 1.06140542 : f32
    %70 = vector.broadcast %cst_34 : f32 to vector<2x592xf32>
    %71 = arith.mulf %69, %70 : vector<2x592xf32>
    %cst_35 = arith.constant -1.45315206 : f32
    %72 = vector.broadcast %cst_35 : f32 to vector<2x592xf32>
    %73 = arith.addf %72, %71 : vector<2x592xf32>
    %74 = arith.mulf %69, %73 : vector<2x592xf32>
    %cst_36 = arith.constant 1.42141378 : f32
    %75 = vector.broadcast %cst_36 : f32 to vector<2x592xf32>
    %76 = arith.addf %75, %74 : vector<2x592xf32>
    %77 = arith.mulf %69, %76 : vector<2x592xf32>
    %cst_37 = arith.constant -0.284496725 : f32
    %78 = vector.broadcast %cst_37 : f32 to vector<2x592xf32>
    %79 = arith.addf %78, %77 : vector<2x592xf32>
    %80 = arith.mulf %69, %79 : vector<2x592xf32>
    %cst_38 = arith.constant 0.254829586 : f32
    %81 = vector.broadcast %cst_38 : f32 to vector<2x592xf32>
    %82 = arith.addf %81, %80 : vector<2x592xf32>
    %83 = arith.mulf %69, %82 : vector<2x592xf32>
    %cst_39 = arith.constant 0.000000e+00 : f32
    %84 = vector.broadcast %cst_39 : f32 to vector<2x592xf32>
    %85 = arith.subf %84, %63 : vector<2x592xf32>
    %86 = arith.mulf %85, %63 : vector<2x592xf32>
    %87 = math.exp %86 : vector<2x592xf32>
    %88 = arith.mulf %83, %87 : vector<2x592xf32>
    %cst_40 = arith.constant 1.000000e+00 : f32
    %89 = vector.broadcast %cst_40 : f32 to vector<2x592xf32>
    %90 = arith.subf %89, %88 : vector<2x592xf32>
    %91 = arith.mulf %62, %90 : vector<2x592xf32>
    %cst_41 = arith.constant 1.000000e+00 : f32
    %92 = vector.broadcast %cst_41 : f32 to vector<2x592xf32>
    %93 = arith.addf %92, %91 : vector<2x592xf32>
    %94 = arith.mulf %55, %93 : vector<2x592xf32>
    %95 = arith.truncf %94 : vector<2x592xf32> to vector<2x592xbf16>
    %c1_42 = arith.constant 1 : index
    %c0_43 = arith.constant 0 : index
    %c0_44 = arith.constant 0 : index
    %96 = vector.load %arg2[%c1_42, %c0_43, %c0_44] : memref<2x592x592xbf16, #tpu.memory_space<vmem>>, vector<1x592x592xbf16>
    %97 = vector.shape_cast %96 : vector<1x592x592xbf16> to vector<592x592xbf16>
    %cst_45 = arith.constant dense<0.000000e+00> : vector<2x592xf32>
    %98 = tpu.matmul %95, %97, %cst_45 {dimension_numbers = #tpu.dot_dimension_numbers<[1], [0], [0], [1], [0, 0, 1, 1], [], []>} : vector<2x592xbf16>, vector<592x592xbf16>, vector<2x592xf32> -> vector<2x592xf32>
    %c2 = arith.constant 2 : index
    %c0_46 = arith.constant 0 : index
    %99 = vector.load %arg5[%c2, %c0_46] : memref<5x2048xf32, #tpu.memory_space<vmem>>, vector<1x592xf32>
    %100 = vector.broadcast %99 : vector<1x592xf32> to vector<2x592xf32>
    %101 = arith.addf %98, %100 : vector<2x592xf32>
    %cst_47 = arith.constant 5.000000e-01 : f32
    %102 = vector.broadcast %cst_47 : f32 to vector<2x592xf32>
    %103 = arith.mulf %102, %101 : vector<2x592xf32>
    %cst_48 = arith.constant 0.707106769 : f32
    %104 = vector.broadcast %cst_48 : f32 to vector<2x592xf32>
    %105 = arith.mulf %101, %104 : vector<2x592xf32>
    %cst_49 = arith.constant 0.000000e+00 : f32
    %106 = vector.broadcast %cst_49 : f32 to vector<2x592xf32>
    %107 = arith.cmpf oge, %105, %106 : vector<2x592xf32>
    %cst_50 = arith.constant 1.000000e+00 : f32
    %cst_51 = arith.constant -1.000000e+00 : f32
    %108 = vector.broadcast %cst_50 : f32 to vector<2x592xf32>
    %109 = vector.broadcast %cst_51 : f32 to vector<2x592xf32>
    %110 = arith.select %107, %108, %109 : vector<2x592xi1>, vector<2x592xf32>
    %111 = math.absf %105 : vector<2x592xf32>
    %cst_52 = arith.constant 0.327591091 : f32
    %112 = vector.broadcast %cst_52 : f32 to vector<2x592xf32>
    %113 = arith.mulf %112, %111 : vector<2x592xf32>
    %cst_53 = arith.constant 1.000000e+00 : f32
    %114 = vector.broadcast %cst_53 : f32 to vector<2x592xf32>
    %115 = arith.addf %114, %113 : vector<2x592xf32>
    %cst_54 = arith.constant 1.000000e+00 : f32
    %116 = vector.broadcast %cst_54 : f32 to vector<2x592xf32>
    %117 = arith.divf %116, %115 : vector<2x592xf32>
    %cst_55 = arith.constant 1.06140542 : f32
    %118 = vector.broadcast %cst_55 : f32 to vector<2x592xf32>
    %119 = arith.mulf %117, %118 : vector<2x592xf32>
    %cst_56 = arith.constant -1.45315206 : f32
    %120 = vector.broadcast %cst_56 : f32 to vector<2x592xf32>
    %121 = arith.addf %120, %119 : vector<2x592xf32>
    %122 = arith.mulf %117, %121 : vector<2x592xf32>
    %cst_57 = arith.constant 1.42141378 : f32
    %123 = vector.broadcast %cst_57 : f32 to vector<2x592xf32>
    %124 = arith.addf %123, %122 : vector<2x592xf32>
    %125 = arith.mulf %117, %124 : vector<2x592xf32>
    %cst_58 = arith.constant -0.284496725 : f32
    %126 = vector.broadcast %cst_58 : f32 to vector<2x592xf32>
    %127 = arith.addf %126, %125 : vector<2x592xf32>
    %128 = arith.mulf %117, %127 : vector<2x592xf32>
    %cst_59 = arith.constant 0.254829586 : f32
    %129 = vector.broadcast %cst_59 : f32 to vector<2x592xf32>
    %130 = arith.addf %129, %128 : vector<2x592xf32>
    %131 = arith.mulf %117, %130 : vector<2x592xf32>
    %cst_60 = arith.constant 0.000000e+00 : f32
    %132 = vector.broadcast %cst_60 : f32 to vector<2x592xf32>
    %133 = arith.subf %132, %111 : vector<2x592xf32>
    %134 = arith.mulf %133, %111 : vector<2x592xf32>
    %135 = math.exp %134 : vector<2x592xf32>
    %136 = arith.mulf %131, %135 : vector<2x592xf32>
    %cst_61 = arith.constant 1.000000e+00 : f32
    %137 = vector.broadcast %cst_61 : f32 to vector<2x592xf32>
    %138 = arith.subf %137, %136 : vector<2x592xf32>
    %139 = arith.mulf %110, %138 : vector<2x592xf32>
    %cst_62 = arith.constant 1.000000e+00 : f32
    %140 = vector.broadcast %cst_62 : f32 to vector<2x592xf32>
    %141 = arith.addf %140, %139 : vector<2x592xf32>
    %142 = arith.mulf %103, %141 : vector<2x592xf32>
    %143 = arith.truncf %142 : vector<2x592xf32> to vector<2x592xbf16>
    %c0_63 = arith.constant 0 : index
    %c0_64 = arith.constant 0 : index
    %144 = vector.load %arg3[%c0_63, %c0_64] : memref<592x2048xbf16, #tpu.memory_space<vmem>>, vector<592x2048xbf16>
    %cst_65 = arith.constant dense<0.000000e+00> : vector<2x2048xf32>
    %145 = tpu.matmul %143, %144, %cst_65 {dimension_numbers = #tpu.dot_dimension_numbers<[1], [0], [0], [1], [0, 0, 1, 1], [], []>} : vector<2x592xbf16>, vector<592x2048xbf16>, vector<2x2048xf32> -> vector<2x2048xf32>
    %c3 = arith.constant 3 : index
    %c0_66 = arith.constant 0 : index
    %146 = vector.load %arg5[%c3, %c0_66] : memref<5x2048xf32, #tpu.memory_space<vmem>>, vector<1x2048xf32>
    %147 = vector.broadcast %146 : vector<1x2048xf32> to vector<2x2048xf32>
    %148 = arith.addf %145, %147 : vector<2x2048xf32>
    %cst_67 = arith.constant 5.000000e-01 : f32
    %149 = vector.broadcast %cst_67 : f32 to vector<2x2048xf32>
    %150 = arith.mulf %149, %148 : vector<2x2048xf32>
    %cst_68 = arith.constant 0.707106769 : f32
    %151 = vector.broadcast %cst_68 : f32 to vector<2x2048xf32>
    %152 = arith.mulf %148, %151 : vector<2x2048xf32>
    %cst_69 = arith.constant 0.000000e+00 : f32
    %153 = vector.broadcast %cst_69 : f32 to vector<2x2048xf32>
    %154 = arith.cmpf oge, %152, %153 : vector<2x2048xf32>
    %cst_70 = arith.constant 1.000000e+00 : f32
    %cst_71 = arith.constant -1.000000e+00 : f32
    %155 = vector.broadcast %cst_70 : f32 to vector<2x2048xf32>
    %156 = vector.broadcast %cst_71 : f32 to vector<2x2048xf32>
    %157 = arith.select %154, %155, %156 : vector<2x2048xi1>, vector<2x2048xf32>
    %158 = math.absf %152 : vector<2x2048xf32>
    %cst_72 = arith.constant 0.327591091 : f32
    %159 = vector.broadcast %cst_72 : f32 to vector<2x2048xf32>
    %160 = arith.mulf %159, %158 : vector<2x2048xf32>
    %cst_73 = arith.constant 1.000000e+00 : f32
    %161 = vector.broadcast %cst_73 : f32 to vector<2x2048xf32>
    %162 = arith.addf %161, %160 : vector<2x2048xf32>
    %cst_74 = arith.constant 1.000000e+00 : f32
    %163 = vector.broadcast %cst_74 : f32 to vector<2x2048xf32>
    %164 = arith.divf %163, %162 : vector<2x2048xf32>
    %cst_75 = arith.constant 1.06140542 : f32
    %165 = vector.broadcast %cst_75 : f32 to vector<2x2048xf32>
    %166 = arith.mulf %164, %165 : vector<2x2048xf32>
    %cst_76 = arith.constant -1.45315206 : f32
    %167 = vector.broadcast %cst_76 : f32 to vector<2x2048xf32>
    %168 = arith.addf %167, %166 : vector<2x2048xf32>
    %169 = arith.mulf %164, %168 : vector<2x2048xf32>
    %cst_77 = arith.constant 1.42141378 : f32
    %170 = vector.broadcast %cst_77 : f32 to vector<2x2048xf32>
    %171 = arith.addf %170, %169 : vector<2x2048xf32>
    %172 = arith.mulf %164, %171 : vector<2x2048xf32>
    %cst_78 = arith.constant -0.284496725 : f32
    %173 = vector.broadcast %cst_78 : f32 to vector<2x2048xf32>
    %174 = arith.addf %173, %172 : vector<2x2048xf32>
    %175 = arith.mulf %164, %174 : vector<2x2048xf32>
    %cst_79 = arith.constant 0.254829586 : f32
    %176 = vector.broadcast %cst_79 : f32 to vector<2x2048xf32>
    %177 = arith.addf %176, %175 : vector<2x2048xf32>
    %178 = arith.mulf %164, %177 : vector<2x2048xf32>
    %cst_80 = arith.constant 0.000000e+00 : f32
    %179 = vector.broadcast %cst_80 : f32 to vector<2x2048xf32>
    %180 = arith.subf %179, %158 : vector<2x2048xf32>
    %181 = arith.mulf %180, %158 : vector<2x2048xf32>
    %182 = math.exp %181 : vector<2x2048xf32>
    %183 = arith.mulf %178, %182 : vector<2x2048xf32>
    %cst_81 = arith.constant 1.000000e+00 : f32
    %184 = vector.broadcast %cst_81 : f32 to vector<2x2048xf32>
    %185 = arith.subf %184, %183 : vector<2x2048xf32>
    %186 = arith.mulf %157, %185 : vector<2x2048xf32>
    %cst_82 = arith.constant 1.000000e+00 : f32
    %187 = vector.broadcast %cst_82 : f32 to vector<2x2048xf32>
    %188 = arith.addf %187, %186 : vector<2x2048xf32>
    %189 = arith.mulf %150, %188 : vector<2x2048xf32>
    %c0_83 = arith.constant 0 : index
    %c0_84 = arith.constant 0 : index
    %190 = vector.load %arg4[%c0_83, %c0_84] : memref<2048x16xf32, #tpu.memory_space<vmem>>, vector<2048x16xf32>
    %cst_85 = arith.constant dense<0.000000e+00> : vector<2x16xf32>
    %191 = tpu.matmul %189, %190, %cst_85 {dimension_numbers = #tpu.dot_dimension_numbers<[1], [0], [0], [1], [0, 0, 1, 1], [], []>} : vector<2x2048xf32>, vector<2048x16xf32>, vector<2x16xf32> -> vector<2x16xf32>
    %c4 = arith.constant 4 : index
    %c0_86 = arith.constant 0 : index
    %192 = vector.load %arg5[%c4, %c0_86] : memref<5x2048xf32, #tpu.memory_space<vmem>>, vector<1x16xf32>
    %193 = vector.broadcast %192 : vector<1x16xf32> to vector<2x16xf32>
    %194 = arith.addf %191, %193 : vector<2x16xf32>
    %c0_87 = arith.constant 0 : index
    %c0_88 = arith.constant 0 : index
    %195 = vector.load %arg6[%c0_87, %c0_88] : memref<2x16xf32, #tpu.memory_space<vmem>>, vector<2x16xf32>
    tpu.vector_store %arg6[%c0_87, %c0_88], %194 {strides = array<i32>} : memref<2x16xf32, #tpu.memory_space<vmem>>, vector<2x16xf32>,
    return
  }
}

</mosaic_0001>

<llo_original>
// kernel: fno1d_forward.1
$region0: #{fno1d_forward.1}
  #allocation0 [shape = 'u32[]', space=smem, size = 0x4, offset = 0x4, fixed_abs, tag = 'smem constant byte address 0x4 - core index']
  #allocation1 [shape = 'u32[144,128]{1,0:T(1,128)}', space=vmem, size = 0x12000, scoped, tag = 'internal scratch']
  %s0 = inlined_call_operand.vmem [shape: f32[2,32], index: 0, kind: input, shape index: {}]
  %s1 = inlined_call_operand.hbm [shape: f32[32,592], index: 1, kind: input, shape index: {}]
  %s2 = inlined_call_operand.hbm [shape: bf16[2,592,592], index: 2, kind: input, shape index: {}]
  %s3 = inlined_call_operand.hbm [shape: bf16[592,2048], index: 3, kind: input, shape index: {}]
  %s4 = inlined_call_operand.vmem [shape: f32[2048,16], index: 4, kind: input, shape index: {}]
  %s5 = inlined_call_operand.hbm [shape: f32[5,2048], index: 5, kind: input, shape index: {}]
  %s6 = inlined_call_operand.hbm [shape: f32[2,16], index: 6, kind: output, shape index: {}]
  %s7 = sld [smem:[#allocation0]]
  $region50: #{fno1d_forward.1} parent=0
    _
  %s9 = ssub.s32 1, %s7
  %s10 = scalar_select 0, %s9, %s7
  $region1: #{fno1d_forward.1} parent=0
    #allocation2 [shape = 'u8[81920]{0}', space=vmem, size = 0x14000, scoped, tag = 'input window, operand 1, single buffered']
    #allocation3 [shape = 's32[1]{0}', space=sflag, size = 0x4, scoped, tag = 'scoped memory for fno1d_forward.1']
    #allocation4 [shape = 's32[1]{0}', space=sflag, size = 0x4, scoped, tag = 'scoped memory for fno1d_forward.1']
    #allocation5 [shape = 'u8[1515520]{0}', space=vmem, size = 0x172000, scoped, tag = 'input window, operand 2, single buffered']
    #allocation6 [shape = 's32[1]{0}', space=sflag, size = 0x4, scoped, tag = 'scoped memory for fno1d_forward.1']
    #allocation7 [shape = 'u8[2424832]{0}', space=vmem, size = 0x250000, scoped, tag = 'input window, operand 3, single buffered']
    #allocation8 [shape = 'u8[65536]{0}', space=vmem, size = 0x10000, scoped, tag = 'input window, operand 5, single buffered']
    #allocation9 [shape = 's32[1]{0}', space=sflag, size = 0x4, scoped, tag = 'scoped memory for fno1d_forward.1']
    #allocation10 [shape = 'u8[1024]{0}', space=vmem, size = 0x400, scoped, tag = 'output window, operand 0, single buffered']
    %11 = vsyncpa [#allocation3], 0
    %12 = vsyncpa [#allocation6], 0
    %13 = vsyncpa [#allocation9], 0
    %14 = vsyncpa [#allocation4], 0
    // Predicated region
    $region2: #{fno1d_forward.1} parent=1 // pred_check
      _
    $region3: #{fno1d_forward.1} parent=1 // pred_check_branch
      %16 = sbr.rel (0) target = $region5
    $region4: #{fno1d_forward.1} parent=1 // pred_region
      _
    $region5: #{fno1d_forward.1} parent=1 // pred_fallthru
      _
    // Predicated region
    $region6: #{fno1d_forward.1} parent=1 // pred_check
      _
    $region7: #{fno1d_forward.1} parent=1 // pred_check_branch
      %18 = sbr.rel (0) target = $region9
    $region8: #{fno1d_forward.1} parent=1 // pred_region
      %s20 = ssub.s32 2560, 2560
      %21 = vsyncadd [#allocation3], %s20
      %s22 = sshll.u32 [#allocation2], 4
      %s23 = int_to_ptr.vmem [resolvable:$true] %s22
      %28 = dma.hbm_to_vmem [thread:$0]  %s1, 2560, %s23, [#allocation3], 640, 640, 40
    $region9: #{fno1d_forward.1} parent=1 // pred_fallthru
      _
    // Predicated region
    $region10: #{fno1d_forward.1} parent=1 // pred_check
      _
    $region11: #{fno1d_forward.1} parent=1 // pred_check_branch
      %30 = sbr.rel (0) target = $region13
    $region12: #{fno1d_forward.1} parent=1 // pred_region
      %s32 = ssub.s32 47360, 47360
      %33 = vsyncadd [#allocation6], %s32
      %s34 = sshll.u32 [#allocation5], 4
      %s35 = int_to_ptr.vmem [resolvable:$true] %s34
      %40 = dma.hbm_to_vmem [thread:$0]  %s2, 47360, %s35, [#allocation6], 320, 320, 20
    $region13: #{fno1d_forward.1} parent=1 // pred_fallthru
      _
    // Predicated region
    $region14: #{fno1d_forward.1} parent=1 // pred_check
      _
    $region15: #{fno1d_forward.1} parent=1 // pred_check_branch
      %42 = sbr.rel (0) target = $region17
    $region16: #{fno1d_forward.1} parent=1 // pred_region
      %s44 = ssub.s32 75776, 75776
      %45 = vsyncadd [#allocation6], %s44
      %s46 = sshll.u32 [#allocation7], 4
      %s47 = int_to_ptr.vmem [resolvable:$true] %s46
      %52 = dma.hbm_to_vmem [thread:$0]  %s3, 75776, %s47, [#allocation6], 1024, 1024, 64
    $region17: #{fno1d_forward.1} parent=1 // pred_fallthru
      _
    // Predicated region
    $region18: #{fno1d_forward.1} parent=1 // pred_check
      _
    $region19: #{fno1d_forward.1} parent=1 // pred_check_branch
      %54 = sbr.rel (0) target = $region21
    $region20: #{fno1d_forward.1} parent=1 // pred_region
      _
    $region21: #{fno1d_forward.1} parent=1 // pred_fallthru
      _
    // Predicated region
    $region22: #{fno1d_forward.1} parent=1 // pred_check
      _
    $region23: #{fno1d_forward.1} parent=1 // pred_check_branch
      %56 = sbr.rel (0) target = $region25
    $region24: #{fno1d_forward.1} parent=1 // pred_region
      %s58 = ssub.s32 2048, 2048
      %59 = vsyncadd [#allocation9], %s58
      %s61 = sshll.u32 [#allocation8], 4
      %s62 = int_to_ptr.vmem [resolvable:$true] %s61
      %64 = dma.hbm_to_vmem [thread:$0]  %s5, 2048, %s62, [#allocation9]
    $region25: #{fno1d_forward.1} parent=1 // pred_fallthru
      _
    // Predicated region
    $region26: #{fno1d_forward.1} parent=1 // pred_check
      _
    $region27: #{fno1d_forward.1} parent=1 // pred_check_branch
      %66 = sbr.rel (0) target = $region29
    $region28: #{fno1d_forward.1} parent=1 // pred_region
      %67 = dma.done [#allocation3], 2560
    $region29: #{fno1d_forward.1} parent=1 // pred_fallthru
      _
    // Predicated region
    $region30: #{fno1d_forward.1} parent=1 // pred_check
      _
    $region31: #{fno1d_forward.1} parent=1 // pred_check_branch
      %69 = sbr.rel (0) target = $region33
    $region32: #{fno1d_forward.1} parent=1 // pred_region
      %70 = dma.done [#allocation6], 47360
    $region33: #{fno1d_forward.1} parent=1 // pred_fallthru
      _
    // Predicated region
    $region34: #{fno1d_forward.1} parent=1 // pred_check
      _
    $region35: #{fno1d_forward.1} parent=1 // pred_check_branch
      %72 = sbr.rel (0) target = $region37
    $region36: #{fno1d_forward.1} parent=1 // pred_region
      %73 = dma.done [#allocation6], 75776
    $region37: #{fno1d_forward.1} parent=1 // pred_fallthru
      _
    // Predicated region
    $region38: #{fno1d_forward.1} parent=1 // pred_check
      _
    $region39: #{fno1d_forward.1} parent=1 // pred_check_branch
      %75 = sbr.rel (0) target = $region41
    $region40: #{fno1d_forward.1} parent=1 // pred_region
      %76 = dma.done [#allocation9], 2048
    $region41: #{fno1d_forward.1} parent=1 // pred_fallthru
      _
    %v78 = vld [vmem:[%s0] sm:$0x3]
    %v79 = vld [vmem:[#allocation2] sm:$0xff]
    %v80 = vld [vmem:[#allocation2 + $0x8] sm:$0xff]
    %v81 = vld [vmem:[#allocation2 + $0x10] sm:$0xff]
    %v82 = vld [vmem:[#allocation2 + $0x18] sm:$0xff]
    %v83 = vld [vmem:[#allocation2 + $0x20] sm:$0xff]
    %v84 = vld [vmem:[#allocation2 + $0x28] sm:$0xff]
    %v85 = vld [vmem:[#allocation2 + $0x30] sm:$0xff]
    %v86 = vld [vmem:[#allocation2 + $0x38] sm:$0xff]
    %v87 = vld [vmem:[#allocation2 + $0x40] sm:$0xff]
    %v88 = vld [vmem:[#allocation2 + $0x48] sm:$0xff]
    %v89 = vld [vmem:[#allocation2 + $0x50] sm:$0xff]
    %v90 = vld [vmem:[#allocation2 + $0x58] sm:$0xff]
    %v91 = vld [vmem:[#allocation2 + $0x60] sm:$0xff]
    %v92 = vld [vmem:[#allocation2 + $0x68] sm:$0xff]
    %v93 = vld [vmem:[#allocation2 + $0x70] sm:$0xff]
    %v94 = vld [vmem:[#allocation2 + $0x78] sm:$0xff]
    %v95 = vld [vmem:[#allocation2 + $0x80] sm:$0xff]
    %v96 = vld [vmem:[#allocation2 + $0x88] sm:$0xff]
    %v97 = vld [vmem:[#allocation2 + $0x90] sm:$0xff]
    %v98 = vld [vmem:[#allocation2 + $0x98] sm:$0xff]
    %v99 = vld [vmem:[#allocation8] ss:$8 sm:$0xf]
    %v100 = vld [vmem:[#allocation8] ss:$8 sm:$0x10]
    %v101 = vor.u32 %v99, %v100
    %v103 = vlaneseq
    %v104 = vshrl.u32 %v103, 7
    %v105 = vsub.s32 0, %v104
    %v106 = vrot.slane %v101, %v105
    %v107 = vlaneseq
    %v108 = vshrl.u32 %v107, 7
    %v109 = vsub.s32 1, %v108
    %v110 = vrot.slane %v101, %v109
    %v111 = vlaneseq
    %v112 = vshrl.u32 %v111, 7
    %v113 = vsub.s32 2, %v112
    %v114 = vrot.slane %v101, %v113
    %v115 = vlaneseq
    %v116 = vshrl.u32 %v115, 7
    %v117 = vsub.s32 3, %v116
    %v118 = vrot.slane %v101, %v117
    %v119 = vlaneseq
    %v120 = vshrl.u32 %v119, 7
    %v121 = vsub.s32 4, %v120
    %v122 = vrot.slane %v101, %v121
    %vm128 = vcmask 261120
    %v130 = vsel %vm128, %v78, 0
    %132 = vmatprep.subr.mxu0 0.0
    %133 = vmatpush1.msra.mxu0 0.0
    %134 = vmatprep.subr.mxu0 0.0
    %135 = vmatpush1.msra.mxu0 0.0
    %136 = vmatprep.subr.mxu0 0.0
    %137 = vmatpush1.msra.mxu0 0.0
    %138 = vmatprep.subr.mxu0 0.0
    %139 = vmatpush1.msra.mxu0 0.0
    %140 = vmatprep.subr.mxu0 0.0
    %141 = vmatpush1.msra.mxu0 0.0
    %142 = vmatprep.subr.mxu0 0.0
    %143 = vmatpush1.msra.mxu0 0.0
    %144 = vmatprep.subr.mxu0 0.0
    %145 = vmatpush1.msra.mxu0 0.0
    %146 = vmatprep.subr.mxu0 0.0
    %147 = vmatpush1.msra.mxu0 0.0
    %148 = vmatprep.subr.mxu0 0.0
    %149 = vmatpush1.msra.mxu0 0.0
    %150 = vmatprep.subr.mxu0 0.0
    %151 = vmatpush1.msra.mxu0 0.0
    %152 = vmatprep.subr.mxu0 0.0
    %153 = vmatpush1.msra.mxu0 0.0
    %154 = vmatprep.subr.mxu0 0.0
    %155 = vmatpush1.msra.mxu0 0.0
    %156 = vmatprep.subr.mxu0 %v95
    %157 = vmatpush1.msra.mxu0 %v94
    %158 = vmatprep.subr.mxu0 %v90
    %159 = vmatpush1.msra.mxu0 %v89
    %160 = vmatprep.subr.mxu0 %v85
    %161 = vmatpush1.msra.mxu0 %v84
    %162 = vmatprep.subr.mxu0 %v80
    %163 = vmatpush1.msra.mxu0 %v79
    %164 = vmatprep.subr.mxu0 0.0
    %165 = vmatpush2.msra.mxu0 0.0
    %166 = vmatprep.subr.mxu0 0.0
    %167 = vmatpush2.msra.mxu0 0.0
    %168 = vmatprep.subr.mxu0 0.0
    %169 = vmatpush2.msra.mxu0 0.0
    %170 = vmatprep.subr.mxu0 0.0
    %171 = vmatpush2.msra.mxu0 0.0
    %172 = vmatprep.subr.mxu0 0.0
    %173 = vmatpush2.msra.mxu0 0.0
    %174 = vmatprep.subr.mxu0 0.0
    %175 = vmatpush2.msra.mxu0 0.0
    %176 = vmatprep.subr.mxu0 0.0
    %177 = vmatpush2.msra.mxu0 0.0
    %178 = vmatprep.subr.mxu0 0.0
    %179 = vmatpush2.msra.mxu0 0.0
    %180 = vmatprep.subr.mxu0 0.0
    %181 = vmatpush2.msra.mxu0 0.0
    %182 = vmatprep.subr.mxu0 0.0
    %183 = vmatpush2.msra.mxu0 0.0
    %184 = vmatprep.subr.mxu0 0.0
    %185 = vmatpush2.msra.mxu0 0.0
    %186 = vmatprep.subr.mxu0 0.0
    %187 = vmatpush2.msra.mxu0 0.0
    %188 = vmatprep.subr.mxu0 0.0
    %189 = vmatpush2.msra.mxu0 0.0
    %190 = vmatprep.subr.mxu0 0.0
    %191 = vmatpush2.msra.mxu0 0.0
    %192 = vmatprep.subr.mxu0 0.0
    %193 = vmatpush2.msra.mxu0 0.0
    %194 = vmatprep.subr.mxu0 0.0
    %195 = vmatpush2.msra.mxu0 0.0
    %196 = vmatprep.mubr.f32.mxu0 0.0
    %197 = vmatmul.mubr.f32.gmra.mxu0 %v130
    %v198 = vpop.f32.mrf.mxu0
    %v199 = vadd.f32 %v106, %v198
    %v200 = vpop.f32.mrf.mxu0
    %v201 = vadd.f32 %v110, %v200
    %202 = vdwg.mxu0
    %203 = vmatprep.subr.mxu0 0.0
    %204 = vmatpush1.msra.mxu0 0.0
    %205 = vmatprep.subr.mxu0 0.0
    %206 = vmatpush1.msra.mxu0 0.0
    %207 = vmatprep.subr.mxu0 0.0
    %208 = vmatpush1.msra.mxu0 0.0
    %209 = vmatprep.subr.mxu0 0.0
    %210 = vmatpush1.msra.mxu0 0.0
    %211 = vmatprep.subr.mxu0 0.0
    %212 = vmatpush1.msra.mxu0 0.0
    %213 = vmatprep.subr.mxu0 0.0
    %214 = vmatpush1.msra.mxu0 0.0
    %215 = vmatprep.subr.mxu0 0.0
    %216 = vmatpush1.msra.mxu0 0.0
    %217 = vmatprep.subr.mxu0 0.0
    %218 = vmatpush1.msra.mxu0 0.0
    %219 = vmatprep.subr.mxu0 0.0
    %220 = vmatpush1.msra.mxu0 0.0
    %221 = vmatprep.subr.mxu0 0.0
    %222 = vmatpush1.msra.mxu0 0.0
    %223 = vmatprep.subr.mxu0 0.0
    %224 = vmatpush1.msra.mxu0 0.0
    %225 = vmatprep.subr.mxu0 0.0
    %226 = vmatpush1.msra.mxu0 0.0
    %227 = vmatprep.subr.mxu0 %v97
    %228 = vmatpush1.msra.mxu0 %v96
    %229 = vmatprep.subr.mxu0 %v92
    %230 = vmatpush1.msra.mxu0 %v91
    %231 = vmatprep.subr.mxu0 %v87
    %232 = vmatpush1.msra.mxu0 %v86
    %233 = vmatprep.subr.mxu0 %v82
    %234 = vmatpush1.msra.mxu0 %v81
    %235 = vmatprep.subr.mxu0 0.0
    %236 = vmatpush2.msra.mxu0 0.0
    %237 = vmatprep.subr.mxu0 0.0
    %238 = vmatpush2.msra.mxu0 0.0
    %239 = vmatprep.subr.mxu0 0.0
    %240 = vmatpush2.msra.mxu0 0.0
    %241 = vmatprep.subr.mxu0 0.0
    %242 = vmatpush2.msra.mxu0 0.0
    %243 = vmatprep.subr.mxu0 0.0
    %244 = vmatpush2.msra.mxu0 0.0
    %245 = vmatprep.subr.mxu0 0.0
    %246 = vmatpush2.msra.mxu0 0.0
    %247 = vmatprep.subr.mxu0 0.0
    %248 = vmatpush2.msra.mxu0 0.0
    %249 = vmatprep.subr.mxu0 0.0
    %250 = vmatpush2.msra.mxu0 0.0
    %251 = vmatprep.subr.mxu0 0.0
    %252 = vmatpush2.msra.mxu0 0.0
    %253 = vmatprep.subr.mxu0 0.0
    %254 = vmatpush2.msra.mxu0 0.0
    %255 = vmatprep.subr.mxu0 0.0
    %256 = vmatpush2.msra.mxu0 0.0
    %257 = vmatprep.subr.mxu0 0.0
    %258 = vmatpush2.msra.mxu0 0.0
    %259 = vmatprep.subr.mxu0 0.0
    %260 = vmatpush2.msra.mxu0 0.0
    %261 = vmatprep.subr.mxu0 0.0
    %262 = vmatpush2.msra.mxu0 0.0
    %263 = vmatprep.subr.mxu0 0.0
    %264 = vmatpush2.msra.mxu0 0.0
    %265 = vmatprep.subr.mxu0 0.0
    %266 = vmatpush2.msra.mxu0 0.0
    %267 = vmatprep.mubr.f32.mxu0 0.0
    %268 = vmatmul.mubr.f32.gmra.mxu0 %v130
    %v269 = vpop.f32.mrf.mxu0
    %v270 = vadd.f32 %v114, %v269
    %v271 = vpop.f32.mrf.mxu0
    %v272 = vadd.f32 %v118, %v271
    %273 = vdwg.mxu0
    %274 = vmatprep.subr.mxu0 0.0
    %275 = vmatpush1.msra.mxu0 0.0
    %276 = vmatprep.subr.mxu0 0.0
    %277 = vmatpush1.msra.mxu0 0.0
    %278 = vmatprep.subr.mxu0 0.0
    %279 = vmatpush1.msra.mxu0 0.0
    %280 = vmatprep.subr.mxu0 0.0
    %281 = vmatpush1.msra.mxu0 0.0
    %282 = vmatprep.subr.mxu0 0.0
    %283 = vmatpush1.msra.mxu0 0.0
    %284 = vmatprep.subr.mxu0 0.0
    %285 = vmatpush1.msra.mxu0 0.0
    %286 = vmatprep.subr.mxu0 0.0
    %287 = vmatpush1.msra.mxu0 0.0
    %288 = vmatprep.subr.mxu0 0.0
    %289 = vmatpush1.msra.mxu0 0.0
    %290 = vmatprep.subr.mxu0 0.0
    %291 = vmatpush1.msra.mxu0 0.0
    %292 = vmatprep.subr.mxu0 0.0
    %293 = vmatpush1.msra.mxu0 0.0
    %294 = vmatprep.subr.mxu0 0.0
    %295 = vmatpush1.msra.mxu0 0.0
    %296 = vmatprep.subr.mxu0 0.0
    %297 = vmatpush1.msra.mxu0 0.0
    %298 = vmatprep.subr.mxu0 0.0
    %299 = vmatpush1.msra.mxu0 %v98
    %300 = vmatprep.subr.mxu0 0.0
    %301 = vmatpush1.msra.mxu0 %v93
    %302 = vmatprep.subr.mxu0 0.0
    %303 = vmatpush1.msra.mxu0 %v88
    %304 = vmatprep.subr.mxu0 0.0
    %305 = vmatpush1.msra.mxu0 %v83
    %306 = vmatprep.subr.mxu0 0.0
    %307 = vmatpush2.msra.mxu0 0.0
    %308 = vmatprep.subr.mxu0 0.0
    %309 = vmatpush2.msra.mxu0 0.0
    %310 = vmatprep.subr.mxu0 0.0
    %311 = vmatpush2.msra.mxu0 0.0
    %312 = vmatprep.subr.mxu0 0.0
    %313 = vmatpush2.msra.mxu0 0.0
    %314 = vmatprep.subr.mxu0 0.0
    %315 = vmatpush2.msra.mxu0 0.0
    %316 = vmatprep.subr.mxu0 0.0
    %317 = vmatpush2.msra.mxu0 0.0
    %318 = vmatprep.subr.mxu0 0.0
    %319 = vmatpush2.msra.mxu0 0.0
    %320 = vmatprep.subr.mxu0 0.0
    %321 = vmatpush2.msra.mxu0 0.0
    %322 = vmatprep.subr.mxu0 0.0
    %323 = vmatpush2.msra.mxu0 0.0
    %324 = vmatprep.subr.mxu0 0.0
    %325 = vmatpush2.msra.mxu0 0.0
    %326 = vmatprep.subr.mxu0 0.0
    %327 = vmatpush2.msra.mxu0 0.0
    %328 = vmatprep.subr.mxu0 0.0
    %329 = vmatpush2.msra.mxu0 0.0
    %330 = vmatprep.subr.mxu0 0.0
    %331 = vmatpush2.msra.mxu0 0.0
    %332 = vmatprep.subr.mxu0 0.0
    %333 = vmatpush2.msra.mxu0 0.0
    %334 = vmatprep.subr.mxu0 0.0
    %335 = vmatpush2.msra.mxu0 0.0
    %336 = vmatprep.subr.mxu0 0.0
    %337 = vmatpush2.msra.mxu0 0.0
    %338 = vmatprep.mubr.f32.mxu0 0.0
    %339 = vmatmul.mubr.f32.gmra.mxu0 %v130
    %v340 = vpop.f32.mrf.mxu0
    %v341 = vadd.f32 %v122, %v340
    %v342 = vpop.f32.mrf.mxu0
    %343 = vdwg.mxu0
    %v344 = vmul.f32 %v199, 0.5
    %v345 = vmul.f32 %v201, 0.5
    %v346 = vmul.f32 %v270, 0.5
    %v347 = vmul.f32 %v272, 0.5
    %v348 = vmul.f32 %v341, 0.5
    %v349 = vmul.f32 %v199, 0.70710677
    %v350 = vmul.f32 %v201, 0.70710677
    %v351 = vmul.f32 %v270, 0.70710677
    %v352 = vmul.f32 %v272, 0.70710677
    %v353 = vmul.f32 %v341, 0.70710677
    %vm354 = vcmp.ge.f32.partialorder %v349, 0.0
    %vm355 = vcmp.ge.f32.partialorder %v350, 0.0
    %vm356 = vcmp.ge.f32.partialorder %v351, 0.0
    %vm357 = vcmp.ge.f32.partialorder %v352, 0.0
    %vm358 = vcmp.ge.f32.partialorder %v353, 0.0
    %v359 = vsel %vm354, 1.0, -1.0
    %v360 = vsel %vm355, 1.0, -1.0
    %v361 = vsel %vm356, 1.0, -1.0
    %v362 = vsel %vm357, 1.0, -1.0
    %v363 = vsel %vm358, 1.0, -1.0
    %v364 = vand.u32 2147483647, %v349
    %v365 = vand.u32 2147483647, %v350
    %v366 = vand.u32 2147483647, %v351
    %v367 = vand.u32 2147483647, %v352
    %v368 = vand.u32 2147483647, %v353
    %v369 = vmul.f32 %v364, 0.3275911
    %v370 = vmul.f32 %v365, 0.3275911
    %v371 = vmul.f32 %v366, 0.3275911
    %v372 = vmul.f32 %v367, 0.3275911
    %v373 = vmul.f32 %v368, 0.3275911
    %v374 = vadd.f32 %v369, 1.0
    %v375 = vadd.f32 %v370, 1.0
    %v376 = vadd.f32 %v371, 1.0
    %v377 = vadd.f32 %v372, 1.0
    %v378 = vadd.f32 %v373, 1.0
    %v379 = vrcp.pop %v374
    %v380 = vmul.f32 1.0, %v379
    %v381 = vrcp.pop %v375
    %v382 = vmul.f32 1.0, %v381
    %v383 = vrcp.pop %v376
    %v384 = vmul.f32 1.0, %v383
    %v385 = vrcp.pop %v377
    %v386 = vmul.f32 1.0, %v385
    %v387 = vrcp.pop %v378
    %v388 = vmul.f32 1.0, %v387
    %v389 = vmul.f32 %v380, 1.0614054
    %v390 = vmul.f32 %v382, 1.0614054
    %v391 = vmul.f32 %v384, 1.0614054
    %v392 = vmul.f32 %v386, 1.0614054
    %v393 = vmul.f32 %v388, 1.0614054
    %v394 = vadd.f32 %v389, -1.4531521
    %v395 = vadd.f32 %v390, -1.4531521
    %v396 = vadd.f32 %v391, -1.4531521
    %v397 = vadd.f32 %v392, -1.4531521
    %v398 = vadd.f32 %v393, -1.4531521
    %v399 = vmul.f32 %v380, %v394
    %v400 = vmul.f32 %v382, %v395
    %v401 = vmul.f32 %v384, %v396
    %v402 = vmul.f32 %v386, %v397
    %v403 = vmul.f32 %v388, %v398
    %v404 = vadd.f32 %v399, 1.4214138
    %v405 = vadd.f32 %v400, 1.4214138
    %v406 = vadd.f32 %v401, 1.4214138
    %v407 = vadd.f32 %v402, 1.4214138
    %v408 = vadd.f32 %v403, 1.4214138
    %v409 = vmul.f32 %v380, %v404
    %v410 = vmul.f32 %v382, %v405
    %v411 = vmul.f32 %v384, %v406
    %v412 = vmul.f32 %v386, %v407
    %v413 = vmul.f32 %v388, %v408
    %v414 = vadd.f32 %v409, -0.28449672
    %v415 = vadd.f32 %v410, -0.28449672
    %v416 = vadd.f32 %v411, -0.28449672
    %v417 = vadd.f32 %v412, -0.28449672
    %v418 = vadd.f32 %v413, -0.28449672
    %v419 = vmul.f32 %v380, %v414
    %v420 = vmul.f32 %v382, %v415
    %v421 = vmul.f32 %v384, %v416
    %v422 = vmul.f32 %v386, %v417
    %v423 = vmul.f32 %v388, %v418
    %v424 = vadd.f32 %v419, 0.2548296
    %v425 = vadd.f32 %v420, 0.2548296
    %v426 = vadd.f32 %v421, 0.2548296
    %v427 = vadd.f32 %v422, 0.2548296
    %v428 = vadd.f32 %v423, 0.2548296
    %v429 = vmul.f32 %v380, %v424
    %v430 = vmul.f32 %v382, %v425
    %v431 = vmul.f32 %v384, %v426
    %v432 = vmul.f32 %v386, %v427
    %v433 = vmul.f32 %v388, %v428
    %v434 = vsub.f32 0.0, %v364
    %v435 = vsub.f32 0.0, %v365
    %v436 = vsub.f32 0.0, %v366
    %v437 = vsub.f32 0.0, %v367
    %v438 = vsub.f32 0.0, %v368
    %v439 = vmul.f32 %v434, %v364
    %v440 = vmul.f32 %v435, %v365
    %v441 = vmul.f32 %v436, %v366
    %v442 = vmul.f32 %v437, %v367
    %v443 = vmul.f32 %v438, %v368
    %v444 = vmul.f32 %v439, 1.442695
    %v445 = vpow.pop %v444
    %v446 = vmul.f32 %v440, 1.442695
    %v447 = vpow.pop %v446
    %v448 = vmul.f32 %v441, 1.442695
    %v449 = vpow.pop %v448
    %v450 = vmul.f32 %v442, 1.442695
    %v451 = vpow.pop %v450
    %v452 = vmul.f32 %v443, 1.442695
    %v453 = vpow.pop %v452
    %v454 = vmul.f32 %v429, %v445
    %v455 = vmul.f32 %v430, %v447
    %v456 = vmul.f32 %v431, %v449
    %v457 = vmul.f32 %v432, %v451
    %v458 = vmul.f32 %v433, %v453
    %v459 = vsub.f32 1.0, %v454
    %v460 = vsub.f32 1.0, %v455
    %v461 = vsub.f32 1.0, %v456
    %v462 = vsub.f32 1.0, %v457
    %v463 = vsub.f32 1.0, %v458
    %v464 = vmul.f32 %v359, %v459
    %v465 = vmul.f32 %v360, %v460
    %v466 = vmul.f32 %v361, %v461
    %v467 = vmul.f32 %v362, %v462
    %v468 = vmul.f32 %v363, %v463
    %v469 = vadd.f32 %v464, 1.0
    %v470 = vadd.f32 %v465, 1.0
    %v471 = vadd.f32 %v466, 1.0
    %v472 = vadd.f32 %v467, 1.0
    %v473 = vadd.f32 %v468, 1.0
    %v474 = vmul.f32 %v344, %v469
    %v475 = vmul.f32 %v345, %v470
    %v476 = vmul.f32 %v346, %v471
    %v477 = vmul.f32 %v347, %v472
    %v478 = vmul.f32 %v348, %v473
    %v479 = vpack.c.bf16 %v474, %v474
    %v480 = vpack.c.bf16 %v475, %v475
    %v481 = vpack.c.bf16 %v476, %v476
    %v482 = vpack.c.bf16 %v477, %v477
    %v483 = vpack.c.bf16 %v478, %v478
    %v484 = vld [vmem:[#allocation5] sm:$0xff]
    %v485 = vld [vmem:[#allocation5 + $0x8] sm:$0xff]
    %v486 = vld [vmem:[#allocation5 + $0x10] sm:$0xf]
    %v487 = vld [vmem:[#allocation5 + $0x14] sm:$0xff]
    %v488 = vld [vmem:[#allocation5 + $0x1c] sm:$0xff]
    %v489 = vld [vmem:[#allocation5 + $0x24] sm:$0xf]
    %v490 = vld [vmem:[#allocation5 + $0x28] sm:$0xff]
    %v491 = vld [vmem:[#allocation5 + $0x30] sm:$0xff]
    %v492 = vld [vmem:[#allocation5 + $0x38] sm:$0xf]
    %v493 = vld [vmem:[#allocation5 + $0x3c] sm:$0xff]
    %v494 = vld [vmem:[#allocation5 + $0x44] sm:$0xff]
    %v495 = vld [vmem:[#allocation5 + $0x4c] sm:$0xf]
    %v496 = vld [vmem:[#allocation5 + $0x50] sm:$0xff]
    %v497 = vld [vmem:[#allocation5 + $0x58] sm:$0xff]
    %v498 = vld [vmem:[#allocation5 + $0x60] sm:$0xf]
    %v499 = vld [vmem:[#allocation5 + $0x64] sm:$0xff]
    %v500 = vld [vmem:[#allocation5 + $0x6c] sm:$0xff]
    %v501 = vld [vmem:[#allocation5 + $0x74] sm:$0xf]
    %v502 = vld [vmem:[#allocation5 + $0x78] sm:$0xff]
    %v503 = vld [vmem:[#allocation5 + $0x80] sm:$0xff]
    %v504 = vld [vmem:[#allocation5 + $0x88] sm:$0xf]
    %v505 = vld [vmem:[#allocation5 + $0x8c] sm:$0xff]
    %v506 = vld [vmem:[#allocation5 + $0x94] sm:$0xff]
    %v507 = vld [vmem:[#allocation5 + $0x9c] sm:$0xf]
    %v508 = vld [vmem:[#allocation5 + $0xa0] sm:$0xff]
    %v509 = vld [vmem:[#allocation5 + $0xa8] sm:$0xff]
    %v510 = vld [vmem:[#allocation5 + $0xb0] sm:$0xf]
    %v511 = vld [vmem:[#allocation5 + $0xb4] sm:$0xff]
    %v512 = vld [vmem:[#allocation5 + $0xbc] sm:$0xff]
    %v513 = vld [vmem:[#allocation5 + $0xc4] sm:$0xf]
    %v514 = vld [vmem:[#allocation5 + $0xc8] sm:$0xff]
    %v515 = vld [vmem:[#allocation5 + $0xd0] sm:$0xff]
    %v516 = vld [vmem:[#allocation5 + $0xd8] sm:$0xf]
    %v517 = vld [vmem:[#allocation5 + $0xdc] sm:$0xff]
    %v518 = vld [vmem:[#allocation5 + $0xe4] sm:$0xff]
    %v519 = vld [vmem:[#allocation5 + $0xec] sm:$0xf]
    %v520 = vld [vmem:[#allocation5 + $0xf0] sm:$0xff]
    %v521 = vld [vmem:[#allocation5 + $0xf8] sm:$0xff]
    %v522 = vld [vmem:[#allocation5 + $0x100] sm:$0xf]
    %v523 = vld [vmem:[#allocation5 + $0x104] sm:$0xff]
    %v524 = vld [vmem:[#allocation5 + $0x10c] sm:$0xff]
    %v525 = vld [vmem:[#allocation5 + $0x114] sm:$0xf]
    %v526 = vld [vmem:[#allocation5 + $0x118] sm:$0xff]
    %v527 = vld [vmem:[#allocation5 + $0x120] sm:$0xff]
    %v528 = vld [vmem:[#allocation5 + $0x128] sm:$0xf]
    %v529 = vld [vmem:[#allocation5 + $0x12c] sm:$0xff]
    %v530 = vld [vmem:[#allocation5 + $0x134] sm:$0xff]
    %v531 = vld [vmem:[#allocation5 + $0x13c] sm:$0xf]
    %v532 = vld [vmem:[#allocation5 + $0x140] sm:$0xff]
    %v533 = vld [vmem:[#allocation5 + $0x148] sm:$0xff]
    %v534 = vld [vmem:[#allocation5 + $0x150] sm:$0xf]
    %v535 = vld [vmem:[#allocation5 + $0x154] sm:$0xff]
    %v536 = vld [vmem:[#allocation5 + $0x15c] sm:$0xff]
    %v537 = vld [vmem:[#allocation5 + $0x164] sm:$0xf]
    %v538 = vld [vmem:[#allocation5 + $0x168] sm:$0xff]
    %v539 = vld [vmem:[#allocation5 + $0x170] sm:$0xff]
    %v540 = vld [vmem:[#allocation5 + $0x178] sm:$0xf]
    %v541 = vld [vmem:[#allocation5 + $0x17c] sm:$0xff]
    %v542 = vld [vmem:[#allocation5 + $0x184] sm:$0xff]
    %v543 = vld [vmem:[#allocation5 + $0x18c] sm:$0xf]
    %v544 = vld [vmem:[#allocation5 + $0x190] sm:$0xff]
    %v545 = vld [vmem:[#allocation5 + $0x198] sm:$0xff]
    %v546 = vld [vmem:[#allocation5 + $0x1a0] sm:$0xf]
    %v547 = vld [vmem:[#allocation5 + $0x1a4] sm:$0xff]
    %v548 = vld [vmem:[#allocation5 + $0x1ac] sm:$0xff]
    %v549 = vld [vmem:[#allocation5 + $0x1b4] sm:$0xf]
    %v550 = vld [vmem:[#allocation5 + $0x1b8] sm:$0xff]
    %v551 = vld [vmem:[#allocation5 + $0x1c0] sm:$0xff]
    %v552 = vld [vmem:[#allocation5 + $0x1c8] sm:$0xf]
    %v553 = vld [vmem:[#allocation5 + $0x1cc] sm:$0xff]
    %v554 = vld [vmem:[#allocation5 + $0x1d4] sm:$0xff]
    %v555 = vld [vmem:[#allocation5 + $0x1dc] sm:$0xf]
    %v556 = vld [vmem:[#allocation5 + $0x1e0] sm:$0xff]
    %v557 = vld [vmem:[#allocation5 + $0x1e8] sm:$0xff]
    %v558 = vld [vmem:[#allocation5 + $0x1f0] sm:$0xf]
    %v559 = vld [vmem:[#allocation5 + $0x1f4] sm:$0xff]
    %v560 = vld [vmem:[#allocation5 + $0x1fc] sm:$0xff]
    %v561 = vld [vmem:[#allocation5 + $0x204] sm:$0xf]
    %v562 = vld [vmem:[#allocation5 + $0x208] sm:$0xff]
    %v563 = vld [vmem:[#allocation5 + $0x210] sm:$0xff]
    %v564 = vld [vmem:[#allocation5 + $0x218] sm:$0xf]
    %v565 = vld [vmem:[#allocation5 + $0x21c] sm:$0xff]
    %v566 = vld [vmem:[#allocation5 + $0x224] sm:$0xff]
    %v567 = vld [vmem:[#allocation5 + $0x22c] sm:$0xf]
    %v568 = vld [vmem:[#allocation5 + $0x230] sm:$0xff]
    %v569 = vld [vmem:[#allocation5 + $0x238] sm:$0xff]
    %v570 = vld [vmem:[#allocation5 + $0x240] sm:$0xf]
    %v571 = vld [vmem:[#allocation5 + $0x244] sm:$0xff]
    %v572 = vld [vmem:[#allocation5 + $0x24c] sm:$0xff]
    %v573 = vld [vmem:[#allocation5 + $0x254] sm:$0xf]
    %v574 = vld [vmem:[#allocation5 + $0x258] sm:$0xff]
    %v575 = vld [vmem:[#allocation5 + $0x260] sm:$0xff]
    %v576 = vld [vmem:[#allocation5 + $0x268] sm:$0xf]
    %v577 = vld [vmem:[#allocation5 + $0x26c] sm:$0xff]
    %v578 = vld [vmem:[#allocation5 + $0x274] sm:$0xff]
    %v579 = vld [vmem:[#allocation5 + $0x27c] sm:$0xf]
    %v580 = vld [vmem:[#allocation5 + $0x280] sm:$0xff]
    %v581 = vld [vmem:[#allocation5 + $0x288] sm:$0xff]
    %v582 = vld [vmem:[#allocation5 + $0x290] sm:$0xf]
    %v583 = vld [vmem:[#allocation5 + $0x294] sm:$0xff]
    %v584 = vld [vmem:[#allocation5 + $0x29c] sm:$0xff]
    %v585 = vld [vmem:[#allocation5 + $0x2a4] sm:$0xf]
    %v586 = vld [vmem:[#allocation5 + $0x2a8] sm:$0xff]
    %v587 = vld [vmem:[#allocation5 + $0x2b0] sm:$0xff]
    %v588 = vld [vmem:[#allocation5 + $0x2b8] sm:$0xf]
    %v589 = vld [vmem:[#allocation5 + $0x2bc] sm:$0xff]
    %v590 = vld [vmem:[#allocation5 + $0x2c4] sm:$0xff]
    %v591 = vld [vmem:[#allocation5 + $0x2cc] sm:$0xf]
    %v592 = vld [vmem:[#allocation5 + $0x2d0] sm:$0xff]
    %v593 = vld [vmem:[#allocation5 + $0x2d8] sm:$0xff]
    %v594 = vld [vmem:[#allocation5 + $0x2e0] sm:$0xf]
    %v595 = vld [vmem:[#allocation5 + $0x2e4] sm:$0xff]
    %v596 = vld [vmem:[#allocation5 + $0x2ec] sm:$0xff]
    %v597 = vld [vmem:[#allocation5 + $0x2f4] sm:$0xf]
    %v598 = vld [vmem:[#allocation5 + $0x2f8] sm:$0xff]
    %v599 = vld [vmem:[#allocation5 + $0x300] sm:$0xff]
    %v600 = vld [vmem:[#allocation5 + $0x308] sm:$0xf]
    %v601 = vld [vmem:[#allocation5 + $0x30c] sm:$0xff]
    %v602 = vld [vmem:[#allocation5 + $0x314] sm:$0xff]
    %v603 = vld [vmem:[#allocation5 + $0x31c] sm:$0xf]
    %v604 = vld [vmem:[#allocation5 + $0x320] sm:$0xff]
    %v605 = vld [vmem:[#allocation5 + $0x328] sm:$0xff]
    %v606 = vld [vmem:[#allocation5 + $0x330] sm:$0xf]
    %v607 = vld [vmem:[#allocation5 + $0x334] sm:$0xff]
    %v608 = vld [vmem:[#allocation5 + $0x33c] sm:$0xff]
    %v609 = vld [vmem:[#allocation5 + $0x344] sm:$0xf]
    %v610 = vld [vmem:[#allocation5 + $0x348] sm:$0xff]
    %v611 = vld [vmem:[#allocation5 + $0x350] sm:$0xff]
    %v612 = vld [vmem:[#allocation5 + $0x358] sm:$0xf]
    %v613 = vld [vmem:[#allocation5 + $0x35c] sm:$0xff]
    %v614 = vld [vmem:[#allocation5 + $0x364] sm:$0xff]
    %v615 = vld [vmem:[#allocation5 + $0x36c] sm:$0xf]
    %v616 = vld [vmem:[#allocation5 + $0x370] sm:$0xff]
    %v617 = vld [vmem:[#allocation5 + $0x378] sm:$0xff]
    %v618 = vld [vmem:[#allocation5 + $0x380] sm:$0xf]
    %v619 = vld [vmem:[#allocation5 + $0x384] sm:$0xff]
    %v620 = vld [vmem:[#allocation5 + $0x38c] sm:$0xff]
    %v621 = vld [vmem:[#allocation5 + $0x394] sm:$0xf]
    %v622 = vld [vmem:[#allocation5 + $0x398] sm:$0xff]
    %v623 = vld [vmem:[#allocation5 + $0x3a0] sm:$0xff]
    %v624 = vld [vmem:[#allocation5 + $0x3a8] sm:$0xf]
    %v625 = vld [vmem:[#allocation5 + $0x3ac] sm:$0xff]
    %v626 = vld [vmem:[#allocation5 + $0x3b4] sm:$0xff]
    %v627 = vld [vmem:[#allocation5 + $0x3bc] sm:$0xf]
    %v628 = vld [vmem:[#allocation5 + $0x3c0] sm:$0xff]
    %v629 = vld [vmem:[#allocation5 + $0x3c8] sm:$0xff]
    %v630 = vld [vmem:[#allocation5 + $0x3d0] sm:$0xf]
    %v631 = vld [vmem:[#allocation5 + $0x3d4] sm:$0xff]
    %v632 = vld [vmem:[#allocation5 + $0x3dc] sm:$0xff]
    %v633 = vld [vmem:[#allocation5 + $0x3e4] sm:$0xf]
    %v634 = vld [vmem:[#allocation5 + $0x3e8] sm:$0xff]
    %v635 = vld [vmem:[#allocation5 + $0x3f0] sm:$0xff]
    %v636 = vld [vmem:[#allocation5 + $0x3f8] sm:$0xf]
    %v637 = vld [vmem:[#allocation5 + $0x3fc] sm:$0xff]
    %v638 = vld [vmem:[#allocation5 + $0x404] sm:$0xff]
    %v639 = vld [vmem:[#allocation5 + $0x40c] sm:$0xf]
    %v640 = vld [vmem:[#allocation5 + $0x410] sm:$0xff]
    %v641 = vld [vmem:[#allocation5 + $0x418] sm:$0xff]
    %v642 = vld [vmem:[#allocation5 + $0x420] sm:$0xf]
    %v643 = vld [vmem:[#allocation5 + $0x424] sm:$0xff]
    %v644 = vld [vmem:[#allocation5 + $0x42c] sm:$0xff]
    %v645 = vld [vmem:[#allocation5 + $0x434] sm:$0xf]
    %v646 = vld [vmem:[#allocation5 + $0x438] sm:$0xff]
    %v647 = vld [vmem:[#allocation5 + $0x440] sm:$0xff]
    %v648 = vld [vmem:[#allocation5 + $0x448] sm:$0xf]
    %v649 = vld [vmem:[#allocation5 + $0x44c] sm:$0xff]
    %v650 = vld [vmem:[#allocation5 + $0x454] sm:$0xff]
    %v651 = vld [vmem:[#allocation5 + $0x45c] sm:$0xf]
    %v652 = vld [vmem:[#allocation5 + $0x460] sm:$0xff]
    %v653 = vld [vmem:[#allocation5 + $0x468] sm:$0xff]
    %v654 = vld [vmem:[#allocation5 + $0x470] sm:$0xf]
    %v655 = vld [vmem:[#allocation5 + $0x474] sm:$0xff]
    %v656 = vld [vmem:[#allocation5 + $0x47c] sm:$0xff]
    %v657 = vld [vmem:[#allocation5 + $0x484] sm:$0xf]
    %v658 = vld [vmem:[#allocation5 + $0x488] sm:$0xff]
    %v659 = vld [vmem:[#allocation5 + $0x490] sm:$0xff]
    %v660 = vld [vmem:[#allocation5 + $0x498] sm:$0xf]
    %v661 = vld [vmem:[#allocation5 + $0x49c] sm:$0xff]
    %v662 = vld [vmem:[#allocation5 + $0x4a4] sm:$0xff]
    %v663 = vld [vmem:[#allocation5 + $0x4ac] sm:$0xf]
    %v664 = vld [vmem:[#allocation5 + $0x4b0] sm:$0xff]
    %v665 = vld [vmem:[#allocation5 + $0x4b8] sm:$0xff]
    %v666 = vld [vmem:[#allocation5 + $0x4c0] sm:$0xf]
    %v667 = vld [vmem:[#allocation5 + $0x4c4] sm:$0xff]
    %v668 = vld [vmem:[#allocation5 + $0x4cc] sm:$0xff]
    %v669 = vld [vmem:[#allocation5 + $0x4d4] sm:$0xf]
    %v670 = vld [vmem:[#allocation5 + $0x4d8] sm:$0xff]
    %v671 = vld [vmem:[#allocation5 + $0x4e0] sm:$0xff]
    %v672 = vld [vmem:[#allocation5 + $0x4e8] sm:$0xf]
    %v673 = vld [vmem:[#allocation5 + $0x4ec] sm:$0xff]
    %v674 = vld [vmem:[#allocation5 + $0x4f4] sm:$0xff]
    %v675 = vld [vmem:[#allocation5 + $0x4fc] sm:$0xf]
    %v676 = vld [vmem:[#allocation5 + $0x500] sm:$0xff]
    %v677 = vld [vmem:[#allocation5 + $0x508] sm:$0xff]
    %v678 = vld [vmem:[#allocation5 + $0x510] sm:$0xf]
    %v679 = vld [vmem:[#allocation5 + $0x514] sm:$0xff]
    %v680 = vld [vmem:[#allocation5 + $0x51c] sm:$0xff]
    %v681 = vld [vmem:[#allocation5 + $0x524] sm:$0xf]
    %v682 = vld [vmem:[#allocation5 + $0x528] sm:$0xff]
    %v683 = vld [vmem:[#allocation5 + $0x530] sm:$0xff]
    %v684 = vld [vmem:[#allocation5 + $0x538] sm:$0xf]
    %v685 = vld [vmem:[#allocation5 + $0x53c] sm:$0xff]
    %v686 = vld [vmem:[#allocation5 + $0x544] sm:$0xff]
    %v687 = vld [vmem:[#allocation5 + $0x54c] sm:$0xf]
    %v688 = vld [vmem:[#allocation5 + $0x550] sm:$0xff]
    %v689 = vld [vmem:[#allocation5 + $0x558] sm:$0xff]
    %v690 = vld [vmem:[#allocation5 + $0x560] sm:$0xf]
    %v691 = vld [vmem:[#allocation5 + $0x564] sm:$0xff]
    %v692 = vld [vmem:[#allocation5 + $0x56c] sm:$0xff]
    %v693 = vld [vmem:[#allocation5 + $0x574] sm:$0xf]
    %v694 = vld [vmem:[#allocation5 + $0x578] sm:$0xff]
    %v695 = vld [vmem:[#allocation5 + $0x580] sm:$0xff]
    %v696 = vld [vmem:[#allocation5 + $0x588] sm:$0xf]
    %v697 = vld [vmem:[#allocation5 + $0x58c] sm:$0xff]
    %v698 = vld [vmem:[#allocation5 + $0x594] sm:$0xff]
    %v699 = vld [vmem:[#allocation5 + $0x59c] sm:$0xf]
    %v700 = vld [vmem:[#allocation5 + $0x5a0] sm:$0xff]
    %v701 = vld [vmem:[#allocation5 + $0x5a8] sm:$0xff]
    %v702 = vld [vmem:[#allocation5 + $0x5b0] sm:$0xf]
    %v703 = vld [vmem:[#allocation5 + $0x5b4] sm:$0xff]
    %v704 = vld [vmem:[#allocation5 + $0x5bc] sm:$0xff]
    %v705 = vld [vmem:[#allocation5 + $0x5c4] sm:$0xf]
    %s706 = scalar_lea.vmem [#allocation8], 1
    %v707 = vld [vmem:[%s706] ss:$8 sm:$0xf]
    %v708 = vld [vmem:[%s706] ss:$8 sm:$0x10]
    %v709 = vor.u32 %v707, %v708
    %v711 = vlaneseq
    %v712 = vshrl.u32 %v711, 7
    %v713 = vsub.s32 0, %v712
    %v714 = vrot.slane %v709, %v713
    %v715 = vlaneseq
    %v716 = vshrl.u32 %v715, 7
    %v717 = vsub.s32 1, %v716
    %v718 = vrot.slane %v709, %v717
    %v719 = vlaneseq
    %v720 = vshrl.u32 %v719, 7
    %v721 = vsub.s32 2, %v720
    %v722 = vrot.slane %v709, %v721
    %v723 = vlaneseq
    %v724 = vshrl.u32 %v723, 7
    %v725 = vsub.s32 3, %v724
    %v726 = vrot.slane %v709, %v725
    %v727 = vlaneseq
    %v728 = vshrl.u32 %v727, 7
    %v729 = vsub.s32 4, %v728
    %v730 = vrot.slane %v709, %v729
    %v958 = vunpack.c.l.b16 %v484
    %v959 = vunpack.c.h.b16 %v484
    %v960 = vunpack.c.l.b16 %v485
    %v961 = vunpack.c.h.b16 %v485
    %v962 = vunpack.c.l.b16 %v486
    %v963 = vunpack.c.l.b16 %v487
    %v964 = vunpack.c.h.b16 %v487
    %v965 = vunpack.c.l.b16 %v488
    %v966 = vunpack.c.h.b16 %v488
    %v967 = vunpack.c.l.b16 %v489
    %v968 = vunpack.c.l.b16 %v490
    %v969 = vunpack.c.h.b16 %v490
    %v970 = vunpack.c.l.b16 %v491
    %v971 = vunpack.c.h.b16 %v491
    %v972 = vunpack.c.l.b16 %v492
    %v973 = vunpack.c.l.b16 %v493
    %v974 = vunpack.c.h.b16 %v493
    %v975 = vunpack.c.l.b16 %v494
    %v976 = vunpack.c.h.b16 %v494
    %v977 = vunpack.c.l.b16 %v495
    %v978 = vunpack.c.l.b16 %v496
    %v979 = vunpack.c.h.b16 %v496
    %v980 = vunpack.c.l.b16 %v497
    %v981 = vunpack.c.h.b16 %v497
    %v982 = vunpack.c.l.b16 %v498
    %v983 = vunpack.c.l.b16 %v499
    %v984 = vunpack.c.h.b16 %v499
    %v985 = vunpack.c.l.b16 %v500
    %v986 = vunpack.c.h.b16 %v500
    %v987 = vunpack.c.l.b16 %v501
    %v988 = vunpack.c.l.b16 %v502
    %v989 = vunpack.c.h.b16 %v502
    %v990 = vunpack.c.l.b16 %v503
    %v991 = vunpack.c.h.b16 %v503
    %v992 = vunpack.c.l.b16 %v504
    %v993 = vunpack.c.l.b16 %v505
    %v994 = vunpack.c.h.b16 %v505
    %v995 = vunpack.c.l.b16 %v506
    %v996 = vunpack.c.h.b16 %v506
    %v997 = vunpack.c.l.b16 %v507
    %v998 = vunpack.c.l.b16 %v508
    %v999 = vunpack.c.h.b16 %v508
    %v1000 = vunpack.c.l.b16 %v509
    %v1001 = vunpack.c.h.b16 %v509
    %v1002 = vunpack.c.l.b16 %v510
    %v1003 = vunpack.c.l.b16 %v511
    %v1004 = vunpack.c.h.b16 %v511
    %v1005 = vunpack.c.l.b16 %v512
    %v1006 = vunpack.c.h.b16 %v512
    %v1007 = vunpack.c.l.b16 %v513
    %v1008 = vunpack.c.l.b16 %v514
    %v1009 = vunpack.c.h.b16 %v514
    %v1010 = vunpack.c.l.b16 %v515
    %v1011 = vunpack.c.h.b16 %v515
    %v1012 = vunpack.c.l.b16 %v516
    %v1013 = vunpack.c.l.b16 %v517
    %v1014 = vunpack.c.h.b16 %v517
    %v1015 = vunpack.c.l.b16 %v518
    %v1016 = vunpack.c.h.b16 %v518
    %v1017 = vunpack.c.l.b16 %v519
    %v1018 = vunpack.c.l.b16 %v520
    %v1019 = vunpack.c.h.b16 %v520
    %v1020 = vunpack.c.l.b16 %v521
    %v1021 = vunpack.c.h.b16 %v521
    %v1022 = vunpack.c.l.b16 %v522
    %v1023 = vunpack.c.l.b16 %v523
    %v1024 = vunpack.c.h.b16 %v523
    %v1025 = vunpack.c.l.b16 %v524
    %v1026 = vunpack.c.h.b16 %v524
    %v1027 = vunpack.c.l.b16 %v525
    %v1028 = vunpack.c.l.b16 %v526
    %v1029 = vunpack.c.h.b16 %v526
    %v1030 = vunpack.c.l.b16 %v527
    %v1031 = vunpack.c.h.b16 %v527
    %v1032 = vunpack.c.l.b16 %v528
    %v1033 = vunpack.c.l.b16 %v529
    %v1034 = vunpack.c.h.b16 %v529
    %v1035 = vunpack.c.l.b16 %v530
    %v1036 = vunpack.c.h.b16 %v530
    %v1037 = vunpack.c.l.b16 %v531
    %v1038 = vunpack.c.l.b16 %v532
    %v1039 = vunpack.c.h.b16 %v532
    %v1040 = vunpack.c.l.b16 %v533
    %v1041 = vunpack.c.h.b16 %v533
    %v1042 = vunpack.c.l.b16 %v534
    %v1043 = vunpack.c.l.b16 %v535
    %v1044 = vunpack.c.h.b16 %v535
    %v1045 = vunpack.c.l.b16 %v536
    %v1046 = vunpack.c.h.b16 %v536
    %v1047 = vunpack.c.l.b16 %v537
    %v1048 = vunpack.c.l.b16 %v538
    %v1049 = vunpack.c.h.b16 %v538
    %v1050 = vunpack.c.l.b16 %v539
    %v1051 = vunpack.c.h.b16 %v539
    %v1052 = vunpack.c.l.b16 %v540
    %v1053 = vunpack.c.l.b16 %v541
    %v1054 = vunpack.c.h.b16 %v541
    %v1055 = vunpack.c.l.b16 %v542
    %v1056 = vunpack.c.h.b16 %v542
    %v1057 = vunpack.c.l.b16 %v543
    %v1058 = vunpack.c.l.b16 %v544
    %v1059 = vunpack.c.h.b16 %v544
    %v1060 = vunpack.c.l.b16 %v545
    %v1061 = vunpack.c.h.b16 %v545
    %v1062 = vunpack.c.l.b16 %v546
    %v1063 = vunpack.c.l.b16 %v547
    %v1064 = vunpack.c.h.b16 %v547
    %v1065 = vunpack.c.l.b16 %v548
    %v1066 = vunpack.c.h.b16 %v548
    %v1067 = vunpack.c.l.b16 %v549
    %v1068 = vunpack.c.l.b16 %v550
    %v1069 = vunpack.c.h.b16 %v550
    %v1070 = vunpack.c.l.b16 %v551
    %v1071 = vunpack.c.h.b16 %v551
    %v1072 = vunpack.c.l.b16 %v552
    %v1073 = vunpack.c.l.b16 %v553
    %v1074 = vunpack.c.h.b16 %v553
    %v1075 = vunpack.c.l.b16 %v554
    %v1076 = vunpack.c.h.b16 %v554
    %v1077 = vunpack.c.l.b16 %v555
    %v1078 = vunpack.c.l.b16 %v556
    %v1079 = vunpack.c.h.b16 %v556
    %v1080 = vunpack.c.l.b16 %v557
    %v1081 = vunpack.c.h.b16 %v557
    %v1082 = vunpack.c.l.b16 %v558
    %v1083 = vunpack.c.l.b16 %v559
    %v1084 = vunpack.c.h.b16 %v559
    %v1085 = vunpack.c.l.b16 %v560
    %v1086 = vunpack.c.h.b16 %v560
    %v1087 = vunpack.c.l.b16 %v561
    %v1088 = vunpack.c.l.b16 %v562
    %v1089 = vunpack.c.h.b16 %v562
    %v1090 = vunpack.c.l.b16 %v563
    %v1091 = vunpack.c.h.b16 %v563
    %v1092 = vunpack.c.l.b16 %v564
    %v1093 = vunpack.c.l.b16 %v565
    %v1094 = vunpack.c.h.b16 %v565
    %v1095 = vunpack.c.l.b16 %v566
    %v1096 = vunpack.c.h.b16 %v566
    %v1097 = vunpack.c.l.b16 %v567
    %v1098 = vunpack.c.l.b16 %v568
    %v1099 = vunpack.c.h.b16 %v568
    %v1100 = vunpack.c.l.b16 %v569
    %v1101 = vunpack.c.h.b16 %v569
    %v1102 = vunpack.c.l.b16 %v570
    %v1103 = vunpack.c.l.b16 %v571
    %v1104 = vunpack.c.h.b16 %v571
    %v1105 = vunpack.c.l.b16 %v572
    %v1106 = vunpack.c.h.b16 %v572
    %v1107 = vunpack.c.l.b16 %v573
    %v1108 = vunpack.c.l.b16 %v574
    %v1109 = vunpack.c.h.b16 %v574
    %v1110 = vunpack.c.l.b16 %v575
    %v1111 = vunpack.c.h.b16 %v575
    %v1112 = vunpack.c.l.b16 %v576
    %v1113 = vunpack.c.l.b16 %v577
    %v1114 = vunpack.c.h.b16 %v577
    %v1115 = vunpack.c.l.b16 %v578
    %v1116 = vunpack.c.h.b16 %v578
    %v1117 = vunpack.c.l.b16 %v579
    %v1118 = vunpack.c.l.b16 %v580
    %v1119 = vunpack.c.h.b16 %v580
    %v1120 = vunpack.c.l.b16 %v581
    %v1121 = vunpack.c.h.b16 %v581
    %v1122 = vunpack.c.l.b16 %v582
    %v1123 = vunpack.c.l.b16 %v583
    %v1124 = vunpack.c.h.b16 %v583
    %v1125 = vunpack.c.l.b16 %v584
    %v1126 = vunpack.c.h.b16 %v584
    %v1127 = vunpack.c.l.b16 %v585
    %v1128 = vunpack.c.l.b16 %v586
    %v1129 = vunpack.c.h.b16 %v586
    %v1130 = vunpack.c.l.b16 %v587
    %v1131 = vunpack.c.h.b16 %v587
    %v1132 = vunpack.c.l.b16 %v588
    %v1133 = vunpack.c.l.b16 %v589
    %v1134 = vunpack.c.h.b16 %v589
    %v1135 = vunpack.c.l.b16 %v590
    %v1136 = vunpack.c.h.b16 %v590
    %v1137 = vunpack.c.l.b16 %v591
    %v1138 = vunpack.c.l.b16 %v592
    %v1139 = vunpack.c.h.b16 %v592
    %v1140 = vunpack.c.l.b16 %v593
    %v1141 = vunpack.c.h.b16 %v593
    %v1142 = vunpack.c.l.b16 %v594
    %v1143 = vunpack.c.l.b16 %v595
    %v1144 = vunpack.c.h.b16 %v595
    %v1145 = vunpack.c.l.b16 %v596
    %v1146 = vunpack.c.h.b16 %v596
    %v1147 = vunpack.c.l.b16 %v597
    %v1148 = vunpack.c.l.b16 %v598
    %v1149 = vunpack.c.h.b16 %v598
    %v1150 = vunpack.c.l.b16 %v599
    %v1151 = vunpack.c.h.b16 %v599
    %v1152 = vunpack.c.l.b16 %v600
    %v1153 = vunpack.c.l.b16 %v601
    %v1154 = vunpack.c.h.b16 %v601
    %v1155 = vunpack.c.l.b16 %v602
    %v1156 = vunpack.c.h.b16 %v602
    %v1157 = vunpack.c.l.b16 %v603
    %v1158 = vunpack.c.l.b16 %v604
    %v1159 = vunpack.c.h.b16 %v604
    %v1160 = vunpack.c.l.b16 %v605
    %v1161 = vunpack.c.h.b16 %v605
    %v1162 = vunpack.c.l.b16 %v606
    %v1163 = vunpack.c.l.b16 %v607
    %v1164 = vunpack.c.h.b16 %v607
    %v1165 = vunpack.c.l.b16 %v608
    %v1166 = vunpack.c.h.b16 %v608
    %v1167 = vunpack.c.l.b16 %v609
    %v1168 = vunpack.c.l.b16 %v610
    %v1169 = vunpack.c.h.b16 %v610
    %v1170 = vunpack.c.l.b16 %v611
    %v1171 = vunpack.c.h.b16 %v611
    %v1172 = vunpack.c.l.b16 %v612
    %v1173 = vunpack.c.l.b16 %v613
    %v1174 = vunpack.c.h.b16 %v613
    %v1175 = vunpack.c.l.b16 %v614
    %v1176 = vunpack.c.h.b16 %v614
    %v1177 = vunpack.c.l.b16 %v615
    %v1178 = vunpack.c.l.b16 %v616
    %v1179 = vunpack.c.h.b16 %v616
    %v1180 = vunpack.c.l.b16 %v617
    %v1181 = vunpack.c.h.b16 %v617
    %v1182 = vunpack.c.l.b16 %v618
    %v1183 = vunpack.c.l.b16 %v619
    %v1184 = vunpack.c.h.b16 %v619
    %v1185 = vunpack.c.l.b16 %v620
    %v1186 = vunpack.c.h.b16 %v620
    %v1187 = vunpack.c.l.b16 %v621
    %v1188 = vunpack.c.l.b16 %v622
    %v1189 = vunpack.c.h.b16 %v622
    %v1190 = vunpack.c.l.b16 %v623
    %v1191 = vunpack.c.h.b16 %v623
    %v1192 = vunpack.c.l.b16 %v624
    %v1193 = vunpack.c.l.b16 %v625
    %v1194 = vunpack.c.h.b16 %v625
    %v1195 = vunpack.c.l.b16 %v626
    %v1196 = vunpack.c.h.b16 %v626
    %v1197 = vunpack.c.l.b16 %v627
    %v1198 = vunpack.c.l.b16 %v628
    %v1199 = vunpack.c.h.b16 %v628
    %v1200 = vunpack.c.l.b16 %v629
    %v1201 = vunpack.c.h.b16 %v629
    %v1202 = vunpack.c.l.b16 %v630
    %v1203 = vunpack.c.l.b16 %v631
    %v1204 = vunpack.c.h.b16 %v631
    %v1205 = vunpack.c.l.b16 %v632
    %v1206 = vunpack.c.h.b16 %v632
    %v1207 = vunpack.c.l.b16 %v633
    %v1208 = vunpack.c.l.b16 %v634
    %v1209 = vunpack.c.h.b16 %v634
    %v1210 = vunpack.c.l.b16 %v635
    %v1211 = vunpack.c.h.b16 %v635
    %v1212 = vunpack.c.l.b16 %v636
    %v1213 = vunpack.c.l.b16 %v637
    %v1214 = vunpack.c.h.b16 %v637
    %v1215 = vunpack.c.l.b16 %v638
    %v1216 = vunpack.c.h.b16 %v638
    %v1217 = vunpack.c.l.b16 %v639
    %v1218 = vunpack.c.l.b16 %v640
    %v1219 = vunpack.c.h.b16 %v640
    %v1220 = vunpack.c.l.b16 %v641
    %v1221 = vunpack.c.h.b16 %v641
    %v1222 = vunpack.c.l.b16 %v642
    %v1223 = vunpack.c.l.b16 %v643
    %v1224 = vunpack.c.h.b16 %v643
    %v1225 = vunpack.c.l.b16 %v644
    %v1226 = vunpack.c.h.b16 %v644
    %v1227 = vunpack.c.l.b16 %v645
    %v1228 = vunpack.c.l.b16 %v646
    %v1229 = vunpack.c.h.b16 %v646
    %v1230 = vunpack.c.l.b16 %v647
    %v1231 = vunpack.c.h.b16 %v647
    %v1232 = vunpack.c.l.b16 %v648
    %v1233 = vunpack.c.l.b16 %v649
    %v1234 = vunpack.c.h.b16 %v649
    %v1235 = vunpack.c.l.b16 %v650
    %v1236 = vunpack.c.h.b16 %v650
    %v1237 = vunpack.c.l.b16 %v651
    %v1238 = vunpack.c.l.b16 %v652
    %v1239 = vunpack.c.h.b16 %v652
    %v1240 = vunpack.c.l.b16 %v653
    %v1241 = vunpack.c.h.b16 %v653
    %v1242 = vunpack.c.l.b16 %v654
    %v1243 = vunpack.c.l.b16 %v655
    %v1244 = vunpack.c.h.b16 %v655
    %v1245 = vunpack.c.l.b16 %v656
    %v1246 = vunpack.c.h.b16 %v656
    %v1247 = vunpack.c.l.b16 %v657
    %v1248 = vunpack.c.l.b16 %v658
    %v1249 = vunpack.c.h.b16 %v658
    %v1250 = vunpack.c.l.b16 %v659
    %v1251 = vunpack.c.h.b16 %v659
    %v1252 = vunpack.c.l.b16 %v660
    %v1253 = vunpack.c.l.b16 %v661
    %v1254 = vunpack.c.h.b16 %v661
    %v1255 = vunpack.c.l.b16 %v662
    %v1256 = vunpack.c.h.b16 %v662
    %v1257 = vunpack.c.l.b16 %v663
    %v1258 = vunpack.c.l.b16 %v664
    %v1259 = vunpack.c.h.b16 %v664
    %v1260 = vunpack.c.l.b16 %v665
    %v1261 = vunpack.c.h.b16 %v665
    %v1262 = vunpack.c.l.b16 %v666
    %v1263 = vunpack.c.l.b16 %v667
    %v1264 = vunpack.c.h.b16 %v667
    %v1265 = vunpack.c.l.b16 %v668
    %v1266 = vunpack.c.h.b16 %v668
    %v1267 = vunpack.c.l.b16 %v669
    %v1268 = vunpack.c.l.b16 %v670
    %v1269 = vunpack.c.h.b16 %v670
    %v1270 = vunpack.c.l.b16 %v671
    %v1271 = vunpack.c.h.b16 %v671
    %v1272 = vunpack.c.l.b16 %v672
    %v1273 = vunpack.c.l.b16 %v673
    %v1274 = vunpack.c.h.b16 %v673
    %v1275 = vunpack.c.l.b16 %v674
    %v1276 = vunpack.c.h.b16 %v674
    %v1277 = vunpack.c.l.b16 %v675
    %v1278 = vunpack.c.l.b16 %v676
    %v1279 = vunpack.c.h.b16 %v676
    %v1280 = vunpack.c.l.b16 %v677
    %v1281 = vunpack.c.h.b16 %v677
    %v1282 = vunpack.c.l.b16 %v678
    %v1283 = vunpack.c.l.b16 %v679
    %v1284 = vunpack.c.h.b16 %v679
    %v1285 = vunpack.c.l.b16 %v680
    %v1286 = vunpack.c.h.b16 %v680
    %v1287 = vunpack.c.l.b16 %v681
    %v1288 = vunpack.c.l.b16 %v682
    %v1289 = vunpack.c.h.b16 %v682
    %v1290 = vunpack.c.l.b16 %v683
    %v1291 = vunpack.c.h.b16 %v683
    %v1292 = vunpack.c.l.b16 %v684
    %v1293 = vunpack.c.l.b16 %v685
    %v1294 = vunpack.c.h.b16 %v685
    %v1295 = vunpack.c.l.b16 %v686
    %v1296 = vunpack.c.h.b16 %v686
    %v1297 = vunpack.c.l.b16 %v687
    %v1298 = vunpack.c.l.b16 %v688
    %v1299 = vunpack.c.h.b16 %v688
    %v1300 = vunpack.c.l.b16 %v689
    %v1301 = vunpack.c.h.b16 %v689
    %v1302 = vunpack.c.l.b16 %v690
    %v1303 = vunpack.c.l.b16 %v691
    %v1304 = vunpack.c.h.b16 %v691
    %v1305 = vunpack.c.l.b16 %v692
    %v1306 = vunpack.c.h.b16 %v692
    %v1307 = vunpack.c.l.b16 %v693
    %v1308 = vunpack.c.l.b16 %v694
    %v1309 = vunpack.c.h.b16 %v694
    %v1310 = vunpack.c.l.b16 %v695
    %v1311 = vunpack.c.h.b16 %v695
    %v1312 = vunpack.c.l.b16 %v696
    %v1313 = vunpack.c.l.b16 %v697
    %v1314 = vunpack.c.h.b16 %v697
    %v1315 = vunpack.c.l.b16 %v698
    %v1316 = vunpack.c.h.b16 %v698
    %v1317 = vunpack.c.l.b16 %v699
    %v1318 = vunpack.c.l.b16 %v700
    %v1319 = vunpack.c.h.b16 %v700
    %v1320 = vunpack.c.l.b16 %v701
    %v1321 = vunpack.c.h.b16 %v701
    %v1322 = vunpack.c.l.b16 %v702
    %v1323 = vunpack.c.l.b16 %v703
    %v1324 = vunpack.c.h.b16 %v703
    %v1325 = vunpack.c.l.b16 %v704
    %v1326 = vunpack.c.h.b16 %v704
    %v1327 = vunpack.c.l.b16 %v705
    %v1328 = vpack.c.b16 %v963, %v958
    %v1329 = vpack.c.b16 %v964, %v959
    %v1330 = vpack.c.b16 %v965, %v960
    %v1331 = vpack.c.b16 %v966, %v961
    %v1332 = vpack.c.b16 %v967, %v962
    %v1333 = vpack.c.b16 %v973, %v968
    %v1334 = vpack.c.b16 %v974, %v969
    %v1335 = vpack.c.b16 %v975, %v970
    %v1336 = vpack.c.b16 %v976, %v971
    %v1337 = vpack.c.b16 %v977, %v972
    %v1338 = vpack.c.b16 %v983, %v978
    %v1339 = vpack.c.b16 %v984, %v979
    %v1340 = vpack.c.b16 %v985, %v980
    %v1341 = vpack.c.b16 %v986, %v981
    %v1342 = vpack.c.b16 %v987, %v982
    %v1343 = vpack.c.b16 %v993, %v988
    %v1344 = vpack.c.b16 %v994, %v989
    %v1345 = vpack.c.b16 %v995, %v990
    %v1346 = vpack.c.b16 %v996, %v991
    %v1347 = vpack.c.b16 %v997, %v992
    %v1348 = vpack.c.b16 %v1003, %v998
    %v1349 = vpack.c.b16 %v1004, %v999
    %v1350 = vpack.c.b16 %v1005, %v1000
    %v1351 = vpack.c.b16 %v1006, %v1001
    %v1352 = vpack.c.b16 %v1007, %v1002
    %v1353 = vpack.c.b16 %v1013, %v1008
    %v1354 = vpack.c.b16 %v1014, %v1009
    %v1355 = vpack.c.b16 %v1015, %v1010
    %v1356 = vpack.c.b16 %v1016, %v1011
    %v1357 = vpack.c.b16 %v1017, %v1012
    %v1358 = vpack.c.b16 %v1023, %v1018
    %v1359 = vpack.c.b16 %v1024, %v1019
    %v1360 = vpack.c.b16 %v1025, %v1020
    %v1361 = vpack.c.b16 %v1026, %v1021
    %v1362 = vpack.c.b16 %v1027, %v1022
    %v1363 = vpack.c.b16 %v1033, %v1028
    %v1364 = vpack.c.b16 %v1034, %v1029
    %v1365 = vpack.c.b16 %v1035, %v1030
    %v1366 = vpack.c.b16 %v1036, %v1031
    %v1367 = vpack.c.b16 %v1037, %v1032
    %v1368 = vpack.c.b16 %v1043, %v1038
    %v1369 = vpack.c.b16 %v1044, %v1039
    %v1370 = vpack.c.b16 %v1045, %v1040
    %v1371 = vpack.c.b16 %v1046, %v1041
    %v1372 = vpack.c.b16 %v1047, %v1042
    %v1373 = vpack.c.b16 %v1053, %v1048
    %v1374 = vpack.c.b16 %v1054, %v1049
    %v1375 = vpack.c.b16 %v1055, %v1050
    %v1376 = vpack.c.b16 %v1056, %v1051
    %v1377 = vpack.c.b16 %v1057, %v1052
    %v1378 = vpack.c.b16 %v1063, %v1058
    %v1379 = vpack.c.b16 %v1064, %v1059
    %v1380 = vpack.c.b16 %v1065, %v1060
    %v1381 = vpack.c.b16 %v1066, %v1061
    %v1382 = vpack.c.b16 %v1067, %v1062
    %v1383 = vpack.c.b16 %v1073, %v1068
    %v1384 = vpack.c.b16 %v1074, %v1069
    %v1385 = vpack.c.b16 %v1075, %v1070
    %v1386 = vpack.c.b16 %v1076, %v1071
    %v1387 = vpack.c.b16 %v1077, %v1072
    %v1388 = vpack.c.b16 %v1083, %v1078
    %v1389 = vpack.c.b16 %v1084, %v1079
    %v1390 = vpack.c.b16 %v1085, %v1080
    %v1391 = vpack.c.b16 %v1086, %v1081
    %v1392 = vpack.c.b16 %v1087, %v1082
    %v1393 = vpack.c.b16 %v1093, %v1088
    %v1394 = vpack.c.b16 %v1094, %v1089
    %v1395 = vpack.c.b16 %v1095, %v1090
    %v1396 = vpack.c.b16 %v1096, %v1091
    %v1397 = vpack.c.b16 %v1097, %v1092
    %v1398 = vpack.c.b16 %v1103, %v1098
    %v1399 = vpack.c.b16 %v1104, %v1099
    %v1400 = vpack.c.b16 %v1105, %v1100
    %v1401 = vpack.c.b16 %v1106, %v1101
    %v1402 = vpack.c.b16 %v1107, %v1102
    %v1403 = vpack.c.b16 %v1113, %v1108
    %v1404 = vpack.c.b16 %v1114, %v1109
    %v1405 = vpack.c.b16 %v1115, %v1110
    %v1406 = vpack.c.b16 %v1116, %v1111
    %v1407 = vpack.c.b16 %v1117, %v1112
    %v1408 = vpack.c.b16 %v1123, %v1118
    %v1409 = vpack.c.b16 %v1124, %v1119
    %v1410 = vpack.c.b16 %v1125, %v1120
    %v1411 = vpack.c.b16 %v1126, %v1121
    %v1412 = vpack.c.b16 %v1127, %v1122
    %v1413 = vpack.c.b16 %v1133, %v1128
    %v1414 = vpack.c.b16 %v1134, %v1129
    %v1415 = vpack.c.b16 %v1135, %v1130
    %v1416 = vpack.c.b16 %v1136, %v1131
    %v1417 = vpack.c.b16 %v1137, %v1132
    %v1418 = vpack.c.b16 %v1143, %v1138
    %v1419 = vpack.c.b16 %v1144, %v1139
    %v1420 = vpack.c.b16 %v1145, %v1140
    %v1421 = vpack.c.b16 %v1146, %v1141
    %v1422 = vpack.c.b16 %v1147, %v1142
    %v1423 = vpack.c.b16 %v1153, %v1148
    %v1424 = vpack.c.b16 %v1154, %v1149
    %v1425 = vpack.c.b16 %v1155, %v1150
    %v1426 = vpack.c.b16 %v1156, %v1151
    %v1427 = vpack.c.b16 %v1157, %v1152
    %v1428 = vpack.c.b16 %v1163, %v1158
    %v1429 = vpack.c.b16 %v1164, %v1159
    %v1430 = vpack.c.b16 %v1165, %v1160
    %v1431 = vpack.c.b16 %v1166, %v1161
    %v1432 = vpack.c.b16 %v1167, %v1162
    %v1433 = vpack.c.b16 %v1173, %v1168
    %v1434 = vpack.c.b16 %v1174, %v1169
    %v1435 = vpack.c.b16 %v1175, %v1170
    %v1436 = vpack.c.b16 %v1176, %v1171
    %v1437 = vpack.c.b16 %v1177, %v1172
    %v1438 = vpack.c.b16 %v1183, %v1178
    %v1439 = vpack.c.b16 %v1184, %v1179
    %v1440 = vpack.c.b16 %v1185, %v1180
    %v1441 = vpack.c.b16 %v1186, %v1181
    %v1442 = vpack.c.b16 %v1187, %v1182
    %v1443 = vpack.c.b16 %v1193, %v1188
    %v1444 = vpack.c.b16 %v1194, %v1189
    %v1445 = vpack.c.b16 %v1195, %v1190
    %v1446 = vpack.c.b16 %v1196, %v1191
    %v1447 = vpack.c.b16 %v1197, %v1192
    %v1448 = vpack.c.b16 %v1203, %v1198
    %v1449 = vpack.c.b16 %v1204, %v1199
    %v1450 = vpack.c.b16 %v1205, %v1200
    %v1451 = vpack.c.b16 %v1206, %v1201
    %v1452 = vpack.c.b16 %v1207, %v1202
    %v1453 = vpack.c.b16 %v1213, %v1208
    %v1454 = vpack.c.b16 %v1214, %v1209
    %v1455 = vpack.c.b16 %v1215, %v1210
    %v1456 = vpack.c.b16 %v1216, %v1211
    %v1457 = vpack.c.b16 %v1217, %v1212
    %v1458 = vpack.c.b16 %v1223, %v1218
    %v1459 = vpack.c.b16 %v1224, %v1219
    %v1460 = vpack.c.b16 %v1225, %v1220
    %v1461 = vpack.c.b16 %v1226, %v1221
    %v1462 = vpack.c.b16 %v1227, %v1222
    %v1463 = vpack.c.b16 %v1233, %v1228
    %v1464 = vpack.c.b16 %v1234, %v1229
    %v1465 = vpack.c.b16 %v1235, %v1230
    %v1466 = vpack.c.b16 %v1236, %v1231
    %v1467 = vpack.c.b16 %v1237, %v1232
    %v1468 = vpack.c.b16 %v1243, %v1238
    %v1469 = vpack.c.b16 %v1244, %v1239
    %v1470 = vpack.c.b16 %v1245, %v1240
    %v1471 = vpack.c.b16 %v1246, %v1241
    %v1472 = vpack.c.b16 %v1247, %v1242
    %v1473 = vpack.c.b16 %v1253, %v1248
    %v1474 = vpack.c.b16 %v1254, %v1249
    %v1475 = vpack.c.b16 %v1255, %v1250
    %v1476 = vpack.c.b16 %v1256, %v1251
    %v1477 = vpack.c.b16 %v1257, %v1252
    %v1478 = vpack.c.b16 %v1263, %v1258
    %v1479 = vpack.c.b16 %v1264, %v1259
    %v1480 = vpack.c.b16 %v1265, %v1260
    %v1481 = vpack.c.b16 %v1266, %v1261
    %v1482 = vpack.c.b16 %v1267, %v1262
    %v1483 = vpack.c.b16 %v1273, %v1268
    %v1484 = vpack.c.b16 %v1274, %v1269
    %v1485 = vpack.c.b16 %v1275, %v1270
    %v1486 = vpack.c.b16 %v1276, %v1271
    %v1487 = vpack.c.b16 %v1277, %v1272
    %v1488 = vpack.c.b16 %v1283, %v1278
    %v1489 = vpack.c.b16 %v1284, %v1279
    %v1490 = vpack.c.b16 %v1285, %v1280
    %v1491 = vpack.c.b16 %v1286, %v1281
    %v1492 = vpack.c.b16 %v1287, %v1282
    %v1493 = vpack.c.b16 %v1293, %v1288
    %v1494 = vpack.c.b16 %v1294, %v1289
    %v1495 = vpack.c.b16 %v1295, %v1290
    %v1496 = vpack.c.b16 %v1296, %v1291
    %v1497 = vpack.c.b16 %v1297, %v1292
    %v1498 = vpack.c.b16 %v1303, %v1298
    %v1499 = vpack.c.b16 %v1304, %v1299
    %v1500 = vpack.c.b16 %v1305, %v1300
    %v1501 = vpack.c.b16 %v1306, %v1301
    %v1502 = vpack.c.b16 %v1307, %v1302
    %v1503 = vpack.c.b16 %v1313, %v1308
    %v1504 = vpack.c.b16 %v1314, %v1309
    %v1505 = vpack.c.b16 %v1315, %v1310
    %v1506 = vpack.c.b16 %v1316, %v1311
    %v1507 = vpack.c.b16 %v1317, %v1312
    %v1508 = vpack.c.b16 %v1323, %v1318
    %v1509 = vpack.c.b16 %v1324, %v1319
    %v1510 = vpack.c.b16 %v1325, %v1320
    %v1511 = vpack.c.b16 %v1326, %v1321
    %v1512 = vpack.c.b16 %v1327, %v1322
    %vm1698 = vcmask 654336
    %v1700 = vsel %vm1698, %v483, 0
    %1702 = vmatprep.subr.bf16.mxu0 %v1364
    %1703 = vmatpush1.bf16.msra.mxu0 %v1363
    %1704 = vmatprep.subr.bf16.mxu0 %v1359
    %1705 = vmatpush1.bf16.msra.mxu0 %v1358
    %1706 = vmatprep.subr.bf16.mxu0 %v1354
    %1707 = vmatpush1.bf16.msra.mxu0 %v1353
    %1708 = vmatprep.subr.bf16.mxu0 %v1349
    %1709 = vmatpush1.bf16.msra.mxu0 %v1348
    %1710 = vmatprep.subr.bf16.mxu0 %v1344
    %1711 = vmatpush1.bf16.msra.mxu0 %v1343
    %1712 = vmatprep.subr.bf16.mxu0 %v1339
    %1713 = vmatpush1.bf16.msra.mxu0 %v1338
    %1714 = vmatprep.subr.bf16.mxu0 %v1334
    %1715 = vmatpush1.bf16.msra.mxu0 %v1333
    %1716 = vmatprep.subr.bf16.mxu0 %v1329
    %1717 = vmatpush1.bf16.msra.mxu0 %v1328
    %1718 = vmatprep.subr.bf16.mxu0 %v1404
    %1719 = vmatpush2.bf16.msra.mxu0 %v1403
    %1720 = vmatprep.subr.bf16.mxu0 %v1399
    %1721 = vmatpush2.bf16.msra.mxu0 %v1398
    %1722 = vmatprep.subr.bf16.mxu0 %v1394
    %1723 = vmatpush2.bf16.msra.mxu0 %v1393
    %1724 = vmatprep.subr.bf16.mxu0 %v1389
    %1725 = vmatpush2.bf16.msra.mxu0 %v1388
    %1726 = vmatprep.subr.bf16.mxu0 %v1384
    %1727 = vmatpush2.bf16.msra.mxu0 %v1383
    %1728 = vmatprep.subr.bf16.mxu0 %v1379
    %1729 = vmatpush2.bf16.msra.mxu0 %v1378
    %1730 = vmatprep.subr.bf16.mxu0 %v1374
    %1731 = vmatpush2.bf16.msra.mxu0 %v1373
    %1732 = vmatprep.subr.bf16.mxu0 %v1369
    %1733 = vmatpush2.bf16.msra.mxu0 %v1368
    %1734 = vmatprep.mubr.bf16.mxu0 %v480
    %1735 = vmatmul.mubr.bf16.gmra.mxu0 %v479
    %v1736 = vpop.f32.mrf.mxu0
    %v1737 = vadd.f32 %v714, %v1736
    %v1738 = vpop.f32.mrf.mxu0
    %v1739 = vadd.f32 %v718, %v1738
    %v1740 = vpop.f32.mrf.mxu0
    %v1741 = vpop.f32.mrf.mxu0
    %1742 = vdwg.mxu0
    %1743 = vmatprep.subr.bf16.mxu0 %v1444
    %1744 = vmatpush1.bf16.msra.mxu0 %v1443
    %1745 = vmatprep.subr.bf16.mxu0 %v1439
    %1746 = vmatpush1.bf16.msra.mxu0 %v1438
    %1747 = vmatprep.subr.bf16.mxu0 %v1434
    %1748 = vmatpush1.bf16.msra.mxu0 %v1433
    %1749 = vmatprep.subr.bf16.mxu0 %v1429
    %1750 = vmatpush1.bf16.msra.mxu0 %v1428
    %1751 = vmatprep.subr.bf16.mxu0 %v1424
    %1752 = vmatpush1.bf16.msra.mxu0 %v1423
    %1753 = vmatprep.subr.bf16.mxu0 %v1419
    %1754 = vmatpush1.bf16.msra.mxu0 %v1418
    %1755 = vmatprep.subr.bf16.mxu0 %v1414
    %1756 = vmatpush1.bf16.msra.mxu0 %v1413
    %1757 = vmatprep.subr.bf16.mxu0 %v1409
    %1758 = vmatpush1.bf16.msra.mxu0 %v1408
    %1759 = vmatprep.subr.bf16.mxu0 %v1484
    %1760 = vmatpush2.bf16.msra.mxu0 %v1483
    %1761 = vmatprep.subr.bf16.mxu0 %v1479
    %1762 = vmatpush2.bf16.msra.mxu0 %v1478
    %1763 = vmatprep.subr.bf16.mxu0 %v1474
    %1764 = vmatpush2.bf16.msra.mxu0 %v1473
    %1765 = vmatprep.subr.bf16.mxu0 %v1469
    %1766 = vmatpush2.bf16.msra.mxu0 %v1468
    %1767 = vmatprep.subr.bf16.mxu0 %v1464
    %1768 = vmatpush2.bf16.msra.mxu0 %v1463
    %1769 = vmatprep.subr.bf16.mxu0 %v1459
    %1770 = vmatpush2.bf16.msra.mxu0 %v1458
    %1771 = vmatprep.subr.bf16.mxu0 %v1454
    %1772 = vmatpush2.bf16.msra.mxu0 %v1453
    %1773 = vmatprep.subr.bf16.mxu0 %v1449
    %1774 = vmatpush2.bf16.msra.mxu0 %v1448
    %1775 = vmatprep.mubr.bf16.mxu0 %v482
    %1776 = vmatmul.mubr.bf16.gmra.mxu0 %v481
    %v1777 = vpop.f32.mrf.mxu0
    %v1778 = vadd.f32 %v1737, %v1777
    %v1779 = vpop.f32.mrf.mxu0
    %v1780 = vadd.f32 %v1739, %v1779
    %v1781 = vpop.f32.mrf.mxu0
    %v1782 = vpop.f32.mrf.mxu0
    %1783 = vdwg.mxu0
    %1784 = vmatprep.subr.bf16.mxu0 0
    %1785 = vmatpush1.bf16.msra.mxu0 0
    %1786 = vmatprep.subr.bf16.mxu0 0
    %1787 = vmatpush1.bf16.msra.mxu0 0
    %1788 = vmatprep.subr.bf16.mxu0 0
    %1789 = vmatpush1.bf16.msra.mxu0 0
    %1790 = vmatprep.subr.bf16.mxu0 %v1509
    %1791 = vmatpush1.bf16.msra.mxu0 %v1508
    %1792 = vmatprep.subr.bf16.mxu0 %v1504
    %1793 = vmatpush1.bf16.msra.mxu0 %v1503
    %1794 = vmatprep.subr.bf16.mxu0 %v1499
    %1795 = vmatpush1.bf16.msra.mxu0 %v1498
    %1796 = vmatprep.subr.bf16.mxu0 %v1494
    %1797 = vmatpush1.bf16.msra.mxu0 %v1493
    %1798 = vmatprep.subr.bf16.mxu0 %v1489
    %1799 = vmatpush1.bf16.msra.mxu0 %v1488
    %1800 = vmatprep.subr.bf16.mxu0 0
    %1801 = vmatpush2.bf16.msra.mxu0 0
    %1802 = vmatprep.subr.bf16.mxu0 0
    %1803 = vmatpush2.bf16.msra.mxu0 0
    %1804 = vmatprep.subr.bf16.mxu0 0
    %1805 = vmatpush2.bf16.msra.mxu0 0
    %1806 = vmatprep.subr.bf16.mxu0 0
    %1807 = vmatpush2.bf16.msra.mxu0 0
    %1808 = vmatprep.subr.bf16.mxu0 0
    %1809 = vmatpush2.bf16.msra.mxu0 0
    %1810 = vmatprep.subr.bf16.mxu0 0
    %1811 = vmatpush2.bf16.msra.mxu0 0
    %1812 = vmatprep.subr.bf16.mxu0 0
    %1813 = vmatpush2.bf16.msra.mxu0 0
    %1814 = vmatprep.subr.bf16.mxu0 0
    %1815 = vmatpush2.bf16.msra.mxu0 0
    %1816 = vmatprep.mubr.bf16.mxu0 0
    %1817 = vmatmul.mubr.bf16.gmra.mxu0 %v1700
    %v1818 = vpop.f32.mrf.mxu0
    %v1819 = vadd.f32 %v1778, %v1818
    %v1820 = vpop.f32.mrf.mxu0
    %v1821 = vadd.f32 %v1780, %v1820
    %v1822 = vpop.f32.mrf.mxu0
    %v1823 = vpop.f32.mrf.mxu0
    %1824 = vdwg.mxu0
    %1825 = vmatprep.subr.bf16.mxu0 %v1366
    %1826 = vmatpush1.bf16.msra.mxu0 %v1365
    %1827 = vmatprep.subr.bf16.mxu0 %v1361
    %1828 = vmatpush1.bf16.msra.mxu0 %v1360
    %1829 = vmatprep.subr.bf16.mxu0 %v1356
    %1830 = vmatpush1.bf16.msra.mxu0 %v1355
    %1831 = vmatprep.subr.bf16.mxu0 %v1351
    %1832 = vmatpush1.bf16.msra.mxu0 %v1350
    %1833 = vmatprep.subr.bf16.mxu0 %v1346
    %1834 = vmatpush1.bf16.msra.mxu0 %v1345
    %1835 = vmatprep.subr.bf16.mxu0 %v1341
    %1836 = vmatpush1.bf16.msra.mxu0 %v1340
    %1837 = vmatprep.subr.bf16.mxu0 %v1336
    %1838 = vmatpush1.bf16.msra.mxu0 %v1335
    %1839 = vmatprep.subr.bf16.mxu0 %v1331
    %1840 = vmatpush1.bf16.msra.mxu0 %v1330
    %1841 = vmatprep.subr.bf16.mxu0 %v1406
    %1842 = vmatpush2.bf16.msra.mxu0 %v1405
    %1843 = vmatprep.subr.bf16.mxu0 %v1401
    %1844 = vmatpush2.bf16.msra.mxu0 %v1400
    %1845 = vmatprep.subr.bf16.mxu0 %v1396
    %1846 = vmatpush2.bf16.msra.mxu0 %v1395
    %1847 = vmatprep.subr.bf16.mxu0 %v1391
    %1848 = vmatpush2.bf16.msra.mxu0 %v1390
    %1849 = vmatprep.subr.bf16.mxu0 %v1386
    %1850 = vmatpush2.bf16.msra.mxu0 %v1385
    %1851 = vmatprep.subr.bf16.mxu0 %v1381
    %1852 = vmatpush2.bf16.msra.mxu0 %v1380
    %1853 = vmatprep.subr.bf16.mxu0 %v1376
    %1854 = vmatpush2.bf16.msra.mxu0 %v1375
    %1855 = vmatprep.subr.bf16.mxu0 %v1371
    %1856 = vmatpush2.bf16.msra.mxu0 %v1370
    %1857 = vmatprep.mubr.bf16.mxu0 %v480
    %1858 = vmatmul.mubr.bf16.gmra.mxu0 %v479
    %v1859 = vpop.f32.mrf.mxu0
    %v1860 = vadd.f32 %v722, %v1859
    %v1861 = vpop.f32.mrf.mxu0
    %v1862 = vadd.f32 %v726, %v1861
    %v1863 = vpop.f32.mrf.mxu0
    %v1864 = vpop.f32.mrf.mxu0
    %1865 = vdwg.mxu0
    %1866 = vmatprep.subr.bf16.mxu0 %v1446
    %1867 = vmatpush1.bf16.msra.mxu0 %v1445
    %1868 = vmatprep.subr.bf16.mxu0 %v1441
    %1869 = vmatpush1.bf16.msra.mxu0 %v1440
    %1870 = vmatprep.subr.bf16.mxu0 %v1436
    %1871 = vmatpush1.bf16.msra.mxu0 %v1435
    %1872 = vmatprep.subr.bf16.mxu0 %v1431
    %1873 = vmatpush1.bf16.msra.mxu0 %v1430
    %1874 = vmatprep.subr.bf16.mxu0 %v1426
    %1875 = vmatpush1.bf16.msra.mxu0 %v1425
    %1876 = vmatprep.subr.bf16.mxu0 %v1421
    %1877 = vmatpush1.bf16.msra.mxu0 %v1420
    %1878 = vmatprep.subr.bf16.mxu0 %v1416
    %1879 = vmatpush1.bf16.msra.mxu0 %v1415
    %1880 = vmatprep.subr.bf16.mxu0 %v1411
    %1881 = vmatpush1.bf16.msra.mxu0 %v1410
    %1882 = vmatprep.subr.bf16.mxu0 %v1486
    %1883 = vmatpush2.bf16.msra.mxu0 %v1485
    %1884 = vmatprep.subr.bf16.mxu0 %v1481
    %1885 = vmatpush2.bf16.msra.mxu0 %v1480
    %1886 = vmatprep.subr.bf16.mxu0 %v1476
    %1887 = vmatpush2.bf16.msra.mxu0 %v1475
    %1888 = vmatprep.subr.bf16.mxu0 %v1471
    %1889 = vmatpush2.bf16.msra.mxu0 %v1470
    %1890 = vmatprep.subr.bf16.mxu0 %v1466
    %1891 = vmatpush2.bf16.msra.mxu0 %v1465
    %1892 = vmatprep.subr.bf16.mxu0 %v1461
    %1893 = vmatpush2.bf16.msra.mxu0 %v1460
    %1894 = vmatprep.subr.bf16.mxu0 %v1456
    %1895 = vmatpush2.bf16.msra.mxu0 %v1455
    %1896 = vmatprep.subr.bf16.mxu0 %v1451
    %1897 = vmatpush2.bf16.msra.mxu0 %v1450
    %1898 = vmatprep.mubr.bf16.mxu0 %v482
    %1899 = vmatmul.mubr.bf16.gmra.mxu0 %v481
    %v1900 = vpop.f32.mrf.mxu0
    %v1901 = vadd.f32 %v1860, %v1900
    %v1902 = vpop.f32.mrf.mxu0
    %v1903 = vadd.f32 %v1862, %v1902
    %v1904 = vpop.f32.mrf.mxu0
    %v1905 = vpop.f32.mrf.mxu0
    %1906 = vdwg.mxu0
    %1907 = vmatprep.subr.bf16.mxu0 0
    %1908 = vmatpush1.bf16.msra.mxu0 0
    %1909 = vmatprep.subr.bf16.mxu0 0
    %1910 = vmatpush1.bf16.msra.mxu0 0
    %1911 = vmatprep.subr.bf16.mxu0 0
    %1912 = vmatpush1.bf16.msra.mxu0 0
    %1913 = vmatprep.subr.bf16.mxu0 %v1511
    %1914 = vmatpush1.bf16.msra.mxu0 %v1510
    %1915 = vmatprep.subr.bf16.mxu0 %v1506
    %1916 = vmatpush1.bf16.msra.mxu0 %v1505
    %1917 = vmatprep.subr.bf16.mxu0 %v1501
    %1918 = vmatpush1.bf16.msra.mxu0 %v1500
    %1919 = vmatprep.subr.bf16.mxu0 %v1496
    %1920 = vmatpush1.bf16.msra.mxu0 %v1495
    %1921 = vmatprep.subr.bf16.mxu0 %v1491
    %1922 = vmatpush1.bf16.msra.mxu0 %v1490
    %1923 = vmatprep.subr.bf16.mxu0 0
    %1924 = vmatpush2.bf16.msra.mxu0 0
    %1925 = vmatprep.subr.bf16.mxu0 0
    %1926 = vmatpush2.bf16.msra.mxu0 0
    %1927 = vmatprep.subr.bf16.mxu0 0
    %1928 = vmatpush2.bf16.msra.mxu0 0
    %1929 = vmatprep.subr.bf16.mxu0 0
    %1930 = vmatpush2.bf16.msra.mxu0 0
    %1931 = vmatprep.subr.bf16.mxu0 0
    %1932 = vmatpush2.bf16.msra.mxu0 0
    %1933 = vmatprep.subr.bf16.mxu0 0
    %1934 = vmatpush2.bf16.msra.mxu0 0
    %1935 = vmatprep.subr.bf16.mxu0 0
    %1936 = vmatpush2.bf16.msra.mxu0 0
    %1937 = vmatprep.subr.bf16.mxu0 0
    %1938 = vmatpush2.bf16.msra.mxu0 0
    %1939 = vmatprep.mubr.bf16.mxu0 0
    %1940 = vmatmul.mubr.bf16.gmra.mxu0 %v1700
    %v1941 = vpop.f32.mrf.mxu0
    %v1942 = vadd.f32 %v1901, %v1941
    %v1943 = vpop.f32.mrf.mxu0
    %v1944 = vadd.f32 %v1903, %v1943
    %v1945 = vpop.f32.mrf.mxu0
    %v1946 = vpop.f32.mrf.mxu0
    %1947 = vdwg.mxu0
    %1948 = vmatprep.subr.bf16.mxu0 0
    %1949 = vmatpush1.bf16.msra.mxu0 %v1367
    %1950 = vmatprep.subr.bf16.mxu0 0
    %1951 = vmatpush1.bf16.msra.mxu0 %v1362
    %1952 = vmatprep.subr.bf16.mxu0 0
    %1953 = vmatpush1.bf16.msra.mxu0 %v1357
    %1954 = vmatprep.subr.bf16.mxu0 0
    %1955 = vmatpush1.bf16.msra.mxu0 %v1352
    %1956 = vmatprep.subr.bf16.mxu0 0
    %1957 = vmatpush1.bf16.msra.mxu0 %v1347
    %1958 = vmatprep.subr.bf16.mxu0 0
    %1959 = vmatpush1.bf16.msra.mxu0 %v1342
    %1960 = vmatprep.subr.bf16.mxu0 0
    %1961 = vmatpush1.bf16.msra.mxu0 %v1337
    %1962 = vmatprep.subr.bf16.mxu0 0
    %1963 = vmatpush1.bf16.msra.mxu0 %v1332
    %1964 = vmatprep.subr.bf16.mxu0 0
    %1965 = vmatpush2.bf16.msra.mxu0 %v1407
    %1966 = vmatprep.subr.bf16.mxu0 0
    %1967 = vmatpush2.bf16.msra.mxu0 %v1402
    %1968 = vmatprep.subr.bf16.mxu0 0
    %1969 = vmatpush2.bf16.msra.mxu0 %v1397
    %1970 = vmatprep.subr.bf16.mxu0 0
    %1971 = vmatpush2.bf16.msra.mxu0 %v1392
    %1972 = vmatprep.subr.bf16.mxu0 0
    %1973 = vmatpush2.bf16.msra.mxu0 %v1387
    %1974 = vmatprep.subr.bf16.mxu0 0
    %1975 = vmatpush2.bf16.msra.mxu0 %v1382
    %1976 = vmatprep.subr.bf16.mxu0 0
    %1977 = vmatpush2.bf16.msra.mxu0 %v1377
    %1978 = vmatprep.subr.bf16.mxu0 0
    %1979 = vmatpush2.bf16.msra.mxu0 %v1372
    %1980 = vmatprep.mubr.bf16.mxu0 %v480
    %1981 = vmatmul.mubr.bf16.gmra.mxu0 %v479
    %v1982 = vpop.f32.mrf.mxu0
    %v1983 = vadd.f32 %v730, %v1982
    %v1984 = vpop.f32.mrf.mxu0
    %v1985 = vpop.f32.mrf.mxu0
    %v1986 = vpop.f32.mrf.mxu0
    %1987 = vdwg.mxu0
    %1988 = vmatprep.subr.bf16.mxu0 0
    %1989 = vmatpush1.bf16.msra.mxu0 %v1447
    %1990 = vmatprep.subr.bf16.mxu0 0
    %1991 = vmatpush1.bf16.msra.mxu0 %v1442
    %1992 = vmatprep.subr.bf16.mxu0 0
    %1993 = vmatpush1.bf16.msra.mxu0 %v1437
    %1994 = vmatprep.subr.bf16.mxu0 0
    %1995 = vmatpush1.bf16.msra.mxu0 %v1432
    %1996 = vmatprep.subr.bf16.mxu0 0
    %1997 = vmatpush1.bf16.msra.mxu0 %v1427
    %1998 = vmatprep.subr.bf16.mxu0 0
    %1999 = vmatpush1.bf16.msra.mxu0 %v1422
    %2000 = vmatprep.subr.bf16.mxu0 0
    %2001 = vmatpush1.bf16.msra.mxu0 %v1417
    %2002 = vmatprep.subr.bf16.mxu0 0
    %2003 = vmatpush1.bf16.msra.mxu0 %v1412
    %2004 = vmatprep.subr.bf16.mxu0 0
    %2005 = vmatpush2.bf16.msra.mxu0 %v1487
    %2006 = vmatprep.subr.bf16.mxu0 0
    %2007 = vmatpush2.bf16.msra.mxu0 %v1482
    %2008 = vmatprep.subr.bf16.mxu0 0
    %2009 = vmatpush2.bf16.msra.mxu0 %v1477
    %2010 = vmatprep.subr.bf16.mxu0 0
    %2011 = vmatpush2.bf16.msra.mxu0 %v1472
    %2012 = vmatprep.subr.bf16.mxu0 0
    %2013 = vmatpush2.bf16.msra.mxu0 %v1467
    %2014 = vmatprep.subr.bf16.mxu0 0
    %2015 = vmatpush2.bf16.msra.mxu0 %v1462
    %2016 = vmatprep.subr.bf16.mxu0 0
    %2017 = vmatpush2.bf16.msra.mxu0 %v1457
    %2018 = vmatprep.subr.bf16.mxu0 0
    %2019 = vmatpush2.bf16.msra.mxu0 %v1452
    %2020 = vmatprep.mubr.bf16.mxu0 %v482
    %2021 = vmatmul.mubr.bf16.gmra.mxu0 %v481
    %v2022 = vpop.f32.mrf.mxu0
    %v2023 = vadd.f32 %v1983, %v2022
    %v2024 = vpop.f32.mrf.mxu0
    %v2025 = vpop.f32.mrf.mxu0
    %v2026 = vpop.f32.mrf.mxu0
    %2027 = vdwg.mxu0
    %2028 = vmatprep.subr.bf16.mxu0 0
    %2029 = vmatpush1.bf16.msra.mxu0 0
    %2030 = vmatprep.subr.bf16.mxu0 0
    %2031 = vmatpush1.bf16.msra.mxu0 0
    %2032 = vmatprep.subr.bf16.mxu0 0
    %2033 = vmatpush1.bf16.msra.mxu0 0
    %2034 = vmatprep.subr.bf16.mxu0 0
    %2035 = vmatpush1.bf16.msra.mxu0 %v1512
    %2036 = vmatprep.subr.bf16.mxu0 0
    %2037 = vmatpush1.bf16.msra.mxu0 %v1507
    %2038 = vmatprep.subr.bf16.mxu0 0
    %2039 = vmatpush1.bf16.msra.mxu0 %v1502
    %2040 = vmatprep.subr.bf16.mxu0 0
    %2041 = vmatpush1.bf16.msra.mxu0 %v1497
    %2042 = vmatprep.subr.bf16.mxu0 0
    %2043 = vmatpush1.bf16.msra.mxu0 %v1492
    %2044 = vmatprep.subr.bf16.mxu0 0
    %2045 = vmatpush2.bf16.msra.mxu0 0
    %2046 = vmatprep.subr.bf16.mxu0 0
    %2047 = vmatpush2.bf16.msra.mxu0 0
    %2048 = vmatprep.subr.bf16.mxu0 0
    %2049 = vmatpush2.bf16.msra.mxu0 0
    %2050 = vmatprep.subr.bf16.mxu0 0
    %2051 = vmatpush2.bf16.msra.mxu0 0
    %2052 = vmatprep.subr.bf16.mxu0 0
    %2053 = vmatpush2.bf16.msra.mxu0 0
    %2054 = vmatprep.subr.bf16.mxu0 0
    %2055 = vmatpush2.bf16.msra.mxu0 0
    %2056 = vmatprep.subr.bf16.mxu0 0
    %2057 = vmatpush2.bf16.msra.mxu0 0
    %2058 = vmatprep.subr.bf16.mxu0 0
    %2059 = vmatpush2.bf16.msra.mxu0 0
    %2060 = vmatprep.mubr.bf16.mxu0 0
    %2061 = vmatmul.mubr.bf16.gmra.mxu0 %v1700
    %v2062 = vpop.f32.mrf.mxu0
    %v2063 = vadd.f32 %v2023, %v2062
    %v2064 = vpop.f32.mrf.mxu0
    %v2065 = vpop.f32.mrf.mxu0
    %v2066 = vpop.f32.mrf.mxu0
    %2067 = vdwg.mxu0
    %v2068 = vmul.f32 %v1819, 0.5
    %v2069 = vmul.f32 %v1821, 0.5
    %v2070 = vmul.f32 %v1942, 0.5
    %v2071 = vmul.f32 %v1944, 0.5
    %v2072 = vmul.f32 %v2063, 0.5
    %v2073 = vmul.f32 %v1819, 0.70710677
    %v2074 = vmul.f32 %v1821, 0.70710677
    %v2075 = vmul.f32 %v1942, 0.70710677
    %v2076 = vmul.f32 %v1944, 0.70710677
    %v2077 = vmul.f32 %v2063, 0.70710677
    %vm2078 = vcmp.ge.f32.partialorder %v2073, 0.0
    %vm2079 = vcmp.ge.f32.partialorder %v2074, 0.0
    %vm2080 = vcmp.ge.f32.partialorder %v2075, 0.0
    %vm2081 = vcmp.ge.f32.partialorder %v2076, 0.0
    %vm2082 = vcmp.ge.f32.partialorder %v2077, 0.0
    %v2083 = vsel %vm2078, 1.0, -1.0
    %v2084 = vsel %vm2079, 1.0, -1.0
    %v2085 = vsel %vm2080, 1.0, -1.0
    %v2086 = vsel %vm2081, 1.0, -1.0
    %v2087 = vsel %vm2082, 1.0, -1.0
    %v2088 = vand.u32 2147483647, %v2073
    %v2089 = vand.u32 2147483647, %v2074
    %v2090 = vand.u32 2147483647, %v2075
    %v2091 = vand.u32 2147483647, %v2076
    %v2092 = vand.u32 2147483647, %v2077
    %v2093 = vmul.f32 %v2088, 0.3275911
    %v2094 = vmul.f32 %v2089, 0.3275911
    %v2095 = vmul.f32 %v2090, 0.3275911
    %v2096 = vmul.f32 %v2091, 0.3275911
    %v2097 = vmul.f32 %v2092, 0.3275911
    %v2098 = vadd.f32 %v2093, 1.0
    %v2099 = vadd.f32 %v2094, 1.0
    %v2100 = vadd.f32 %v2095, 1.0
    %v2101 = vadd.f32 %v2096, 1.0
    %v2102 = vadd.f32 %v2097, 1.0
    %v2103 = vrcp.pop %v2098
    %v2104 = vmul.f32 1.0, %v2103
    %v2105 = vrcp.pop %v2099
    %v2106 = vmul.f32 1.0, %v2105
    %v2107 = vrcp.pop %v2100
    %v2108 = vmul.f32 1.0, %v2107
    %v2109 = vrcp.pop %v2101
    %v2110 = vmul.f32 1.0, %v2109
    %v2111 = vrcp.pop %v2102
    %v2112 = vmul.f32 1.0, %v2111
    %v2113 = vmul.f32 %v2104, 1.0614054
    %v2114 = vmul.f32 %v2106, 1.0614054
    %v2115 = vmul.f32 %v2108, 1.0614054
    %v2116 = vmul.f32 %v2110, 1.0614054
    %v2117 = vmul.f32 %v2112, 1.0614054
    %v2118 = vadd.f32 %v2113, -1.4531521
    %v2119 = vadd.f32 %v2114, -1.4531521
    %v2120 = vadd.f32 %v2115, -1.4531521
    %v2121 = vadd.f32 %v2116, -1.4531521
    %v2122 = vadd.f32 %v2117, -1.4531521
    %v2123 = vmul.f32 %v2104, %v2118
    %v2124 = vmul.f32 %v2106, %v2119
    %v2125 = vmul.f32 %v2108, %v2120
    %v2126 = vmul.f32 %v2110, %v2121
    %v2127 = vmul.f32 %v2112, %v2122
    %v2128 = vadd.f32 %v2123, 1.4214138
    %v2129 = vadd.f32 %v2124, 1.4214138
    %v2130 = vadd.f32 %v2125, 1.4214138
    %v2131 = vadd.f32 %v2126, 1.4214138
    %v2132 = vadd.f32 %v2127, 1.4214138
    %v2133 = vmul.f32 %v2104, %v2128
    %v2134 = vmul.f32 %v2106, %v2129
    %v2135 = vmul.f32 %v2108, %v2130
    %v2136 = vmul.f32 %v2110, %v2131
    %v2137 = vmul.f32 %v2112, %v2132
    %v2138 = vadd.f32 %v2133, -0.28449672
    %v2139 = vadd.f32 %v2134, -0.28449672
    %v2140 = vadd.f32 %v2135, -0.28449672
    %v2141 = vadd.f32 %v2136, -0.28449672
    %v2142 = vadd.f32 %v2137, -0.28449672
    %v2143 = vmul.f32 %v2104, %v2138
    %v2144 = vmul.f32 %v2106, %v2139
    %v2145 = vmul.f32 %v2108, %v2140
    %v2146 = vmul.f32 %v2110, %v2141
    %v2147 = vmul.f32 %v2112, %v2142
    %v2148 = vadd.f32 %v2143, 0.2548296
    %v2149 = vadd.f32 %v2144, 0.2548296
    %v2150 = vadd.f32 %v2145, 0.2548296
    %v2151 = vadd.f32 %v2146, 0.2548296
    %v2152 = vadd.f32 %v2147, 0.2548296
    %v2153 = vmul.f32 %v2104, %v2148
    %v2154 = vmul.f32 %v2106, %v2149
    %v2155 = vmul.f32 %v2108, %v2150
    %v2156 = vmul.f32 %v2110, %v2151
    %v2157 = vmul.f32 %v2112, %v2152
    %v2158 = vsub.f32 0.0, %v2088
    %v2159 = vsub.f32 0.0, %v2089
    %v2160 = vsub.f32 0.0, %v2090
    %v2161 = vsub.f32 0.0, %v2091
    %v2162 = vsub.f32 0.0, %v2092
    %v2163 = vmul.f32 %v2158, %v2088
    %v2164 = vmul.f32 %v2159, %v2089
    %v2165 = vmul.f32 %v2160, %v2090
    %v2166 = vmul.f32 %v2161, %v2091
    %v2167 = vmul.f32 %v2162, %v2092
    %v2168 = vmul.f32 %v2163, 1.442695
    %v2169 = vpow.pop %v2168
    %v2170 = vmul.f32 %v2164, 1.442695
    %v2171 = vpow.pop %v2170
    %v2172 = vmul.f32 %v2165, 1.442695
    %v2173 = vpow.pop %v2172
    %v2174 = vmul.f32 %v2166, 1.442695
    %v2175 = vpow.pop %v2174
    %v2176 = vmul.f32 %v2167, 1.442695
    %v2177 = vpow.pop %v2176
    %v2178 = vmul.f32 %v2153, %v2169
    %v2179 = vmul.f32 %v2154, %v2171
    %v2180 = vmul.f32 %v2155, %v2173
    %v2181 = vmul.f32 %v2156, %v2175
    %v2182 = vmul.f32 %v2157, %v2177
    %v2183 = vsub.f32 1.0, %v2178
    %v2184 = vsub.f32 1.0, %v2179
    %v2185 = vsub.f32 1.0, %v2180
    %v2186 = vsub.f32 1.0, %v2181
    %v2187 = vsub.f32 1.0, %v2182
    %v2188 = vmul.f32 %v2083, %v2183
    %v2189 = vmul.f32 %v2084, %v2184
    %v2190 = vmul.f32 %v2085, %v2185
    %v2191 = vmul.f32 %v2086, %v2186
    %v2192 = vmul.f32 %v2087, %v2187
    %v2193 = vadd.f32 %v2188, 1.0
    %v2194 = vadd.f32 %v2189, 1.0
    %v2195 = vadd.f32 %v2190, 1.0
    %v2196 = vadd.f32 %v2191, 1.0
    %v2197 = vadd.f32 %v2192, 1.0
    %v2198 = vmul.f32 %v2068, %v2193
    %v2199 = vmul.f32 %v2069, %v2194
    %v2200 = vmul.f32 %v2070, %v2195
    %v2201 = vmul.f32 %v2071, %v2196
    %v2202 = vmul.f32 %v2072, %v2197
    %v2203 = vpack.c.bf16 %v2198, %v2198
    %v2204 = vpack.c.bf16 %v2199, %v2199
    %v2205 = vpack.c.bf16 %v2200, %v2200
    %v2206 = vpack.c.bf16 %v2201, %v2201
    %v2207 = vpack.c.bf16 %v2202, %v2202
    %s2208 = scalar_lea.vmem [#allocation5], 1480
    %v2209 = vld [vmem:[%s2208] sm:$0xff]
    %v2210 = vld [vmem:[%s2208 + $0x8] sm:$0xff]
    %v2211 = vld [vmem:[%s2208 + $0x10] sm:$0xf]
    %v2212 = vld [vmem:[%s2208 + $0x14] sm:$0xff]
    %v2213 = vld [vmem:[%s2208 + $0x1c] sm:$0xff]
    %v2214 = vld [vmem:[%s2208 + $0x24] sm:$0xf]
    %v2215 = vld [vmem:[%s2208 + $0x28] sm:$0xff]
    %v2216 = vld [vmem:[%s2208 + $0x30] sm:$0xff]
    %v2217 = vld [vmem:[%s2208 + $0x38] sm:$0xf]
    %v2218 = vld [vmem:[%s2208 + $0x3c] sm:$0xff]
    %v2219 = vld [vmem:[%s2208 + $0x44] sm:$0xff]
    %v2220 = vld [vmem:[%s2208 + $0x4c] sm:$0xf]
    %v2221 = vld [vmem:[%s2208 + $0x50] sm:$0xff]
    %v2222 = vld [vmem:[%s2208 + $0x58] sm:$0xff]
    %v2223 = vld [vmem:[%s2208 + $0x60] sm:$0xf]
    %v2224 = vld [vmem:[%s2208 + $0x64] sm:$0xff]
    %v2225 = vld [vmem:[%s2208 + $0x6c] sm:$0xff]
    %v2226 = vld [vmem:[%s2208 + $0x74] sm:$0xf]
    %v2227 = vld [vmem:[%s2208 + $0x78] sm:$0xff]
    %v2228 = vld [vmem:[%s2208 + $0x80] sm:$0xff]
    %v2229 = vld [vmem:[%s2208 + $0x88] sm:$0xf]
    %v2230 = vld [vmem:[%s2208 + $0x8c] sm:$0xff]
    %v2231 = vld [vmem:[%s2208 + $0x94] sm:$0xff]
    %v2232 = vld [vmem:[%s2208 + $0x9c] sm:$0xf]
    %v2233 = vld [vmem:[%s2208 + $0xa0] sm:$0xff]
    %v2234 = vld [vmem:[%s2208 + $0xa8] sm:$0xff]
    %v2235 = vld [vmem:[%s2208 + $0xb0] sm:$0xf]
    %v2236 = vld [vmem:[%s2208 + $0xb4] sm:$0xff]
    %v2237 = vld [vmem:[%s2208 + $0xbc] sm:$0xff]
    %v2238 = vld [vmem:[%s2208 + $0xc4] sm:$0xf]
    %v2239 = vld [vmem:[%s2208 + $0xc8] sm:$0xff]
    %v2240 = vld [vmem:[%s2208 + $0xd0] sm:$0xff]
    %v2241 = vld [vmem:[%s2208 + $0xd8] sm:$0xf]
    %v2242 = vld [vmem:[%s2208 + $0xdc] sm:$0xff]
    %v2243 = vld [vmem:[%s2208 + $0xe4] sm:$0xff]
    %v2244 = vld [vmem:[%s2208 + $0xec] sm:$0xf]
    %v2245 = vld [vmem:[%s2208 + $0xf0] sm:$0xff]
    %v2246 = vld [vmem:[%s2208 + $0xf8] sm:$0xff]
    %v2247 = vld [vmem:[%s2208 + $0x100] sm:$0xf]
    %v2248 = vld [vmem:[%s2208 + $0x104] sm:$0xff]
    %v2249 = vld [vmem:[%s2208 + $0x10c] sm:$0xff]
    %v2250 = vld [vmem:[%s2208 + $0x114] sm:$0xf]
    %v2251 = vld [vmem:[%s2208 + $0x118] sm:$0xff]
    %v2252 = vld [vmem:[%s2208 + $0x120] sm:$0xff]
    %v2253 = vld [vmem:[%s2208 + $0x128] sm:$0xf]
    %v2254 = vld [vmem:[%s2208 + $0x12c] sm:$0xff]
    %v2255 = vld [vmem:[%s2208 + $0x134] sm:$0xff]
    %v2256 = vld [vmem:[%s2208 + $0x13c] sm:$0xf]
    %v2257 = vld [vmem:[%s2208 + $0x140] sm:$0xff]
    %v2258 = vld [vmem:[%s2208 + $0x148] sm:$0xff]
    %v2259 = vld [vmem:[%s2208 + $0x150] sm:$0xf]
    %v2260 = vld [vmem:[%s2208 + $0x154] sm:$0xff]
    %v2261 = vld [vmem:[%s2208 + $0x15c] sm:$0xff]
    %v2262 = vld [vmem:[%s2208 + $0x164] sm:$0xf]
    %v2263 = vld [vmem:[%s2208 + $0x168] sm:$0xff]
    %v2264 = vld [vmem:[%s2208 + $0x170] sm:$0xff]
    %v2265 = vld [vmem:[%s2208 + $0x178] sm:$0xf]
    %v2266 = vld [vmem:[%s2208 + $0x17c] sm:$0xff]
    %v2267 = vld [vmem:[%s2208 + $0x184] sm:$0xff]
    %v2268 = vld [vmem:[%s2208 + $0x18c] sm:$0xf]
    %v2269 = vld [vmem:[%s2208 + $0x190] sm:$0xff]
    %v2270 = vld [vmem:[%s2208 + $0x198] sm:$0xff]
    %v2271 = vld [vmem:[%s2208 + $0x1a0] sm:$0xf]
    %v2272 = vld [vmem:[%s2208 + $0x1a4] sm:$0xff]
    %v2273 = vld [vmem:[%s2208 + $0x1ac] sm:$0xff]
    %v2274 = vld [vmem:[%s2208 + $0x1b4] sm:$0xf]
    %v2275 = vld [vmem:[%s2208 + $0x1b8] sm:$0xff]
    %v2276 = vld [vmem:[%s2208 + $0x1c0] sm:$0xff]
    %v2277 = vld [vmem:[%s2208 + $0x1c8] sm:$0xf]
    %v2278 = vld [vmem:[%s2208 + $0x1cc] sm:$0xff]
    %v2279 = vld [vmem:[%s2208 + $0x1d4] sm:$0xff]
    %v2280 = vld [vmem:[%s2208 + $0x1dc] sm:$0xf]
    %v2281 = vld [vmem:[%s2208 + $0x1e0] sm:$0xff]
    %v2282 = vld [vmem:[%s2208 + $0x1e8] sm:$0xff]
    %v2283 = vld [vmem:[%s2208 + $0x1f0] sm:$0xf]
    %v2284 = vld [vmem:[%s2208 + $0x1f4] sm:$0xff]
    %v2285 = vld [vmem:[%s2208 + $0x1fc] sm:$0xff]
    %v2286 = vld [vmem:[%s2208 + $0x204] sm:$0xf]
    %v2287 = vld [vmem:[%s2208 + $0x208] sm:$0xff]
    %v2288 = vld [vmem:[%s2208 + $0x210] sm:$0xff]
    %v2289 = vld [vmem:[%s2208 + $0x218] sm:$0xf]
    %v2290 = vld [vmem:[%s2208 + $0x21c] sm:$0xff]
    %v2291 = vld [vmem:[%s2208 + $0x224] sm:$0xff]
    %v2292 = vld [vmem:[%s2208 + $0x22c] sm:$0xf]
    %v2293 = vld [vmem:[%s2208 + $0x230] sm:$0xff]
    %v2294 = vld [vmem:[%s2208 + $0x238] sm:$0xff]
    %v2295 = vld [vmem:[%s2208 + $0x240] sm:$0xf]
    %v2296 = vld [vmem:[%s2208 + $0x244] sm:$0xff]
    %v2297 = vld [vmem:[%s2208 + $0x24c] sm:$0xff]
    %v2298 = vld [vmem:[%s2208 + $0x254] sm:$0xf]
    %v2299 = vld [vmem:[%s2208 + $0x258] sm:$0xff]
    %v2300 = vld [vmem:[%s2208 + $0x260] sm:$0xff]
    %v2301 = vld [vmem:[%s2208 + $0x268] sm:$0xf]
    %v2302 = vld [vmem:[%s2208 + $0x26c] sm:$0xff]
    %v2303 = vld [vmem:[%s2208 + $0x274] sm:$0xff]
    %v2304 = vld [vmem:[%s2208 + $0x27c] sm:$0xf]
    %v2305 = vld [vmem:[%s2208 + $0x280] sm:$0xff]
    %v2306 = vld [vmem:[%s2208 + $0x288] sm:$0xff]
    %v2307 = vld [vmem:[%s2208 + $0x290] sm:$0xf]
    %v2308 = vld [vmem:[%s2208 + $0x294] sm:$0xff]
    %v2309 = vld [vmem:[%s2208 + $0x29c] sm:$0xff]
    %v2310 = vld [vmem:[%s2208 + $0x2a4] sm:$0xf]
    %v2311 = vld [vmem:[%s2208 + $0x2a8] sm:$0xff]
    %v2312 = vld [vmem:[%s2208 + $0x2b0] sm:$0xff]
    %v2313 = vld [vmem:[%s2208 + $0x2b8] sm:$0xf]
    %v2314 = vld [vmem:[%s2208 + $0x2bc] sm:$0xff]
    %v2315 = vld [vmem:[%s2208 + $0x2c4] sm:$0xff]
    %v2316 = vld [vmem:[%s2208 + $0x2cc] sm:$0xf]
    %v2317 = vld [vmem:[%s2208 + $0x2d0] sm:$0xff]
    %v2318 = vld [vmem:[%s2208 + $0x2d8] sm:$0xff]
    %v2319 = vld [vmem:[%s2208 + $0x2e0] sm:$0xf]
    %v2320 = vld [vmem:[%s2208 + $0x2e4] sm:$0xff]
    %v2321 = vld [vmem:[%s2208 + $0x2ec] sm:$0xff]
    %v2322 = vld [vmem:[%s2208 + $0x2f4] sm:$0xf]
    %v2323 = vld [vmem:[%s2208 + $0x2f8] sm:$0xff]
    %v2324 = vld [vmem:[%s2208 + $0x300] sm:$0xff]
    %v2325 = vld [vmem:[%s2208 + $0x308] sm:$0xf]
    %v2326 = vld [vmem:[%s2208 + $0x30c] sm:$0xff]
    %v2327 = vld [vmem:[%s2208 + $0x314] sm:$0xff]
    %v2328 = vld [vmem:[%s2208 + $0x31c] sm:$0xf]
    %v2329 = vld [vmem:[%s2208 + $0x320] sm:$0xff]
    %v2330 = vld [vmem:[%s2208 + $0x328] sm:$0xff]
    %v2331 = vld [vmem:[%s2208 + $0x330] sm:$0xf]
    %v2332 = vld [vmem:[%s2208 + $0x334] sm:$0xff]
    %v2333 = vld [vmem:[%s2208 + $0x33c] sm:$0xff]
    %v2334 = vld [vmem:[%s2208 + $0x344] sm:$0xf]
    %v2335 = vld [vmem:[%s2208 + $0x348] sm:$0xff]
    %v2336 = vld [vmem:[%s2208 + $0x350] sm:$0xff]
    %v2337 = vld [vmem:[%s2208 + $0x358] sm:$0xf]
    %v2338 = vld [vmem:[%s2208 + $0x35c] sm:$0xff]
    %v2339 = vld [vmem:[%s2208 + $0x364] sm:$0xff]
    %v2340 = vld [vmem:[%s2208 + $0x36c] sm:$0xf]
    %v2341 = vld [vmem:[%s2208 + $0x370] sm:$0xff]
    %v2342 = vld [vmem:[%s2208 + $0x378] sm:$0xff]
    %v2343 = vld [vmem:[%s2208 + $0x380] sm:$0xf]
    %v2344 = vld [vmem:[%s2208 + $0x384] sm:$0xff]
    %v2345 = vld [vmem:[%s2208 + $0x38c] sm:$0xff]
    %v2346 = vld [vmem:[%s2208 + $0x394] sm:$0xf]
    %v2347 = vld [vmem:[%s2208 + $0x398] sm:$0xff]
    %v2348 = vld [vmem:[%s2208 + $0x3a0] sm:$0xff]
    %v2349 = vld [vmem:[%s2208 + $0x3a8] sm:$0xf]
    %v2350 = vld [vmem:[%s2208 + $0x3ac] sm:$0xff]
    %v2351 = vld [vmem:[%s2208 + $0x3b4] sm:$0xff]
    %v2352 = vld [vmem:[%s2208 + $0x3bc] sm:$0xf]
    %v2353 = vld [vmem:[%s2208 + $0x3c0] sm:$0xff]
    %v2354 = vld [vmem:[%s2208 + $0x3c8] sm:$0xff]
    %v2355 = vld [vmem:[%s2208 + $0x3d0] sm:$0xf]
    %v2356 = vld [vmem:[%s2208 + $0x3d4] sm:$0xff]
    %v2357 = vld [vmem:[%s2208 + $0x3dc] sm:$0xff]
    %v2358 = vld [vmem:[%s2208 + $0x3e4] sm:$0xf]
    %v2359 = vld [vmem:[%s2208 + $0x3e8] sm:$0xff]
    %v2360 = vld [vmem:[%s2208 + $0x3f0] sm:$0xff]
    %v2361 = vld [vmem:[%s2208 + $0x3f8] sm:$0xf]
    %v2362 = vld [vmem:[%s2208 + $0x3fc] sm:$0xff]
    %v2363 = vld [vmem:[%s2208 + $0x404] sm:$0xff]
    %v2364 = vld [vmem:[%s2208 + $0x40c] sm:$0xf]
    %v2365 = vld [vmem:[%s2208 + $0x410] sm:$0xff]
    %v2366 = vld [vmem:[%s2208 + $0x418] sm:$0xff]
    %v2367 = vld [vmem:[%s2208 + $0x420] sm:$0xf]
    %v2368 = vld [vmem:[%s2208 + $0x424] sm:$0xff]
    %v2369 = vld [vmem:[%s2208 + $0x42c] sm:$0xff]
    %v2370 = vld [vmem:[%s2208 + $0x434] sm:$0xf]
    %v2371 = vld [vmem:[%s2208 + $0x438] sm:$0xff]
    %v2372 = vld [vmem:[%s2208 + $0x440] sm:$0xff]
    %v2373 = vld [vmem:[%s2208 + $0x448] sm:$0xf]
    %v2374 = vld [vmem:[%s2208 + $0x44c] sm:$0xff]
    %v2375 = vld [vmem:[%s2208 + $0x454] sm:$0xff]
    %v2376 = vld [vmem:[%s2208 + $0x45c] sm:$0xf]
    %v2377 = vld [vmem:[%s2208 + $0x460] sm:$0xff]
    %v2378 = vld [vmem:[%s2208 + $0x468] sm:$0xff]
    %v2379 = vld [vmem:[%s2208 + $0x470] sm:$0xf]
    %v2380 = vld [vmem:[%s2208 + $0x474] sm:$0xff]
    %v2381 = vld [vmem:[%s2208 + $0x47c] sm:$0xff]
    %v2382 = vld [vmem:[%s2208 + $0x484] sm:$0xf]
    %v2383 = vld [vmem:[%s2208 + $0x488] sm:$0xff]
    %v2384 = vld [vmem:[%s2208 + $0x490] sm:$0xff]
    %v2385 = vld [vmem:[%s2208 + $0x498] sm:$0xf]
    %v2386 = vld [vmem:[%s2208 + $0x49c] sm:$0xff]
    %v2387 = vld [vmem:[%s2208 + $0x4a4] sm:$0xff]
    %v2388 = vld [vmem:[%s2208 + $0x4ac] sm:$0xf]
    %v2389 = vld [vmem:[%s2208 + $0x4b0] sm:$0xff]
    %v2390 = vld [vmem:[%s2208 + $0x4b8] sm:$0xff]
    %v2391 = vld [vmem:[%s2208 + $0x4c0] sm:$0xf]
    %v2392 = vld [vmem:[%s2208 + $0x4c4] sm:$0xff]
    %v2393 = vld [vmem:[%s2208 + $0x4cc] sm:$0xff]
    %v2394 = vld [vmem:[%s2208 + $0x4d4] sm:$0xf]
    %v2395 = vld [vmem:[%s2208 + $0x4d8] sm:$0xff]
    %v2396 = vld [vmem:[%s2208 + $0x4e0] sm:$0xff]
    %v2397 = vld [vmem:[%s2208 + $0x4e8] sm:$0xf]
    %v2398 = vld [vmem:[%s2208 + $0x4ec] sm:$0xff]
    %v2399 = vld [vmem:[%s2208 + $0x4f4] sm:$0xff]
    %v2400 = vld [vmem:[%s2208 + $0x4fc] sm:$0xf]
    %v2401 = vld [vmem:[%s2208 + $0x500] sm:$0xff]
    %v2402 = vld [vmem:[%s2208 + $0x508] sm:$0xff]
    %v2403 = vld [vmem:[%s2208 + $0x510] sm:$0xf]
    %v2404 = vld [vmem:[%s2208 + $0x514] sm:$0xff]
    %v2405 = vld [vmem:[%s2208 + $0x51c] sm:$0xff]
    %v2406 = vld [vmem:[%s2208 + $0x524] sm:$0xf]
    %v2407 = vld [vmem:[%s2208 + $0x528] sm:$0xff]
    %v2408 = vld [vmem:[%s2208 + $0x530] sm:$0xff]
    %v2409 = vld [vmem:[%s2208 + $0x538] sm:$0xf]
    %v2410 = vld [vmem:[%s2208 + $0x53c] sm:$0xff]
    %v2411 = vld [vmem:[%s2208 + $0x544] sm:$0xff]
    %v2412 = vld [vmem:[%s2208 + $0x54c] sm:$0xf]
    %v2413 = vld [vmem:[%s2208 + $0x550] sm:$0xff]
    %v2414 = vld [vmem:[%s2208 + $0x558] sm:$0xff]
    %v2415 = vld [vmem:[%s2208 + $0x560] sm:$0xf]
    %v2416 = vld [vmem:[%s2208 + $0x564] sm:$0xff]
    %v2417 = vld [vmem:[%s2208 + $0x56c] sm:$0xff]
    %v2418 = vld [vmem:[%s2208 + $0x574] sm:$0xf]
    %v2419 = vld [vmem:[%s2208 + $0x578] sm:$0xff]
    %v2420 = vld [vmem:[%s2208 + $0x580] sm:$0xff]
    %v2421 = vld [vmem:[%s2208 + $0x588] sm:$0xf]
    %v2422 = vld [vmem:[%s2208 + $0x58c] sm:$0xff]
    %v2423 = vld [vmem:[%s2208 + $0x594] sm:$0xff]
    %v2424 = vld [vmem:[%s2208 + $0x59c] sm:$0xf]
    %v2425 = vld [vmem:[%s2208 + $0x5a0] sm:$0xff]
    %v2426 = vld [vmem:[%s2208 + $0x5a8] sm:$0xff]
    %v2427 = vld [vmem:[%s2208 + $0x5b0] sm:$0xf]
    %v2428 = vld [vmem:[%s2208 + $0x5b4] sm:$0xff]
    %v2429 = vld [vmem:[%s2208 + $0x5bc] sm:$0xff]
    %v2430 = vld [vmem:[%s2208 + $0x5c4] sm:$0xf]
    %s2431 = scalar_lea.vmem [#allocation8], 2
    %v2432 = vld [vmem:[%s2431] ss:$8 sm:$0xf]
    %v2433 = vld [vmem:[%s2431] ss:$8 sm:$0x10]
    %v2434 = vor.u32 %v2432, %v2433
    %v2436 = vlaneseq
    %v2437 = vshrl.u32 %v2436, 7
    %v2438 = vsub.s32 0, %v2437
    %v2439 = vrot.slane %v2434, %v2438
    %v2440 = vlaneseq
    %v2441 = vshrl.u32 %v2440, 7
    %v2442 = vsub.s32 1, %v2441
    %v2443 = vrot.slane %v2434, %v2442
    %v2444 = vlaneseq
    %v2445 = vshrl.u32 %v2444, 7
    %v2446 = vsub.s32 2, %v2445
    %v2447 = vrot.slane %v2434, %v2446
    %v2448 = vlaneseq
    %v2449 = vshrl.u32 %v2448, 7
    %v2450 = vsub.s32 3, %v2449
    %v2451 = vrot.slane %v2434, %v2450
    %v2452 = vlaneseq
    %v2453 = vshrl.u32 %v2452, 7
    %v2454 = vsub.s32 4, %v2453
    %v2455 = vrot.slane %v2434, %v2454
    %v2683 = vunpack.c.l.b16 %v2209
    %v2684 = vunpack.c.h.b16 %v2209
    %v2685 = vunpack.c.l.b16 %v2210
    %v2686 = vunpack.c.h.b16 %v2210
    %v2687 = vunpack.c.l.b16 %v2211
    %v2688 = vunpack.c.l.b16 %v2212
    %v2689 = vunpack.c.h.b16 %v2212
    %v2690 = vunpack.c.l.b16 %v2213
    %v2691 = vunpack.c.h.b16 %v2213
    %v2692 = vunpack.c.l.b16 %v2214
    %v2693 = vunpack.c.l.b16 %v2215
    %v2694 = vunpack.c.h.b16 %v2215
    %v2695 = vunpack.c.l.b16 %v2216
    %v2696 = vunpack.c.h.b16 %v2216
    %v2697 = vunpack.c.l.b16 %v2217
    %v2698 = vunpack.c.l.b16 %v2218
    %v2699 = vunpack.c.h.b16 %v2218
    %v2700 = vunpack.c.l.b16 %v2219
    %v2701 = vunpack.c.h.b16 %v2219
    %v2702 = vunpack.c.l.b16 %v2220
    %v2703 = vunpack.c.l.b16 %v2221
    %v2704 = vunpack.c.h.b16 %v2221
    %v2705 = vunpack.c.l.b16 %v2222
    %v2706 = vunpack.c.h.b16 %v2222
    %v2707 = vunpack.c.l.b16 %v2223
    %v2708 = vunpack.c.l.b16 %v2224
    %v2709 = vunpack.c.h.b16 %v2224
    %v2710 = vunpack.c.l.b16 %v2225
    %v2711 = vunpack.c.h.b16 %v2225
    %v2712 = vunpack.c.l.b16 %v2226
    %v2713 = vunpack.c.l.b16 %v2227
    %v2714 = vunpack.c.h.b16 %v2227
    %v2715 = vunpack.c.l.b16 %v2228
    %v2716 = vunpack.c.h.b16 %v2228
    %v2717 = vunpack.c.l.b16 %v2229
    %v2718 = vunpack.c.l.b16 %v2230
    %v2719 = vunpack.c.h.b16 %v2230
    %v2720 = vunpack.c.l.b16 %v2231
    %v2721 = vunpack.c.h.b16 %v2231
    %v2722 = vunpack.c.l.b16 %v2232
    %v2723 = vunpack.c.l.b16 %v2233
    %v2724 = vunpack.c.h.b16 %v2233
    %v2725 = vunpack.c.l.b16 %v2234
    %v2726 = vunpack.c.h.b16 %v2234
    %v2727 = vunpack.c.l.b16 %v2235
    %v2728 = vunpack.c.l.b16 %v2236
    %v2729 = vunpack.c.h.b16 %v2236
    %v2730 = vunpack.c.l.b16 %v2237
    %v2731 = vunpack.c.h.b16 %v2237
    %v2732 = vunpack.c.l.b16 %v2238
    %v2733 = vunpack.c.l.b16 %v2239
    %v2734 = vunpack.c.h.b16 %v2239
    %v2735 = vunpack.c.l.b16 %v2240
    %v2736 = vunpack.c.h.b16 %v2240
    %v2737 = vunpack.c.l.b16 %v2241
    %v2738 = vunpack.c.l.b16 %v2242
    %v2739 = vunpack.c.h.b16 %v2242
    %v2740 = vunpack.c.l.b16 %v2243
    %v2741 = vunpack.c.h.b16 %v2243
    %v2742 = vunpack.c.l.b16 %v2244
    %v2743 = vunpack.c.l.b16 %v2245
    %v2744 = vunpack.c.h.b16 %v2245
    %v2745 = vunpack.c.l.b16 %v2246
    %v2746 = vunpack.c.h.b16 %v2246
    %v2747 = vunpack.c.l.b16 %v2247
    %v2748 = vunpack.c.l.b16 %v2248
    %v2749 = vunpack.c.h.b16 %v2248
    %v2750 = vunpack.c.l.b16 %v2249
    %v2751 = vunpack.c.h.b16 %v2249
    %v2752 = vunpack.c.l.b16 %v2250
    %v2753 = vunpack.c.l.b16 %v2251
    %v2754 = vunpack.c.h.b16 %v2251
    %v2755 = vunpack.c.l.b16 %v2252
    %v2756 = vunpack.c.h.b16 %v2252
    %v2757 = vunpack.c.l.b16 %v2253
    %v2758 = vunpack.c.l.b16 %v2254
    %v2759 = vunpack.c.h.b16 %v2254
    %v2760 = vunpack.c.l.b16 %v2255
    %v2761 = vunpack.c.h.b16 %v2255
    %v2762 = vunpack.c.l.b16 %v2256
    %v2763 = vunpack.c.l.b16 %v2257
    %v2764 = vunpack.c.h.b16 %v2257
    %v2765 = vunpack.c.l.b16 %v2258
    %v2766 = vunpack.c.h.b16 %v2258
    %v2767 = vunpack.c.l.b16 %v2259
    %v2768 = vunpack.c.l.b16 %v2260
    %v2769 = vunpack.c.h.b16 %v2260
    %v2770 = vunpack.c.l.b16 %v2261
    %v2771 = vunpack.c.h.b16 %v2261
    %v2772 = vunpack.c.l.b16 %v2262
    %v2773 = vunpack.c.l.b16 %v2263
    %v2774 = vunpack.c.h.b16 %v2263
    %v2775 = vunpack.c.l.b16 %v2264
    %v2776 = vunpack.c.h.b16 %v2264
    %v2777 = vunpack.c.l.b16 %v2265
    %v2778 = vunpack.c.l.b16 %v2266
    %v2779 = vunpack.c.h.b16 %v2266
    %v2780 = vunpack.c.l.b16 %v2267
    %v2781 = vunpack.c.h.b16 %v2267
    %v2782 = vunpack.c.l.b16 %v2268
    %v2783 = vunpack.c.l.b16 %v2269
    %v2784 = vunpack.c.h.b16 %v2269
    %v2785 = vunpack.c.l.b16 %v2270
    %v2786 = vunpack.c.h.b16 %v2270
    %v2787 = vunpack.c.l.b16 %v2271
    %v2788 = vunpack.c.l.b16 %v2272
    %v2789 = vunpack.c.h.b16 %v2272
    %v2790 = vunpack.c.l.b16 %v2273
    %v2791 = vunpack.c.h.b16 %v2273
    %v2792 = vunpack.c.l.b16 %v2274
    %v2793 = vunpack.c.l.b16 %v2275
    %v2794 = vunpack.c.h.b16 %v2275
    %v2795 = vunpack.c.l.b16 %v2276
    %v2796 = vunpack.c.h.b16 %v2276
    %v2797 = vunpack.c.l.b16 %v2277
    %v2798 = vunpack.c.l.b16 %v2278
    %v2799 = vunpack.c.h.b16 %v2278
    %v2800 = vunpack.c.l.b16 %v2279
    %v2801 = vunpack.c.h.b16 %v2279
    %v2802 = vunpack.c.l.b16 %v2280
    %v2803 = vunpack.c.l.b16 %v2281
    %v2804 = vunpack.c.h.b16 %v2281
    %v2805 = vunpack.c.l.b16 %v2282
    %v2806 = vunpack.c.h.b16 %v2282
    %v2807 = vunpack.c.l.b16 %v2283
    %v2808 = vunpack.c.l.b16 %v2284
    %v2809 = vunpack.c.h.b16 %v2284
    %v2810 = vunpack.c.l.b16 %v2285
    %v2811 = vunpack.c.h.b16 %v2285
    %v2812 = vunpack.c.l.b16 %v2286
    %v2813 = vunpack.c.l.b16 %v2287
    %v2814 = vunpack.c.h.b16 %v2287
    %v2815 = vunpack.c.l.b16 %v2288
    %v2816 = vunpack.c.h.b16 %v2288
    %v2817 = vunpack.c.l.b16 %v2289
    %v2818 = vunpack.c.l.b16 %v2290
    %v2819 = vunpack.c.h.b16 %v2290
    %v2820 = vunpack.c.l.b16 %v2291
    %v2821 = vunpack.c.h.b16 %v2291
    %v2822 = vunpack.c.l.b16 %v2292
    %v2823 = vunpack.c.l.b16 %v2293
    %v2824 = vunpack.c.h.b16 %v2293
    %v2825 = vunpack.c.l.b16 %v2294
    %v2826 = vunpack.c.h.b16 %v2294
    %v2827 = vunpack.c.l.b16 %v2295
    %v2828 = vunpack.c.l.b16 %v2296
    %v2829 = vunpack.c.h.b16 %v2296
    %v2830 = vunpack.c.l.b16 %v2297
    %v2831 = vunpack.c.h.b16 %v2297
    %v2832 = vunpack.c.l.b16 %v2298
    %v2833 = vunpack.c.l.b16 %v2299
    %v2834 = vunpack.c.h.b16 %v2299
    %v2835 = vunpack.c.l.b16 %v2300
    %v2836 = vunpack.c.h.b16 %v2300
    %v2837 = vunpack.c.l.b16 %v2301
    %v2838 = vunpack.c.l.b16 %v2302
    %v2839 = vunpack.c.h.b16 %v2302
    %v2840 = vunpack.c.l.b16 %v2303
    %v2841 = vunpack.c.h.b16 %v2303
    %v2842 = vunpack.c.l.b16 %v2304
    %v2843 = vunpack.c.l.b16 %v2305
    %v2844 = vunpack.c.h.b16 %v2305
    %v2845 = vunpack.c.l.b16 %v2306
    %v2846 = vunpack.c.h.b16 %v2306
    %v2847 = vunpack.c.l.b16 %v2307
    %v2848 = vunpack.c.l.b16 %v2308
    %v2849 = vunpack.c.h.b16 %v2308
    %v2850 = vunpack.c.l.b16 %v2309
    %v2851 = vunpack.c.h.b16 %v2309
    %v2852 = vunpack.c.l.b16 %v2310
    %v2853 = vunpack.c.l.b16 %v2311
    %v2854 = vunpack.c.h.b16 %v2311
    %v2855 = vunpack.c.l.b16 %v2312
    %v2856 = vunpack.c.h.b16 %v2312
    %v2857 = vunpack.c.l.b16 %v2313
    %v2858 = vunpack.c.l.b16 %v2314
    %v2859 = vunpack.c.h.b16 %v2314
    %v2860 = vunpack.c.l.b16 %v2315
    %v2861 = vunpack.c.h.b16 %v2315
    %v2862 = vunpack.c.l.b16 %v2316
    %v2863 = vunpack.c.l.b16 %v2317
    %v2864 = vunpack.c.h.b16 %v2317
    %v2865 = vunpack.c.l.b16 %v2318
    %v2866 = vunpack.c.h.b16 %v2318
    %v2867 = vunpack.c.l.b16 %v2319
    %v2868 = vunpack.c.l.b16 %v2320
    %v2869 = vunpack.c.h.b16 %v2320
    %v2870 = vunpack.c.l.b16 %v2321
    %v2871 = vunpack.c.h.b16 %v2321
    %v2872 = vunpack.c.l.b16 %v2322
    %v2873 = vunpack.c.l.b16 %v2323
    %v2874 = vunpack.c.h.b16 %v2323
    %v2875 = vunpack.c.l.b16 %v2324
    %v2876 = vunpack.c.h.b16 %v2324
    %v2877 = vunpack.c.l.b16 %v2325
    %v2878 = vunpack.c.l.b16 %v2326
    %v2879 = vunpack.c.h.b16 %v2326
    %v2880 = vunpack.c.l.b16 %v2327
    %v2881 = vunpack.c.h.b16 %v2327
    %v2882 = vunpack.c.l.b16 %v2328
    %v2883 = vunpack.c.l.b16 %v2329
    %v2884 = vunpack.c.h.b16 %v2329
    %v2885 = vunpack.c.l.b16 %v2330
    %v2886 = vunpack.c.h.b16 %v2330
    %v2887 = vunpack.c.l.b16 %v2331
    %v2888 = vunpack.c.l.b16 %v2332
    %v2889 = vunpack.c.h.b16 %v2332
    %v2890 = vunpack.c.l.b16 %v2333
    %v2891 = vunpack.c.h.b16 %v2333
    %v2892 = vunpack.c.l.b16 %v2334
    %v2893 = vunpack.c.l.b16 %v2335
    %v2894 = vunpack.c.h.b16 %v2335
    %v2895 = vunpack.c.l.b16 %v2336
    %v2896 = vunpack.c.h.b16 %v2336
    %v2897 = vunpack.c.l.b16 %v2337
    %v2898 = vunpack.c.l.b16 %v2338
    %v2899 = vunpack.c.h.b16 %v2338
    %v2900 = vunpack.c.l.b16 %v2339
    %v2901 = vunpack.c.h.b16 %v2339
    %v2902 = vunpack.c.l.b16 %v2340
    %v2903 = vunpack.c.l.b16 %v2341
    %v2904 = vunpack.c.h.b16 %v2341
    %v2905 = vunpack.c.l.b16 %v2342
    %v2906 = vunpack.c.h.b16 %v2342
    %v2907 = vunpack.c.l.b16 %v2343
    %v2908 = vunpack.c.l.b16 %v2344
    %v2909 = vunpack.c.h.b16 %v2344
    %v2910 = vunpack.c.l.b16 %v2345
    %v2911 = vunpack.c.h.b16 %v2345
    %v2912 = vunpack.c.l.b16 %v2346
    %v2913 = vunpack.c.l.b16 %v2347
    %v2914 = vunpack.c.h.b16 %v2347
    %v2915 = vunpack.c.l.b16 %v2348
    %v2916 = vunpack.c.h.b16 %v2348
    %v2917 = vunpack.c.l.b16 %v2349
    %v2918 = vunpack.c.l.b16 %v2350
    %v2919 = vunpack.c.h.b16 %v2350
    %v2920 = vunpack.c.l.b16 %v2351
    %v2921 = vunpack.c.h.b16 %v2351
    %v2922 = vunpack.c.l.b16 %v2352
    %v2923 = vunpack.c.l.b16 %v2353
    %v2924 = vunpack.c.h.b16 %v2353
    %v2925 = vunpack.c.l.b16 %v2354
    %v2926 = vunpack.c.h.b16 %v2354
    %v2927 = vunpack.c.l.b16 %v2355
    %v2928 = vunpack.c.l.b16 %v2356
    %v2929 = vunpack.c.h.b16 %v2356
    %v2930 = vunpack.c.l.b16 %v2357
    %v2931 = vunpack.c.h.b16 %v2357
    %v2932 = vunpack.c.l.b16 %v2358
    %v2933 = vunpack.c.l.b16 %v2359
    %v2934 = vunpack.c.h.b16 %v2359
    %v2935 = vunpack.c.l.b16 %v2360
    %v2936 = vunpack.c.h.b16 %v2360
    %v2937 = vunpack.c.l.b16 %v2361
    %v2938 = vunpack.c.l.b16 %v2362
    %v2939 = vunpack.c.h.b16 %v2362
    %v2940 = vunpack.c.l.b16 %v2363
    %v2941 = vunpack.c.h.b16 %v2363
    %v2942 = vunpack.c.l.b16 %v2364
    %v2943 = vunpack.c.l.b16 %v2365
    %v2944 = vunpack.c.h.b16 %v2365
    %v2945 = vunpack.c.l.b16 %v2366
    %v2946 = vunpack.c.h.b16 %v2366
    %v2947 = vunpack.c.l.b16 %v2367
    %v2948 = vunpack.c.l.b16 %v2368
    %v2949 = vunpack.c.h.b16 %v2368
    %v2950 = vunpack.c.l.b16 %v2369
    %v2951 = vunpack.c.h.b16 %v2369
    %v2952 = vunpack.c.l.b16 %v2370
    %v2953 = vunpack.c.l.b16 %v2371
    %v2954 = vunpack.c.h.b16 %v2371
    %v2955 = vunpack.c.l.b16 %v2372
    %v2956 = vunpack.c.h.b16 %v2372
    %v2957 = vunpack.c.l.b16 %v2373
    %v2958 = vunpack.c.l.b16 %v2374
    %v2959 = vunpack.c.h.b16 %v2374
    %v2960 = vunpack.c.l.b16 %v2375
    %v2961 = vunpack.c.h.b16 %v2375
    %v2962 = vunpack.c.l.b16 %v2376
    %v2963 = vunpack.c.l.b16 %v2377
    %v2964 = vunpack.c.h.b16 %v2377
    %v2965 = vunpack.c.l.b16 %v2378
    %v2966 = vunpack.c.h.b16 %v2378
    %v2967 = vunpack.c.l.b16 %v2379
    %v2968 = vunpack.c.l.b16 %v2380
    %v2969 = vunpack.c.h.b16 %v2380
    %v2970 = vunpack.c.l.b16 %v2381
    %v2971 = vunpack.c.h.b16 %v2381
    %v2972 = vunpack.c.l.b16 %v2382
    %v2973 = vunpack.c.l.b16 %v2383
    %v2974 = vunpack.c.h.b16 %v2383
    %v2975 = vunpack.c.l.b16 %v2384
    %v2976 = vunpack.c.h.b16 %v2384
    %v2977 = vunpack.c.l.b16 %v2385
    %v2978 = vunpack.c.l.b16 %v2386
    %v2979 = vunpack.c.h.b16 %v2386
    %v2980 = vunpack.c.l.b16 %v2387
    %v2981 = vunpack.c.h.b16 %v2387
    %v2982 = vunpack.c.l.b16 %v2388
    %v2983 = vunpack.c.l.b16 %v2389
    %v2984 = vunpack.c.h.b16 %v2389
    %v2985 = vunpack.c.l.b16 %v2390
    %v2986 = vunpack.c.h.b16 %v2390
    %v2987 = vunpack.c.l.b16 %v2391
    %v2988 = vunpack.c.l.b16 %v2392
    %v2989 = vunpack.c.h.b16 %v2392
    %v2990 = vunpack.c.l.b16 %v2393
    %v2991 = vunpack.c.h.b16 %v2393
    %v2992 = vunpack.c.l.b16 %v2394
    %v2993 = vunpack.c.l.b16 %v2395
    %v2994 = vunpack.c.h.b16 %v2395
    %v2995 = vunpack.c.l.b16 %v2396
    %v2996 = vunpack.c.h.b16 %v2396
    %v2997 = vunpack.c.l.b16 %v2397
    %v2998 = vunpack.c.l.b16 %v2398
    %v2999 = vunpack.c.h.b16 %v2398
    %v3000 = vunpack.c.l.b16 %v2399
    %v3001 = vunpack.c.h.b16 %v2399
    %v3002 = vunpack.c.l.b16 %v2400
    %v3003 = vunpack.c.l.b16 %v2401
    %v3004 = vunpack.c.h.b16 %v2401
    %v3005 = vunpack.c.l.b16 %v2402
    %v3006 = vunpack.c.h.b16 %v2402
    %v3007 = vunpack.c.l.b16 %v2403
    %v3008 = vunpack.c.l.b16 %v2404
    %v3009 = vunpack.c.h.b16 %v2404
    %v3010 = vunpack.c.l.b16 %v2405
    %v3011 = vunpack.c.h.b16 %v2405
    %v3012 = vunpack.c.l.b16 %v2406
    %v3013 = vunpack.c.l.b16 %v2407
    %v3014 = vunpack.c.h.b16 %v2407
    %v3015 = vunpack.c.l.b16 %v2408
    %v3016 = vunpack.c.h.b16 %v2408
    %v3017 = vunpack.c.l.b16 %v2409
    %v3018 = vunpack.c.l.b16 %v2410
    %v3019 = vunpack.c.h.b16 %v2410
    %v3020 = vunpack.c.l.b16 %v2411
    %v3021 = vunpack.c.h.b16 %v2411
    %v3022 = vunpack.c.l.b16 %v2412
    %v3023 = vunpack.c.l.b16 %v2413
    %v3024 = vunpack.c.h.b16 %v2413
    %v3025 = vunpack.c.l.b16 %v2414
    %v3026 = vunpack.c.h.b16 %v2414
    %v3027 = vunpack.c.l.b16 %v2415
    %v3028 = vunpack.c.l.b16 %v2416
    %v3029 = vunpack.c.h.b16 %v2416
    %v3030 = vunpack.c.l.b16 %v2417
    %v3031 = vunpack.c.h.b16 %v2417
    %v3032 = vunpack.c.l.b16 %v2418
    %v3033 = vunpack.c.l.b16 %v2419
    %v3034 = vunpack.c.h.b16 %v2419
    %v3035 = vunpack.c.l.b16 %v2420
    %v3036 = vunpack.c.h.b16 %v2420
    %v3037 = vunpack.c.l.b16 %v2421
    %v3038 = vunpack.c.l.b16 %v2422
    %v3039 = vunpack.c.h.b16 %v2422
    %v3040 = vunpack.c.l.b16 %v2423
    %v3041 = vunpack.c.h.b16 %v2423
    %v3042 = vunpack.c.l.b16 %v2424
    %v3043 = vunpack.c.l.b16 %v2425
    %v3044 = vunpack.c.h.b16 %v2425
    %v3045 = vunpack.c.l.b16 %v2426
    %v3046 = vunpack.c.h.b16 %v2426
    %v3047 = vunpack.c.l.b16 %v2427
    %v3048 = vunpack.c.l.b16 %v2428
    %v3049 = vunpack.c.h.b16 %v2428
    %v3050 = vunpack.c.l.b16 %v2429
    %v3051 = vunpack.c.h.b16 %v2429
    %v3052 = vunpack.c.l.b16 %v2430
    %v3053 = vpack.c.b16 %v2688, %v2683
    %v3054 = vpack.c.b16 %v2689, %v2684
    %v3055 = vpack.c.b16 %v2690, %v2685
    %v3056 = vpack.c.b16 %v2691, %v2686
    %v3057 = vpack.c.b16 %v2692, %v2687
    %v3058 = vpack.c.b16 %v2698, %v2693
    %v3059 = vpack.c.b16 %v2699, %v2694
    %v3060 = vpack.c.b16 %v2700, %v2695
    %v3061 = vpack.c.b16 %v2701, %v2696
    %v3062 = vpack.c.b16 %v2702, %v2697
    %v3063 = vpack.c.b16 %v2708, %v2703
    %v3064 = vpack.c.b16 %v2709, %v2704
    %v3065 = vpack.c.b16 %v2710, %v2705
    %v3066 = vpack.c.b16 %v2711, %v2706
    %v3067 = vpack.c.b16 %v2712, %v2707
    %v3068 = vpack.c.b16 %v2718, %v2713
    %v3069 = vpack.c.b16 %v2719, %v2714
    %v3070 = vpack.c.b16 %v2720, %v2715
    %v3071 = vpack.c.b16 %v2721, %v2716
    %v3072 = vpack.c.b16 %v2722, %v2717
    %v3073 = vpack.c.b16 %v2728, %v2723
    %v3074 = vpack.c.b16 %v2729, %v2724
    %v3075 = vpack.c.b16 %v2730, %v2725
    %v3076 = vpack.c.b16 %v2731, %v2726
    %v3077 = vpack.c.b16 %v2732, %v2727
    %v3078 = vpack.c.b16 %v2738, %v2733
    %v3079 = vpack.c.b16 %v2739, %v2734
    %v3080 = vpack.c.b16 %v2740, %v2735
    %v3081 = vpack.c.b16 %v2741, %v2736
    %v3082 = vpack.c.b16 %v2742, %v2737
    %v3083 = vpack.c.b16 %v2748, %v2743
    %v3084 = vpack.c.b16 %v2749, %v2744
    %v3085 = vpack.c.b16 %v2750, %v2745
    %v3086 = vpack.c.b16 %v2751, %v2746
    %v3087 = vpack.c.b16 %v2752, %v2747
    %v3088 = vpack.c.b16 %v2758, %v2753
    %v3089 = vpack.c.b16 %v2759, %v2754
    %v3090 = vpack.c.b16 %v2760, %v2755
    %v3091 = vpack.c.b16 %v2761, %v2756
    %v3092 = vpack.c.b16 %v2762, %v2757
    %v3093 = vpack.c.b16 %v2768, %v2763
    %v3094 = vpack.c.b16 %v2769, %v2764
    %v3095 = vpack.c.b16 %v2770, %v2765
    %v3096 = vpack.c.b16 %v2771, %v2766
    %v3097 = vpack.c.b16 %v2772, %v2767
    %v3098 = vpack.c.b16 %v2778, %v2773
    %v3099 = vpack.c.b16 %v2779, %v2774
    %v3100 = vpack.c.b16 %v2780, %v2775
    %v3101 = vpack.c.b16 %v2781, %v2776
    %v3102 = vpack.c.b16 %v2782, %v2777
    %v3103 = vpack.c.b16 %v2788, %v2783
    %v3104 = vpack.c.b16 %v2789, %v2784
    %v3105 = vpack.c.b16 %v2790, %v2785
    %v3106 = vpack.c.b16 %v2791, %v2786
    %v3107 = vpack.c.b16 %v2792, %v2787
    %v3108 = vpack.c.b16 %v2798, %v2793
    %v3109 = vpack.c.b16 %v2799, %v2794
    %v3110 = vpack.c.b16 %v2800, %v2795
    %v3111 = vpack.c.b16 %v2801, %v2796
    %v3112 = vpack.c.b16 %v2802, %v2797
    %v3113 = vpack.c.b16 %v2808, %v2803
    %v3114 = vpack.c.b16 %v2809, %v2804
    %v3115 = vpack.c.b16 %v2810, %v2805
    %v3116 = vpack.c.b16 %v2811, %v2806
    %v3117 = vpack.c.b16 %v2812, %v2807
    %v3118 = vpack.c.b16 %v2818, %v2813
    %v3119 = vpack.c.b16 %v2819, %v2814
    %v3120 = vpack.c.b16 %v2820, %v2815
    %v3121 = vpack.c.b16 %v2821, %v2816
    %v3122 = vpack.c.b16 %v2822, %v2817
    %v3123 = vpack.c.b16 %v2828, %v2823
    %v3124 = vpack.c.b16 %v2829, %v2824
    %v3125 = vpack.c.b16 %v2830, %v2825
    %v3126 = vpack.c.b16 %v2831, %v2826
    %v3127 = vpack.c.b16 %v2832, %v2827
    %v3128 = vpack.c.b16 %v2838, %v2833
    %v3129 = vpack.c.b16 %v2839, %v2834
    %v3130 = vpack.c.b16 %v2840, %v2835
    %v3131 = vpack.c.b16 %v2841, %v2836
    %v3132 = vpack.c.b16 %v2842, %v2837
    %v3133 = vpack.c.b16 %v2848, %v2843
    %v3134 = vpack.c.b16 %v2849, %v2844
    %v3135 = vpack.c.b16 %v2850, %v2845
    %v3136 = vpack.c.b16 %v2851, %v2846
    %v3137 = vpack.c.b16 %v2852, %v2847
    %v3138 = vpack.c.b16 %v2858, %v2853
    %v3139 = vpack.c.b16 %v2859, %v2854
    %v3140 = vpack.c.b16 %v2860, %v2855
    %v3141 = vpack.c.b16 %v2861, %v2856
    %v3142 = vpack.c.b16 %v2862, %v2857
    %v3143 = vpack.c.b16 %v2868, %v2863
    %v3144 = vpack.c.b16 %v2869, %v2864
    %v3145 = vpack.c.b16 %v2870, %v2865
    %v3146 = vpack.c.b16 %v2871, %v2866
    %v3147 = vpack.c.b16 %v2872, %v2867
    %v3148 = vpack.c.b16 %v2878, %v2873
    %v3149 = vpack.c.b16 %v2879, %v2874
    %v3150 = vpack.c.b16 %v2880, %v2875
    %v3151 = vpack.c.b16 %v2881, %v2876
    %v3152 = vpack.c.b16 %v2882, %v2877
    %v3153 = vpack.c.b16 %v2888, %v2883
    %v3154 = vpack.c.b16 %v2889, %v2884
    %v3155 = vpack.c.b16 %v2890, %v2885
    %v3156 = vpack.c.b16 %v2891, %v2886
    %v3157 = vpack.c.b16 %v2892, %v2887
    %v3158 = vpack.c.b16 %v2898, %v2893
    %v3159 = vpack.c.b16 %v2899, %v2894
    %v3160 = vpack.c.b16 %v2900, %v2895
    %v3161 = vpack.c.b16 %v2901, %v2896
    %v3162 = vpack.c.b16 %v2902, %v2897
    %v3163 = vpack.c.b16 %v2908, %v2903
    %v3164 = vpack.c.b16 %v2909, %v2904
    %v3165 = vpack.c.b16 %v2910, %v2905
    %v3166 = vpack.c.b16 %v2911, %v2906
    %v3167 = vpack.c.b16 %v2912, %v2907
    %v3168 = vpack.c.b16 %v2918, %v2913
    %v3169 = vpack.c.b16 %v2919, %v2914
    %v3170 = vpack.c.b16 %v2920, %v2915
    %v3171 = vpack.c.b16 %v2921, %v2916
    %v3172 = vpack.c.b16 %v2922, %v2917
    %v3173 = vpack.c.b16 %v2928, %v2923
    %v3174 = vpack.c.b16 %v2929, %v2924
    %v3175 = vpack.c.b16 %v2930, %v2925
    %v3176 = vpack.c.b16 %v2931, %v2926
    %v3177 = vpack.c.b16 %v2932, %v2927
    %v3178 = vpack.c.b16 %v2938, %v2933
    %v3179 = vpack.c.b16 %v2939, %v2934
    %v3180 = vpack.c.b16 %v2940, %v2935
    %v3181 = vpack.c.b16 %v2941, %v2936
    %v3182 = vpack.c.b16 %v2942, %v2937
    %v3183 = vpack.c.b16 %v2948, %v2943
    %v3184 = vpack.c.b16 %v2949, %v2944
    %v3185 = vpack.c.b16 %v2950, %v2945
    %v3186 = vpack.c.b16 %v2951, %v2946
    %v3187 = vpack.c.b16 %v2952, %v2947
    %v3188 = vpack.c.b16 %v2958, %v2953
    %v3189 = vpack.c.b16 %v2959, %v2954
    %v3190 = vpack.c.b16 %v2960, %v2955
    %v3191 = vpack.c.b16 %v2961, %v2956
    %v3192 = vpack.c.b16 %v2962, %v2957
    %v3193 = vpack.c.b16 %v2968, %v2963
    %v3194 = vpack.c.b16 %v2969, %v2964
    %v3195 = vpack.c.b16 %v2970, %v2965
    %v3196 = vpack.c.b16 %v2971, %v2966
    %v3197 = vpack.c.b16 %v2972, %v2967
    %v3198 = vpack.c.b16 %v2978, %v2973
    %v3199 = vpack.c.b16 %v2979, %v2974
    %v3200 = vpack.c.b16 %v2980, %v2975
    %v3201 = vpack.c.b16 %v2981, %v2976
    %v3202 = vpack.c.b16 %v2982, %v2977
    %v3203 = vpack.c.b16 %v2988, %v2983
    %v3204 = vpack.c.b16 %v2989, %v2984
    %v3205 = vpack.c.b16 %v2990, %v2985
    %v3206 = vpack.c.b16 %v2991, %v2986
    %v3207 = vpack.c.b16 %v2992, %v2987
    %v3208 = vpack.c.b16 %v2998, %v2993
    %v3209 = vpack.c.b16 %v2999, %v2994
    %v3210 = vpack.c.b16 %v3000, %v2995
    %v3211 = vpack.c.b16 %v3001, %v2996
    %v3212 = vpack.c.b16 %v3002, %v2997
    %v3213 = vpack.c.b16 %v3008, %v3003
    %v3214 = vpack.c.b16 %v3009, %v3004
    %v3215 = vpack.c.b16 %v3010, %v3005
    %v3216 = vpack.c.b16 %v3011, %v3006
    %v3217 = vpack.c.b16 %v3012, %v3007
    %v3218 = vpack.c.b16 %v3018, %v3013
    %v3219 = vpack.c.b16 %v3019, %v3014
    %v3220 = vpack.c.b16 %v3020, %v3015
    %v3221 = vpack.c.b16 %v3021, %v3016
    %v3222 = vpack.c.b16 %v3022, %v3017
    %v3223 = vpack.c.b16 %v3028, %v3023
    %v3224 = vpack.c.b16 %v3029, %v3024
    %v3225 = vpack.c.b16 %v3030, %v3025
    %v3226 = vpack.c.b16 %v3031, %v3026
    %v3227 = vpack.c.b16 %v3032, %v3027
    %v3228 = vpack.c.b16 %v3038, %v3033
    %v3229 = vpack.c.b16 %v3039, %v3034
    %v3230 = vpack.c.b16 %v3040, %v3035
    %v3231 = vpack.c.b16 %v3041, %v3036
    %v3232 = vpack.c.b16 %v3042, %v3037
    %v3233 = vpack.c.b16 %v3048, %v3043
    %v3234 = vpack.c.b16 %v3049, %v3044
    %v3235 = vpack.c.b16 %v3050, %v3045
    %v3236 = vpack.c.b16 %v3051, %v3046
    %v3237 = vpack.c.b16 %v3052, %v3047
    %v3424 = vsel %vm1698, %v2207, 0
    %3426 = vmatprep.subr.bf16.mxu0 %v3089
    %3427 = vmatpush1.bf16.msra.mxu0 %v3088
    %3428 = vmatprep.subr.bf16.mxu0 %v3084
    %3429 = vmatpush1.bf16.msra.mxu0 %v3083
    %3430 = vmatprep.subr.bf16.mxu0 %v3079
    %3431 = vmatpush1.bf16.msra.mxu0 %v3078
    %3432 = vmatprep.subr.bf16.mxu0 %v3074
    %3433 = vmatpush1.bf16.msra.mxu0 %v3073
    %3434 = vmatprep.subr.bf16.mxu0 %v3069
    %3435 = vmatpush1.bf16.msra.mxu0 %v3068
    %3436 = vmatprep.subr.bf16.mxu0 %v3064
    %3437 = vmatpush1.bf16.msra.mxu0 %v3063
    %3438 = vmatprep.subr.bf16.mxu0 %v3059
    %3439 = vmatpush1.bf16.msra.mxu0 %v3058
    %3440 = vmatprep.subr.bf16.mxu0 %v3054
    %3441 = vmatpush1.bf16.msra.mxu0 %v3053
    %3442 = vmatprep.subr.bf16.mxu0 %v3129
    %3443 = vmatpush2.bf16.msra.mxu0 %v3128
    %3444 = vmatprep.subr.bf16.mxu0 %v3124
    %3445 = vmatpush2.bf16.msra.mxu0 %v3123
    %3446 = vmatprep.subr.bf16.mxu0 %v3119
    %3447 = vmatpush2.bf16.msra.mxu0 %v3118
    %3448 = vmatprep.subr.bf16.mxu0 %v3114
    %3449 = vmatpush2.bf16.msra.mxu0 %v3113
    %3450 = vmatprep.subr.bf16.mxu0 %v3109
    %3451 = vmatpush2.bf16.msra.mxu0 %v3108
    %3452 = vmatprep.subr.bf16.mxu0 %v3104
    %3453 = vmatpush2.bf16.msra.mxu0 %v3103
    %3454 = vmatprep.subr.bf16.mxu0 %v3099
    %3455 = vmatpush2.bf16.msra.mxu0 %v3098
    %3456 = vmatprep.subr.bf16.mxu0 %v3094
    %3457 = vmatpush2.bf16.msra.mxu0 %v3093
    %3458 = vmatprep.mubr.bf16.mxu0 %v2204
    %3459 = vmatmul.mubr.bf16.gmra.mxu0 %v2203
    %v3460 = vpop.f32.mrf.mxu0
    %v3461 = vadd.f32 %v2439, %v3460
    %v3462 = vpop.f32.mrf.mxu0
    %v3463 = vadd.f32 %v2443, %v3462
    %v3464 = vpop.f32.mrf.mxu0
    %v3465 = vpop.f32.mrf.mxu0
    %3466 = vdwg.mxu0
    %3467 = vmatprep.subr.bf16.mxu0 %v3169
    %3468 = vmatpush1.bf16.msra.mxu0 %v3168
    %3469 = vmatprep.subr.bf16.mxu0 %v3164
    %3470 = vmatpush1.bf16.msra.mxu0 %v3163
    %3471 = vmatprep.subr.bf16.mxu0 %v3159
    %3472 = vmatpush1.bf16.msra.mxu0 %v3158
    %3473 = vmatprep.subr.bf16.mxu0 %v3154
    %3474 = vmatpush1.bf16.msra.mxu0 %v3153
    %3475 = vmatprep.subr.bf16.mxu0 %v3149
    %3476 = vmatpush1.bf16.msra.mxu0 %v3148
    %3477 = vmatprep.subr.bf16.mxu0 %v3144
    %3478 = vmatpush1.bf16.msra.mxu0 %v3143
    %3479 = vmatprep.subr.bf16.mxu0 %v3139
    %3480 = vmatpush1.bf16.msra.mxu0 %v3138
    %3481 = vmatprep.subr.bf16.mxu0 %v3134
    %3482 = vmatpush1.bf16.msra.mxu0 %v3133
    %3483 = vmatprep.subr.bf16.mxu0 %v3209
    %3484 = vmatpush2.bf16.msra.mxu0 %v3208
    %3485 = vmatprep.subr.bf16.mxu0 %v3204
    %3486 = vmatpush2.bf16.msra.mxu0 %v3203
    %3487 = vmatprep.subr.bf16.mxu0 %v3199
    %3488 = vmatpush2.bf16.msra.mxu0 %v3198
    %3489 = vmatprep.subr.bf16.mxu0 %v3194
    %3490 = vmatpush2.bf16.msra.mxu0 %v3193
    %3491 = vmatprep.subr.bf16.mxu0 %v3189
    %3492 = vmatpush2.bf16.msra.mxu0 %v3188
    %3493 = vmatprep.subr.bf16.mxu0 %v3184
    %3494 = vmatpush2.bf16.msra.mxu0 %v3183
    %3495 = vmatprep.subr.bf16.mxu0 %v3179
    %3496 = vmatpush2.bf16.msra.mxu0 %v3178
    %3497 = vmatprep.subr.bf16.mxu0 %v3174
    %3498 = vmatpush2.bf16.msra.mxu0 %v3173
    %3499 = vmatprep.mubr.bf16.mxu0 %v2206
    %3500 = vmatmul.mubr.bf16.gmra.mxu0 %v2205
    %v3501 = vpop.f32.mrf.mxu0
    %v3502 = vadd.f32 %v3461, %v3501
    %v3503 = vpop.f32.mrf.mxu0
    %v3504 = vadd.f32 %v3463, %v3503
    %v3505 = vpop.f32.mrf.mxu0
    %v3506 = vpop.f32.mrf.mxu0
    %3507 = vdwg.mxu0
    %3508 = vmatprep.subr.bf16.mxu0 0
    %3509 = vmatpush1.bf16.msra.mxu0 0
    %3510 = vmatprep.subr.bf16.mxu0 0
    %3511 = vmatpush1.bf16.msra.mxu0 0
    %3512 = vmatprep.subr.bf16.mxu0 0
    %3513 = vmatpush1.bf16.msra.mxu0 0
    %3514 = vmatprep.subr.bf16.mxu0 %v3234
    %3515 = vmatpush1.bf16.msra.mxu0 %v3233
    %3516 = vmatprep.subr.bf16.mxu0 %v3229
    %3517 = vmatpush1.bf16.msra.mxu0 %v3228
    %3518 = vmatprep.subr.bf16.mxu0 %v3224
    %3519 = vmatpush1.bf16.msra.mxu0 %v3223
    %3520 = vmatprep.subr.bf16.mxu0 %v3219
    %3521 = vmatpush1.bf16.msra.mxu0 %v3218
    %3522 = vmatprep.subr.bf16.mxu0 %v3214
    %3523 = vmatpush1.bf16.msra.mxu0 %v3213
    %3524 = vmatprep.subr.bf16.mxu0 0
    %3525 = vmatpush2.bf16.msra.mxu0 0
    %3526 = vmatprep.subr.bf16.mxu0 0
    %3527 = vmatpush2.bf16.msra.mxu0 0
    %3528 = vmatprep.subr.bf16.mxu0 0
    %3529 = vmatpush2.bf16.msra.mxu0 0
    %3530 = vmatprep.subr.bf16.mxu0 0
    %3531 = vmatpush2.bf16.msra.mxu0 0
    %3532 = vmatprep.subr.bf16.mxu0 0
    %3533 = vmatpush2.bf16.msra.mxu0 0
    %3534 = vmatprep.subr.bf16.mxu0 0
    %3535 = vmatpush2.bf16.msra.mxu0 0
    %3536 = vmatprep.subr.bf16.mxu0 0
    %3537 = vmatpush2.bf16.msra.mxu0 0
    %3538 = vmatprep.subr.bf16.mxu0 0
    %3539 = vmatpush2.bf16.msra.mxu0 0
    %3540 = vmatprep.mubr.bf16.mxu0 0
    %3541 = vmatmul.mubr.bf16.gmra.mxu0 %v3424
    %v3542 = vpop.f32.mrf.mxu0
    %v3543 = vadd.f32 %v3502, %v3542
    %v3544 = vpop.f32.mrf.mxu0
    %v3545 = vadd.f32 %v3504, %v3544
    %v3546 = vpop.f32.mrf.mxu0
    %v3547 = vpop.f32.mrf.mxu0
    %3548 = vdwg.mxu0
    %3549 = vmatprep.subr.bf16.mxu0 %v3091
    %3550 = vmatpush1.bf16.msra.mxu0 %v3090
    %3551 = vmatprep.subr.bf16.mxu0 %v3086
    %3552 = vmatpush1.bf16.msra.mxu0 %v3085
    %3553 = vmatprep.subr.bf16.mxu0 %v3081
    %3554 = vmatpush1.bf16.msra.mxu0 %v3080
    %3555 = vmatprep.subr.bf16.mxu0 %v3076
    %3556 = vmatpush1.bf16.msra.mxu0 %v3075
    %3557 = vmatprep.subr.bf16.mxu0 %v3071
    %3558 = vmatpush1.bf16.msra.mxu0 %v3070
    %3559 = vmatprep.subr.bf16.mxu0 %v3066
    %3560 = vmatpush1.bf16.msra.mxu0 %v3065
    %3561 = vmatprep.subr.bf16.mxu0 %v3061
    %3562 = vmatpush1.bf16.msra.mxu0 %v3060
    %3563 = vmatprep.subr.bf16.mxu0 %v3056
    %3564 = vmatpush1.bf16.msra.mxu0 %v3055
    %3565 = vmatprep.subr.bf16.mxu0 %v3131
    %3566 = vmatpush2.bf16.msra.mxu0 %v3130
    %3567 = vmatprep.subr.bf16.mxu0 %v3126
    %3568 = vmatpush2.bf16.msra.mxu0 %v3125
    %3569 = vmatprep.subr.bf16.mxu0 %v3121
    %3570 = vmatpush2.bf16.msra.mxu0 %v3120
    %3571 = vmatprep.subr.bf16.mxu0 %v3116
    %3572 = vmatpush2.bf16.msra.mxu0 %v3115
    %3573 = vmatprep.subr.bf16.mxu0 %v3111
    %3574 = vmatpush2.bf16.msra.mxu0 %v3110
    %3575 = vmatprep.subr.bf16.mxu0 %v3106
    %3576 = vmatpush2.bf16.msra.mxu0 %v3105
    %3577 = vmatprep.subr.bf16.mxu0 %v3101
    %3578 = vmatpush2.bf16.msra.mxu0 %v3100
    %3579 = vmatprep.subr.bf16.mxu0 %v3096
    %3580 = vmatpush2.bf16.msra.mxu0 %v3095
    %3581 = vmatprep.mubr.bf16.mxu0 %v2204
    %3582 = vmatmul.mubr.bf16.gmra.mxu0 %v2203
    %v3583 = vpop.f32.mrf.mxu0
    %v3584 = vadd.f32 %v2447, %v3583
    %v3585 = vpop.f32.mrf.mxu0
    %v3586 = vadd.f32 %v2451, %v3585
    %v3587 = vpop.f32.mrf.mxu0
    %v3588 = vpop.f32.mrf.mxu0
    %3589 = vdwg.mxu0
    %3590 = vmatprep.subr.bf16.mxu0 %v3171
    %3591 = vmatpush1.bf16.msra.mxu0 %v3170
    %3592 = vmatprep.subr.bf16.mxu0 %v3166
    %3593 = vmatpush1.bf16.msra.mxu0 %v3165
    %3594 = vmatprep.subr.bf16.mxu0 %v3161
    %3595 = vmatpush1.bf16.msra.mxu0 %v3160
    %3596 = vmatprep.subr.bf16.mxu0 %v3156
    %3597 = vmatpush1.bf16.msra.mxu0 %v3155
    %3598 = vmatprep.subr.bf16.mxu0 %v3151
    %3599 = vmatpush1.bf16.msra.mxu0 %v3150
    %3600 = vmatprep.subr.bf16.mxu0 %v3146
    %3601 = vmatpush1.bf16.msra.mxu0 %v3145
    %3602 = vmatprep.subr.bf16.mxu0 %v3141
    %3603 = vmatpush1.bf16.msra.mxu0 %v3140
    %3604 = vmatprep.subr.bf16.mxu0 %v3136
    %3605 = vmatpush1.bf16.msra.mxu0 %v3135
    %3606 = vmatprep.subr.bf16.mxu0 %v3211
    %3607 = vmatpush2.bf16.msra.mxu0 %v3210
    %3608 = vmatprep.subr.bf16.mxu0 %v3206
    %3609 = vmatpush2.bf16.msra.mxu0 %v3205
    %3610 = vmatprep.subr.bf16.mxu0 %v3201
    %3611 = vmatpush2.bf16.msra.mxu0 %v3200
    %3612 = vmatprep.subr.bf16.mxu0 %v3196
    %3613 = vmatpush2.bf16.msra.mxu0 %v3195
    %3614 = vmatprep.subr.bf16.mxu0 %v3191
    %3615 = vmatpush2.bf16.msra.mxu0 %v3190
    %3616 = vmatprep.subr.bf16.mxu0 %v3186
    %3617 = vmatpush2.bf16.msra.mxu0 %v3185
    %3618 = vmatprep.subr.bf16.mxu0 %v3181
    %3619 = vmatpush2.bf16.msra.mxu0 %v3180
    %3620 = vmatprep.subr.bf16.mxu0 %v3176
    %3621 = vmatpush2.bf16.msra.mxu0 %v3175
    %3622 = vmatprep.mubr.bf16.mxu0 %v2206
    %3623 = vmatmul.mubr.bf16.gmra.mxu0 %v2205
    %v3624 = vpop.f32.mrf.mxu0
    %v3625 = vadd.f32 %v3584, %v3624
    %v3626 = vpop.f32.mrf.mxu0
    %v3627 = vadd.f32 %v3586, %v3626
    %v3628 = vpop.f32.mrf.mxu0
    %v3629 = vpop.f32.mrf.mxu0
    %3630 = vdwg.mxu0
    %3631 = vmatprep.subr.bf16.mxu0 0
    %3632 = vmatpush1.bf16.msra.mxu0 0
    %3633 = vmatprep.subr.bf16.mxu0 0
    %3634 = vmatpush1.bf16.msra.mxu0 0
    %3635 = vmatprep.subr.bf16.mxu0 0
    %3636 = vmatpush1.bf16.msra.mxu0 0
    %3637 = vmatprep.subr.bf16.mxu0 %v3236
    %3638 = vmatpush1.bf16.msra.mxu0 %v3235
    %3639 = vmatprep.subr.bf16.mxu0 %v3231
    %3640 = vmatpush1.bf16.msra.mxu0 %v3230
    %3641 = vmatprep.subr.bf16.mxu0 %v3226
    %3642 = vmatpush1.bf16.msra.mxu0 %v3225
    %3643 = vmatprep.subr.bf16.mxu0 %v3221
    %3644 = vmatpush1.bf16.msra.mxu0 %v3220
    %3645 = vmatprep.subr.bf16.mxu0 %v3216
    %3646 = vmatpush1.bf16.msra.mxu0 %v3215
    %3647 = vmatprep.subr.bf16.mxu0 0
    %3648 = vmatpush2.bf16.msra.mxu0 0
    %3649 = vmatprep.subr.bf16.mxu0 0
    %3650 = vmatpush2.bf16.msra.mxu0 0
    %3651 = vmatprep.subr.bf16.mxu0 0
    %3652 = vmatpush2.bf16.msra.mxu0 0
    %3653 = vmatprep.subr.bf16.mxu0 0
    %3654 = vmatpush2.bf16.msra.mxu0 0
    %3655 = vmatprep.subr.bf16.mxu0 0
    %3656 = vmatpush2.bf16.msra.mxu0 0
    %3657 = vmatprep.subr.bf16.mxu0 0
    %3658 = vmatpush2.bf16.msra.mxu0 0
    %3659 = vmatprep.subr.bf16.mxu0 0
    %3660 = vmatpush2.bf16.msra.mxu0 0
    %3661 = vmatprep.subr.bf16.mxu0 0
    %3662 = vmatpush2.bf16.msra.mxu0 0
    %3663 = vmatprep.mubr.bf16.mxu0 0
    %3664 = vmatmul.mubr.bf16.gmra.mxu0 %v3424
    %v3665 = vpop.f32.mrf.mxu0
    %v3666 = vadd.f32 %v3625, %v3665
    %v3667 = vpop.f32.mrf.mxu0
    %v3668 = vadd.f32 %v3627, %v3667
    %v3669 = vpop.f32.mrf.mxu0
    %v3670 = vpop.f32.mrf.mxu0
    %3671 = vdwg.mxu0
    %3672 = vmatprep.subr.bf16.mxu0 0
    %3673 = vmatpush1.bf16.msra.mxu0 %v3092
    %3674 = vmatprep.subr.bf16.mxu0 0
    %3675 = vmatpush1.bf16.msra.mxu0 %v3087
    %3676 = vmatprep.subr.bf16.mxu0 0
    %3677 = vmatpush1.bf16.msra.mxu0 %v3082
    %3678 = vmatprep.subr.bf16.mxu0 0
    %3679 = vmatpush1.bf16.msra.mxu0 %v3077
    %3680 = vmatprep.subr.bf16.mxu0 0
    %3681 = vmatpush1.bf16.msra.mxu0 %v3072
    %3682 = vmatprep.subr.bf16.mxu0 0
    %3683 = vmatpush1.bf16.msra.mxu0 %v3067
    %3684 = vmatprep.subr.bf16.mxu0 0
    %3685 = vmatpush1.bf16.msra.mxu0 %v3062
    %3686 = vmatprep.subr.bf16.mxu0 0
    %3687 = vmatpush1.bf16.msra.mxu0 %v3057
    %3688 = vmatprep.subr.bf16.mxu0 0
    %3689 = vmatpush2.bf16.msra.mxu0 %v3132
    %3690 = vmatprep.subr.bf16.mxu0 0
    %3691 = vmatpush2.bf16.msra.mxu0 %v3127
    %3692 = vmatprep.subr.bf16.mxu0 0
    %3693 = vmatpush2.bf16.msra.mxu0 %v3122
    %3694 = vmatprep.subr.bf16.mxu0 0
    %3695 = vmatpush2.bf16.msra.mxu0 %v3117
    %3696 = vmatprep.subr.bf16.mxu0 0
    %3697 = vmatpush2.bf16.msra.mxu0 %v3112
    %3698 = vmatprep.subr.bf16.mxu0 0
    %3699 = vmatpush2.bf16.msra.mxu0 %v3107
    %3700 = vmatprep.subr.bf16.mxu0 0
    %3701 = vmatpush2.bf16.msra.mxu0 %v3102
    %3702 = vmatprep.subr.bf16.mxu0 0
    %3703 = vmatpush2.bf16.msra.mxu0 %v3097
    %3704 = vmatprep.mubr.bf16.mxu0 %v2204
    %3705 = vmatmul.mubr.bf16.gmra.mxu0 %v2203
    %v3706 = vpop.f32.mrf.mxu0
    %v3707 = vadd.f32 %v2455, %v3706
    %v3708 = vpop.f32.mrf.mxu0
    %v3709 = vpop.f32.mrf.mxu0
    %v3710 = vpop.f32.mrf.mxu0
    %3711 = vdwg.mxu0
    %3712 = vmatprep.subr.bf16.mxu0 0
    %3713 = vmatpush1.bf16.msra.mxu0 %v3172
    %3714 = vmatprep.subr.bf16.mxu0 0
    %3715 = vmatpush1.bf16.msra.mxu0 %v3167
    %3716 = vmatprep.subr.bf16.mxu0 0
    %3717 = vmatpush1.bf16.msra.mxu0 %v3162
    %3718 = vmatprep.subr.bf16.mxu0 0
    %3719 = vmatpush1.bf16.msra.mxu0 %v3157
    %3720 = vmatprep.subr.bf16.mxu0 0
    %3721 = vmatpush1.bf16.msra.mxu0 %v3152
    %3722 = vmatprep.subr.bf16.mxu0 0
    %3723 = vmatpush1.bf16.msra.mxu0 %v3147
    %3724 = vmatprep.subr.bf16.mxu0 0
    %3725 = vmatpush1.bf16.msra.mxu0 %v3142
    %3726 = vmatprep.subr.bf16.mxu0 0
    %3727 = vmatpush1.bf16.msra.mxu0 %v3137
    %3728 = vmatprep.subr.bf16.mxu0 0
    %3729 = vmatpush2.bf16.msra.mxu0 %v3212
    %3730 = vmatprep.subr.bf16.mxu0 0
    %3731 = vmatpush2.bf16.msra.mxu0 %v3207
    %3732 = vmatprep.subr.bf16.mxu0 0
    %3733 = vmatpush2.bf16.msra.mxu0 %v3202
    %3734 = vmatprep.subr.bf16.mxu0 0
    %3735 = vmatpush2.bf16.msra.mxu0 %v3197
    %3736 = vmatprep.subr.bf16.mxu0 0
    %3737 = vmatpush2.bf16.msra.mxu0 %v3192
    %3738 = vmatprep.subr.bf16.mxu0 0
    %3739 = vmatpush2.bf16.msra.mxu0 %v3187
    %3740 = vmatprep.subr.bf16.mxu0 0
    %3741 = vmatpush2.bf16.msra.mxu0 %v3182
    %3742 = vmatprep.subr.bf16.mxu0 0
    %3743 = vmatpush2.bf16.msra.mxu0 %v3177
    %3744 = vmatprep.mubr.bf16.mxu0 %v2206
    %3745 = vmatmul.mubr.bf16.gmra.mxu0 %v2205
    %v3746 = vpop.f32.mrf.mxu0
    %v3747 = vadd.f32 %v3707, %v3746
    %v3748 = vpop.f32.mrf.mxu0
    %v3749 = vpop.f32.mrf.mxu0
    %v3750 = vpop.f32.mrf.mxu0
    %3751 = vdwg.mxu0
    %3752 = vmatprep.subr.bf16.mxu0 0
    %3753 = vmatpush1.bf16.msra.mxu0 0
    %3754 = vmatprep.subr.bf16.mxu0 0
    %3755 = vmatpush1.bf16.msra.mxu0 0
    %3756 = vmatprep.subr.bf16.mxu0 0
    %3757 = vmatpush1.bf16.msra.mxu0 0
    %3758 = vmatprep.subr.bf16.mxu0 0
    %3759 = vmatpush1.bf16.msra.mxu0 %v3237
    %3760 = vmatprep.subr.bf16.mxu0 0
    %3761 = vmatpush1.bf16.msra.mxu0 %v3232
    %3762 = vmatprep.subr.bf16.mxu0 0
    %3763 = vmatpush1.bf16.msra.mxu0 %v3227
    %3764 = vmatprep.subr.bf16.mxu0 0
    %3765 = vmatpush1.bf16.msra.mxu0 %v3222
    %3766 = vmatprep.subr.bf16.mxu0 0
    %3767 = vmatpush1.bf16.msra.mxu0 %v3217
    %3768 = vmatprep.subr.bf16.mxu0 0
    %3769 = vmatpush2.bf16.msra.mxu0 0
    %3770 = vmatprep.subr.bf16.mxu0 0
    %3771 = vmatpush2.bf16.msra.mxu0 0
    %3772 = vmatprep.subr.bf16.mxu0 0
    %3773 = vmatpush2.bf16.msra.mxu0 0
    %3774 = vmatprep.subr.bf16.mxu0 0
    %3775 = vmatpush2.bf16.msra.mxu0 0
    %3776 = vmatprep.subr.bf16.mxu0 0
    %3777 = vmatpush2.bf16.msra.mxu0 0
    %3778 = vmatprep.subr.bf16.mxu0 0
    %3779 = vmatpush2.bf16.msra.mxu0 0
    %3780 = vmatprep.subr.bf16.mxu0 0
    %3781 = vmatpush2.bf16.msra.mxu0 0
    %3782 = vmatprep.subr.bf16.mxu0 0
    %3783 = vmatpush2.bf16.msra.mxu0 0
    %3784 = vmatprep.mubr.bf16.mxu0 0
    %3785 = vmatmul.mubr.bf16.gmra.mxu0 %v3424
    %v3786 = vpop.f32.mrf.mxu0
    %v3787 = vadd.f32 %v3747, %v3786
    %v3788 = vpop.f32.mrf.mxu0
    %v3789 = vpop.f32.mrf.mxu0
    %v3790 = vpop.f32.mrf.mxu0
    %3791 = vdwg.mxu0
    %v3792 = vmul.f32 %v3543, 0.5
    %v3793 = vmul.f32 %v3545, 0.5
    %v3794 = vmul.f32 %v3666, 0.5
    %v3795 = vmul.f32 %v3668, 0.5
    %v3796 = vmul.f32 %v3787, 0.5
    %v3797 = vmul.f32 %v3543, 0.70710677
    %v3798 = vmul.f32 %v3545, 0.70710677
    %v3799 = vmul.f32 %v3666, 0.70710677
    %v3800 = vmul.f32 %v3668, 0.70710677
    %v3801 = vmul.f32 %v3787, 0.70710677
    %vm3802 = vcmp.ge.f32.partialorder %v3797, 0.0
    %vm3803 = vcmp.ge.f32.partialorder %v3798, 0.0
    %vm3804 = vcmp.ge.f32.partialorder %v3799, 0.0
    %vm3805 = vcmp.ge.f32.partialorder %v3800, 0.0
    %vm3806 = vcmp.ge.f32.partialorder %v3801, 0.0
    %v3807 = vsel %vm3802, 1.0, -1.0
    %v3808 = vsel %vm3803, 1.0, -1.0
    %v3809 = vsel %vm3804, 1.0, -1.0
    %v3810 = vsel %vm3805, 1.0, -1.0
    %v3811 = vsel %vm3806, 1.0, -1.0
    %v3812 = vand.u32 2147483647, %v3797
    %v3813 = vand.u32 2147483647, %v3798
    %v3814 = vand.u32 2147483647, %v3799
    %v3815 = vand.u32 2147483647, %v3800
    %v3816 = vand.u32 2147483647, %v3801
    %v3817 = vmul.f32 %v3812, 0.3275911
    %v3818 = vmul.f32 %v3813, 0.3275911
    %v3819 = vmul.f32 %v3814, 0.3275911
    %v3820 = vmul.f32 %v3815, 0.3275911
    %v3821 = vmul.f32 %v3816, 0.3275911
    %v3822 = vadd.f32 %v3817, 1.0
    %v3823 = vadd.f32 %v3818, 1.0
    %v3824 = vadd.f32 %v3819, 1.0
    %v3825 = vadd.f32 %v3820, 1.0
    %v3826 = vadd.f32 %v3821, 1.0
    %v3827 = vrcp.pop %v3822
    %v3828 = vmul.f32 1.0, %v3827
    %v3829 = vrcp.pop %v3823
    %v3830 = vmul.f32 1.0, %v3829
    %v3831 = vrcp.pop %v3824
    %v3832 = vmul.f32 1.0, %v3831
    %v3833 = vrcp.pop %v3825
    %v3834 = vmul.f32 1.0, %v3833
    %v3835 = vrcp.pop %v3826
    %v3836 = vmul.f32 1.0, %v3835
    %v3837 = vmul.f32 %v3828, 1.0614054
    %v3838 = vmul.f32 %v3830, 1.0614054
    %v3839 = vmul.f32 %v3832, 1.0614054
    %v3840 = vmul.f32 %v3834, 1.0614054
    %v3841 = vmul.f32 %v3836, 1.0614054
    %v3842 = vadd.f32 %v3837, -1.4531521
    %v3843 = vadd.f32 %v3838, -1.4531521
    %v3844 = vadd.f32 %v3839, -1.4531521
    %v3845 = vadd.f32 %v3840, -1.4531521
    %v3846 = vadd.f32 %v3841, -1.4531521
    %v3847 = vmul.f32 %v3828, %v3842
    %v3848 = vmul.f32 %v3830, %v3843
    %v3849 = vmul.f32 %v3832, %v3844
    %v3850 = vmul.f32 %v3834, %v3845
    %v3851 = vmul.f32 %v3836, %v3846
    %v3852 = vadd.f32 %v3847, 1.4214138
    %v3853 = vadd.f32 %v3848, 1.4214138
    %v3854 = vadd.f32 %v3849, 1.4214138
    %v3855 = vadd.f32 %v3850, 1.4214138
    %v3856 = vadd.f32 %v3851, 1.4214138
    %v3857 = vmul.f32 %v3828, %v3852
    %v3858 = vmul.f32 %v3830, %v3853
    %v3859 = vmul.f32 %v3832, %v3854
    %v3860 = vmul.f32 %v3834, %v3855
    %v3861 = vmul.f32 %v3836, %v3856
    %v3862 = vadd.f32 %v3857, -0.28449672
    %v3863 = vadd.f32 %v3858, -0.28449672
    %v3864 = vadd.f32 %v3859, -0.28449672
    %v3865 = vadd.f32 %v3860, -0.28449672
    %v3866 = vadd.f32 %v3861, -0.28449672
    %v3867 = vmul.f32 %v3828, %v3862
    %v3868 = vmul.f32 %v3830, %v3863
    %v3869 = vmul.f32 %v3832, %v3864
    %v3870 = vmul.f32 %v3834, %v3865
    %v3871 = vmul.f32 %v3836, %v3866
    %v3872 = vadd.f32 %v3867, 0.2548296
    %v3873 = vadd.f32 %v3868, 0.2548296
    %v3874 = vadd.f32 %v3869, 0.2548296
    %v3875 = vadd.f32 %v3870, 0.2548296
    %v3876 = vadd.f32 %v3871, 0.2548296
    %v3877 = vmul.f32 %v3828, %v3872
    %v3878 = vmul.f32 %v3830, %v3873
    %v3879 = vmul.f32 %v3832, %v3874
    %v3880 = vmul.f32 %v3834, %v3875
    %v3881 = vmul.f32 %v3836, %v3876
    %v3882 = vsub.f32 0.0, %v3812
    %v3883 = vsub.f32 0.0, %v3813
    %v3884 = vsub.f32 0.0, %v3814
    %v3885 = vsub.f32 0.0, %v3815
    %v3886 = vsub.f32 0.0, %v3816
    %v3887 = vmul.f32 %v3882, %v3812
    %v3888 = vmul.f32 %v3883, %v3813
    %v3889 = vmul.f32 %v3884, %v3814
    %v3890 = vmul.f32 %v3885, %v3815
    %v3891 = vmul.f32 %v3886, %v3816
    %v3892 = vmul.f32 %v3887, 1.442695
    %v3893 = vpow.pop %v3892
    %v3894 = vmul.f32 %v3888, 1.442695
    %v3895 = vpow.pop %v3894
    %v3896 = vmul.f32 %v3889, 1.442695
    %v3897 = vpow.pop %v3896
    %v3898 = vmul.f32 %v3890, 1.442695
    %v3899 = vpow.pop %v3898
    %v3900 = vmul.f32 %v3891, 1.442695
    %v3901 = vpow.pop %v3900
    %v3902 = vmul.f32 %v3877, %v3893
    %v3903 = vmul.f32 %v3878, %v3895
    %v3904 = vmul.f32 %v3879, %v3897
    %v3905 = vmul.f32 %v3880, %v3899
    %v3906 = vmul.f32 %v3881, %v3901
    %v3907 = vsub.f32 1.0, %v3902
    %v3908 = vsub.f32 1.0, %v3903
    %v3909 = vsub.f32 1.0, %v3904
    %v3910 = vsub.f32 1.0, %v3905
    %v3911 = vsub.f32 1.0, %v3906
    %v3912 = vmul.f32 %v3807, %v3907
    %v3913 = vmul.f32 %v3808, %v3908
    %v3914 = vmul.f32 %v3809, %v3909
    %v3915 = vmul.f32 %v3810, %v3910
    %v3916 = vmul.f32 %v3811, %v3911
    %v3917 = vadd.f32 %v3912, 1.0
    %v3918 = vadd.f32 %v3913, 1.0
    %v3919 = vadd.f32 %v3914, 1.0
    %v3920 = vadd.f32 %v3915, 1.0
    %v3921 = vadd.f32 %v3916, 1.0
    %v3922 = vmul.f32 %v3792, %v3917
    %v3923 = vmul.f32 %v3793, %v3918
    %v3924 = vmul.f32 %v3794, %v3919
    %v3925 = vmul.f32 %v3795, %v3920
    %v3926 = vmul.f32 %v3796, %v3921
    %v3927 = vpack.c.bf16 %v3922, %v3922
    %v3928 = vpack.c.bf16 %v3923, %v3923
    %v3929 = vpack.c.bf16 %v3924, %v3924
    %v3930 = vpack.c.bf16 %v3925, %v3925
    %v3931 = vpack.c.bf16 %v3926, %v3926
    %v3932 = vld [vmem:[#allocation7] sm:$0xff]
    %v3933 = vld [vmem:[#allocation7 + $0x8] sm:$0xff]
    %v3934 = vld [vmem:[#allocation7 + $0x10] sm:$0xff]
    %v3935 = vld [vmem:[#allocation7 + $0x18] sm:$0xff]
    %v3936 = vld [vmem:[#allocation7 + $0x20] sm:$0xff]
    %v3937 = vld [vmem:[#allocation7 + $0x28] sm:$0xff]
    %v3938 = vld [vmem:[#allocation7 + $0x30] sm:$0xff]
    %v3939 = vld [vmem:[#allocation7 + $0x38] sm:$0xff]
    %v3940 = vld [vmem:[#allocation7 + $0x40] sm:$0xff]
    %v3941 = vld [vmem:[#allocation7 + $0x48] sm:$0xff]
    %v3942 = vld [vmem:[#allocation7 + $0x50] sm:$0xff]
    %v3943 = vld [vmem:[#allocation7 + $0x58] sm:$0xff]
    %v3944 = vld [vmem:[#allocation7 + $0x60] sm:$0xff]
    %v3945 = vld [vmem:[#allocation7 + $0x68] sm:$0xff]
    %v3946 = vld [vmem:[#allocation7 + $0x70] sm:$0xff]
    %v3947 = vld [vmem:[#allocation7 + $0x78] sm:$0xff]
    %v3948 = vld [vmem:[#allocation7 + $0x80] sm:$0xff]
    %v3949 = vld [vmem:[#allocation7 + $0x88] sm:$0xff]
    %v3950 = vld [vmem:[#allocation7 + $0x90] sm:$0xff]
    %v3951 = vld [vmem:[#allocation7 + $0x98] sm:$0xff]
    %v3952 = vld [vmem:[#allocation7 + $0xa0] sm:$0xff]
    %v3953 = vld [vmem:[#allocation7 + $0xa8] sm:$0xff]
    %v3954 = vld [vmem:[#allocation7 + $0xb0] sm:$0xff]
    %v3955 = vld [vmem:[#allocation7 + $0xb8] sm:$0xff]
    %v3956 = vld [vmem:[#allocation7 + $0xc0] sm:$0xff]
    %v3957 = vld [vmem:[#allocation7 + $0xc8] sm:$0xff]
    %v3958 = vld [vmem:[#allocation7 + $0xd0] sm:$0xff]
    %v3959 = vld [vmem:[#allocation7 + $0xd8] sm:$0xff]
    %v3960 = vld [vmem:[#allocation7 + $0xe0] sm:$0xff]
    %v3961 = vld [vmem:[#allocation7 + $0xe8] sm:$0xff]
    %v3962 = vld [vmem:[#allocation7 + $0xf0] sm:$0xff]
    %v3963 = vld [vmem:[#allocation7 + $0xf8] sm:$0xff]
    %v3964 = vld [vmem:[#allocation7 + $0x100] sm:$0xff]
    %v3965 = vld [vmem:[#allocation7 + $0x108] sm:$0xff]
    %v3966 = vld [vmem:[#allocation7 + $0x110] sm:$0xff]
    %v3967 = vld [vmem:[#allocation7 + $0x118] sm:$0xff]
    %v3968 = vld [vmem:[#allocation7 + $0x120] sm:$0xff]
    %v3969 = vld [vmem:[#allocation7 + $0x128] sm:$0xff]
    %v3970 = vld [vmem:[#allocation7 + $0x130] sm:$0xff]
    %v3971 = vld [vmem:[#allocation7 + $0x138] sm:$0xff]
    %v3972 = vld [vmem:[#allocation7 + $0x140] sm:$0xff]
    %v3973 = vld [vmem:[#allocation7 + $0x148] sm:$0xff]
    %v3974 = vld [vmem:[#allocation7 + $0x150] sm:$0xff]
    %v3975 = vld [vmem:[#allocation7 + $0x158] sm:$0xff]
    %v3976 = vld [vmem:[#allocation7 + $0x160] sm:$0xff]
    %v3977 = vld [vmem:[#allocation7 + $0x168] sm:$0xff]
    %v3978 = vld [vmem:[#allocation7 + $0x170] sm:$0xff]
    %v3979 = vld [vmem:[#allocation7 + $0x178] sm:$0xff]
    %v3980 = vld [vmem:[#allocation7 + $0x180] sm:$0xff]
    %v3981 = vld [vmem:[#allocation7 + $0x188] sm:$0xff]
    %v3982 = vld [vmem:[#allocation7 + $0x190] sm:$0xff]
    %v3983 = vld [vmem:[#allocation7 + $0x198] sm:$0xff]
    %v3984 = vld [vmem:[#allocation7 + $0x1a0] sm:$0xff]
    %v3985 = vld [vmem:[#allocation7 + $0x1a8] sm:$0xff]
    %v3986 = vld [vmem:[#allocation7 + $0x1b0] sm:$0xff]
    %v3987 = vld [vmem:[#allocation7 + $0x1b8] sm:$0xff]
    %v3988 = vld [vmem:[#allocation7 + $0x1c0] sm:$0xff]
    %v3989 = vld [vmem:[#allocation7 + $0x1c8] sm:$0xff]
    %v3990 = vld [vmem:[#allocation7 + $0x1d0] sm:$0xff]
    %v3991 = vld [vmem:[#allocation7 + $0x1d8] sm:$0xff]
    %v3992 = vld [vmem:[#allocation7 + $0x1e0] sm:$0xff]
    %v3993 = vld [vmem:[#allocation7 + $0x1e8] sm:$0xff]
    %v3994 = vld [vmem:[#allocation7 + $0x1f0] sm:$0xff]
    %v3995 = vld [vmem:[#allocation7 + $0x1f8] sm:$0xff]
    %v3996 = vld [vmem:[#allocation7 + $0x200] sm:$0xff]
    %v3997 = vld [vmem:[#allocation7 + $0x208] sm:$0xff]
    %v3998 = vld [vmem:[#allocation7 + $0x210] sm:$0xff]
    %v3999 = vld [vmem:[#allocation7 + $0x218] sm:$0xff]
    %v4000 = vld [vmem:[#allocation7 + $0x220] sm:$0xff]
    %v4001 = vld [vmem:[#allocation7 + $0x228] sm:$0xff]
    %v4002 = vld [vmem:[#allocation7 + $0x230] sm:$0xff]
    %v4003 = vld [vmem:[#allocation7 + $0x238] sm:$0xff]
    %v4004 = vld [vmem:[#allocation7 + $0x240] sm:$0xff]
    %v4005 = vld [vmem:[#allocation7 + $0x248] sm:$0xff]
    %v4006 = vld [vmem:[#allocation7 + $0x250] sm:$0xff]
    %v4007 = vld [vmem:[#allocation7 + $0x258] sm:$0xff]
    %v4008 = vld [vmem:[#allocation7 + $0x260] sm:$0xff]
    %v4009 = vld [vmem:[#allocation7 + $0x268] sm:$0xff]
    %v4010 = vld [vmem:[#allocation7 + $0x270] sm:$0xff]
    %v4011 = vld [vmem:[#allocation7 + $0x278] sm:$0xff]
    %v4012 = vld [vmem:[#allocation7 + $0x280] sm:$0xff]
    %v4013 = vld [vmem:[#allocation7 + $0x288] sm:$0xff]
    %v4014 = vld [vmem:[#allocation7 + $0x290] sm:$0xff]
    %v4015 = vld [vmem:[#allocation7 + $0x298] sm:$0xff]
    %v4016 = vld [vmem:[#allocation7 + $0x2a0] sm:$0xff]
    %v4017 = vld [vmem:[#allocation7 + $0x2a8] sm:$0xff]
    %v4018 = vld [vmem:[#allocation7 + $0x2b0] sm:$0xff]
    %v4019 = vld [vmem:[#allocation7 + $0x2b8] sm:$0xff]
    %v4020 = vld [vmem:[#allocation7 + $0x2c0] sm:$0xff]
    %v4021 = vld [vmem:[#allocation7 + $0x2c8] sm:$0xff]
    %v4022 = vld [vmem:[#allocation7 + $0x2d0] sm:$0xff]
    %v4023 = vld [vmem:[#allocation7 + $0x2d8] sm:$0xff]
    %v4024 = vld [vmem:[#allocation7 + $0x2e0] sm:$0xff]
    %v4025 = vld [vmem:[#allocation7 + $0x2e8] sm:$0xff]
    %v4026 = vld [vmem:[#allocation7 + $0x2f0] sm:$0xff]
    %v4027 = vld [vmem:[#allocation7 + $0x2f8] sm:$0xff]
    %v4028 = vld [vmem:[#allocation7 + $0x300] sm:$0xff]
    %v4029 = vld [vmem:[#allocation7 + $0x308] sm:$0xff]
    %v4030 = vld [vmem:[#allocation7 + $0x310] sm:$0xff]
    %v4031 = vld [vmem:[#allocation7 + $0x318] sm:$0xff]
    %v4032 = vld [vmem:[#allocation7 + $0x320] sm:$0xff]
    %v4033 = vld [vmem:[#allocation7 + $0x328] sm:$0xff]
    %v4034 = vld [vmem:[#allocation7 + $0x330] sm:$0xff]
    %v4035 = vld [vmem:[#allocation7 + $0x338] sm:$0xff]
    %v4036 = vld [vmem:[#allocation7 + $0x340] sm:$0xff]
    %v4037 = vld [vmem:[#allocation7 + $0x348] sm:$0xff]
    %v4038 = vld [vmem:[#allocation7 + $0x350] sm:$0xff]
    %v4039 = vld [vmem:[#allocation7 + $0x358] sm:$0xff]
    %v4040 = vld [vmem:[#allocation7 + $0x360] sm:$0xff]
    %v4041 = vld [vmem:[#allocation7 + $0x368] sm:$0xff]
    %v4042 = vld [vmem:[#allocation7 + $0x370] sm:$0xff]
    %v4043 = vld [vmem:[#allocation7 + $0x378] sm:$0xff]
    %v4044 = vld [vmem:[#allocation7 + $0x380] sm:$0xff]
    %v4045 = vld [vmem:[#allocation7 + $0x388] sm:$0xff]
    %v4046 = vld [vmem:[#allocation7 + $0x390] sm:$0xff]
    %v4047 = vld [vmem:[#allocation7 + $0x398] sm:$0xff]
    %v4048 = vld [vmem:[#allocation7 + $0x3a0] sm:$0xff]
    %v4049 = vld [vmem:[#allocation7 + $0x3a8] sm:$0xff]
    %v4050 = vld [vmem:[#allocation7 + $0x3b0] sm:$0xff]
    %v4051 = vld [vmem:[#allocation7 + $0x3b8] sm:$0xff]
    %v4052 = vld [vmem:[#allocation7 + $0x3c0] sm:$0xff]
    %v4053 = vld [vmem:[#allocation7 + $0x3c8] sm:$0xff]
    %v4054 = vld [vmem:[#allocation7 + $0x3d0] sm:$0xff]
    %v4055 = vld [vmem:[#allocation7 + $0x3d8] sm:$0xff]
    %v4056 = vld [vmem:[#allocation7 + $0x3e0] sm:$0xff]
    %v4057 = vld [vmem:[#allocation7 + $0x3e8] sm:$0xff]
    %v4058 = vld [vmem:[#allocation7 + $0x3f0] sm:$0xff]
    %v4059 = vld [vmem:[#allocation7 + $0x3f8] sm:$0xff]
    %v4060 = vld [vmem:[#allocation7 + $0x400] sm:$0xff]
    %v4061 = vld [vmem:[#allocation7 + $0x408] sm:$0xff]
    %v4062 = vld [vmem:[#allocation7 + $0x410] sm:$0xff]
    %v4063 = vld [vmem:[#allocation7 + $0x418] sm:$0xff]
    %v4064 = vld [vmem:[#allocation7 + $0x420] sm:$0xff]
    %v4065 = vld [vmem:[#allocation7 + $0x428] sm:$0xff]
    %v4066 = vld [vmem:[#allocation7 + $0x430] sm:$0xff]
    %v4067 = vld [vmem:[#allocation7 + $0x438] sm:$0xff]
    %v4068 = vld [vmem:[#allocation7 + $0x440] sm:$0xff]
    %v4069 = vld [vmem:[#allocation7 + $0x448] sm:$0xff]
    %v4070 = vld [vmem:[#allocation7 + $0x450] sm:$0xff]
    %v4071 = vld [vmem:[#allocation7 + $0x458] sm:$0xff]
    %v4072 = vld [vmem:[#allocation7 + $0x460] sm:$0xff]
    %v4073 = vld [vmem:[#allocation7 + $0x468] sm:$0xff]
    %v4074 = vld [vmem:[#allocation7 + $0x470] sm:$0xff]
    %v4075 = vld [vmem:[#allocation7 + $0x478] sm:$0xff]
    %v4076 = vld [vmem:[#allocation7 + $0x480] sm:$0xff]
    %v4077 = vld [vmem:[#allocation7 + $0x488] sm:$0xff]
    %v4078 = vld [vmem:[#allocation7 + $0x490] sm:$0xff]
    %v4079 = vld [vmem:[#allocation7 + $0x498] sm:$0xff]
    %v4080 = vld [vmem:[#allocation7 + $0x4a0] sm:$0xff]
    %v4081 = vld [vmem:[#allocation7 + $0x4a8] sm:$0xff]
    %v4082 = vld [vmem:[#allocation7 + $0x4b0] sm:$0xff]
    %v4083 = vld [vmem:[#allocation7 + $0x4b8] sm:$0xff]
    %v4084 = vld [vmem:[#allocation7 + $0x4c0] sm:$0xff]
    %v4085 = vld [vmem:[#allocation7 + $0x4c8] sm:$0xff]
    %v4086 = vld [vmem:[#allocation7 + $0x4d0] sm:$0xff]
    %v4087 = vld [vmem:[#allocation7 + $0x4d8] sm:$0xff]
    %v4088 = vld [vmem:[#allocation7 + $0x4e0] sm:$0xff]
    %v4089 = vld [vmem:[#allocation7 + $0x4e8] sm:$0xff]
    %v4090 = vld [vmem:[#allocation7 + $0x4f0] sm:$0xff]
    %v4091 = vld [vmem:[#allocation7 + $0x4f8] sm:$0xff]
    %v4092 = vld [vmem:[#allocation7 + $0x500] sm:$0xff]
    %v4093 = vld [vmem:[#allocation7 + $0x508] sm:$0xff]
    %v4094 = vld [vmem:[#allocation7 + $0x510] sm:$0xff]
    %v4095 = vld [vmem:[#allocation7 + $0x518] sm:$0xff]
    %v4096 = vld [vmem:[#allocation7 + $0x520] sm:$0xff]
    %v4097 = vld [vmem:[#allocation7 + $0x528] sm:$0xff]
    %v4098 = vld [vmem:[#allocation7 + $0x530] sm:$0xff]
    %v4099 = vld [vmem:[#allocation7 + $0x538] sm:$0xff]
    %v4100 = vld [vmem:[#allocation7 + $0x540] sm:$0xff]
    %v4101 = vld [vmem:[#allocation7 + $0x548] sm:$0xff]
    %v4102 = vld [vmem:[#allocation7 + $0x550] sm:$0xff]
    %v4103 = vld [vmem:[#allocation7 + $0x558] sm:$0xff]
    %v4104 = vld [vmem:[#allocation7 + $0x560] sm:$0xff]
    %v4105 = vld [vmem:[#allocation7 + $0x568] sm:$0xff]
    %v4106 = vld [vmem:[#allocation7 + $0x570] sm:$0xff]
    %v4107 = vld [vmem:[#allocation7 + $0x578] sm:$0xff]
    %v4108 = vld [vmem:[#allocation7 + $0x580] sm:$0xff]
    %v4109 = vld [vmem:[#allocation7 + $0x588] sm:$0xff]
    %v4110 = vld [vmem:[#allocation7 + $0x590] sm:$0xff]
    %v4111 = vld [vmem:[#allocation7 + $0x598] sm:$0xff]
    %v4112 = vld [vmem:[#allocation7 + $0x5a0] sm:$0xff]
    %v4113 = vld [vmem:[#allocation7 + $0x5a8] sm:$0xff]
    %v4114 = vld [vmem:[#allocation7 + $0x5b0] sm:$0xff]
    %v4115 = vld [vmem:[#allocation7 + $0x5b8] sm:$0xff]
    %v4116 = vld [vmem:[#allocation7 + $0x5c0] sm:$0xff]
    %v4117 = vld [vmem:[#allocation7 + $0x5c8] sm:$0xff]
    %v4118 = vld [vmem:[#allocation7 + $0x5d0] sm:$0xff]
    %v4119 = vld [vmem:[#allocation7 + $0x5d8] sm:$0xff]
    %v4120 = vld [vmem:[#allocation7 + $0x5e0] sm:$0xff]
    %v4121 = vld [vmem:[#allocation7 + $0x5e8] sm:$0xff]
    %v4122 = vld [vmem:[#allocation7 + $0x5f0] sm:$0xff]
    %v4123 = vld [vmem:[#allocation7 + $0x5f8] sm:$0xff]
    %v4124 = vld [vmem:[#allocation7 + $0x600] sm:$0xff]
    %v4125 = vld [vmem:[#allocation7 + $0x608] sm:$0xff]
    %v4126 = vld [vmem:[#allocation7 + $0x610] sm:$0xff]
    %v4127 = vld [vmem:[#allocation7 + $0x618] sm:$0xff]
    %v4128 = vld [vmem:[#allocation7 + $0x620] sm:$0xff]
    %v4129 = vld [vmem:[#allocation7 + $0x628] sm:$0xff]
    %v4130 = vld [vmem:[#allocation7 + $0x630] sm:$0xff]
    %v4131 = vld [vmem:[#allocation7 + $0x638] sm:$0xff]
    %v4132 = vld [vmem:[#allocation7 + $0x640] sm:$0xff]
    %v4133 = vld [vmem:[#allocation7 + $0x648] sm:$0xff]
    %v4134 = vld [vmem:[#allocation7 + $0x650] sm:$0xff]
    %v4135 = vld [vmem:[#allocation7 + $0x658] sm:$0xff]
    %v4136 = vld [vmem:[#allocation7 + $0x660] sm:$0xff]
    %v4137 = vld [vmem:[#allocation7 + $0x668] sm:$0xff]
    %v4138 = vld [vmem:[#allocation7 + $0x670] sm:$0xff]
    %v4139 = vld [vmem:[#allocation7 + $0x678] sm:$0xff]
    %v4140 = vld [vmem:[#allocation7 + $0x680] sm:$0xff]
    %v4141 = vld [vmem:[#allocation7 + $0x688] sm:$0xff]
    %v4142 = vld [vmem:[#allocation7 + $0x690] sm:$0xff]
    %v4143 = vld [vmem:[#allocation7 + $0x698] sm:$0xff]
    %v4144 = vld [vmem:[#allocation7 + $0x6a0] sm:$0xff]
    %v4145 = vld [vmem:[#allocation7 + $0x6a8] sm:$0xff]
    %v4146 = vld [vmem:[#allocation7 + $0x6b0] sm:$0xff]
    %v4147 = vld [vmem:[#allocation7 + $0x6b8] sm:$0xff]
    %v4148 = vld [vmem:[#allocation7 + $0x6c0] sm:$0xff]
    %v4149 = vld [vmem:[#allocation7 + $0x6c8] sm:$0xff]
    %v4150 = vld [vmem:[#allocation7 + $0x6d0] sm:$0xff]
    %v4151 = vld [vmem:[#allocation7 + $0x6d8] sm:$0xff]
    %v4152 = vld [vmem:[#allocation7 + $0x6e0] sm:$0xff]
    %v4153 = vld [vmem:[#allocation7 + $0x6e8] sm:$0xff]
    %v4154 = vld [vmem:[#allocation7 + $0x6f0] sm:$0xff]
    %v4155 = vld [vmem:[#allocation7 + $0x6f8] sm:$0xff]
    %v4156 = vld [vmem:[#allocation7 + $0x700] sm:$0xff]
    %v4157 = vld [vmem:[#allocation7 + $0x708] sm:$0xff]
    %v4158 = vld [vmem:[#allocation7 + $0x710] sm:$0xff]
    %v4159 = vld [vmem:[#allocation7 + $0x718] sm:$0xff]
    %v4160 = vld [vmem:[#allocation7 + $0x720] sm:$0xff]
    %v4161 = vld [vmem:[#allocation7 + $0x728] sm:$0xff]
    %v4162 = vld [vmem:[#allocation7 + $0x730] sm:$0xff]
    %v4163 = vld [vmem:[#allocation7 + $0x738] sm:$0xff]
    %v4164 = vld [vmem:[#allocation7 + $0x740] sm:$0xff]
    %v4165 = vld [vmem:[#allocation7 + $0x748] sm:$0xff]
    %v4166 = vld [vmem:[#allocation7 + $0x750] sm:$0xff]
    %v4167 = vld [vmem:[#allocation7 + $0x758] sm:$0xff]
    %v4168 = vld [vmem:[#allocation7 + $0x760] sm:$0xff]
    %v4169 = vld [vmem:[#allocation7 + $0x768] sm:$0xff]
    %v4170 = vld [vmem:[#allocation7 + $0x770] sm:$0xff]
    %v4171 = vld [vmem:[#allocation7 + $0x778] sm:$0xff]
    %v4172 = vld [vmem:[#allocation7 + $0x780] sm:$0xff]
    %v4173 = vld [vmem:[#allocation7 + $0x788] sm:$0xff]
    %v4174 = vld [vmem:[#allocation7 + $0x790] sm:$0xff]
    %v4175 = vld [vmem:[#allocation7 + $0x798] sm:$0xff]
    %v4176 = vld [vmem:[#allocation7 + $0x7a0] sm:$0xff]
    %v4177 = vld [vmem:[#allocation7 + $0x7a8] sm:$0xff]
    %v4178 = vld [vmem:[#allocation7 + $0x7b0] sm:$0xff]
    %v4179 = vld [vmem:[#allocation7 + $0x7b8] sm:$0xff]
    %v4180 = vld [vmem:[#allocation7 + $0x7c0] sm:$0xff]
    %v4181 = vld [vmem:[#allocation7 + $0x7c8] sm:$0xff]
    %v4182 = vld [vmem:[#allocation7 + $0x7d0] sm:$0xff]
    %v4183 = vld [vmem:[#allocation7 + $0x7d8] sm:$0xff]
    %v4184 = vld [vmem:[#allocation7 + $0x7e0] sm:$0xff]
    %v4185 = vld [vmem:[#allocation7 + $0x7e8] sm:$0xff]
    %v4186 = vld [vmem:[#allocation7 + $0x7f0] sm:$0xff]
    %v4187 = vld [vmem:[#allocation7 + $0x7f8] sm:$0xff]
    %v4188 = vld [vmem:[#allocation7 + $0x800] sm:$0xff]
    %v4189 = vld [vmem:[#allocation7 + $0x808] sm:$0xff]
    %v4190 = vld [vmem:[#allocation7 + $0x810] sm:$0xff]
    %v4191 = vld [vmem:[#allocation7 + $0x818] sm:$0xff]
    %v4192 = vld [vmem:[#allocation7 + $0x820] sm:$0xff]
    %v4193 = vld [vmem:[#allocation7 + $0x828] sm:$0xff]
    %v4194 = vld [vmem:[#allocation7 + $0x830] sm:$0xff]
    %v4195 = vld [vmem:[#allocation7 + $0x838] sm:$0xff]
    %v4196 = vld [vmem:[#allocation7 + $0x840] sm:$0xff]
    %v4197 = vld [vmem:[#allocation7 + $0x848] sm:$0xff]
    %v4198 = vld [vmem:[#allocation7 + $0x850] sm:$0xff]
    %v4199 = vld [vmem:[#allocation7 + $0x858] sm:$0xff]
    %v4200 = vld [vmem:[#allocation7 + $0x860] sm:$0xff]
    %v4201 = vld [vmem:[#allocation7 + $0x868] sm:$0xff]
    %v4202 = vld [vmem:[#allocation7 + $0x870] sm:$0xff]
    %v4203 = vld [vmem:[#allocation7 + $0x878] sm:$0xff]
    %v4204 = vld [vmem:[#allocation7 + $0x880] sm:$0xff]
    %v4205 = vld [vmem:[#allocation7 + $0x888] sm:$0xff]
    %v4206 = vld [vmem:[#allocation7 + $0x890] sm:$0xff]
    %v4207 = vld [vmem:[#allocation7 + $0x898] sm:$0xff]
    %v4208 = vld [vmem:[#allocation7 + $0x8a0] sm:$0xff]
    %v4209 = vld [vmem:[#allocation7 + $0x8a8] sm:$0xff]
    %v4210 = vld [vmem:[#allocation7 + $0x8b0] sm:$0xff]
    %v4211 = vld [vmem:[#allocation7 + $0x8b8] sm:$0xff]
    %v4212 = vld [vmem:[#allocation7 + $0x8c0] sm:$0xff]
    %v4213 = vld [vmem:[#allocation7 + $0x8c8] sm:$0xff]
    %v4214 = vld [vmem:[#allocation7 + $0x8d0] sm:$0xff]
    %v4215 = vld [vmem:[#allocation7 + $0x8d8] sm:$0xff]
    %v4216 = vld [vmem:[#allocation7 + $0x8e0] sm:$0xff]
    %v4217 = vld [vmem:[#allocation7 + $0x8e8] sm:$0xff]
    %v4218 = vld [vmem:[#allocation7 + $0x8f0] sm:$0xff]
    %v4219 = vld [vmem:[#allocation7 + $0x8f8] sm:$0xff]
    %v4220 = vld [vmem:[#allocation7 + $0x900] sm:$0xff]
    %v4221 = vld [vmem:[#allocation7 + $0x908] sm:$0xff]
    %v4222 = vld [vmem:[#allocation7 + $0x910] sm:$0xff]
    %v4223 = vld [vmem:[#allocation7 + $0x918] sm:$0xff]
    %v4224 = vld [vmem:[#allocation7 + $0x920] sm:$0xff]
    %v4225 = vld [vmem:[#allocation7 + $0x928] sm:$0xff]
    %v4226 = vld [vmem:[#allocation7 + $0x930] sm:$0xff]
    %v4227 = vld [vmem:[#allocation7 + $0x938] sm:$0xff]
    %v4228 = vld [vmem:[#allocation7 + $0x940] sm:$0xff]
    %v4229 = vld [vmem:[#allocation7 + $0x948] sm:$0xff]
    %v4230 = vld [vmem:[#allocation7 + $0x950] sm:$0xff]
    %v4231 = vld [vmem:[#allocation7 + $0x958] sm:$0xff]
    %v4232 = vld [vmem:[#allocation7 + $0x960] sm:$0xff]
    %v4233 = vld [vmem:[#allocation7 + $0x968] sm:$0xff]
    %v4234 = vld [vmem:[#allocation7 + $0x970] sm:$0xff]
    %v4235 = vld [vmem:[#allocation7 + $0x978] sm:$0xff]
    %v4236 = vld [vmem:[#allocation7 + $0x980] sm:$0xff]
    %v4237 = vld [vmem:[#allocation7 + $0x988] sm:$0xff]
    %v4238 = vld [vmem:[#allocation7 + $0x990] sm:$0xff]
    %v4239 = vld [vmem:[#allocation7 + $0x998] sm:$0xff]
    %v4240 = vld [vmem:[#allocation7 + $0x9a0] sm:$0xff]
    %v4241 = vld [vmem:[#allocation7 + $0x9a8] sm:$0xff]
    %v4242 = vld [vmem:[#allocation7 + $0x9b0] sm:$0xff]
    %v4243 = vld [vmem:[#allocation7 + $0x9b8] sm:$0xff]
    %v4244 = vld [vmem:[#allocation7 + $0x9c0] sm:$0xff]
    %v4245 = vld [vmem:[#allocation7 + $0x9c8] sm:$0xff]
    %v4246 = vld [vmem:[#allocation7 + $0x9d0] sm:$0xff]
    %v4247 = vld [vmem:[#allocation7 + $0x9d8] sm:$0xff]
    %v4248 = vld [vmem:[#allocation7 + $0x9e0] sm:$0xff]
    %v4249 = vld [vmem:[#allocation7 + $0x9e8] sm:$0xff]
    %v4250 = vld [vmem:[#allocation7 + $0x9f0] sm:$0xff]
    %v4251 = vld [vmem:[#allocation7 + $0x9f8] sm:$0xff]
    %v4252 = vld [vmem:[#allocation7 + $0xa00] sm:$0xff]
    %v4253 = vld [vmem:[#allocation7 + $0xa08] sm:$0xff]
    %v4254 = vld [vmem:[#allocation7 + $0xa10] sm:$0xff]
    %v4255 = vld [vmem:[#allocation7 + $0xa18] sm:$0xff]
    %v4256 = vld [vmem:[#allocation7 + $0xa20] sm:$0xff]
    %v4257 = vld [vmem:[#allocation7 + $0xa28] sm:$0xff]
    %v4258 = vld [vmem:[#allocation7 + $0xa30] sm:$0xff]
    %v4259 = vld [vmem:[#allocation7 + $0xa38] sm:$0xff]
    %v4260 = vld [vmem:[#allocation7 + $0xa40] sm:$0xff]
    %v4261 = vld [vmem:[#allocation7 + $0xa48] sm:$0xff]
    %v4262 = vld [vmem:[#allocation7 + $0xa50] sm:$0xff]
    %v4263 = vld [vmem:[#allocation7 + $0xa58] sm:$0xff]
    %v4264 = vld [vmem:[#allocation7 + $0xa60] sm:$0xff]
    %v4265 = vld [vmem:[#allocation7 + $0xa68] sm:$0xff]
    %v4266 = vld [vmem:[#allocation7 + $0xa70] sm:$0xff]
    %v4267 = vld [vmem:[#allocation7 + $0xa78] sm:$0xff]
    %v4268 = vld [vmem:[#allocation7 + $0xa80] sm:$0xff]
    %v4269 = vld [vmem:[#allocation7 + $0xa88] sm:$0xff]
    %v4270 = vld [vmem:[#allocation7 + $0xa90] sm:$0xff]
    %v4271 = vld [vmem:[#allocation7 + $0xa98] sm:$0xff]
    %v4272 = vld [vmem:[#allocation7 + $0xaa0] sm:$0xff]
    %v4273 = vld [vmem:[#allocation7 + $0xaa8] sm:$0xff]
    %v4274 = vld [vmem:[#allocation7 + $0xab0] sm:$0xff]
    %v4275 = vld [vmem:[#allocation7 + $0xab8] sm:$0xff]
    %v4276 = vld [vmem:[#allocation7 + $0xac0] sm:$0xff]
    %v4277 = vld [vmem:[#allocation7 + $0xac8] sm:$0xff]
    %v4278 = vld [vmem:[#allocation7 + $0xad0] sm:$0xff]
    %v4279 = vld [vmem:[#allocation7 + $0xad8] sm:$0xff]
    %v4280 = vld [vmem:[#allocation7 + $0xae0] sm:$0xff]
    %v4281 = vld [vmem:[#allocation7 + $0xae8] sm:$0xff]
    %v4282 = vld [vmem:[#allocation7 + $0xaf0] sm:$0xff]
    %v4283 = vld [vmem:[#allocation7 + $0xaf8] sm:$0xff]
    %v4284 = vld [vmem:[#allocation7 + $0xb00] sm:$0xff]
    %v4285 = vld [vmem:[#allocation7 + $0xb08] sm:$0xff]
    %v4286 = vld [vmem:[#allocation7 + $0xb10] sm:$0xff]
    %v4287 = vld [vmem:[#allocation7 + $0xb18] sm:$0xff]
    %v4288 = vld [vmem:[#allocation7 + $0xb20] sm:$0xff]
    %v4289 = vld [vmem:[#allocation7 + $0xb28] sm:$0xff]
    %v4290 = vld [vmem:[#allocation7 + $0xb30] sm:$0xff]
    %v4291 = vld [vmem:[#allocation7 + $0xb38] sm:$0xff]
    %v4292 = vld [vmem:[#allocation7 + $0xb40] sm:$0xff]
    %v4293 = vld [vmem:[#allocation7 + $0xb48] sm:$0xff]
    %v4294 = vld [vmem:[#allocation7 + $0xb50] sm:$0xff]
    %v4295 = vld [vmem:[#allocation7 + $0xb58] sm:$0xff]
    %v4296 = vld [vmem:[#allocation7 + $0xb60] sm:$0xff]
    %v4297 = vld [vmem:[#allocation7 + $0xb68] sm:$0xff]
    %v4298 = vld [vmem:[#allocation7 + $0xb70] sm:$0xff]
    %v4299 = vld [vmem:[#allocation7 + $0xb78] sm:$0xff]
    %v4300 = vld [vmem:[#allocation7 + $0xb80] sm:$0xff]
    %v4301 = vld [vmem:[#allocation7 + $0xb88] sm:$0xff]
    %v4302 = vld [vmem:[#allocation7 + $0xb90] sm:$0xff]
    %v4303 = vld [vmem:[#allocation7 + $0xb98] sm:$0xff]
    %v4304 = vld [vmem:[#allocation7 + $0xba0] sm:$0xff]
    %v4305 = vld [vmem:[#allocation7 + $0xba8] sm:$0xff]
    %v4306 = vld [vmem:[#allocation7 + $0xbb0] sm:$0xff]
    %v4307 = vld [vmem:[#allocation7 + $0xbb8] sm:$0xff]
    %v4308 = vld [vmem:[#allocation7 + $0xbc0] sm:$0xff]
    %v4309 = vld [vmem:[#allocation7 + $0xbc8] sm:$0xff]
    %v4310 = vld [vmem:[#allocation7 + $0xbd0] sm:$0xff]
    %v4311 = vld [vmem:[#allocation7 + $0xbd8] sm:$0xff]
    %v4312 = vld [vmem:[#allocation7 + $0xbe0] sm:$0xff]
    %v4313 = vld [vmem:[#allocation7 + $0xbe8] sm:$0xff]
    %v4314 = vld [vmem:[#allocation7 + $0xbf0] sm:$0xff]
    %v4315 = vld [vmem:[#allocation7 + $0xbf8] sm:$0xff]
    %v4316 = vld [vmem:[#allocation7 + $0xc00] sm:$0xff]
    %v4317 = vld [vmem:[#allocation7 + $0xc08] sm:$0xff]
    %v4318 = vld [vmem:[#allocation7 + $0xc10] sm:$0xff]
    %v4319 = vld [vmem:[#allocation7 + $0xc18] sm:$0xff]
    %v4320 = vld [vmem:[#allocation7 + $0xc20] sm:$0xff]
    %v4321 = vld [vmem:[#allocation7 + $0xc28] sm:$0xff]
    %v4322 = vld [vmem:[#allocation7 + $0xc30] sm:$0xff]
    %v4323 = vld [vmem:[#allocation7 + $0xc38] sm:$0xff]
    %v4324 = vld [vmem:[#allocation7 + $0xc40] sm:$0xff]
    %v4325 = vld [vmem:[#allocation7 + $0xc48] sm:$0xff]
    %v4326 = vld [vmem:[#allocation7 + $0xc50] sm:$0xff]
    %v4327 = vld [vmem:[#allocation7 + $0xc58] sm:$0xff]
    %v4328 = vld [vmem:[#allocation7 + $0xc60] sm:$0xff]
    %v4329 = vld [vmem:[#allocation7 + $0xc68] sm:$0xff]
    %v4330 = vld [vmem:[#allocation7 + $0xc70] sm:$0xff]
    %v4331 = vld [vmem:[#allocation7 + $0xc78] sm:$0xff]
    %v4332 = vld [vmem:[#allocation7 + $0xc80] sm:$0xff]
    %v4333 = vld [vmem:[#allocation7 + $0xc88] sm:$0xff]
    %v4334 = vld [vmem:[#allocation7 + $0xc90] sm:$0xff]
    %v4335 = vld [vmem:[#allocation7 + $0xc98] sm:$0xff]
    %v4336 = vld [vmem:[#allocation7 + $0xca0] sm:$0xff]
    %v4337 = vld [vmem:[#allocation7 + $0xca8] sm:$0xff]
    %v4338 = vld [vmem:[#allocation7 + $0xcb0] sm:$0xff]
    %v4339 = vld [vmem:[#allocation7 + $0xcb8] sm:$0xff]
    %v4340 = vld [vmem:[#allocation7 + $0xcc0] sm:$0xff]
    %v4341 = vld [vmem:[#allocation7 + $0xcc8] sm:$0xff]
    %v4342 = vld [vmem:[#allocation7 + $0xcd0] sm:$0xff]
    %v4343 = vld [vmem:[#allocation7 + $0xcd8] sm:$0xff]
    %v4344 = vld [vmem:[#allocation7 + $0xce0] sm:$0xff]
    %v4345 = vld [vmem:[#allocation7 + $0xce8] sm:$0xff]
    %v4346 = vld [vmem:[#allocation7 + $0xcf0] sm:$0xff]
    %v4347 = vld [vmem:[#allocation7 + $0xcf8] sm:$0xff]
    %v4348 = vld [vmem:[#allocation7 + $0xd00] sm:$0xff]
    %v4349 = vld [vmem:[#allocation7 + $0xd08] sm:$0xff]
    %v4350 = vld [vmem:[#allocation7 + $0xd10] sm:$0xff]
    %v4351 = vld [vmem:[#allocation7 + $0xd18] sm:$0xff]
    %v4352 = vld [vmem:[#allocation7 + $0xd20] sm:$0xff]
    %v4353 = vld [vmem:[#allocation7 + $0xd28] sm:$0xff]
    %v4354 = vld [vmem:[#allocation7 + $0xd30] sm:$0xff]
    %v4355 = vld [vmem:[#allocation7 + $0xd38] sm:$0xff]
    %v4356 = vld [vmem:[#allocation7 + $0xd40] sm:$0xff]
    %v4357 = vld [vmem:[#allocation7 + $0xd48] sm:$0xff]
    %v4358 = vld [vmem:[#allocation7 + $0xd50] sm:$0xff]
    %v4359 = vld [vmem:[#allocation7 + $0xd58] sm:$0xff]
    %v4360 = vld [vmem:[#allocation7 + $0xd60] sm:$0xff]
    %v4361 = vld [vmem:[#allocation7 + $0xd68] sm:$0xff]
    %v4362 = vld [vmem:[#allocation7 + $0xd70] sm:$0xff]
    %v4363 = vld [vmem:[#allocation7 + $0xd78] sm:$0xff]
    %v4364 = vld [vmem:[#allocation7 + $0xd80] sm:$0xff]
    %v4365 = vld [vmem:[#allocation7 + $0xd88] sm:$0xff]
    %v4366 = vld [vmem:[#allocation7 + $0xd90] sm:$0xff]
    %v4367 = vld [vmem:[#allocation7 + $0xd98] sm:$0xff]
    %v4368 = vld [vmem:[#allocation7 + $0xda0] sm:$0xff]
    %v4369 = vld [vmem:[#allocation7 + $0xda8] sm:$0xff]
    %v4370 = vld [vmem:[#allocation7 + $0xdb0] sm:$0xff]
    %v4371 = vld [vmem:[#allocation7 + $0xdb8] sm:$0xff]
    %v4372 = vld [vmem:[#allocation7 + $0xdc0] sm:$0xff]
    %v4373 = vld [vmem:[#allocation7 + $0xdc8] sm:$0xff]
    %v4374 = vld [vmem:[#allocation7 + $0xdd0] sm:$0xff]
    %v4375 = vld [vmem:[#allocation7 + $0xdd8] sm:$0xff]
    %v4376 = vld [vmem:[#allocation7 + $0xde0] sm:$0xff]
    %v4377 = vld [vmem:[#allocation7 + $0xde8] sm:$0xff]
    %v4378 = vld [vmem:[#allocation7 + $0xdf0] sm:$0xff]
    %v4379 = vld [vmem:[#allocation7 + $0xdf8] sm:$0xff]
    %v4380 = vld [vmem:[#allocation7 + $0xe00] sm:$0xff]
    %v4381 = vld [vmem:[#allocation7 + $0xe08] sm:$0xff]
    %v4382 = vld [vmem:[#allocation7 + $0xe10] sm:$0xff]
    %v4383 = vld [vmem:[#allocation7 + $0xe18] sm:$0xff]
    %v4384 = vld [vmem:[#allocation7 + $0xe20] sm:$0xff]
    %v4385 = vld [vmem:[#allocation7 + $0xe28] sm:$0xff]
    %v4386 = vld [vmem:[#allocation7 + $0xe30] sm:$0xff]
    %v4387 = vld [vmem:[#allocation7 + $0xe38] sm:$0xff]
    %v4388 = vld [vmem:[#allocation7 + $0xe40] sm:$0xff]
    %v4389 = vld [vmem:[#allocation7 + $0xe48] sm:$0xff]
    %v4390 = vld [vmem:[#allocation7 + $0xe50] sm:$0xff]
    %v4391 = vld [vmem:[#allocation7 + $0xe58] sm:$0xff]
    %v4392 = vld [vmem:[#allocation7 + $0xe60] sm:$0xff]
    %v4393 = vld [vmem:[#allocation7 + $0xe68] sm:$0xff]
    %v4394 = vld [vmem:[#allocation7 + $0xe70] sm:$0xff]
    %v4395 = vld [vmem:[#allocation7 + $0xe78] sm:$0xff]
    %v4396 = vld [vmem:[#allocation7 + $0xe80] sm:$0xff]
    %v4397 = vld [vmem:[#allocation7 + $0xe88] sm:$0xff]
    %v4398 = vld [vmem:[#allocation7 + $0xe90] sm:$0xff]
    %v4399 = vld [vmem:[#allocation7 + $0xe98] sm:$0xff]
    %v4400 = vld [vmem:[#allocation7 + $0xea0] sm:$0xff]
    %v4401 = vld [vmem:[#allocation7 + $0xea8] sm:$0xff]
    %v4402 = vld [vmem:[#allocation7 + $0xeb0] sm:$0xff]
    %v4403 = vld [vmem:[#allocation7 + $0xeb8] sm:$0xff]
    %v4404 = vld [vmem:[#allocation7 + $0xec0] sm:$0xff]
    %v4405 = vld [vmem:[#allocation7 + $0xec8] sm:$0xff]
    %v4406 = vld [vmem:[#allocation7 + $0xed0] sm:$0xff]
    %v4407 = vld [vmem:[#allocation7 + $0xed8] sm:$0xff]
    %v4408 = vld [vmem:[#allocation7 + $0xee0] sm:$0xff]
    %v4409 = vld [vmem:[#allocation7 + $0xee8] sm:$0xff]
    %v4410 = vld [vmem:[#allocation7 + $0xef0] sm:$0xff]
    %v4411 = vld [vmem:[#allocation7 + $0xef8] sm:$0xff]
    %v4412 = vld [vmem:[#allocation7 + $0xf00] sm:$0xff]
    %v4413 = vld [vmem:[#allocation7 + $0xf08] sm:$0xff]
    %v4414 = vld [vmem:[#allocation7 + $0xf10] sm:$0xff]
    %v4415 = vld [vmem:[#allocation7 + $0xf18] sm:$0xff]
    %v4416 = vld [vmem:[#allocation7 + $0xf20] sm:$0xff]
    %v4417 = vld [vmem:[#allocation7 + $0xf28] sm:$0xff]
    %v4418 = vld [vmem:[#allocation7 + $0xf30] sm:$0xff]
    %v4419 = vld [vmem:[#allocation7 + $0xf38] sm:$0xff]
    %v4420 = vld [vmem:[#allocation7 + $0xf40] sm:$0xff]
    %v4421 = vld [vmem:[#allocation7 + $0xf48] sm:$0xff]
    %v4422 = vld [vmem:[#allocation7 + $0xf50] sm:$0xff]
    %v4423 = vld [vmem:[#allocation7 + $0xf58] sm:$0xff]
    %v4424 = vld [vmem:[#allocation7 + $0xf60] sm:$0xff]
    %v4425 = vld [vmem:[#allocation7 + $0xf68] sm:$0xff]
    %v4426 = vld [vmem:[#allocation7 + $0xf70] sm:$0xff]
    %v4427 = vld [vmem:[#allocation7 + $0xf78] sm:$0xff]
    %v4428 = vld [vmem:[#allocation7 + $0xf80] sm:$0xff]
    %v4429 = vld [vmem:[#allocation7 + $0xf88] sm:$0xff]
    %v4430 = vld [vmem:[#allocation7 + $0xf90] sm:$0xff]
    %v4431 = vld [vmem:[#allocation7 + $0xf98] sm:$0xff]
    %v4432 = vld [vmem:[#allocation7 + $0xfa0] sm:$0xff]
    %v4433 = vld [vmem:[#allocation7 + $0xfa8] sm:$0xff]
    %v4434 = vld [vmem:[#allocation7 + $0xfb0] sm:$0xff]
    %v4435 = vld [vmem:[#allocation7 + $0xfb8] sm:$0xff]
    %v4436 = vld [vmem:[#allocation7 + $0xfc0] sm:$0xff]
    %v4437 = vld [vmem:[#allocation7 + $0xfc8] sm:$0xff]
    %v4438 = vld [vmem:[#allocation7 + $0xfd0] sm:$0xff]
    %v4439 = vld [vmem:[#allocation7 + $0xfd8] sm:$0xff]
    %v4440 = vld [vmem:[#allocation7 + $0xfe0] sm:$0xff]
    %v4441 = vld [vmem:[#allocation7 + $0xfe8] sm:$0xff]
    %v4442 = vld [vmem:[#allocation7 + $0xff0] sm:$0xff]
    %v4443 = vld [vmem:[#allocation7 + $0xff8] sm:$0xff]
    %v4444 = vld [vmem:[#allocation7 + $0x1000] sm:$0xff]
    %v4445 = vld [vmem:[#allocation7 + $0x1008] sm:$0xff]
    %v4446 = vld [vmem:[#allocation7 + $0x1010] sm:$0xff]
    %v4447 = vld [vmem:[#allocation7 + $0x1018] sm:$0xff]
    %v4448 = vld [vmem:[#allocation7 + $0x1020] sm:$0xff]
    %v4449 = vld [vmem:[#allocation7 + $0x1028] sm:$0xff]
    %v4450 = vld [vmem:[#allocation7 + $0x1030] sm:$0xff]
    %v4451 = vld [vmem:[#allocation7 + $0x1038] sm:$0xff]
    %v4452 = vld [vmem:[#allocation7 + $0x1040] sm:$0xff]
    %v4453 = vld [vmem:[#allocation7 + $0x1048] sm:$0xff]
    %v4454 = vld [vmem:[#allocation7 + $0x1050] sm:$0xff]
    %v4455 = vld [vmem:[#allocation7 + $0x1058] sm:$0xff]
    %v4456 = vld [vmem:[#allocation7 + $0x1060] sm:$0xff]
    %v4457 = vld [vmem:[#allocation7 + $0x1068] sm:$0xff]
    %v4458 = vld [vmem:[#allocation7 + $0x1070] sm:$0xff]
    %v4459 = vld [vmem:[#allocation7 + $0x1078] sm:$0xff]
    %v4460 = vld [vmem:[#allocation7 + $0x1080] sm:$0xff]
    %v4461 = vld [vmem:[#allocation7 + $0x1088] sm:$0xff]
    %v4462 = vld [vmem:[#allocation7 + $0x1090] sm:$0xff]
    %v4463 = vld [vmem:[#allocation7 + $0x1098] sm:$0xff]
    %v4464 = vld [vmem:[#allocation7 + $0x10a0] sm:$0xff]
    %v4465 = vld [vmem:[#allocation7 + $0x10a8] sm:$0xff]
    %v4466 = vld [vmem:[#allocation7 + $0x10b0] sm:$0xff]
    %v4467 = vld [vmem:[#allocation7 + $0x10b8] sm:$0xff]
    %v4468 = vld [vmem:[#allocation7 + $0x10c0] sm:$0xff]
    %v4469 = vld [vmem:[#allocation7 + $0x10c8] sm:$0xff]
    %v4470 = vld [vmem:[#allocation7 + $0x10d0] sm:$0xff]
    %v4471 = vld [vmem:[#allocation7 + $0x10d8] sm:$0xff]
    %v4472 = vld [vmem:[#allocation7 + $0x10e0] sm:$0xff]
    %v4473 = vld [vmem:[#allocation7 + $0x10e8] sm:$0xff]
    %v4474 = vld [vmem:[#allocation7 + $0x10f0] sm:$0xff]
    %v4475 = vld [vmem:[#allocation7 + $0x10f8] sm:$0xff]
    %v4476 = vld [vmem:[#allocation7 + $0x1100] sm:$0xff]
    %v4477 = vld [vmem:[#allocation7 + $0x1108] sm:$0xff]
    %v4478 = vld [vmem:[#allocation7 + $0x1110] sm:$0xff]
    %v4479 = vld [vmem:[#allocation7 + $0x1118] sm:$0xff]
    %v4480 = vld [vmem:[#allocation7 + $0x1120] sm:$0xff]
    %v4481 = vld [vmem:[#allocation7 + $0x1128] sm:$0xff]
    %v4482 = vld [vmem:[#allocation7 + $0x1130] sm:$0xff]
    %v4483 = vld [vmem:[#allocation7 + $0x1138] sm:$0xff]
    %v4484 = vld [vmem:[#allocation7 + $0x1140] sm:$0xff]
    %v4485 = vld [vmem:[#allocation7 + $0x1148] sm:$0xff]
    %v4486 = vld [vmem:[#allocation7 + $0x1150] sm:$0xff]
    %v4487 = vld [vmem:[#allocation7 + $0x1158] sm:$0xff]
    %v4488 = vld [vmem:[#allocation7 + $0x1160] sm:$0xff]
    %v4489 = vld [vmem:[#allocation7 + $0x1168] sm:$0xff]
    %v4490 = vld [vmem:[#allocation7 + $0x1170] sm:$0xff]
    %v4491 = vld [vmem:[#allocation7 + $0x1178] sm:$0xff]
    %v4492 = vld [vmem:[#allocation7 + $0x1180] sm:$0xff]
    %v4493 = vld [vmem:[#allocation7 + $0x1188] sm:$0xff]
    %v4494 = vld [vmem:[#allocation7 + $0x1190] sm:$0xff]
    %v4495 = vld [vmem:[#allocation7 + $0x1198] sm:$0xff]
    %v4496 = vld [vmem:[#allocation7 + $0x11a0] sm:$0xff]
    %v4497 = vld [vmem:[#allocation7 + $0x11a8] sm:$0xff]
    %v4498 = vld [vmem:[#allocation7 + $0x11b0] sm:$0xff]
    %v4499 = vld [vmem:[#allocation7 + $0x11b8] sm:$0xff]
    %v4500 = vld [vmem:[#allocation7 + $0x11c0] sm:$0xff]
    %v4501 = vld [vmem:[#allocation7 + $0x11c8] sm:$0xff]
    %v4502 = vld [vmem:[#allocation7 + $0x11d0] sm:$0xff]
    %v4503 = vld [vmem:[#allocation7 + $0x11d8] sm:$0xff]
    %v4504 = vld [vmem:[#allocation7 + $0x11e0] sm:$0xff]
    %v4505 = vld [vmem:[#allocation7 + $0x11e8] sm:$0xff]
    %v4506 = vld [vmem:[#allocation7 + $0x11f0] sm:$0xff]
    %v4507 = vld [vmem:[#allocation7 + $0x11f8] sm:$0xff]
    %v4508 = vld [vmem:[#allocation7 + $0x1200] sm:$0xff]
    %v4509 = vld [vmem:[#allocation7 + $0x1208] sm:$0xff]
    %v4510 = vld [vmem:[#allocation7 + $0x1210] sm:$0xff]
    %v4511 = vld [vmem:[#allocation7 + $0x1218] sm:$0xff]
    %v4512 = vld [vmem:[#allocation7 + $0x1220] sm:$0xff]
    %v4513 = vld [vmem:[#allocation7 + $0x1228] sm:$0xff]
    %v4514 = vld [vmem:[#allocation7 + $0x1230] sm:$0xff]
    %v4515 = vld [vmem:[#allocation7 + $0x1238] sm:$0xff]
    %v4516 = vld [vmem:[#allocation7 + $0x1240] sm:$0xff]
    %v4517 = vld [vmem:[#allocation7 + $0x1248] sm:$0xff]
    %v4518 = vld [vmem:[#allocation7 + $0x1250] sm:$0xff]
    %v4519 = vld [vmem:[#allocation7 + $0x1258] sm:$0xff]
    %v4520 = vld [vmem:[#allocation7 + $0x1260] sm:$0xff]
    %v4521 = vld [vmem:[#allocation7 + $0x1268] sm:$0xff]
    %v4522 = vld [vmem:[#allocation7 + $0x1270] sm:$0xff]
    %v4523 = vld [vmem:[#allocation7 + $0x1278] sm:$0xff]
    %s4524 = scalar_lea.vmem [#allocation8], 3
    %v4525 = vld [vmem:[%s4524] ss:$8 sm:$0xf]
    %v4526 = vld [vmem:[%s4524] ss:$8 sm:$0xf0]
    %v4527 = vor.u32 %v4525, %v4526
    %s4528 = scalar_lea.vmem [#allocation8], 67
    %v4529 = vld [vmem:[%s4528] ss:$8 sm:$0xf]
    %v4530 = vld [vmem:[%s4528] ss:$8 sm:$0xf0]
    %v4531 = vor.u32 %v4529, %v4530
    %v4534 = vlaneseq
    %v4535 = vshrl.u32 %v4534, 7
    %v4536 = vsub.s32 0, %v4535
    %v4537 = vrot.slane %v4527, %v4536
    %v4538 = vlaneseq
    %v4539 = vshrl.u32 %v4538, 7
    %v4540 = vsub.s32 1, %v4539
    %v4541 = vrot.slane %v4527, %v4540
    %v4542 = vlaneseq
    %v4543 = vshrl.u32 %v4542, 7
    %v4544 = vsub.s32 2, %v4543
    %v4545 = vrot.slane %v4527, %v4544
    %v4546 = vlaneseq
    %v4547 = vshrl.u32 %v4546, 7
    %v4548 = vsub.s32 3, %v4547
    %v4549 = vrot.slane %v4527, %v4548
    %v4550 = vlaneseq
    %v4551 = vshrl.u32 %v4550, 7
    %v4552 = vsub.s32 4, %v4551
    %v4553 = vrot.slane %v4527, %v4552
    %v4554 = vlaneseq
    %v4555 = vshrl.u32 %v4554, 7
    %v4556 = vsub.s32 5, %v4555
    %v4557 = vrot.slane %v4527, %v4556
    %v4558 = vlaneseq
    %v4559 = vshrl.u32 %v4558, 7
    %v4560 = vsub.s32 6, %v4559
    %v4561 = vrot.slane %v4527, %v4560
    %v4562 = vlaneseq
    %v4563 = vshrl.u32 %v4562, 7
    %v4564 = vsub.s32 7, %v4563
    %v4565 = vrot.slane %v4527, %v4564
    %v4566 = vlaneseq
    %v4567 = vshrl.u32 %v4566, 7
    %v4568 = vsub.s32 0, %v4567
    %v4569 = vrot.slane %v4531, %v4568
    %v4570 = vlaneseq
    %v4571 = vshrl.u32 %v4570, 7
    %v4572 = vsub.s32 1, %v4571
    %v4573 = vrot.slane %v4531, %v4572
    %v4574 = vlaneseq
    %v4575 = vshrl.u32 %v4574, 7
    %v4576 = vsub.s32 2, %v4575
    %v4577 = vrot.slane %v4531, %v4576
    %v4578 = vlaneseq
    %v4579 = vshrl.u32 %v4578, 7
    %v4580 = vsub.s32 3, %v4579
    %v4581 = vrot.slane %v4531, %v4580
    %v4582 = vlaneseq
    %v4583 = vshrl.u32 %v4582, 7
    %v4584 = vsub.s32 4, %v4583
    %v4585 = vrot.slane %v4531, %v4584
    %v4586 = vlaneseq
    %v4587 = vshrl.u32 %v4586, 7
    %v4588 = vsub.s32 5, %v4587
    %v4589 = vrot.slane %v4531, %v4588
    %v4590 = vlaneseq
    %v4591 = vshrl.u32 %v4590, 7
    %v4592 = vsub.s32 6, %v4591
    %v4593 = vrot.slane %v4531, %v4592
    %v4594 = vlaneseq
    %v4595 = vshrl.u32 %v4594, 7
    %v4596 = vsub.s32 7, %v4595
    %v4597 = vrot.slane %v4531, %v4596
    %v5206 = vunpack.c.l.b16 %v3932
    %v5207 = vunpack.c.h.b16 %v3932
    %v5208 = vunpack.c.l.b16 %v3933
    %v5209 = vunpack.c.h.b16 %v3933
    %v5210 = vunpack.c.l.b16 %v3934
    %v5211 = vunpack.c.h.b16 %v3934
    %v5212 = vunpack.c.l.b16 %v3935
    %v5213 = vunpack.c.h.b16 %v3935
    %v5214 = vunpack.c.l.b16 %v3936
    %v5215 = vunpack.c.h.b16 %v3936
    %v5216 = vunpack.c.l.b16 %v3937
    %v5217 = vunpack.c.h.b16 %v3937
    %v5218 = vunpack.c.l.b16 %v3938
    %v5219 = vunpack.c.h.b16 %v3938
    %v5220 = vunpack.c.l.b16 %v3939
    %v5221 = vunpack.c.h.b16 %v3939
    %v5222 = vunpack.c.l.b16 %v3940
    %v5223 = vunpack.c.h.b16 %v3940
    %v5224 = vunpack.c.l.b16 %v3941
    %v5225 = vunpack.c.h.b16 %v3941
    %v5226 = vunpack.c.l.b16 %v3942
    %v5227 = vunpack.c.h.b16 %v3942
    %v5228 = vunpack.c.l.b16 %v3943
    %v5229 = vunpack.c.h.b16 %v3943
    %v5230 = vunpack.c.l.b16 %v3944
    %v5231 = vunpack.c.h.b16 %v3944
    %v5232 = vunpack.c.l.b16 %v3945
    %v5233 = vunpack.c.h.b16 %v3945
    %v5234 = vunpack.c.l.b16 %v3946
    %v5235 = vunpack.c.h.b16 %v3946
    %v5236 = vunpack.c.l.b16 %v3947
    %v5237 = vunpack.c.h.b16 %v3947
    %v5238 = vunpack.c.l.b16 %v3948
    %v5239 = vunpack.c.h.b16 %v3948
    %v5240 = vunpack.c.l.b16 %v3949
    %v5241 = vunpack.c.h.b16 %v3949
    %v5242 = vunpack.c.l.b16 %v3950
    %v5243 = vunpack.c.h.b16 %v3950
    %v5244 = vunpack.c.l.b16 %v3951
    %v5245 = vunpack.c.h.b16 %v3951
    %v5246 = vunpack.c.l.b16 %v3952
    %v5247 = vunpack.c.h.b16 %v3952
    %v5248 = vunpack.c.l.b16 %v3953
    %v5249 = vunpack.c.h.b16 %v3953
    %v5250 = vunpack.c.l.b16 %v3954
    %v5251 = vunpack.c.h.b16 %v3954
    %v5252 = vunpack.c.l.b16 %v3955
    %v5253 = vunpack.c.h.b16 %v3955
    %v5254 = vunpack.c.l.b16 %v3956
    %v5255 = vunpack.c.h.b16 %v3956
    %v5256 = vunpack.c.l.b16 %v3957
    %v5257 = vunpack.c.h.b16 %v3957
    %v5258 = vunpack.c.l.b16 %v3958
    %v5259 = vunpack.c.h.b16 %v3958
    %v5260 = vunpack.c.l.b16 %v3959
    %v5261 = vunpack.c.h.b16 %v3959
    %v5262 = vunpack.c.l.b16 %v3960
    %v5263 = vunpack.c.h.b16 %v3960
    %v5264 = vunpack.c.l.b16 %v3961
    %v5265 = vunpack.c.h.b16 %v3961
    %v5266 = vunpack.c.l.b16 %v3962
    %v5267 = vunpack.c.h.b16 %v3962
    %v5268 = vunpack.c.l.b16 %v3963
    %v5269 = vunpack.c.h.b16 %v3963
    %v5270 = vunpack.c.l.b16 %v3964
    %v5271 = vunpack.c.h.b16 %v3964
    %v5272 = vunpack.c.l.b16 %v3965
    %v5273 = vunpack.c.h.b16 %v3965
    %v5274 = vunpack.c.l.b16 %v3966
    %v5275 = vunpack.c.h.b16 %v3966
    %v5276 = vunpack.c.l.b16 %v3967
    %v5277 = vunpack.c.h.b16 %v3967
    %v5278 = vunpack.c.l.b16 %v3968
    %v5279 = vunpack.c.h.b16 %v3968
    %v5280 = vunpack.c.l.b16 %v3969
    %v5281 = vunpack.c.h.b16 %v3969
    %v5282 = vunpack.c.l.b16 %v3970
    %v5283 = vunpack.c.h.b16 %v3970
    %v5284 = vunpack.c.l.b16 %v3971
    %v5285 = vunpack.c.h.b16 %v3971
    %v5286 = vunpack.c.l.b16 %v3972
    %v5287 = vunpack.c.h.b16 %v3972
    %v5288 = vunpack.c.l.b16 %v3973
    %v5289 = vunpack.c.h.b16 %v3973
    %v5290 = vunpack.c.l.b16 %v3974
    %v5291 = vunpack.c.h.b16 %v3974
    %v5292 = vunpack.c.l.b16 %v3975
    %v5293 = vunpack.c.h.b16 %v3975
    %v5294 = vunpack.c.l.b16 %v3976
    %v5295 = vunpack.c.h.b16 %v3976
    %v5296 = vunpack.c.l.b16 %v3977
    %v5297 = vunpack.c.h.b16 %v3977
    %v5298 = vunpack.c.l.b16 %v3978
    %v5299 = vunpack.c.h.b16 %v3978
    %v5300 = vunpack.c.l.b16 %v3979
    %v5301 = vunpack.c.h.b16 %v3979
    %v5302 = vunpack.c.l.b16 %v3980
    %v5303 = vunpack.c.h.b16 %v3980
    %v5304 = vunpack.c.l.b16 %v3981
    %v5305 = vunpack.c.h.b16 %v3981
    %v5306 = vunpack.c.l.b16 %v3982
    %v5307 = vunpack.c.h.b16 %v3982
    %v5308 = vunpack.c.l.b16 %v3983
    %v5309 = vunpack.c.h.b16 %v3983
    %v5310 = vunpack.c.l.b16 %v3984
    %v5311 = vunpack.c.h.b16 %v3984
    %v5312 = vunpack.c.l.b16 %v3985
    %v5313 = vunpack.c.h.b16 %v3985
    %v5314 = vunpack.c.l.b16 %v3986
    %v5315 = vunpack.c.h.b16 %v3986
    %v5316 = vunpack.c.l.b16 %v3987
    %v5317 = vunpack.c.h.b16 %v3987
    %v5318 = vunpack.c.l.b16 %v3988
    %v5319 = vunpack.c.h.b16 %v3988
    %v5320 = vunpack.c.l.b16 %v3989
    %v5321 = vunpack.c.h.b16 %v3989
    %v5322 = vunpack.c.l.b16 %v3990
    %v5323 = vunpack.c.h.b16 %v3990
    %v5324 = vunpack.c.l.b16 %v3991
    %v5325 = vunpack.c.h.b16 %v3991
    %v5326 = vunpack.c.l.b16 %v3992
    %v5327 = vunpack.c.h.b16 %v3992
    %v5328 = vunpack.c.l.b16 %v3993
    %v5329 = vunpack.c.h.b16 %v3993
    %v5330 = vunpack.c.l.b16 %v3994
    %v5331 = vunpack.c.h.b16 %v3994
    %v5332 = vunpack.c.l.b16 %v3995
    %v5333 = vunpack.c.h.b16 %v3995
    %v5334 = vunpack.c.l.b16 %v3996
    %v5335 = vunpack.c.h.b16 %v3996
    %v5336 = vunpack.c.l.b16 %v3997
    %v5337 = vunpack.c.h.b16 %v3997
    %v5338 = vunpack.c.l.b16 %v3998
    %v5339 = vunpack.c.h.b16 %v3998
    %v5340 = vunpack.c.l.b16 %v3999
    %v5341 = vunpack.c.h.b16 %v3999
    %v5342 = vunpack.c.l.b16 %v4000
    %v5343 = vunpack.c.h.b16 %v4000
    %v5344 = vunpack.c.l.b16 %v4001
    %v5345 = vunpack.c.h.b16 %v4001
    %v5346 = vunpack.c.l.b16 %v4002
    %v5347 = vunpack.c.h.b16 %v4002
    %v5348 = vunpack.c.l.b16 %v4003
    %v5349 = vunpack.c.h.b16 %v4003
    %v5350 = vunpack.c.l.b16 %v4004
    %v5351 = vunpack.c.h.b16 %v4004
    %v5352 = vunpack.c.l.b16 %v4005
    %v5353 = vunpack.c.h.b16 %v4005
    %v5354 = vunpack.c.l.b16 %v4006
    %v5355 = vunpack.c.h.b16 %v4006
    %v5356 = vunpack.c.l.b16 %v4007
    %v5357 = vunpack.c.h.b16 %v4007
    %v5358 = vunpack.c.l.b16 %v4008
    %v5359 = vunpack.c.h.b16 %v4008
    %v5360 = vunpack.c.l.b16 %v4009
    %v5361 = vunpack.c.h.b16 %v4009
    %v5362 = vunpack.c.l.b16 %v4010
    %v5363 = vunpack.c.h.b16 %v4010
    %v5364 = vunpack.c.l.b16 %v4011
    %v5365 = vunpack.c.h.b16 %v4011
    %v5366 = vunpack.c.l.b16 %v4012
    %v5367 = vunpack.c.h.b16 %v4012
    %v5368 = vunpack.c.l.b16 %v4013
    %v5369 = vunpack.c.h.b16 %v4013
    %v5370 = vunpack.c.l.b16 %v4014
    %v5371 = vunpack.c.h.b16 %v4014
    %v5372 = vunpack.c.l.b16 %v4015
    %v5373 = vunpack.c.h.b16 %v4015
    %v5374 = vunpack.c.l.b16 %v4016
    %v5375 = vunpack.c.h.b16 %v4016
    %v5376 = vunpack.c.l.b16 %v4017
    %v5377 = vunpack.c.h.b16 %v4017
    %v5378 = vunpack.c.l.b16 %v4018
    %v5379 = vunpack.c.h.b16 %v4018
    %v5380 = vunpack.c.l.b16 %v4019
    %v5381 = vunpack.c.h.b16 %v4019
    %v5382 = vunpack.c.l.b16 %v4020
    %v5383 = vunpack.c.h.b16 %v4020
    %v5384 = vunpack.c.l.b16 %v4021
    %v5385 = vunpack.c.h.b16 %v4021
    %v5386 = vunpack.c.l.b16 %v4022
    %v5387 = vunpack.c.h.b16 %v4022
    %v5388 = vunpack.c.l.b16 %v4023
    %v5389 = vunpack.c.h.b16 %v4023
    %v5390 = vunpack.c.l.b16 %v4024
    %v5391 = vunpack.c.h.b16 %v4024
    %v5392 = vunpack.c.l.b16 %v4025
    %v5393 = vunpack.c.h.b16 %v4025
    %v5394 = vunpack.c.l.b16 %v4026
    %v5395 = vunpack.c.h.b16 %v4026
    %v5396 = vunpack.c.l.b16 %v4027
    %v5397 = vunpack.c.h.b16 %v4027
    %v5398 = vunpack.c.l.b16 %v4028
    %v5399 = vunpack.c.h.b16 %v4028
    %v5400 = vunpack.c.l.b16 %v4029
    %v5401 = vunpack.c.h.b16 %v4029
    %v5402 = vunpack.c.l.b16 %v4030
    %v5403 = vunpack.c.h.b16 %v4030
    %v5404 = vunpack.c.l.b16 %v4031
    %v5405 = vunpack.c.h.b16 %v4031
    %v5406 = vunpack.c.l.b16 %v4032
    %v5407 = vunpack.c.h.b16 %v4032
    %v5408 = vunpack.c.l.b16 %v4033
    %v5409 = vunpack.c.h.b16 %v4033
    %v5410 = vunpack.c.l.b16 %v4034
    %v5411 = vunpack.c.h.b16 %v4034
    %v5412 = vunpack.c.l.b16 %v4035
    %v5413 = vunpack.c.h.b16 %v4035
    %v5414 = vunpack.c.l.b16 %v4036
    %v5415 = vunpack.c.h.b16 %v4036
    %v5416 = vunpack.c.l.b16 %v4037
    %v5417 = vunpack.c.h.b16 %v4037
    %v5418 = vunpack.c.l.b16 %v4038
    %v5419 = vunpack.c.h.b16 %v4038
    %v5420 = vunpack.c.l.b16 %v4039
    %v5421 = vunpack.c.h.b16 %v4039
    %v5422 = vunpack.c.l.b16 %v4040
    %v5423 = vunpack.c.h.b16 %v4040
    %v5424 = vunpack.c.l.b16 %v4041
    %v5425 = vunpack.c.h.b16 %v4041
    %v5426 = vunpack.c.l.b16 %v4042
    %v5427 = vunpack.c.h.b16 %v4042
    %v5428 = vunpack.c.l.b16 %v4043
    %v5429 = vunpack.c.h.b16 %v4043
    %v5430 = vunpack.c.l.b16 %v4044
    %v5431 = vunpack.c.h.b16 %v4044
    %v5432 = vunpack.c.l.b16 %v4045
    %v5433 = vunpack.c.h.b16 %v4045
    %v5434 = vunpack.c.l.b16 %v4046
    %v5435 = vunpack.c.h.b16 %v4046
    %v5436 = vunpack.c.l.b16 %v4047
    %v5437 = vunpack.c.h.b16 %v4047
    %v5438 = vunpack.c.l.b16 %v4048
    %v5439 = vunpack.c.h.b16 %v4048
    %v5440 = vunpack.c.l.b16 %v4049
    %v5441 = vunpack.c.h.b16 %v4049
    %v5442 = vunpack.c.l.b16 %v4050
    %v5443 = vunpack.c.h.b16 %v4050
    %v5444 = vunpack.c.l.b16 %v4051
    %v5445 = vunpack.c.h.b16 %v4051
    %v5446 = vunpack.c.l.b16 %v4052
    %v5447 = vunpack.c.h.b16 %v4052
    %v5448 = vunpack.c.l.b16 %v4053
    %v5449 = vunpack.c.h.b16 %v4053
    %v5450 = vunpack.c.l.b16 %v4054
    %v5451 = vunpack.c.h.b16 %v4054
    %v5452 = vunpack.c.l.b16 %v4055
    %v5453 = vunpack.c.h.b16 %v4055
    %v5454 = vunpack.c.l.b16 %v4056
    %v5455 = vunpack.c.h.b16 %v4056
    %v5456 = vunpack.c.l.b16 %v4057
    %v5457 = vunpack.c.h.b16 %v4057
    %v5458 = vunpack.c.l.b16 %v4058
    %v5459 = vunpack.c.h.b16 %v4058
    %v5460 = vunpack.c.l.b16 %v4059
    %v5461 = vunpack.c.h.b16 %v4059
    %v5462 = vunpack.c.l.b16 %v4060
    %v5463 = vunpack.c.h.b16 %v4060
    %v5464 = vunpack.c.l.b16 %v4061
    %v5465 = vunpack.c.h.b16 %v4061
    %v5466 = vunpack.c.l.b16 %v4062
    %v5467 = vunpack.c.h.b16 %v4062
    %v5468 = vunpack.c.l.b16 %v4063
    %v5469 = vunpack.c.h.b16 %v4063
    %v5470 = vunpack.c.l.b16 %v4064
    %v5471 = vunpack.c.h.b16 %v4064
    %v5472 = vunpack.c.l.b16 %v4065
    %v5473 = vunpack.c.h.b16 %v4065
    %v5474 = vunpack.c.l.b16 %v4066
    %v5475 = vunpack.c.h.b16 %v4066
    %v5476 = vunpack.c.l.b16 %v4067
    %v5477 = vunpack.c.h.b16 %v4067
    %v5478 = vunpack.c.l.b16 %v4068
    %v5479 = vunpack.c.h.b16 %v4068
    %v5480 = vunpack.c.l.b16 %v4069
    %v5481 = vunpack.c.h.b16 %v4069
    %v5482 = vunpack.c.l.b16 %v4070
    %v5483 = vunpack.c.h.b16 %v4070
    %v5484 = vunpack.c.l.b16 %v4071
    %v5485 = vunpack.c.h.b16 %v4071
    %v5486 = vunpack.c.l.b16 %v4072
    %v5487 = vunpack.c.h.b16 %v4072
    %v5488 = vunpack.c.l.b16 %v4073
    %v5489 = vunpack.c.h.b16 %v4073
    %v5490 = vunpack.c.l.b16 %v4074
    %v5491 = vunpack.c.h.b16 %v4074
    %v5492 = vunpack.c.l.b16 %v4075
    %v5493 = vunpack.c.h.b16 %v4075
    %v5494 = vunpack.c.l.b16 %v4076
    %v5495 = vunpack.c.h.b16 %v4076
    %v5496 = vunpack.c.l.b16 %v4077
    %v5497 = vunpack.c.h.b16 %v4077
    %v5498 = vunpack.c.l.b16 %v4078
    %v5499 = vunpack.c.h.b16 %v4078
    %v5500 = vunpack.c.l.b16 %v4079
    %v5501 = vunpack.c.h.b16 %v4079
    %v5502 = vunpack.c.l.b16 %v4080
    %v5503 = vunpack.c.h.b16 %v4080
    %v5504 = vunpack.c.l.b16 %v4081
    %v5505 = vunpack.c.h.b16 %v4081
    %v5506 = vunpack.c.l.b16 %v4082
    %v5507 = vunpack.c.h.b16 %v4082
    %v5508 = vunpack.c.l.b16 %v4083
    %v5509 = vunpack.c.h.b16 %v4083
    %v5510 = vunpack.c.l.b16 %v4084
    %v5511 = vunpack.c.h.b16 %v4084
    %v5512 = vunpack.c.l.b16 %v4085
    %v5513 = vunpack.c.h.b16 %v4085
    %v5514 = vunpack.c.l.b16 %v4086
    %v5515 = vunpack.c.h.b16 %v4086
    %v5516 = vunpack.c.l.b16 %v4087
    %v5517 = vunpack.c.h.b16 %v4087
    %v5518 = vunpack.c.l.b16 %v4088
    %v5519 = vunpack.c.h.b16 %v4088
    %v5520 = vunpack.c.l.b16 %v4089
    %v5521 = vunpack.c.h.b16 %v4089
    %v5522 = vunpack.c.l.b16 %v4090
    %v5523 = vunpack.c.h.b16 %v4090
    %v5524 = vunpack.c.l.b16 %v4091
    %v5525 = vunpack.c.h.b16 %v4091
    %v5526 = vunpack.c.l.b16 %v4092
    %v5527 = vunpack.c.h.b16 %v4092
    %v5528 = vunpack.c.l.b16 %v4093
    %v5529 = vunpack.c.h.b16 %v4093
    %v5530 = vunpack.c.l.b16 %v4094
    %v5531 = vunpack.c.h.b16 %v4094
    %v5532 = vunpack.c.l.b16 %v4095
    %v5533 = vunpack.c.h.b16 %v4095
    %v5534 = vunpack.c.l.b16 %v4096
    %v5535 = vunpack.c.h.b16 %v4096
    %v5536 = vunpack.c.l.b16 %v4097
    %v5537 = vunpack.c.h.b16 %v4097
    %v5538 = vunpack.c.l.b16 %v4098
    %v5539 = vunpack.c.h.b16 %v4098
    %v5540 = vunpack.c.l.b16 %v4099
    %v5541 = vunpack.c.h.b16 %v4099
    %v5542 = vunpack.c.l.b16 %v4100
    %v5543 = vunpack.c.h.b16 %v4100
    %v5544 = vunpack.c.l.b16 %v4101
    %v5545 = vunpack.c.h.b16 %v4101
    %v5546 = vunpack.c.l.b16 %v4102
    %v5547 = vunpack.c.h.b16 %v4102
    %v5548 = vunpack.c.l.b16 %v4103
    %v5549 = vunpack.c.h.b16 %v4103
    %v5550 = vunpack.c.l.b16 %v4104
    %v5551 = vunpack.c.h.b16 %v4104
    %v5552 = vunpack.c.l.b16 %v4105
    %v5553 = vunpack.c.h.b16 %v4105
    %v5554 = vunpack.c.l.b16 %v4106
    %v5555 = vunpack.c.h.b16 %v4106
    %v5556 = vunpack.c.l.b16 %v4107
    %v5557 = vunpack.c.h.b16 %v4107
    %v5558 = vunpack.c.l.b16 %v4108
    %v5559 = vunpack.c.h.b16 %v4108
    %v5560 = vunpack.c.l.b16 %v4109
    %v5561 = vunpack.c.h.b16 %v4109
    %v5562 = vunpack.c.l.b16 %v4110
    %v5563 = vunpack.c.h.b16 %v4110
    %v5564 = vunpack.c.l.b16 %v4111
    %v5565 = vunpack.c.h.b16 %v4111
    %v5566 = vunpack.c.l.b16 %v4112
    %v5567 = vunpack.c.h.b16 %v4112
    %v5568 = vunpack.c.l.b16 %v4113
    %v5569 = vunpack.c.h.b16 %v4113
    %v5570 = vunpack.c.l.b16 %v4114
    %v5571 = vunpack.c.h.b16 %v4114
    %v5572 = vunpack.c.l.b16 %v4115
    %v5573 = vunpack.c.h.b16 %v4115
    %v5574 = vunpack.c.l.b16 %v4116
    %v5575 = vunpack.c.h.b16 %v4116
    %v5576 = vunpack.c.l.b16 %v4117
    %v5577 = vunpack.c.h.b16 %v4117
    %v5578 = vunpack.c.l.b16 %v4118
    %v5579 = vunpack.c.h.b16 %v4118
    %v5580 = vunpack.c.l.b16 %v4119
    %v5581 = vunpack.c.h.b16 %v4119
    %v5582 = vunpack.c.l.b16 %v4120
    %v5583 = vunpack.c.h.b16 %v4120
    %v5584 = vunpack.c.l.b16 %v4121
    %v5585 = vunpack.c.h.b16 %v4121
    %v5586 = vunpack.c.l.b16 %v4122
    %v5587 = vunpack.c.h.b16 %v4122
    %v5588 = vunpack.c.l.b16 %v4123
    %v5589 = vunpack.c.h.b16 %v4123
    %v5590 = vunpack.c.l.b16 %v4124
    %v5591 = vunpack.c.h.b16 %v4124
    %v5592 = vunpack.c.l.b16 %v4125
    %v5593 = vunpack.c.h.b16 %v4125
    %v5594 = vunpack.c.l.b16 %v4126
    %v5595 = vunpack.c.h.b16 %v4126
    %v5596 = vunpack.c.l.b16 %v4127
    %v5597 = vunpack.c.h.b16 %v4127
    %v5598 = vunpack.c.l.b16 %v4128
    %v5599 = vunpack.c.h.b16 %v4128
    %v5600 = vunpack.c.l.b16 %v4129
    %v5601 = vunpack.c.h.b16 %v4129
    %v5602 = vunpack.c.l.b16 %v4130
    %v5603 = vunpack.c.h.b16 %v4130
    %v5604 = vunpack.c.l.b16 %v4131
    %v5605 = vunpack.c.h.b16 %v4131
    %v5606 = vunpack.c.l.b16 %v4132
    %v5607 = vunpack.c.h.b16 %v4132
    %v5608 = vunpack.c.l.b16 %v4133
    %v5609 = vunpack.c.h.b16 %v4133
    %v5610 = vunpack.c.l.b16 %v4134
    %v5611 = vunpack.c.h.b16 %v4134
    %v5612 = vunpack.c.l.b16 %v4135
    %v5613 = vunpack.c.h.b16 %v4135
    %v5614 = vunpack.c.l.b16 %v4136
    %v5615 = vunpack.c.h.b16 %v4136
    %v5616 = vunpack.c.l.b16 %v4137
    %v5617 = vunpack.c.h.b16 %v4137
    %v5618 = vunpack.c.l.b16 %v4138
    %v5619 = vunpack.c.h.b16 %v4138
    %v5620 = vunpack.c.l.b16 %v4139
    %v5621 = vunpack.c.h.b16 %v4139
    %v5622 = vunpack.c.l.b16 %v4140
    %v5623 = vunpack.c.h.b16 %v4140
    %v5624 = vunpack.c.l.b16 %v4141
    %v5625 = vunpack.c.h.b16 %v4141
    %v5626 = vunpack.c.l.b16 %v4142
    %v5627 = vunpack.c.h.b16 %v4142
    %v5628 = vunpack.c.l.b16 %v4143
    %v5629 = vunpack.c.h.b16 %v4143
    %v5630 = vunpack.c.l.b16 %v4144
    %v5631 = vunpack.c.h.b16 %v4144
    %v5632 = vunpack.c.l.b16 %v4145
    %v5633 = vunpack.c.h.b16 %v4145
    %v5634 = vunpack.c.l.b16 %v4146
    %v5635 = vunpack.c.h.b16 %v4146
    %v5636 = vunpack.c.l.b16 %v4147
    %v5637 = vunpack.c.h.b16 %v4147
    %v5638 = vunpack.c.l.b16 %v4148
    %v5639 = vunpack.c.h.b16 %v4148
    %v5640 = vunpack.c.l.b16 %v4149
    %v5641 = vunpack.c.h.b16 %v4149
    %v5642 = vunpack.c.l.b16 %v4150
    %v5643 = vunpack.c.h.b16 %v4150
    %v5644 = vunpack.c.l.b16 %v4151
    %v5645 = vunpack.c.h.b16 %v4151
    %v5646 = vunpack.c.l.b16 %v4152
    %v5647 = vunpack.c.h.b16 %v4152
    %v5648 = vunpack.c.l.b16 %v4153
    %v5649 = vunpack.c.h.b16 %v4153
    %v5650 = vunpack.c.l.b16 %v4154
    %v5651 = vunpack.c.h.b16 %v4154
    %v5652 = vunpack.c.l.b16 %v4155
    %v5653 = vunpack.c.h.b16 %v4155
    %v5654 = vunpack.c.l.b16 %v4156
    %v5655 = vunpack.c.h.b16 %v4156
    %v5656 = vunpack.c.l.b16 %v4157
    %v5657 = vunpack.c.h.b16 %v4157
    %v5658 = vunpack.c.l.b16 %v4158
    %v5659 = vunpack.c.h.b16 %v4158
    %v5660 = vunpack.c.l.b16 %v4159
    %v5661 = vunpack.c.h.b16 %v4159
    %v5662 = vunpack.c.l.b16 %v4160
    %v5663 = vunpack.c.h.b16 %v4160
    %v5664 = vunpack.c.l.b16 %v4161
    %v5665 = vunpack.c.h.b16 %v4161
    %v5666 = vunpack.c.l.b16 %v4162
    %v5667 = vunpack.c.h.b16 %v4162
    %v5668 = vunpack.c.l.b16 %v4163
    %v5669 = vunpack.c.h.b16 %v4163
    %v5670 = vunpack.c.l.b16 %v4164
    %v5671 = vunpack.c.h.b16 %v4164
    %v5672 = vunpack.c.l.b16 %v4165
    %v5673 = vunpack.c.h.b16 %v4165
    %v5674 = vunpack.c.l.b16 %v4166
    %v5675 = vunpack.c.h.b16 %v4166
    %v5676 = vunpack.c.l.b16 %v4167
    %v5677 = vunpack.c.h.b16 %v4167
    %v5678 = vunpack.c.l.b16 %v4168
    %v5679 = vunpack.c.h.b16 %v4168
    %v5680 = vunpack.c.l.b16 %v4169
    %v5681 = vunpack.c.h.b16 %v4169
    %v5682 = vunpack.c.l.b16 %v4170
    %v5683 = vunpack.c.h.b16 %v4170
    %v5684 = vunpack.c.l.b16 %v4171
    %v5685 = vunpack.c.h.b16 %v4171
    %v5686 = vunpack.c.l.b16 %v4172
    %v5687 = vunpack.c.h.b16 %v4172
    %v5688 = vunpack.c.l.b16 %v4173
    %v5689 = vunpack.c.h.b16 %v4173
    %v5690 = vunpack.c.l.b16 %v4174
    %v5691 = vunpack.c.h.b16 %v4174
    %v5692 = vunpack.c.l.b16 %v4175
    %v5693 = vunpack.c.h.b16 %v4175
    %v5694 = vunpack.c.l.b16 %v4176
    %v5695 = vunpack.c.h.b16 %v4176
    %v5696 = vunpack.c.l.b16 %v4177
    %v5697 = vunpack.c.h.b16 %v4177
    %v5698 = vunpack.c.l.b16 %v4178
    %v5699 = vunpack.c.h.b16 %v4178
    %v5700 = vunpack.c.l.b16 %v4179
    %v5701 = vunpack.c.h.b16 %v4179
    %v5702 = vunpack.c.l.b16 %v4180
    %v5703 = vunpack.c.h.b16 %v4180
    %v5704 = vunpack.c.l.b16 %v4181
    %v5705 = vunpack.c.h.b16 %v4181
    %v5706 = vunpack.c.l.b16 %v4182
    %v5707 = vunpack.c.h.b16 %v4182
    %v5708 = vunpack.c.l.b16 %v4183
    %v5709 = vunpack.c.h.b16 %v4183
    %v5710 = vunpack.c.l.b16 %v4184
    %v5711 = vunpack.c.h.b16 %v4184
    %v5712 = vunpack.c.l.b16 %v4185
    %v5713 = vunpack.c.h.b16 %v4185
    %v5714 = vunpack.c.l.b16 %v4186
    %v5715 = vunpack.c.h.b16 %v4186
    %v5716 = vunpack.c.l.b16 %v4187
    %v5717 = vunpack.c.h.b16 %v4187
    %v5718 = vunpack.c.l.b16 %v4188
    %v5719 = vunpack.c.h.b16 %v4188
    %v5720 = vunpack.c.l.b16 %v4189
    %v5721 = vunpack.c.h.b16 %v4189
    %v5722 = vunpack.c.l.b16 %v4190
    %v5723 = vunpack.c.h.b16 %v4190
    %v5724 = vunpack.c.l.b16 %v4191
    %v5725 = vunpack.c.h.b16 %v4191
    %v5726 = vunpack.c.l.b16 %v4192
    %v5727 = vunpack.c.h.b16 %v4192
    %v5728 = vunpack.c.l.b16 %v4193
    %v5729 = vunpack.c.h.b16 %v4193
    %v5730 = vunpack.c.l.b16 %v4194
    %v5731 = vunpack.c.h.b16 %v4194
    %v5732 = vunpack.c.l.b16 %v4195
    %v5733 = vunpack.c.h.b16 %v4195
    %v5734 = vunpack.c.l.b16 %v4196
    %v5735 = vunpack.c.h.b16 %v4196
    %v5736 = vunpack.c.l.b16 %v4197
    %v5737 = vunpack.c.h.b16 %v4197
    %v5738 = vunpack.c.l.b16 %v4198
    %v5739 = vunpack.c.h.b16 %v4198
    %v5740 = vunpack.c.l.b16 %v4199
    %v5741 = vunpack.c.h.b16 %v4199
    %v5742 = vunpack.c.l.b16 %v4200
    %v5743 = vunpack.c.h.b16 %v4200
    %v5744 = vunpack.c.l.b16 %v4201
    %v5745 = vunpack.c.h.b16 %v4201
    %v5746 = vunpack.c.l.b16 %v4202
    %v5747 = vunpack.c.h.b16 %v4202
    %v5748 = vunpack.c.l.b16 %v4203
    %v5749 = vunpack.c.h.b16 %v4203
    %v5750 = vunpack.c.l.b16 %v4204
    %v5751 = vunpack.c.h.b16 %v4204
    %v5752 = vunpack.c.l.b16 %v4205
    %v5753 = vunpack.c.h.b16 %v4205
    %v5754 = vunpack.c.l.b16 %v4206
    %v5755 = vunpack.c.h.b16 %v4206
    %v5756 = vunpack.c.l.b16 %v4207
    %v5757 = vunpack.c.h.b16 %v4207
    %v5758 = vunpack.c.l.b16 %v4208
    %v5759 = vunpack.c.h.b16 %v4208
    %v5760 = vunpack.c.l.b16 %v4209
    %v5761 = vunpack.c.h.b16 %v4209
    %v5762 = vunpack.c.l.b16 %v4210
    %v5763 = vunpack.c.h.b16 %v4210
    %v5764 = vunpack.c.l.b16 %v4211
    %v5765 = vunpack.c.h.b16 %v4211
    %v5766 = vunpack.c.l.b16 %v4212
    %v5767 = vunpack.c.h.b16 %v4212
    %v5768 = vunpack.c.l.b16 %v4213
    %v5769 = vunpack.c.h.b16 %v4213
    %v5770 = vunpack.c.l.b16 %v4214
    %v5771 = vunpack.c.h.b16 %v4214
    %v5772 = vunpack.c.l.b16 %v4215
    %v5773 = vunpack.c.h.b16 %v4215
    %v5774 = vunpack.c.l.b16 %v4216
    %v5775 = vunpack.c.h.b16 %v4216
    %v5776 = vunpack.c.l.b16 %v4217
    %v5777 = vunpack.c.h.b16 %v4217
    %v5778 = vunpack.c.l.b16 %v4218
    %v5779 = vunpack.c.h.b16 %v4218
    %v5780 = vunpack.c.l.b16 %v4219
    %v5781 = vunpack.c.h.b16 %v4219
    %v5782 = vunpack.c.l.b16 %v4220
    %v5783 = vunpack.c.h.b16 %v4220
    %v5784 = vunpack.c.l.b16 %v4221
    %v5785 = vunpack.c.h.b16 %v4221
    %v5786 = vunpack.c.l.b16 %v4222
    %v5787 = vunpack.c.h.b16 %v4222
    %v5788 = vunpack.c.l.b16 %v4223
    %v5789 = vunpack.c.h.b16 %v4223
    %v5790 = vunpack.c.l.b16 %v4224
    %v5791 = vunpack.c.h.b16 %v4224
    %v5792 = vunpack.c.l.b16 %v4225
    %v5793 = vunpack.c.h.b16 %v4225
    %v5794 = vunpack.c.l.b16 %v4226
    %v5795 = vunpack.c.h.b16 %v4226
    %v5796 = vunpack.c.l.b16 %v4227
    %v5797 = vunpack.c.h.b16 %v4227
    %v5798 = vunpack.c.l.b16 %v4228
    %v5799 = vunpack.c.h.b16 %v4228
    %v5800 = vunpack.c.l.b16 %v4229
    %v5801 = vunpack.c.h.b16 %v4229
    %v5802 = vunpack.c.l.b16 %v4230
    %v5803 = vunpack.c.h.b16 %v4230
    %v5804 = vunpack.c.l.b16 %v4231
    %v5805 = vunpack.c.h.b16 %v4231
    %v5806 = vunpack.c.l.b16 %v4232
    %v5807 = vunpack.c.h.b16 %v4232
    %v5808 = vunpack.c.l.b16 %v4233
    %v5809 = vunpack.c.h.b16 %v4233
    %v5810 = vunpack.c.l.b16 %v4234
    %v5811 = vunpack.c.h.b16 %v4234
    %v5812 = vunpack.c.l.b16 %v4235
    %v5813 = vunpack.c.h.b16 %v4235
    %v5814 = vunpack.c.l.b16 %v4236
    %v5815 = vunpack.c.h.b16 %v4236
    %v5816 = vunpack.c.l.b16 %v4237
    %v5817 = vunpack.c.h.b16 %v4237
    %v5818 = vunpack.c.l.b16 %v4238
    %v5819 = vunpack.c.h.b16 %v4238
    %v5820 = vunpack.c.l.b16 %v4239
    %v5821 = vunpack.c.h.b16 %v4239
    %v5822 = vunpack.c.l.b16 %v4240
    %v5823 = vunpack.c.h.b16 %v4240
    %v5824 = vunpack.c.l.b16 %v4241
    %v5825 = vunpack.c.h.b16 %v4241
    %v5826 = vunpack.c.l.b16 %v4242
    %v5827 = vunpack.c.h.b16 %v4242
    %v5828 = vunpack.c.l.b16 %v4243
    %v5829 = vunpack.c.h.b16 %v4243
    %v5830 = vunpack.c.l.b16 %v4244
    %v5831 = vunpack.c.h.b16 %v4244
    %v5832 = vunpack.c.l.b16 %v4245
    %v5833 = vunpack.c.h.b16 %v4245
    %v5834 = vunpack.c.l.b16 %v4246
    %v5835 = vunpack.c.h.b16 %v4246
    %v5836 = vunpack.c.l.b16 %v4247
    %v5837 = vunpack.c.h.b16 %v4247
    %v5838 = vunpack.c.l.b16 %v4248
    %v5839 = vunpack.c.h.b16 %v4248
    %v5840 = vunpack.c.l.b16 %v4249
    %v5841 = vunpack.c.h.b16 %v4249
    %v5842 = vunpack.c.l.b16 %v4250
    %v5843 = vunpack.c.h.b16 %v4250
    %v5844 = vunpack.c.l.b16 %v4251
    %v5845 = vunpack.c.h.b16 %v4251
    %v5846 = vunpack.c.l.b16 %v4252
    %v5847 = vunpack.c.h.b16 %v4252
    %v5848 = vunpack.c.l.b16 %v4253
    %v5849 = vunpack.c.h.b16 %v4253
    %v5850 = vunpack.c.l.b16 %v4254
    %v5851 = vunpack.c.h.b16 %v4254
    %v5852 = vunpack.c.l.b16 %v4255
    %v5853 = vunpack.c.h.b16 %v4255
    %v5854 = vunpack.c.l.b16 %v4256
    %v5855 = vunpack.c.h.b16 %v4256
    %v5856 = vunpack.c.l.b16 %v4257
    %v5857 = vunpack.c.h.b16 %v4257
    %v5858 = vunpack.c.l.b16 %v4258
    %v5859 = vunpack.c.h.b16 %v4258
    %v5860 = vunpack.c.l.b16 %v4259
    %v5861 = vunpack.c.h.b16 %v4259
    %v5862 = vunpack.c.l.b16 %v4260
    %v5863 = vunpack.c.h.b16 %v4260
    %v5864 = vunpack.c.l.b16 %v4261
    %v5865 = vunpack.c.h.b16 %v4261
    %v5866 = vunpack.c.l.b16 %v4262
    %v5867 = vunpack.c.h.b16 %v4262
    %v5868 = vunpack.c.l.b16 %v4263
    %v5869 = vunpack.c.h.b16 %v4263
    %v5870 = vunpack.c.l.b16 %v4264
    %v5871 = vunpack.c.h.b16 %v4264
    %v5872 = vunpack.c.l.b16 %v4265
    %v5873 = vunpack.c.h.b16 %v4265
    %v5874 = vunpack.c.l.b16 %v4266
    %v5875 = vunpack.c.h.b16 %v4266
    %v5876 = vunpack.c.l.b16 %v4267
    %v5877 = vunpack.c.h.b16 %v4267
    %v5878 = vunpack.c.l.b16 %v4268
    %v5879 = vunpack.c.h.b16 %v4268
    %v5880 = vunpack.c.l.b16 %v4269
    %v5881 = vunpack.c.h.b16 %v4269
    %v5882 = vunpack.c.l.b16 %v4270
    %v5883 = vunpack.c.h.b16 %v4270
    %v5884 = vunpack.c.l.b16 %v4271
    %v5885 = vunpack.c.h.b16 %v4271
    %v5886 = vunpack.c.l.b16 %v4272
    %v5887 = vunpack.c.h.b16 %v4272
    %v5888 = vunpack.c.l.b16 %v4273
    %v5889 = vunpack.c.h.b16 %v4273
    %v5890 = vunpack.c.l.b16 %v4274
    %v5891 = vunpack.c.h.b16 %v4274
    %v5892 = vunpack.c.l.b16 %v4275
    %v5893 = vunpack.c.h.b16 %v4275
    %v5894 = vunpack.c.l.b16 %v4276
    %v5895 = vunpack.c.h.b16 %v4276
    %v5896 = vunpack.c.l.b16 %v4277
    %v5897 = vunpack.c.h.b16 %v4277
    %v5898 = vunpack.c.l.b16 %v4278
    %v5899 = vunpack.c.h.b16 %v4278
    %v5900 = vunpack.c.l.b16 %v4279
    %v5901 = vunpack.c.h.b16 %v4279
    %v5902 = vunpack.c.l.b16 %v4280
    %v5903 = vunpack.c.h.b16 %v4280
    %v5904 = vunpack.c.l.b16 %v4281
    %v5905 = vunpack.c.h.b16 %v4281
    %v5906 = vunpack.c.l.b16 %v4282
    %v5907 = vunpack.c.h.b16 %v4282
    %v5908 = vunpack.c.l.b16 %v4283
    %v5909 = vunpack.c.h.b16 %v4283
    %v5910 = vunpack.c.l.b16 %v4284
    %v5911 = vunpack.c.h.b16 %v4284
    %v5912 = vunpack.c.l.b16 %v4285
    %v5913 = vunpack.c.h.b16 %v4285
    %v5914 = vunpack.c.l.b16 %v4286
    %v5915 = vunpack.c.h.b16 %v4286
    %v5916 = vunpack.c.l.b16 %v4287
    %v5917 = vunpack.c.h.b16 %v4287
    %v5918 = vunpack.c.l.b16 %v4288
    %v5919 = vunpack.c.h.b16 %v4288
    %v5920 = vunpack.c.l.b16 %v4289
    %v5921 = vunpack.c.h.b16 %v4289
    %v5922 = vunpack.c.l.b16 %v4290
    %v5923 = vunpack.c.h.b16 %v4290
    %v5924 = vunpack.c.l.b16 %v4291
    %v5925 = vunpack.c.h.b16 %v4291
    %v5926 = vunpack.c.l.b16 %v4292
    %v5927 = vunpack.c.h.b16 %v4292
    %v5928 = vunpack.c.l.b16 %v4293
    %v5929 = vunpack.c.h.b16 %v4293
    %v5930 = vunpack.c.l.b16 %v4294
    %v5931 = vunpack.c.h.b16 %v4294
    %v5932 = vunpack.c.l.b16 %v4295
    %v5933 = vunpack.c.h.b16 %v4295
    %v5934 = vunpack.c.l.b16 %v4296
    %v5935 = vunpack.c.h.b16 %v4296
    %v5936 = vunpack.c.l.b16 %v4297
    %v5937 = vunpack.c.h.b16 %v4297
    %v5938 = vunpack.c.l.b16 %v4298
    %v5939 = vunpack.c.h.b16 %v4298
    %v5940 = vunpack.c.l.b16 %v4299
    %v5941 = vunpack.c.h.b16 %v4299
    %v5942 = vunpack.c.l.b16 %v4300
    %v5943 = vunpack.c.h.b16 %v4300
    %v5944 = vunpack.c.l.b16 %v4301
    %v5945 = vunpack.c.h.b16 %v4301
    %v5946 = vunpack.c.l.b16 %v4302
    %v5947 = vunpack.c.h.b16 %v4302
    %v5948 = vunpack.c.l.b16 %v4303
    %v5949 = vunpack.c.h.b16 %v4303
    %v5950 = vunpack.c.l.b16 %v4304
    %v5951 = vunpack.c.h.b16 %v4304
    %v5952 = vunpack.c.l.b16 %v4305
    %v5953 = vunpack.c.h.b16 %v4305
    %v5954 = vunpack.c.l.b16 %v4306
    %v5955 = vunpack.c.h.b16 %v4306
    %v5956 = vunpack.c.l.b16 %v4307
    %v5957 = vunpack.c.h.b16 %v4307
    %v5958 = vunpack.c.l.b16 %v4308
    %v5959 = vunpack.c.h.b16 %v4308
    %v5960 = vunpack.c.l.b16 %v4309
    %v5961 = vunpack.c.h.b16 %v4309
    %v5962 = vunpack.c.l.b16 %v4310
    %v5963 = vunpack.c.h.b16 %v4310
    %v5964 = vunpack.c.l.b16 %v4311
    %v5965 = vunpack.c.h.b16 %v4311
    %v5966 = vunpack.c.l.b16 %v4312
    %v5967 = vunpack.c.h.b16 %v4312
    %v5968 = vunpack.c.l.b16 %v4313
    %v5969 = vunpack.c.h.b16 %v4313
    %v5970 = vunpack.c.l.b16 %v4314
    %v5971 = vunpack.c.h.b16 %v4314
    %v5972 = vunpack.c.l.b16 %v4315
    %v5973 = vunpack.c.h.b16 %v4315
    %v5974 = vunpack.c.l.b16 %v4316
    %v5975 = vunpack.c.h.b16 %v4316
    %v5976 = vunpack.c.l.b16 %v4317
    %v5977 = vunpack.c.h.b16 %v4317
    %v5978 = vunpack.c.l.b16 %v4318
    %v5979 = vunpack.c.h.b16 %v4318
    %v5980 = vunpack.c.l.b16 %v4319
    %v5981 = vunpack.c.h.b16 %v4319
    %v5982 = vunpack.c.l.b16 %v4320
    %v5983 = vunpack.c.h.b16 %v4320
    %v5984 = vunpack.c.l.b16 %v4321
    %v5985 = vunpack.c.h.b16 %v4321
    %v5986 = vunpack.c.l.b16 %v4322
    %v5987 = vunpack.c.h.b16 %v4322
    %v5988 = vunpack.c.l.b16 %v4323
    %v5989 = vunpack.c.h.b16 %v4323
    %v5990 = vunpack.c.l.b16 %v4324
    %v5991 = vunpack.c.h.b16 %v4324
    %v5992 = vunpack.c.l.b16 %v4325
    %v5993 = vunpack.c.h.b16 %v4325
    %v5994 = vunpack.c.l.b16 %v4326
    %v5995 = vunpack.c.h.b16 %v4326
    %v5996 = vunpack.c.l.b16 %v4327
    %v5997 = vunpack.c.h.b16 %v4327
    %v5998 = vunpack.c.l.b16 %v4328
    %v5999 = vunpack.c.h.b16 %v4328
    %v6000 = vunpack.c.l.b16 %v4329
    %v6001 = vunpack.c.h.b16 %v4329
    %v6002 = vunpack.c.l.b16 %v4330
    %v6003 = vunpack.c.h.b16 %v4330
    %v6004 = vunpack.c.l.b16 %v4331
    %v6005 = vunpack.c.h.b16 %v4331
    %v6006 = vunpack.c.l.b16 %v4332
    %v6007 = vunpack.c.h.b16 %v4332
    %v6008 = vunpack.c.l.b16 %v4333
    %v6009 = vunpack.c.h.b16 %v4333
    %v6010 = vunpack.c.l.b16 %v4334
    %v6011 = vunpack.c.h.b16 %v4334
    %v6012 = vunpack.c.l.b16 %v4335
    %v6013 = vunpack.c.h.b16 %v4335
    %v6014 = vunpack.c.l.b16 %v4336
    %v6015 = vunpack.c.h.b16 %v4336
    %v6016 = vunpack.c.l.b16 %v4337
    %v6017 = vunpack.c.h.b16 %v4337
    %v6018 = vunpack.c.l.b16 %v4338
    %v6019 = vunpack.c.h.b16 %v4338
    %v6020 = vunpack.c.l.b16 %v4339
    %v6021 = vunpack.c.h.b16 %v4339
    %v6022 = vunpack.c.l.b16 %v4340
    %v6023 = vunpack.c.h.b16 %v4340
    %v6024 = vunpack.c.l.b16 %v4341
    %v6025 = vunpack.c.h.b16 %v4341
    %v6026 = vunpack.c.l.b16 %v4342
    %v6027 = vunpack.c.h.b16 %v4342
    %v6028 = vunpack.c.l.b16 %v4343
    %v6029 = vunpack.c.h.b16 %v4343
    %v6030 = vunpack.c.l.b16 %v4344
    %v6031 = vunpack.c.h.b16 %v4344
    %v6032 = vunpack.c.l.b16 %v4345
    %v6033 = vunpack.c.h.b16 %v4345
    %v6034 = vunpack.c.l.b16 %v4346
    %v6035 = vunpack.c.h.b16 %v4346
    %v6036 = vunpack.c.l.b16 %v4347
    %v6037 = vunpack.c.h.b16 %v4347
    %v6038 = vunpack.c.l.b16 %v4348
    %v6039 = vunpack.c.h.b16 %v4348
    %v6040 = vunpack.c.l.b16 %v4349
    %v6041 = vunpack.c.h.b16 %v4349
    %v6042 = vunpack.c.l.b16 %v4350
    %v6043 = vunpack.c.h.b16 %v4350
    %v6044 = vunpack.c.l.b16 %v4351
    %v6045 = vunpack.c.h.b16 %v4351
    %v6046 = vunpack.c.l.b16 %v4352
    %v6047 = vunpack.c.h.b16 %v4352
    %v6048 = vunpack.c.l.b16 %v4353
    %v6049 = vunpack.c.h.b16 %v4353
    %v6050 = vunpack.c.l.b16 %v4354
    %v6051 = vunpack.c.h.b16 %v4354
    %v6052 = vunpack.c.l.b16 %v4355
    %v6053 = vunpack.c.h.b16 %v4355
    %v6054 = vunpack.c.l.b16 %v4356
    %v6055 = vunpack.c.h.b16 %v4356
    %v6056 = vunpack.c.l.b16 %v4357
    %v6057 = vunpack.c.h.b16 %v4357
    %v6058 = vunpack.c.l.b16 %v4358
    %v6059 = vunpack.c.h.b16 %v4358
    %v6060 = vunpack.c.l.b16 %v4359
    %v6061 = vunpack.c.h.b16 %v4359
    %v6062 = vunpack.c.l.b16 %v4360
    %v6063 = vunpack.c.h.b16 %v4360
    %v6064 = vunpack.c.l.b16 %v4361
    %v6065 = vunpack.c.h.b16 %v4361
    %v6066 = vunpack.c.l.b16 %v4362
    %v6067 = vunpack.c.h.b16 %v4362
    %v6068 = vunpack.c.l.b16 %v4363
    %v6069 = vunpack.c.h.b16 %v4363
    %v6070 = vunpack.c.l.b16 %v4364
    %v6071 = vunpack.c.h.b16 %v4364
    %v6072 = vunpack.c.l.b16 %v4365
    %v6073 = vunpack.c.h.b16 %v4365
    %v6074 = vunpack.c.l.b16 %v4366
    %v6075 = vunpack.c.h.b16 %v4366
    %v6076 = vunpack.c.l.b16 %v4367
    %v6077 = vunpack.c.h.b16 %v4367
    %v6078 = vunpack.c.l.b16 %v4368
    %v6079 = vunpack.c.h.b16 %v4368
    %v6080 = vunpack.c.l.b16 %v4369
    %v6081 = vunpack.c.h.b16 %v4369
    %v6082 = vunpack.c.l.b16 %v4370
    %v6083 = vunpack.c.h.b16 %v4370
    %v6084 = vunpack.c.l.b16 %v4371
    %v6085 = vunpack.c.h.b16 %v4371
    %v6086 = vunpack.c.l.b16 %v4372
    %v6087 = vunpack.c.h.b16 %v4372
    %v6088 = vunpack.c.l.b16 %v4373
    %v6089 = vunpack.c.h.b16 %v4373
    %v6090 = vunpack.c.l.b16 %v4374
    %v6091 = vunpack.c.h.b16 %v4374
    %v6092 = vunpack.c.l.b16 %v4375
    %v6093 = vunpack.c.h.b16 %v4375
    %v6094 = vunpack.c.l.b16 %v4376
    %v6095 = vunpack.c.h.b16 %v4376
    %v6096 = vunpack.c.l.b16 %v4377
    %v6097 = vunpack.c.h.b16 %v4377
    %v6098 = vunpack.c.l.b16 %v4378
    %v6099 = vunpack.c.h.b16 %v4378
    %v6100 = vunpack.c.l.b16 %v4379
    %v6101 = vunpack.c.h.b16 %v4379
    %v6102 = vunpack.c.l.b16 %v4380
    %v6103 = vunpack.c.h.b16 %v4380
    %v6104 = vunpack.c.l.b16 %v4381
    %v6105 = vunpack.c.h.b16 %v4381
    %v6106 = vunpack.c.l.b16 %v4382
    %v6107 = vunpack.c.h.b16 %v4382
    %v6108 = vunpack.c.l.b16 %v4383
    %v6109 = vunpack.c.h.b16 %v4383
    %v6110 = vunpack.c.l.b16 %v4384
    %v6111 = vunpack.c.h.b16 %v4384
    %v6112 = vunpack.c.l.b16 %v4385
    %v6113 = vunpack.c.h.b16 %v4385
    %v6114 = vunpack.c.l.b16 %v4386
    %v6115 = vunpack.c.h.b16 %v4386
    %v6116 = vunpack.c.l.b16 %v4387
    %v6117 = vunpack.c.h.b16 %v4387
    %v6118 = vunpack.c.l.b16 %v4388
    %v6119 = vunpack.c.h.b16 %v4388
    %v6120 = vunpack.c.l.b16 %v4389
    %v6121 = vunpack.c.h.b16 %v4389
    %v6122 = vunpack.c.l.b16 %v4390
    %v6123 = vunpack.c.h.b16 %v4390
    %v6124 = vunpack.c.l.b16 %v4391
    %v6125 = vunpack.c.h.b16 %v4391
    %v6126 = vunpack.c.l.b16 %v4392
    %v6127 = vunpack.c.h.b16 %v4392
    %v6128 = vunpack.c.l.b16 %v4393
    %v6129 = vunpack.c.h.b16 %v4393
    %v6130 = vunpack.c.l.b16 %v4394
    %v6131 = vunpack.c.h.b16 %v4394
    %v6132 = vunpack.c.l.b16 %v4395
    %v6133 = vunpack.c.h.b16 %v4395
    %v6134 = vunpack.c.l.b16 %v4396
    %v6135 = vunpack.c.h.b16 %v4396
    %v6136 = vunpack.c.l.b16 %v4397
    %v6137 = vunpack.c.h.b16 %v4397
    %v6138 = vunpack.c.l.b16 %v4398
    %v6139 = vunpack.c.h.b16 %v4398
    %v6140 = vunpack.c.l.b16 %v4399
    %v6141 = vunpack.c.h.b16 %v4399
    %v6142 = vunpack.c.l.b16 %v4400
    %v6143 = vunpack.c.h.b16 %v4400
    %v6144 = vunpack.c.l.b16 %v4401
    %v6145 = vunpack.c.h.b16 %v4401
    %v6146 = vunpack.c.l.b16 %v4402
    %v6147 = vunpack.c.h.b16 %v4402
    %v6148 = vunpack.c.l.b16 %v4403
    %v6149 = vunpack.c.h.b16 %v4403
    %v6150 = vunpack.c.l.b16 %v4404
    %v6151 = vunpack.c.h.b16 %v4404
    %v6152 = vunpack.c.l.b16 %v4405
    %v6153 = vunpack.c.h.b16 %v4405
    %v6154 = vunpack.c.l.b16 %v4406
    %v6155 = vunpack.c.h.b16 %v4406
    %v6156 = vunpack.c.l.b16 %v4407
    %v6157 = vunpack.c.h.b16 %v4407
    %v6158 = vunpack.c.l.b16 %v4408
    %v6159 = vunpack.c.h.b16 %v4408
    %v6160 = vunpack.c.l.b16 %v4409
    %v6161 = vunpack.c.h.b16 %v4409
    %v6162 = vunpack.c.l.b16 %v4410
    %v6163 = vunpack.c.h.b16 %v4410
    %v6164 = vunpack.c.l.b16 %v4411
    %v6165 = vunpack.c.h.b16 %v4411
    %v6166 = vunpack.c.l.b16 %v4412
    %v6167 = vunpack.c.h.b16 %v4412
    %v6168 = vunpack.c.l.b16 %v4413
    %v6169 = vunpack.c.h.b16 %v4413
    %v6170 = vunpack.c.l.b16 %v4414
    %v6171 = vunpack.c.h.b16 %v4414
    %v6172 = vunpack.c.l.b16 %v4415
    %v6173 = vunpack.c.h.b16 %v4415
    %v6174 = vunpack.c.l.b16 %v4416
    %v6175 = vunpack.c.h.b16 %v4416
    %v6176 = vunpack.c.l.b16 %v4417
    %v6177 = vunpack.c.h.b16 %v4417
    %v6178 = vunpack.c.l.b16 %v4418
    %v6179 = vunpack.c.h.b16 %v4418
    %v6180 = vunpack.c.l.b16 %v4419
    %v6181 = vunpack.c.h.b16 %v4419
    %v6182 = vunpack.c.l.b16 %v4420
    %v6183 = vunpack.c.h.b16 %v4420
    %v6184 = vunpack.c.l.b16 %v4421
    %v6185 = vunpack.c.h.b16 %v4421
    %v6186 = vunpack.c.l.b16 %v4422
    %v6187 = vunpack.c.h.b16 %v4422
    %v6188 = vunpack.c.l.b16 %v4423
    %v6189 = vunpack.c.h.b16 %v4423
    %v6190 = vunpack.c.l.b16 %v4424
    %v6191 = vunpack.c.h.b16 %v4424
    %v6192 = vunpack.c.l.b16 %v4425
    %v6193 = vunpack.c.h.b16 %v4425
    %v6194 = vunpack.c.l.b16 %v4426
    %v6195 = vunpack.c.h.b16 %v4426
    %v6196 = vunpack.c.l.b16 %v4427
    %v6197 = vunpack.c.h.b16 %v4427
    %v6198 = vunpack.c.l.b16 %v4428
    %v6199 = vunpack.c.h.b16 %v4428
    %v6200 = vunpack.c.l.b16 %v4429
    %v6201 = vunpack.c.h.b16 %v4429
    %v6202 = vunpack.c.l.b16 %v4430
    %v6203 = vunpack.c.h.b16 %v4430
    %v6204 = vunpack.c.l.b16 %v4431
    %v6205 = vunpack.c.h.b16 %v4431
    %v6206 = vunpack.c.l.b16 %v4432
    %v6207 = vunpack.c.h.b16 %v4432
    %v6208 = vunpack.c.l.b16 %v4433
    %v6209 = vunpack.c.h.b16 %v4433
    %v6210 = vunpack.c.l.b16 %v4434
    %v6211 = vunpack.c.h.b16 %v4434
    %v6212 = vunpack.c.l.b16 %v4435
    %v6213 = vunpack.c.h.b16 %v4435
    %v6214 = vunpack.c.l.b16 %v4436
    %v6215 = vunpack.c.h.b16 %v4436
    %v6216 = vunpack.c.l.b16 %v4437
    %v6217 = vunpack.c.h.b16 %v4437
    %v6218 = vunpack.c.l.b16 %v4438
    %v6219 = vunpack.c.h.b16 %v4438
    %v6220 = vunpack.c.l.b16 %v4439
    %v6221 = vunpack.c.h.b16 %v4439
    %v6222 = vunpack.c.l.b16 %v4440
    %v6223 = vunpack.c.h.b16 %v4440
    %v6224 = vunpack.c.l.b16 %v4441
    %v6225 = vunpack.c.h.b16 %v4441
    %v6226 = vunpack.c.l.b16 %v4442
    %v6227 = vunpack.c.h.b16 %v4442
    %v6228 = vunpack.c.l.b16 %v4443
    %v6229 = vunpack.c.h.b16 %v4443
    %v6230 = vunpack.c.l.b16 %v4444
    %v6231 = vunpack.c.h.b16 %v4444
    %v6232 = vunpack.c.l.b16 %v4445
    %v6233 = vunpack.c.h.b16 %v4445
    %v6234 = vunpack.c.l.b16 %v4446
    %v6235 = vunpack.c.h.b16 %v4446
    %v6236 = vunpack.c.l.b16 %v4447
    %v6237 = vunpack.c.h.b16 %v4447
    %v6238 = vunpack.c.l.b16 %v4448
    %v6239 = vunpack.c.h.b16 %v4448
    %v6240 = vunpack.c.l.b16 %v4449
    %v6241 = vunpack.c.h.b16 %v4449
    %v6242 = vunpack.c.l.b16 %v4450
    %v6243 = vunpack.c.h.b16 %v4450
    %v6244 = vunpack.c.l.b16 %v4451
    %v6245 = vunpack.c.h.b16 %v4451
    %v6246 = vunpack.c.l.b16 %v4452
    %v6247 = vunpack.c.h.b16 %v4452
    %v6248 = vunpack.c.l.b16 %v4453
    %v6249 = vunpack.c.h.b16 %v4453
    %v6250 = vunpack.c.l.b16 %v4454
    %v6251 = vunpack.c.h.b16 %v4454
    %v6252 = vunpack.c.l.b16 %v4455
    %v6253 = vunpack.c.h.b16 %v4455
    %v6254 = vunpack.c.l.b16 %v4456
    %v6255 = vunpack.c.h.b16 %v4456
    %v6256 = vunpack.c.l.b16 %v4457
    %v6257 = vunpack.c.h.b16 %v4457
    %v6258 = vunpack.c.l.b16 %v4458
    %v6259 = vunpack.c.h.b16 %v4458
    %v6260 = vunpack.c.l.b16 %v4459
    %v6261 = vunpack.c.h.b16 %v4459
    %v6262 = vunpack.c.l.b16 %v4460
    %v6263 = vunpack.c.h.b16 %v4460
    %v6264 = vunpack.c.l.b16 %v4461
    %v6265 = vunpack.c.h.b16 %v4461
    %v6266 = vunpack.c.l.b16 %v4462
    %v6267 = vunpack.c.h.b16 %v4462
    %v6268 = vunpack.c.l.b16 %v4463
    %v6269 = vunpack.c.h.b16 %v4463
    %v6270 = vunpack.c.l.b16 %v4464
    %v6271 = vunpack.c.h.b16 %v4464
    %v6272 = vunpack.c.l.b16 %v4465
    %v6273 = vunpack.c.h.b16 %v4465
    %v6274 = vunpack.c.l.b16 %v4466
    %v6275 = vunpack.c.h.b16 %v4466
    %v6276 = vunpack.c.l.b16 %v4467
    %v6277 = vunpack.c.h.b16 %v4467
    %v6278 = vunpack.c.l.b16 %v4468
    %v6279 = vunpack.c.h.b16 %v4468
    %v6280 = vunpack.c.l.b16 %v4469
    %v6281 = vunpack.c.h.b16 %v4469
    %v6282 = vunpack.c.l.b16 %v4470
    %v6283 = vunpack.c.h.b16 %v4470
    %v6284 = vunpack.c.l.b16 %v4471
    %v6285 = vunpack.c.h.b16 %v4471
    %v6286 = vunpack.c.l.b16 %v4472
    %v6287 = vunpack.c.h.b16 %v4472
    %v6288 = vunpack.c.l.b16 %v4473
    %v6289 = vunpack.c.h.b16 %v4473
    %v6290 = vunpack.c.l.b16 %v4474
    %v6291 = vunpack.c.h.b16 %v4474
    %v6292 = vunpack.c.l.b16 %v4475
    %v6293 = vunpack.c.h.b16 %v4475
    %v6294 = vunpack.c.l.b16 %v4476
    %v6295 = vunpack.c.h.b16 %v4476
    %v6296 = vunpack.c.l.b16 %v4477
    %v6297 = vunpack.c.h.b16 %v4477
    %v6298 = vunpack.c.l.b16 %v4478
    %v6299 = vunpack.c.h.b16 %v4478
    %v6300 = vunpack.c.l.b16 %v4479
    %v6301 = vunpack.c.h.b16 %v4479
    %v6302 = vunpack.c.l.b16 %v4480
    %v6303 = vunpack.c.h.b16 %v4480
    %v6304 = vunpack.c.l.b16 %v4481
    %v6305 = vunpack.c.h.b16 %v4481
    %v6306 = vunpack.c.l.b16 %v4482
    %v6307 = vunpack.c.h.b16 %v4482
    %v6308 = vunpack.c.l.b16 %v4483
    %v6309 = vunpack.c.h.b16 %v4483
    %v6310 = vunpack.c.l.b16 %v4484
    %v6311 = vunpack.c.h.b16 %v4484
    %v6312 = vunpack.c.l.b16 %v4485
    %v6313 = vunpack.c.h.b16 %v4485
    %v6314 = vunpack.c.l.b16 %v4486
    %v6315 = vunpack.c.h.b16 %v4486
    %v6316 = vunpack.c.l.b16 %v4487
    %v6317 = vunpack.c.h.b16 %v4487
    %v6318 = vunpack.c.l.b16 %v4488
    %v6319 = vunpack.c.h.b16 %v4488
    %v6320 = vunpack.c.l.b16 %v4489
    %v6321 = vunpack.c.h.b16 %v4489
    %v6322 = vunpack.c.l.b16 %v4490
    %v6323 = vunpack.c.h.b16 %v4490
    %v6324 = vunpack.c.l.b16 %v4491
    %v6325 = vunpack.c.h.b16 %v4491
    %v6326 = vunpack.c.l.b16 %v4492
    %v6327 = vunpack.c.h.b16 %v4492
    %v6328 = vunpack.c.l.b16 %v4493
    %v6329 = vunpack.c.h.b16 %v4493
    %v6330 = vunpack.c.l.b16 %v4494
    %v6331 = vunpack.c.h.b16 %v4494
    %v6332 = vunpack.c.l.b16 %v4495
    %v6333 = vunpack.c.h.b16 %v4495
    %v6334 = vunpack.c.l.b16 %v4496
    %v6335 = vunpack.c.h.b16 %v4496
    %v6336 = vunpack.c.l.b16 %v4497
    %v6337 = vunpack.c.h.b16 %v4497
    %v6338 = vunpack.c.l.b16 %v4498
    %v6339 = vunpack.c.h.b16 %v4498
    %v6340 = vunpack.c.l.b16 %v4499
    %v6341 = vunpack.c.h.b16 %v4499
    %v6342 = vunpack.c.l.b16 %v4500
    %v6343 = vunpack.c.h.b16 %v4500
    %v6344 = vunpack.c.l.b16 %v4501
    %v6345 = vunpack.c.h.b16 %v4501
    %v6346 = vunpack.c.l.b16 %v4502
    %v6347 = vunpack.c.h.b16 %v4502
    %v6348 = vunpack.c.l.b16 %v4503
    %v6349 = vunpack.c.h.b16 %v4503
    %v6350 = vunpack.c.l.b16 %v4504
    %v6351 = vunpack.c.h.b16 %v4504
    %v6352 = vunpack.c.l.b16 %v4505
    %v6353 = vunpack.c.h.b16 %v4505
    %v6354 = vunpack.c.l.b16 %v4506
    %v6355 = vunpack.c.h.b16 %v4506
    %v6356 = vunpack.c.l.b16 %v4507
    %v6357 = vunpack.c.h.b16 %v4507
    %v6358 = vunpack.c.l.b16 %v4508
    %v6359 = vunpack.c.h.b16 %v4508
    %v6360 = vunpack.c.l.b16 %v4509
    %v6361 = vunpack.c.h.b16 %v4509
    %v6362 = vunpack.c.l.b16 %v4510
    %v6363 = vunpack.c.h.b16 %v4510
    %v6364 = vunpack.c.l.b16 %v4511
    %v6365 = vunpack.c.h.b16 %v4511
    %v6366 = vunpack.c.l.b16 %v4512
    %v6367 = vunpack.c.h.b16 %v4512
    %v6368 = vunpack.c.l.b16 %v4513
    %v6369 = vunpack.c.h.b16 %v4513
    %v6370 = vunpack.c.l.b16 %v4514
    %v6371 = vunpack.c.h.b16 %v4514
    %v6372 = vunpack.c.l.b16 %v4515
    %v6373 = vunpack.c.h.b16 %v4515
    %v6374 = vunpack.c.l.b16 %v4516
    %v6375 = vunpack.c.h.b16 %v4516
    %v6376 = vunpack.c.l.b16 %v4517
    %v6377 = vunpack.c.h.b16 %v4517
    %v6378 = vunpack.c.l.b16 %v4518
    %v6379 = vunpack.c.h.b16 %v4518
    %v6380 = vunpack.c.l.b16 %v4519
    %v6381 = vunpack.c.h.b16 %v4519
    %v6382 = vunpack.c.l.b16 %v4520
    %v6383 = vunpack.c.h.b16 %v4520
    %v6384 = vunpack.c.l.b16 %v4521
    %v6385 = vunpack.c.h.b16 %v4521
    %v6386 = vunpack.c.l.b16 %v4522
    %v6387 = vunpack.c.h.b16 %v4522
    %v6388 = vunpack.c.l.b16 %v4523
    %v6389 = vunpack.c.h.b16 %v4523
    %v6390 = vpack.c.b16 %v5222, %v5206
    %v6391 = vpack.c.b16 %v5223, %v5207
    %v6392 = vpack.c.b16 %v5224, %v5208
    %v6393 = vpack.c.b16 %v5225, %v5209
    %v6394 = vpack.c.b16 %v5226, %v5210
    %v6395 = vpack.c.b16 %v5227, %v5211
    %v6396 = vpack.c.b16 %v5228, %v5212
    %v6397 = vpack.c.b16 %v5229, %v5213
    %v6398 = vpack.c.b16 %v5230, %v5214
    %v6399 = vpack.c.b16 %v5231, %v5215
    %v6400 = vpack.c.b16 %v5232, %v5216
    %v6401 = vpack.c.b16 %v5233, %v5217
    %v6402 = vpack.c.b16 %v5234, %v5218
    %v6403 = vpack.c.b16 %v5235, %v5219
    %v6404 = vpack.c.b16 %v5236, %v5220
    %v6405 = vpack.c.b16 %v5237, %v5221
    %v6406 = vpack.c.b16 %v5254, %v5238
    %v6407 = vpack.c.b16 %v5255, %v5239
    %v6408 = vpack.c.b16 %v5256, %v5240
    %v6409 = vpack.c.b16 %v5257, %v5241
    %v6410 = vpack.c.b16 %v5258, %v5242
    %v6411 = vpack.c.b16 %v5259, %v5243
    %v6412 = vpack.c.b16 %v5260, %v5244
    %v6413 = vpack.c.b16 %v5261, %v5245
    %v6414 = vpack.c.b16 %v5262, %v5246
    %v6415 = vpack.c.b16 %v5263, %v5247
    %v6416 = vpack.c.b16 %v5264, %v5248
    %v6417 = vpack.c.b16 %v5265, %v5249
    %v6418 = vpack.c.b16 %v5266, %v5250
    %v6419 = vpack.c.b16 %v5267, %v5251
    %v6420 = vpack.c.b16 %v5268, %v5252
    %v6421 = vpack.c.b16 %v5269, %v5253
    %v6422 = vpack.c.b16 %v5286, %v5270
    %v6423 = vpack.c.b16 %v5287, %v5271
    %v6424 = vpack.c.b16 %v5288, %v5272
    %v6425 = vpack.c.b16 %v5289, %v5273
    %v6426 = vpack.c.b16 %v5290, %v5274
    %v6427 = vpack.c.b16 %v5291, %v5275
    %v6428 = vpack.c.b16 %v5292, %v5276
    %v6429 = vpack.c.b16 %v5293, %v5277
    %v6430 = vpack.c.b16 %v5294, %v5278
    %v6431 = vpack.c.b16 %v5295, %v5279
    %v6432 = vpack.c.b16 %v5296, %v5280
    %v6433 = vpack.c.b16 %v5297, %v5281
    %v6434 = vpack.c.b16 %v5298, %v5282
    %v6435 = vpack.c.b16 %v5299, %v5283
    %v6436 = vpack.c.b16 %v5300, %v5284
    %v6437 = vpack.c.b16 %v5301, %v5285
    %v6438 = vpack.c.b16 %v5318, %v5302
    %v6439 = vpack.c.b16 %v5319, %v5303
    %v6440 = vpack.c.b16 %v5320, %v5304
    %v6441 = vpack.c.b16 %v5321, %v5305
    %v6442 = vpack.c.b16 %v5322, %v5306
    %v6443 = vpack.c.b16 %v5323, %v5307
    %v6444 = vpack.c.b16 %v5324, %v5308
    %v6445 = vpack.c.b16 %v5325, %v5309
    %v6446 = vpack.c.b16 %v5326, %v5310
    %v6447 = vpack.c.b16 %v5327, %v5311
    %v6448 = vpack.c.b16 %v5328, %v5312
    %v6449 = vpack.c.b16 %v5329, %v5313
    %v6450 = vpack.c.b16 %v5330, %v5314
    %v6451 = vpack.c.b16 %v5331, %v5315
    %v6452 = vpack.c.b16 %v5332, %v5316
    %v6453 = vpack.c.b16 %v5333, %v5317
    %v6454 = vpack.c.b16 %v5350, %v5334
    %v6455 = vpack.c.b16 %v5351, %v5335
    %v6456 = vpack.c.b16 %v5352, %v5336
    %v6457 = vpack.c.b16 %v5353, %v5337
    %v6458 = vpack.c.b16 %v5354, %v5338
    %v6459 = vpack.c.b16 %v5355, %v5339
    %v6460 = vpack.c.b16 %v5356, %v5340
    %v6461 = vpack.c.b16 %v5357, %v5341
    %v6462 = vpack.c.b16 %v5358, %v5342
    %v6463 = vpack.c.b16 %v5359, %v5343
    %v6464 = vpack.c.b16 %v5360, %v5344
    %v6465 = vpack.c.b16 %v5361, %v5345
    %v6466 = vpack.c.b16 %v5362, %v5346
    %v6467 = vpack.c.b16 %v5363, %v5347
    %v6468 = vpack.c.b16 %v5364, %v5348
    %v6469 = vpack.c.b16 %v5365, %v5349
    %v6470 = vpack.c.b16 %v5382, %v5366
    %v6471 = vpack.c.b16 %v5383, %v5367
    %v6472 = vpack.c.b16 %v5384, %v5368
    %v6473 = vpack.c.b16 %v5385, %v5369
    %v6474 = vpack.c.b16 %v5386, %v5370
    %v6475 = vpack.c.b16 %v5387, %v5371
    %v6476 = vpack.c.b16 %v5388, %v5372
    %v6477 = vpack.c.b16 %v5389, %v5373
    %v6478 = vpack.c.b16 %v5390, %v5374
    %v6479 = vpack.c.b16 %v5391, %v5375
    %v6480 = vpack.c.b16 %v5392, %v5376
    %v6481 = vpack.c.b16 %v5393, %v5377
    %v6482 = vpack.c.b16 %v5394, %v5378
    %v6483 = vpack.c.b16 %v5395, %v5379
    %v6484 = vpack.c.b16 %v5396, %v5380
    %v6485 = vpack.c.b16 %v5397, %v5381
    %v6486 = vpack.c.b16 %v5414, %v5398
    %v6487 = vpack.c.b16 %v5415, %v5399
    %v6488 = vpack.c.b16 %v5416, %v5400
    %v6489 = vpack.c.b16 %v5417, %v5401
    %v6490 = vpack.c.b16 %v5418, %v5402
    %v6491 = vpack.c.b16 %v5419, %v5403
    %v6492 = vpack.c.b16 %v5420, %v5404
    %v6493 = vpack.c.b16 %v5421, %v5405
    %v6494 = vpack.c.b16 %v5422, %v5406
    %v6495 = vpack.c.b16 %v5423, %v5407
    %v6496 = vpack.c.b16 %v5424, %v5408
    %v6497 = vpack.c.b16 %v5425, %v5409
    %v6498 = vpack.c.b16 %v5426, %v5410
    %v6499 = vpack.c.b16 %v5427, %v5411
    %v6500 = vpack.c.b16 %v5428, %v5412
    %v6501 = vpack.c.b16 %v5429, %v5413
    %v6502 = vpack.c.b16 %v5446, %v5430
    %v6503 = vpack.c.b16 %v5447, %v5431
    %v6504 = vpack.c.b16 %v5448, %v5432
    %v6505 = vpack.c.b16 %v5449, %v5433
    %v6506 = vpack.c.b16 %v5450, %v5434
    %v6507 = vpack.c.b16 %v5451, %v5435
    %v6508 = vpack.c.b16 %v5452, %v5436
    %v6509 = vpack.c.b16 %v5453, %v5437
    %v6510 = vpack.c.b16 %v5454, %v5438
    %v6511 = vpack.c.b16 %v5455, %v5439
    %v6512 = vpack.c.b16 %v5456, %v5440
    %v6513 = vpack.c.b16 %v5457, %v5441
    %v6514 = vpack.c.b16 %v5458, %v5442
    %v6515 = vpack.c.b16 %v5459, %v5443
    %v6516 = vpack.c.b16 %v5460, %v5444
    %v6517 = vpack.c.b16 %v5461, %v5445
    %v6518 = vpack.c.b16 %v5478, %v5462
    %v6519 = vpack.c.b16 %v5479, %v5463
    %v6520 = vpack.c.b16 %v5480, %v5464
    %v6521 = vpack.c.b16 %v5481, %v5465
    %v6522 = vpack.c.b16 %v5482, %v5466
    %v6523 = vpack.c.b16 %v5483, %v5467
    %v6524 = vpack.c.b16 %v5484, %v5468
    %v6525 = vpack.c.b16 %v5485, %v5469
    %v6526 = vpack.c.b16 %v5486, %v5470
    %v6527 = vpack.c.b16 %v5487, %v5471
    %v6528 = vpack.c.b16 %v5488, %v5472
    %v6529 = vpack.c.b16 %v5489, %v5473
    %v6530 = vpack.c.b16 %v5490, %v5474
    %v6531 = vpack.c.b16 %v5491, %v5475
    %v6532 = vpack.c.b16 %v5492, %v5476
    %v6533 = vpack.c.b16 %v5493, %v5477
    %v6534 = vpack.c.b16 %v5510, %v5494
    %v6535 = vpack.c.b16 %v5511, %v5495
    %v6536 = vpack.c.b16 %v5512, %v5496
    %v6537 = vpack.c.b16 %v5513, %v5497
    %v6538 = vpack.c.b16 %v5514, %v5498
    %v6539 = vpack.c.b16 %v5515, %v5499
    %v6540 = vpack.c.b16 %v5516, %v5500
    %v6541 = vpack.c.b16 %v5517, %v5501
    %v6542 = vpack.c.b16 %v5518, %v5502
    %v6543 = vpack.c.b16 %v5519, %v5503
    %v6544 = vpack.c.b16 %v5520, %v5504
    %v6545 = vpack.c.b16 %v5521, %v5505
    %v6546 = vpack.c.b16 %v5522, %v5506
    %v6547 = vpack.c.b16 %v5523, %v5507
    %v6548 = vpack.c.b16 %v5524, %v5508
    %v6549 = vpack.c.b16 %v5525, %v5509
    %v6550 = vpack.c.b16 %v5542, %v5526
    %v6551 = vpack.c.b16 %v5543, %v5527
    %v6552 = vpack.c.b16 %v5544, %v5528
    %v6553 = vpack.c.b16 %v5545, %v5529
    %v6554 = vpack.c.b16 %v5546, %v5530
    %v6555 = vpack.c.b16 %v5547, %v5531
    %v6556 = vpack.c.b16 %v5548, %v5532
    %v6557 = vpack.c.b16 %v5549, %v5533
    %v6558 = vpack.c.b16 %v5550, %v5534
    %v6559 = vpack.c.b16 %v5551, %v5535
    %v6560 = vpack.c.b16 %v5552, %v5536
    %v6561 = vpack.c.b16 %v5553, %v5537
    %v6562 = vpack.c.b16 %v5554, %v5538
    %v6563 = vpack.c.b16 %v5555, %v5539
    %v6564 = vpack.c.b16 %v5556, %v5540
    %v6565 = vpack.c.b16 %v5557, %v5541
    %v6566 = vpack.c.b16 %v5574, %v5558
    %v6567 = vpack.c.b16 %v5575, %v5559
    %v6568 = vpack.c.b16 %v5576, %v5560
    %v6569 = vpack.c.b16 %v5577, %v5561
    %v6570 = vpack.c.b16 %v5578, %v5562
    %v6571 = vpack.c.b16 %v5579, %v5563
    %v6572 = vpack.c.b16 %v5580, %v5564
    %v6573 = vpack.c.b16 %v5581, %v5565
    %v6574 = vpack.c.b16 %v5582, %v5566
    %v6575 = vpack.c.b16 %v5583, %v5567
    %v6576 = vpack.c.b16 %v5584, %v5568
    %v6577 = vpack.c.b16 %v5585, %v5569
    %v6578 = vpack.c.b16 %v5586, %v5570
    %v6579 = vpack.c.b16 %v5587, %v5571
    %v6580 = vpack.c.b16 %v5588, %v5572
    %v6581 = vpack.c.b16 %v5589, %v5573
    %v6582 = vpack.c.b16 %v5606, %v5590
    %v6583 = vpack.c.b16 %v5607, %v5591
    %v6584 = vpack.c.b16 %v5608, %v5592
    %v6585 = vpack.c.b16 %v5609, %v5593
    %v6586 = vpack.c.b16 %v5610, %v5594
    %v6587 = vpack.c.b16 %v5611, %v5595
    %v6588 = vpack.c.b16 %v5612, %v5596
    %v6589 = vpack.c.b16 %v5613, %v5597
    %v6590 = vpack.c.b16 %v5614, %v5598
    %v6591 = vpack.c.b16 %v5615, %v5599
    %v6592 = vpack.c.b16 %v5616, %v5600
    %v6593 = vpack.c.b16 %v5617, %v5601
    %v6594 = vpack.c.b16 %v5618, %v5602
    %v6595 = vpack.c.b16 %v5619, %v5603
    %v6596 = vpack.c.b16 %v5620, %v5604
    %v6597 = vpack.c.b16 %v5621, %v5605
    %v6598 = vpack.c.b16 %v5638, %v5622
    %v6599 = vpack.c.b16 %v5639, %v5623
    %v6600 = vpack.c.b16 %v5640, %v5624
    %v6601 = vpack.c.b16 %v5641, %v5625
    %v6602 = vpack.c.b16 %v5642, %v5626
    %v6603 = vpack.c.b16 %v5643, %v5627
    %v6604 = vpack.c.b16 %v5644, %v5628
    %v6605 = vpack.c.b16 %v5645, %v5629
    %v6606 = vpack.c.b16 %v5646, %v5630
    %v6607 = vpack.c.b16 %v5647, %v5631
    %v6608 = vpack.c.b16 %v5648, %v5632
    %v6609 = vpack.c.b16 %v5649, %v5633
    %v6610 = vpack.c.b16 %v5650, %v5634
    %v6611 = vpack.c.b16 %v5651, %v5635
    %v6612 = vpack.c.b16 %v5652, %v5636
    %v6613 = vpack.c.b16 %v5653, %v5637
    %v6614 = vpack.c.b16 %v5670, %v5654
    %v6615 = vpack.c.b16 %v5671, %v5655
    %v6616 = vpack.c.b16 %v5672, %v5656
    %v6617 = vpack.c.b16 %v5673, %v5657
    %v6618 = vpack.c.b16 %v5674, %v5658
    %v6619 = vpack.c.b16 %v5675, %v5659
    %v6620 = vpack.c.b16 %v5676, %v5660
    %v6621 = vpack.c.b16 %v5677, %v5661
    %v6622 = vpack.c.b16 %v5678, %v5662
    %v6623 = vpack.c.b16 %v5679, %v5663
    %v6624 = vpack.c.b16 %v5680, %v5664
    %v6625 = vpack.c.b16 %v5681, %v5665
    %v6626 = vpack.c.b16 %v5682, %v5666
    %v6627 = vpack.c.b16 %v5683, %v5667
    %v6628 = vpack.c.b16 %v5684, %v5668
    %v6629 = vpack.c.b16 %v5685, %v5669
    %v6630 = vpack.c.b16 %v5702, %v5686
    %v6631 = vpack.c.b16 %v5703, %v5687
    %v6632 = vpack.c.b16 %v5704, %v5688
    %v6633 = vpack.c.b16 %v5705, %v5689
    %v6634 = vpack.c.b16 %v5706, %v5690
    %v6635 = vpack.c.b16 %v5707, %v5691
    %v6636 = vpack.c.b16 %v5708, %v5692
    %v6637 = vpack.c.b16 %v5709, %v5693
    %v6638 = vpack.c.b16 %v5710, %v5694
    %v6639 = vpack.c.b16 %v5711, %v5695
    %v6640 = vpack.c.b16 %v5712, %v5696
    %v6641 = vpack.c.b16 %v5713, %v5697
    %v6642 = vpack.c.b16 %v5714, %v5698
    %v6643 = vpack.c.b16 %v5715, %v5699
    %v6644 = vpack.c.b16 %v5716, %v5700
    %v6645 = vpack.c.b16 %v5717, %v5701
    %v6646 = vpack.c.b16 %v5734, %v5718
    %v6647 = vpack.c.b16 %v5735, %v5719
    %v6648 = vpack.c.b16 %v5736, %v5720
    %v6649 = vpack.c.b16 %v5737, %v5721
    %v6650 = vpack.c.b16 %v5738, %v5722
    %v6651 = vpack.c.b16 %v5739, %v5723
    %v6652 = vpack.c.b16 %v5740, %v5724
    %v6653 = vpack.c.b16 %v5741, %v5725
    %v6654 = vpack.c.b16 %v5742, %v5726
    %v6655 = vpack.c.b16 %v5743, %v5727
    %v6656 = vpack.c.b16 %v5744, %v5728
    %v6657 = vpack.c.b16 %v5745, %v5729
    %v6658 = vpack.c.b16 %v5746, %v5730
    %v6659 = vpack.c.b16 %v5747, %v5731
    %v6660 = vpack.c.b16 %v5748, %v5732
    %v6661 = vpack.c.b16 %v5749, %v5733
    %v6662 = vpack.c.b16 %v5766, %v5750
    %v6663 = vpack.c.b16 %v5767, %v5751
    %v6664 = vpack.c.b16 %v5768, %v5752
    %v6665 = vpack.c.b16 %v5769, %v5753
    %v6666 = vpack.c.b16 %v5770, %v5754
    %v6667 = vpack.c.b16 %v5771, %v5755
    %v6668 = vpack.c.b16 %v5772, %v5756
    %v6669 = vpack.c.b16 %v5773, %v5757
    %v6670 = vpack.c.b16 %v5774, %v5758
    %v6671 = vpack.c.b16 %v5775, %v5759
    %v6672 = vpack.c.b16 %v5776, %v5760
    %v6673 = vpack.c.b16 %v5777, %v5761
    %v6674 = vpack.c.b16 %v5778, %v5762
    %v6675 = vpack.c.b16 %v5779, %v5763
    %v6676 = vpack.c.b16 %v5780, %v5764
    %v6677 = vpack.c.b16 %v5781, %v5765
    %v6678 = vpack.c.b16 %v5798, %v5782
    %v6679 = vpack.c.b16 %v5799, %v5783
    %v6680 = vpack.c.b16 %v5800, %v5784
    %v6681 = vpack.c.b16 %v5801, %v5785
    %v6682 = vpack.c.b16 %v5802, %v5786
    %v6683 = vpack.c.b16 %v5803, %v5787
    %v6684 = vpack.c.b16 %v5804, %v5788
    %v6685 = vpack.c.b16 %v5805, %v5789
    %v6686 = vpack.c.b16 %v5806, %v5790
    %v6687 = vpack.c.b16 %v5807, %v5791
    %v6688 = vpack.c.b16 %v5808, %v5792
    %v6689 = vpack.c.b16 %v5809, %v5793
    %v6690 = vpack.c.b16 %v5810, %v5794
    %v6691 = vpack.c.b16 %v5811, %v5795
    %v6692 = vpack.c.b16 %v5812, %v5796
    %v6693 = vpack.c.b16 %v5813, %v5797
    %v6694 = vpack.c.b16 %v5830, %v5814
    %v6695 = vpack.c.b16 %v5831, %v5815
    %v6696 = vpack.c.b16 %v5832, %v5816
    %v6697 = vpack.c.b16 %v5833, %v5817
    %v6698 = vpack.c.b16 %v5834, %v5818
    %v6699 = vpack.c.b16 %v5835, %v5819
    %v6700 = vpack.c.b16 %v5836, %v5820
    %v6701 = vpack.c.b16 %v5837, %v5821
    %v6702 = vpack.c.b16 %v5838, %v5822
    %v6703 = vpack.c.b16 %v5839, %v5823
    %v6704 = vpack.c.b16 %v5840, %v5824
    %v6705 = vpack.c.b16 %v5841, %v5825
    %v6706 = vpack.c.b16 %v5842, %v5826
    %v6707 = vpack.c.b16 %v5843, %v5827
    %v6708 = vpack.c.b16 %v5844, %v5828
    %v6709 = vpack.c.b16 %v5845, %v5829
    %v6710 = vpack.c.b16 %v5862, %v5846
    %v6711 = vpack.c.b16 %v5863, %v5847
    %v6712 = vpack.c.b16 %v5864, %v5848
    %v6713 = vpack.c.b16 %v5865, %v5849
    %v6714 = vpack.c.b16 %v5866, %v5850
    %v6715 = vpack.c.b16 %v5867, %v5851
    %v6716 = vpack.c.b16 %v5868, %v5852
    %v6717 = vpack.c.b16 %v5869, %v5853
    %v6718 = vpack.c.b16 %v5870, %v5854
    %v6719 = vpack.c.b16 %v5871, %v5855
    %v6720 = vpack.c.b16 %v5872, %v5856
    %v6721 = vpack.c.b16 %v5873, %v5857
    %v6722 = vpack.c.b16 %v5874, %v5858
    %v6723 = vpack.c.b16 %v5875, %v5859
    %v6724 = vpack.c.b16 %v5876, %v5860
    %v6725 = vpack.c.b16 %v5877, %v5861
    %v6726 = vpack.c.b16 %v5894, %v5878
    %v6727 = vpack.c.b16 %v5895, %v5879
    %v6728 = vpack.c.b16 %v5896, %v5880
    %v6729 = vpack.c.b16 %v5897, %v5881
    %v6730 = vpack.c.b16 %v5898, %v5882
    %v6731 = vpack.c.b16 %v5899, %v5883
    %v6732 = vpack.c.b16 %v5900, %v5884
    %v6733 = vpack.c.b16 %v5901, %v5885
    %v6734 = vpack.c.b16 %v5902, %v5886
    %v6735 = vpack.c.b16 %v5903, %v5887
    %v6736 = vpack.c.b16 %v5904, %v5888
    %v6737 = vpack.c.b16 %v5905, %v5889
    %v6738 = vpack.c.b16 %v5906, %v5890
    %v6739 = vpack.c.b16 %v5907, %v5891
    %v6740 = vpack.c.b16 %v5908, %v5892
    %v6741 = vpack.c.b16 %v5909, %v5893
    %v6742 = vpack.c.b16 %v5926, %v5910
    %v6743 = vpack.c.b16 %v5927, %v5911
    %v6744 = vpack.c.b16 %v5928, %v5912
    %v6745 = vpack.c.b16 %v5929, %v5913
    %v6746 = vpack.c.b16 %v5930, %v5914
    %v6747 = vpack.c.b16 %v5931, %v5915
    %v6748 = vpack.c.b16 %v5932, %v5916
    %v6749 = vpack.c.b16 %v5933, %v5917
    %v6750 = vpack.c.b16 %v5934, %v5918
    %v6751 = vpack.c.b16 %v5935, %v5919
    %v6752 = vpack.c.b16 %v5936, %v5920
    %v6753 = vpack.c.b16 %v5937, %v5921
    %v6754 = vpack.c.b16 %v5938, %v5922
    %v6755 = vpack.c.b16 %v5939, %v5923
    %v6756 = vpack.c.b16 %v5940, %v5924
    %v6757 = vpack.c.b16 %v5941, %v5925
    %v6758 = vpack.c.b16 %v5958, %v5942
    %v6759 = vpack.c.b16 %v5959, %v5943
    %v6760 = vpack.c.b16 %v5960, %v5944
    %v6761 = vpack.c.b16 %v5961, %v5945
    %v6762 = vpack.c.b16 %v5962, %v5946
    %v6763 = vpack.c.b16 %v5963, %v5947
    %v6764 = vpack.c.b16 %v5964, %v5948
    %v6765 = vpack.c.b16 %v5965, %v5949
    %v6766 = vpack.c.b16 %v5966, %v5950
    %v6767 = vpack.c.b16 %v5967, %v5951
    %v6768 = vpack.c.b16 %v5968, %v5952
    %v6769 = vpack.c.b16 %v5969, %v5953
    %v6770 = vpack.c.b16 %v5970, %v5954
    %v6771 = vpack.c.b16 %v5971, %v5955
    %v6772 = vpack.c.b16 %v5972, %v5956
    %v6773 = vpack.c.b16 %v5973, %v5957
    %v6774 = vpack.c.b16 %v5990, %v5974
    %v6775 = vpack.c.b16 %v5991, %v5975
    %v6776 = vpack.c.b16 %v5992, %v5976
    %v6777 = vpack.c.b16 %v5993, %v5977
    %v6778 = vpack.c.b16 %v5994, %v5978
    %v6779 = vpack.c.b16 %v5995, %v5979
    %v6780 = vpack.c.b16 %v5996, %v5980
    %v6781 = vpack.c.b16 %v5997, %v5981
    %v6782 = vpack.c.b16 %v5998, %v5982
    %v6783 = vpack.c.b16 %v5999, %v5983
    %v6784 = vpack.c.b16 %v6000, %v5984
    %v6785 = vpack.c.b16 %v6001, %v5985
    %v6786 = vpack.c.b16 %v6002, %v5986
    %v6787 = vpack.c.b16 %v6003, %v5987
    %v6788 = vpack.c.b16 %v6004, %v5988
    %v6789 = vpack.c.b16 %v6005, %v5989
    %v6790 = vpack.c.b16 %v6022, %v6006
    %v6791 = vpack.c.b16 %v6023, %v6007
    %v6792 = vpack.c.b16 %v6024, %v6008
    %v6793 = vpack.c.b16 %v6025, %v6009
    %v6794 = vpack.c.b16 %v6026, %v6010
    %v6795 = vpack.c.b16 %v6027, %v6011
    %v6796 = vpack.c.b16 %v6028, %v6012
    %v6797 = vpack.c.b16 %v6029, %v6013
    %v6798 = vpack.c.b16 %v6030, %v6014
    %v6799 = vpack.c.b16 %v6031, %v6015
    %v6800 = vpack.c.b16 %v6032, %v6016
    %v6801 = vpack.c.b16 %v6033, %v6017
    %v6802 = vpack.c.b16 %v6034, %v6018
    %v6803 = vpack.c.b16 %v6035, %v6019
    %v6804 = vpack.c.b16 %v6036, %v6020
    %v6805 = vpack.c.b16 %v6037, %v6021
    %v6806 = vpack.c.b16 %v6054, %v6038
    %v6807 = vpack.c.b16 %v6055, %v6039
    %v6808 = vpack.c.b16 %v6056, %v6040
    %v6809 = vpack.c.b16 %v6057, %v6041
    %v6810 = vpack.c.b16 %v6058, %v6042
    %v6811 = vpack.c.b16 %v6059, %v6043
    %v6812 = vpack.c.b16 %v6060, %v6044
    %v6813 = vpack.c.b16 %v6061, %v6045
    %v6814 = vpack.c.b16 %v6062, %v6046
    %v6815 = vpack.c.b16 %v6063, %v6047
    %v6816 = vpack.c.b16 %v6064, %v6048
    %v6817 = vpack.c.b16 %v6065, %v6049
    %v6818 = vpack.c.b16 %v6066, %v6050
    %v6819 = vpack.c.b16 %v6067, %v6051
    %v6820 = vpack.c.b16 %v6068, %v6052
    %v6821 = vpack.c.b16 %v6069, %v6053
    %v6822 = vpack.c.b16 %v6086, %v6070
    %v6823 = vpack.c.b16 %v6087, %v6071
    %v6824 = vpack.c.b16 %v6088, %v6072
    %v6825 = vpack.c.b16 %v6089, %v6073
    %v6826 = vpack.c.b16 %v6090, %v6074
    %v6827 = vpack.c.b16 %v6091, %v6075
    %v6828 = vpack.c.b16 %v6092, %v6076
    %v6829 = vpack.c.b16 %v6093, %v6077
    %v6830 = vpack.c.b16 %v6094, %v6078
    %v6831 = vpack.c.b16 %v6095, %v6079
    %v6832 = vpack.c.b16 %v6096, %v6080
    %v6833 = vpack.c.b16 %v6097, %v6081
    %v6834 = vpack.c.b16 %v6098, %v6082
    %v6835 = vpack.c.b16 %v6099, %v6083
    %v6836 = vpack.c.b16 %v6100, %v6084
    %v6837 = vpack.c.b16 %v6101, %v6085
    %v6838 = vpack.c.b16 %v6118, %v6102
    %v6839 = vpack.c.b16 %v6119, %v6103
    %v6840 = vpack.c.b16 %v6120, %v6104
    %v6841 = vpack.c.b16 %v6121, %v6105
    %v6842 = vpack.c.b16 %v6122, %v6106
    %v6843 = vpack.c.b16 %v6123, %v6107
    %v6844 = vpack.c.b16 %v6124, %v6108
    %v6845 = vpack.c.b16 %v6125, %v6109
    %v6846 = vpack.c.b16 %v6126, %v6110
    %v6847 = vpack.c.b16 %v6127, %v6111
    %v6848 = vpack.c.b16 %v6128, %v6112
    %v6849 = vpack.c.b16 %v6129, %v6113
    %v6850 = vpack.c.b16 %v6130, %v6114
    %v6851 = vpack.c.b16 %v6131, %v6115
    %v6852 = vpack.c.b16 %v6132, %v6116
    %v6853 = vpack.c.b16 %v6133, %v6117
    %v6854 = vpack.c.b16 %v6150, %v6134
    %v6855 = vpack.c.b16 %v6151, %v6135
    %v6856 = vpack.c.b16 %v6152, %v6136
    %v6857 = vpack.c.b16 %v6153, %v6137
    %v6858 = vpack.c.b16 %v6154, %v6138
    %v6859 = vpack.c.b16 %v6155, %v6139
    %v6860 = vpack.c.b16 %v6156, %v6140
    %v6861 = vpack.c.b16 %v6157, %v6141
    %v6862 = vpack.c.b16 %v6158, %v6142
    %v6863 = vpack.c.b16 %v6159, %v6143
    %v6864 = vpack.c.b16 %v6160, %v6144
    %v6865 = vpack.c.b16 %v6161, %v6145
    %v6866 = vpack.c.b16 %v6162, %v6146
    %v6867 = vpack.c.b16 %v6163, %v6147
    %v6868 = vpack.c.b16 %v6164, %v6148
    %v6869 = vpack.c.b16 %v6165, %v6149
    %v6870 = vpack.c.b16 %v6182, %v6166
    %v6871 = vpack.c.b16 %v6183, %v6167
    %v6872 = vpack.c.b16 %v6184, %v6168
    %v6873 = vpack.c.b16 %v6185, %v6169
    %v6874 = vpack.c.b16 %v6186, %v6170
    %v6875 = vpack.c.b16 %v6187, %v6171
    %v6876 = vpack.c.b16 %v6188, %v6172
    %v6877 = vpack.c.b16 %v6189, %v6173
    %v6878 = vpack.c.b16 %v6190, %v6174
    %v6879 = vpack.c.b16 %v6191, %v6175
    %v6880 = vpack.c.b16 %v6192, %v6176
    %v6881 = vpack.c.b16 %v6193, %v6177
    %v6882 = vpack.c.b16 %v6194, %v6178
    %v6883 = vpack.c.b16 %v6195, %v6179
    %v6884 = vpack.c.b16 %v6196, %v6180
    %v6885 = vpack.c.b16 %v6197, %v6181
    %v6886 = vpack.c.b16 %v6214, %v6198
    %v6887 = vpack.c.b16 %v6215, %v6199
    %v6888 = vpack.c.b16 %v6216, %v6200
    %v6889 = vpack.c.b16 %v6217, %v6201
    %v6890 = vpack.c.b16 %v6218, %v6202
    %v6891 = vpack.c.b16 %v6219, %v6203
    %v6892 = vpack.c.b16 %v6220, %v6204
    %v6893 = vpack.c.b16 %v6221, %v6205
    %v6894 = vpack.c.b16 %v6222, %v6206
    %v6895 = vpack.c.b16 %v6223, %v6207
    %v6896 = vpack.c.b16 %v6224, %v6208
    %v6897 = vpack.c.b16 %v6225, %v6209
    %v6898 = vpack.c.b16 %v6226, %v6210
    %v6899 = vpack.c.b16 %v6227, %v6211
    %v6900 = vpack.c.b16 %v6228, %v6212
    %v6901 = vpack.c.b16 %v6229, %v6213
    %v6902 = vpack.c.b16 %v6246, %v6230
    %v6903 = vpack.c.b16 %v6247, %v6231
    %v6904 = vpack.c.b16 %v6248, %v6232
    %v6905 = vpack.c.b16 %v6249, %v6233
    %v6906 = vpack.c.b16 %v6250, %v6234
    %v6907 = vpack.c.b16 %v6251, %v6235
    %v6908 = vpack.c.b16 %v6252, %v6236
    %v6909 = vpack.c.b16 %v6253, %v6237
    %v6910 = vpack.c.b16 %v6254, %v6238
    %v6911 = vpack.c.b16 %v6255, %v6239
    %v6912 = vpack.c.b16 %v6256, %v6240
    %v6913 = vpack.c.b16 %v6257, %v6241
    %v6914 = vpack.c.b16 %v6258, %v6242
    %v6915 = vpack.c.b16 %v6259, %v6243
    %v6916 = vpack.c.b16 %v6260, %v6244
    %v6917 = vpack.c.b16 %v6261, %v6245
    %v6918 = vpack.c.b16 %v6278, %v6262
    %v6919 = vpack.c.b16 %v6279, %v6263
    %v6920 = vpack.c.b16 %v6280, %v6264
    %v6921 = vpack.c.b16 %v6281, %v6265
    %v6922 = vpack.c.b16 %v6282, %v6266
    %v6923 = vpack.c.b16 %v6283, %v6267
    %v6924 = vpack.c.b16 %v6284, %v6268
    %v6925 = vpack.c.b16 %v6285, %v6269
    %v6926 = vpack.c.b16 %v6286, %v6270
    %v6927 = vpack.c.b16 %v6287, %v6271
    %v6928 = vpack.c.b16 %v6288, %v6272
    %v6929 = vpack.c.b16 %v6289, %v6273
    %v6930 = vpack.c.b16 %v6290, %v6274
    %v6931 = vpack.c.b16 %v6291, %v6275
    %v6932 = vpack.c.b16 %v6292, %v6276
    %v6933 = vpack.c.b16 %v6293, %v6277
    %v6934 = vpack.c.b16 %v6310, %v6294
    %v6935 = vpack.c.b16 %v6311, %v6295
    %v6936 = vpack.c.b16 %v6312, %v6296
    %v6937 = vpack.c.b16 %v6313, %v6297
    %v6938 = vpack.c.b16 %v6314, %v6298
    %v6939 = vpack.c.b16 %v6315, %v6299
    %v6940 = vpack.c.b16 %v6316, %v6300
    %v6941 = vpack.c.b16 %v6317, %v6301
    %v6942 = vpack.c.b16 %v6318, %v6302
    %v6943 = vpack.c.b16 %v6319, %v6303
    %v6944 = vpack.c.b16 %v6320, %v6304
    %v6945 = vpack.c.b16 %v6321, %v6305
    %v6946 = vpack.c.b16 %v6322, %v6306
    %v6947 = vpack.c.b16 %v6323, %v6307
    %v6948 = vpack.c.b16 %v6324, %v6308
    %v6949 = vpack.c.b16 %v6325, %v6309
    %v6950 = vpack.c.b16 %v6342, %v6326
    %v6951 = vpack.c.b16 %v6343, %v6327
    %v6952 = vpack.c.b16 %v6344, %v6328
    %v6953 = vpack.c.b16 %v6345, %v6329
    %v6954 = vpack.c.b16 %v6346, %v6330
    %v6955 = vpack.c.b16 %v6347, %v6331
    %v6956 = vpack.c.b16 %v6348, %v6332
    %v6957 = vpack.c.b16 %v6349, %v6333
    %v6958 = vpack.c.b16 %v6350, %v6334
    %v6959 = vpack.c.b16 %v6351, %v6335
    %v6960 = vpack.c.b16 %v6352, %v6336
    %v6961 = vpack.c.b16 %v6353, %v6337
    %v6962 = vpack.c.b16 %v6354, %v6338
    %v6963 = vpack.c.b16 %v6355, %v6339
    %v6964 = vpack.c.b16 %v6356, %v6340
    %v6965 = vpack.c.b16 %v6357, %v6341
    %v6966 = vpack.c.b16 %v6374, %v6358
    %v6967 = vpack.c.b16 %v6375, %v6359
    %v6968 = vpack.c.b16 %v6376, %v6360
    %v6969 = vpack.c.b16 %v6377, %v6361
    %v6970 = vpack.c.b16 %v6378, %v6362
    %v6971 = vpack.c.b16 %v6379, %v6363
    %v6972 = vpack.c.b16 %v6380, %v6364
    %v6973 = vpack.c.b16 %v6381, %v6365
    %v6974 = vpack.c.b16 %v6382, %v6366
    %v6975 = vpack.c.b16 %v6383, %v6367
    %v6976 = vpack.c.b16 %v6384, %v6368
    %v6977 = vpack.c.b16 %v6385, %v6369
    %v6978 = vpack.c.b16 %v6386, %v6370
    %v6979 = vpack.c.b16 %v6387, %v6371
    %v6980 = vpack.c.b16 %v6388, %v6372
    %v6981 = vpack.c.b16 %v6389, %v6373
    %v7575 = vsel %vm1698, %v3931, 0
    %7577 = vmatprep.subr.bf16.mxu0 %v6503
    %7578 = vmatpush1.bf16.msra.mxu0 %v6502
    %7579 = vmatprep.subr.bf16.mxu0 %v6487
    %7580 = vmatpush1.bf16.msra.mxu0 %v6486
    %7581 = vmatprep.subr.bf16.mxu0 %v6471
    %7582 = vmatpush1.bf16.msra.mxu0 %v6470
    %7583 = vmatprep.subr.bf16.mxu0 %v6455
    %7584 = vmatpush1.bf16.msra.mxu0 %v6454
    %7585 = vmatprep.subr.bf16.mxu0 %v6439
    %7586 = vmatpush1.bf16.msra.mxu0 %v6438
    %7587 = vmatprep.subr.bf16.mxu0 %v6423
    %7588 = vmatpush1.bf16.msra.mxu0 %v6422
    %7589 = vmatprep.subr.bf16.mxu0 %v6407
    %7590 = vmatpush1.bf16.msra.mxu0 %v6406
    %7591 = vmatprep.subr.bf16.mxu0 %v6391
    %7592 = vmatpush1.bf16.msra.mxu0 %v6390
    %7593 = vmatprep.subr.bf16.mxu0 %v6631
    %7594 = vmatpush2.bf16.msra.mxu0 %v6630
    %7595 = vmatprep.subr.bf16.mxu0 %v6615
    %7596 = vmatpush2.bf16.msra.mxu0 %v6614
    %7597 = vmatprep.subr.bf16.mxu0 %v6599
    %7598 = vmatpush2.bf16.msra.mxu0 %v6598
    %7599 = vmatprep.subr.bf16.mxu0 %v6583
    %7600 = vmatpush2.bf16.msra.mxu0 %v6582
    %7601 = vmatprep.subr.bf16.mxu0 %v6567
    %7602 = vmatpush2.bf16.msra.mxu0 %v6566
    %7603 = vmatprep.subr.bf16.mxu0 %v6551
    %7604 = vmatpush2.bf16.msra.mxu0 %v6550
    %7605 = vmatprep.subr.bf16.mxu0 %v6535
    %7606 = vmatpush2.bf16.msra.mxu0 %v6534
    %7607 = vmatprep.subr.bf16.mxu0 %v6519
    %7608 = vmatpush2.bf16.msra.mxu0 %v6518
    %7609 = vmatprep.mubr.bf16.mxu0 %v3928
    %7610 = vmatmul.mubr.bf16.gmra.mxu0 %v3927
    %v7611 = vpop.f32.mrf.mxu0
    %v7612 = vadd.f32 %v4537, %v7611
    %v7613 = vpop.f32.mrf.mxu0
    %v7614 = vadd.f32 %v4541, %v7613
    %v7615 = vpop.f32.mrf.mxu0
    %v7616 = vpop.f32.mrf.mxu0
    %7617 = vdwg.mxu0
    %7618 = vmatprep.subr.bf16.mxu0 %v6759
    %7619 = vmatpush1.bf16.msra.mxu0 %v6758
    %7620 = vmatprep.subr.bf16.mxu0 %v6743
    %7621 = vmatpush1.bf16.msra.mxu0 %v6742
    %7622 = vmatprep.subr.bf16.mxu0 %v6727
    %7623 = vmatpush1.bf16.msra.mxu0 %v6726
    %7624 = vmatprep.subr.bf16.mxu0 %v6711
    %7625 = vmatpush1.bf16.msra.mxu0 %v6710
    %7626 = vmatprep.subr.bf16.mxu0 %v6695
    %7627 = vmatpush1.bf16.msra.mxu0 %v6694
    %7628 = vmatprep.subr.bf16.mxu0 %v6679
    %7629 = vmatpush1.bf16.msra.mxu0 %v6678
    %7630 = vmatprep.subr.bf16.mxu0 %v6663
    %7631 = vmatpush1.bf16.msra.mxu0 %v6662
    %7632 = vmatprep.subr.bf16.mxu0 %v6647
    %7633 = vmatpush1.bf16.msra.mxu0 %v6646
    %7634 = vmatprep.subr.bf16.mxu0 %v6887
    %7635 = vmatpush2.bf16.msra.mxu0 %v6886
    %7636 = vmatprep.subr.bf16.mxu0 %v6871
    %7637 = vmatpush2.bf16.msra.mxu0 %v6870
    %7638 = vmatprep.subr.bf16.mxu0 %v6855
    %7639 = vmatpush2.bf16.msra.mxu0 %v6854
    %7640 = vmatprep.subr.bf16.mxu0 %v6839
    %7641 = vmatpush2.bf16.msra.mxu0 %v6838
    %7642 = vmatprep.subr.bf16.mxu0 %v6823
    %7643 = vmatpush2.bf16.msra.mxu0 %v6822
    %7644 = vmatprep.subr.bf16.mxu0 %v6807
    %7645 = vmatpush2.bf16.msra.mxu0 %v6806
    %7646 = vmatprep.subr.bf16.mxu0 %v6791
    %7647 = vmatpush2.bf16.msra.mxu0 %v6790
    %7648 = vmatprep.subr.bf16.mxu0 %v6775
    %7649 = vmatpush2.bf16.msra.mxu0 %v6774
    %7650 = vmatprep.mubr.bf16.mxu0 %v3930
    %7651 = vmatmul.mubr.bf16.gmra.mxu0 %v3929
    %v7652 = vpop.f32.mrf.mxu0
    %v7653 = vadd.f32 %v7612, %v7652
    %v7654 = vpop.f32.mrf.mxu0
    %v7655 = vadd.f32 %v7614, %v7654
    %v7656 = vpop.f32.mrf.mxu0
    %v7657 = vpop.f32.mrf.mxu0
    %7658 = vdwg.mxu0
    %7659 = vmatprep.subr.bf16.mxu0 0
    %7660 = vmatpush1.bf16.msra.mxu0 0
    %7661 = vmatprep.subr.bf16.mxu0 0
    %7662 = vmatpush1.bf16.msra.mxu0 0
    %7663 = vmatprep.subr.bf16.mxu0 0
    %7664 = vmatpush1.bf16.msra.mxu0 0
    %7665 = vmatprep.subr.bf16.mxu0 %v6967
    %7666 = vmatpush1.bf16.msra.mxu0 %v6966
    %7667 = vmatprep.subr.bf16.mxu0 %v6951
    %7668 = vmatpush1.bf16.msra.mxu0 %v6950
    %7669 = vmatprep.subr.bf16.mxu0 %v6935
    %7670 = vmatpush1.bf16.msra.mxu0 %v6934
    %7671 = vmatprep.subr.bf16.mxu0 %v6919
    %7672 = vmatpush1.bf16.msra.mxu0 %v6918
    %7673 = vmatprep.subr.bf16.mxu0 %v6903
    %7674 = vmatpush1.bf16.msra.mxu0 %v6902
    %7675 = vmatprep.subr.bf16.mxu0 0
    %7676 = vmatpush2.bf16.msra.mxu0 0
    %7677 = vmatprep.subr.bf16.mxu0 0
    %7678 = vmatpush2.bf16.msra.mxu0 0
    %7679 = vmatprep.subr.bf16.mxu0 0
    %7680 = vmatpush2.bf16.msra.mxu0 0
    %7681 = vmatprep.subr.bf16.mxu0 0
    %7682 = vmatpush2.bf16.msra.mxu0 0
    %7683 = vmatprep.subr.bf16.mxu0 0
    %7684 = vmatpush2.bf16.msra.mxu0 0
    %7685 = vmatprep.subr.bf16.mxu0 0
    %7686 = vmatpush2.bf16.msra.mxu0 0
    %7687 = vmatprep.subr.bf16.mxu0 0
    %7688 = vmatpush2.bf16.msra.mxu0 0
    %7689 = vmatprep.subr.bf16.mxu0 0
    %7690 = vmatpush2.bf16.msra.mxu0 0
    %7691 = vmatprep.mubr.bf16.mxu0 0
    %7692 = vmatmul.mubr.bf16.gmra.mxu0 %v7575
    %v7693 = vpop.f32.mrf.mxu0
    %v7694 = vadd.f32 %v7653, %v7693
    %v7695 = vpop.f32.mrf.mxu0
    %v7696 = vadd.f32 %v7655, %v7695
    %v7697 = vpop.f32.mrf.mxu0
    %v7698 = vpop.f32.mrf.mxu0
    %7699 = vdwg.mxu0
    %7700 = vmatprep.subr.bf16.mxu0 %v6505
    %7701 = vmatpush1.bf16.msra.mxu0 %v6504
    %7702 = vmatprep.subr.bf16.mxu0 %v6489
    %7703 = vmatpush1.bf16.msra.mxu0 %v6488
    %7704 = vmatprep.subr.bf16.mxu0 %v6473
    %7705 = vmatpush1.bf16.msra.mxu0 %v6472
    %7706 = vmatprep.subr.bf16.mxu0 %v6457
    %7707 = vmatpush1.bf16.msra.mxu0 %v6456
    %7708 = vmatprep.subr.bf16.mxu0 %v6441
    %7709 = vmatpush1.bf16.msra.mxu0 %v6440
    %7710 = vmatprep.subr.bf16.mxu0 %v6425
    %7711 = vmatpush1.bf16.msra.mxu0 %v6424
    %7712 = vmatprep.subr.bf16.mxu0 %v6409
    %7713 = vmatpush1.bf16.msra.mxu0 %v6408
    %7714 = vmatprep.subr.bf16.mxu0 %v6393
    %7715 = vmatpush1.bf16.msra.mxu0 %v6392
    %7716 = vmatprep.subr.bf16.mxu0 %v6633
    %7717 = vmatpush2.bf16.msra.mxu0 %v6632
    %7718 = vmatprep.subr.bf16.mxu0 %v6617
    %7719 = vmatpush2.bf16.msra.mxu0 %v6616
    %7720 = vmatprep.subr.bf16.mxu0 %v6601
    %7721 = vmatpush2.bf16.msra.mxu0 %v6600
    %7722 = vmatprep.subr.bf16.mxu0 %v6585
    %7723 = vmatpush2.bf16.msra.mxu0 %v6584
    %7724 = vmatprep.subr.bf16.mxu0 %v6569
    %7725 = vmatpush2.bf16.msra.mxu0 %v6568
    %7726 = vmatprep.subr.bf16.mxu0 %v6553
    %7727 = vmatpush2.bf16.msra.mxu0 %v6552
    %7728 = vmatprep.subr.bf16.mxu0 %v6537
    %7729 = vmatpush2.bf16.msra.mxu0 %v6536
    %7730 = vmatprep.subr.bf16.mxu0 %v6521
    %7731 = vmatpush2.bf16.msra.mxu0 %v6520
    %7732 = vmatprep.mubr.bf16.mxu0 %v3928
    %7733 = vmatmul.mubr.bf16.gmra.mxu0 %v3927
    %v7734 = vpop.f32.mrf.mxu0
    %v7735 = vadd.f32 %v4545, %v7734
    %v7736 = vpop.f32.mrf.mxu0
    %v7737 = vadd.f32 %v4549, %v7736
    %v7738 = vpop.f32.mrf.mxu0
    %v7739 = vpop.f32.mrf.mxu0
    %7740 = vdwg.mxu0
    %7741 = vmatprep.subr.bf16.mxu0 %v6761
    %7742 = vmatpush1.bf16.msra.mxu0 %v6760
    %7743 = vmatprep.subr.bf16.mxu0 %v6745
    %7744 = vmatpush1.bf16.msra.mxu0 %v6744
    %7745 = vmatprep.subr.bf16.mxu0 %v6729
    %7746 = vmatpush1.bf16.msra.mxu0 %v6728
    %7747 = vmatprep.subr.bf16.mxu0 %v6713
    %7748 = vmatpush1.bf16.msra.mxu0 %v6712
    %7749 = vmatprep.subr.bf16.mxu0 %v6697
    %7750 = vmatpush1.bf16.msra.mxu0 %v6696
    %7751 = vmatprep.subr.bf16.mxu0 %v6681
    %7752 = vmatpush1.bf16.msra.mxu0 %v6680
    %7753 = vmatprep.subr.bf16.mxu0 %v6665
    %7754 = vmatpush1.bf16.msra.mxu0 %v6664
    %7755 = vmatprep.subr.bf16.mxu0 %v6649
    %7756 = vmatpush1.bf16.msra.mxu0 %v6648
    %7757 = vmatprep.subr.bf16.mxu0 %v6889
    %7758 = vmatpush2.bf16.msra.mxu0 %v6888
    %7759 = vmatprep.subr.bf16.mxu0 %v6873
    %7760 = vmatpush2.bf16.msra.mxu0 %v6872
    %7761 = vmatprep.subr.bf16.mxu0 %v6857
    %7762 = vmatpush2.bf16.msra.mxu0 %v6856
    %7763 = vmatprep.subr.bf16.mxu0 %v6841
    %7764 = vmatpush2.bf16.msra.mxu0 %v6840
    %7765 = vmatprep.subr.bf16.mxu0 %v6825
    %7766 = vmatpush2.bf16.msra.mxu0 %v6824
    %7767 = vmatprep.subr.bf16.mxu0 %v6809
    %7768 = vmatpush2.bf16.msra.mxu0 %v6808
    %7769 = vmatprep.subr.bf16.mxu0 %v6793
    %7770 = vmatpush2.bf16.msra.mxu0 %v6792
    %7771 = vmatprep.subr.bf16.mxu0 %v6777
    %7772 = vmatpush2.bf16.msra.mxu0 %v6776
    %7773 = vmatprep.mubr.bf16.mxu0 %v3930
    %7774 = vmatmul.mubr.bf16.gmra.mxu0 %v3929
    %v7775 = vpop.f32.mrf.mxu0
    %v7776 = vadd.f32 %v7735, %v7775
    %v7777 = vpop.f32.mrf.mxu0
    %v7778 = vadd.f32 %v7737, %v7777
    %v7779 = vpop.f32.mrf.mxu0
    %v7780 = vpop.f32.mrf.mxu0
    %7781 = vdwg.mxu0
    %7782 = vmatprep.subr.bf16.mxu0 0
    %7783 = vmatpush1.bf16.msra.mxu0 0
    %7784 = vmatprep.subr.bf16.mxu0 0
    %7785 = vmatpush1.bf16.msra.mxu0 0
    %7786 = vmatprep.subr.bf16.mxu0 0
    %7787 = vmatpush1.bf16.msra.mxu0 0
    %7788 = vmatprep.subr.bf16.mxu0 %v6969
    %7789 = vmatpush1.bf16.msra.mxu0 %v6968
    %7790 = vmatprep.subr.bf16.mxu0 %v6953
    %7791 = vmatpush1.bf16.msra.mxu0 %v6952
    %7792 = vmatprep.subr.bf16.mxu0 %v6937
    %7793 = vmatpush1.bf16.msra.mxu0 %v6936
    %7794 = vmatprep.subr.bf16.mxu0 %v6921
    %7795 = vmatpush1.bf16.msra.mxu0 %v6920
    %7796 = vmatprep.subr.bf16.mxu0 %v6905
    %7797 = vmatpush1.bf16.msra.mxu0 %v6904
    %7798 = vmatprep.subr.bf16.mxu0 0
    %7799 = vmatpush2.bf16.msra.mxu0 0
    %7800 = vmatprep.subr.bf16.mxu0 0
    %7801 = vmatpush2.bf16.msra.mxu0 0
    %7802 = vmatprep.subr.bf16.mxu0 0
    %7803 = vmatpush2.bf16.msra.mxu0 0
    %7804 = vmatprep.subr.bf16.mxu0 0
    %7805 = vmatpush2.bf16.msra.mxu0 0
    %7806 = vmatprep.subr.bf16.mxu0 0
    %7807 = vmatpush2.bf16.msra.mxu0 0
    %7808 = vmatprep.subr.bf16.mxu0 0
    %7809 = vmatpush2.bf16.msra.mxu0 0
    %7810 = vmatprep.subr.bf16.mxu0 0
    %7811 = vmatpush2.bf16.msra.mxu0 0
    %7812 = vmatprep.subr.bf16.mxu0 0
    %7813 = vmatpush2.bf16.msra.mxu0 0
    %7814 = vmatprep.mubr.bf16.mxu0 0
    %7815 = vmatmul.mubr.bf16.gmra.mxu0 %v7575
    %v7816 = vpop.f32.mrf.mxu0
    %v7817 = vadd.f32 %v7776, %v7816
    %v7818 = vpop.f32.mrf.mxu0
    %v7819 = vadd.f32 %v7778, %v7818
    %v7820 = vpop.f32.mrf.mxu0
    %v7821 = vpop.f32.mrf.mxu0
    %7822 = vdwg.mxu0
    %7823 = vmatprep.subr.bf16.mxu0 %v6507
    %7824 = vmatpush1.bf16.msra.mxu0 %v6506
    %7825 = vmatprep.subr.bf16.mxu0 %v6491
    %7826 = vmatpush1.bf16.msra.mxu0 %v6490
    %7827 = vmatprep.subr.bf16.mxu0 %v6475
    %7828 = vmatpush1.bf16.msra.mxu0 %v6474
    %7829 = vmatprep.subr.bf16.mxu0 %v6459
    %7830 = vmatpush1.bf16.msra.mxu0 %v6458
    %7831 = vmatprep.subr.bf16.mxu0 %v6443
    %7832 = vmatpush1.bf16.msra.mxu0 %v6442
    %7833 = vmatprep.subr.bf16.mxu0 %v6427
    %7834 = vmatpush1.bf16.msra.mxu0 %v6426
    %7835 = vmatprep.subr.bf16.mxu0 %v6411
    %7836 = vmatpush1.bf16.msra.mxu0 %v6410
    %7837 = vmatprep.subr.bf16.mxu0 %v6395
    %7838 = vmatpush1.bf16.msra.mxu0 %v6394
    %7839 = vmatprep.subr.bf16.mxu0 %v6635
    %7840 = vmatpush2.bf16.msra.mxu0 %v6634
    %7841 = vmatprep.subr.bf16.mxu0 %v6619
    %7842 = vmatpush2.bf16.msra.mxu0 %v6618
    %7843 = vmatprep.subr.bf16.mxu0 %v6603
    %7844 = vmatpush2.bf16.msra.mxu0 %v6602
    %7845 = vmatprep.subr.bf16.mxu0 %v6587
    %7846 = vmatpush2.bf16.msra.mxu0 %v6586
    %7847 = vmatprep.subr.bf16.mxu0 %v6571
    %7848 = vmatpush2.bf16.msra.mxu0 %v6570
    %7849 = vmatprep.subr.bf16.mxu0 %v6555
    %7850 = vmatpush2.bf16.msra.mxu0 %v6554
    %7851 = vmatprep.subr.bf16.mxu0 %v6539
    %7852 = vmatpush2.bf16.msra.mxu0 %v6538
    %7853 = vmatprep.subr.bf16.mxu0 %v6523
    %7854 = vmatpush2.bf16.msra.mxu0 %v6522
    %7855 = vmatprep.mubr.bf16.mxu0 %v3928
    %7856 = vmatmul.mubr.bf16.gmra.mxu0 %v3927
    %v7857 = vpop.f32.mrf.mxu0
    %v7858 = vadd.f32 %v4553, %v7857
    %v7859 = vpop.f32.mrf.mxu0
    %v7860 = vadd.f32 %v4557, %v7859
    %v7861 = vpop.f32.mrf.mxu0
    %v7862 = vpop.f32.mrf.mxu0
    %7863 = vdwg.mxu0
    %7864 = vmatprep.subr.bf16.mxu0 %v6763
    %7865 = vmatpush1.bf16.msra.mxu0 %v6762
    %7866 = vmatprep.subr.bf16.mxu0 %v6747
    %7867 = vmatpush1.bf16.msra.mxu0 %v6746
    %7868 = vmatprep.subr.bf16.mxu0 %v6731
    %7869 = vmatpush1.bf16.msra.mxu0 %v6730
    %7870 = vmatprep.subr.bf16.mxu0 %v6715
    %7871 = vmatpush1.bf16.msra.mxu0 %v6714
    %7872 = vmatprep.subr.bf16.mxu0 %v6699
    %7873 = vmatpush1.bf16.msra.mxu0 %v6698
    %7874 = vmatprep.subr.bf16.mxu0 %v6683
    %7875 = vmatpush1.bf16.msra.mxu0 %v6682
    %7876 = vmatprep.subr.bf16.mxu0 %v6667
    %7877 = vmatpush1.bf16.msra.mxu0 %v6666
    %7878 = vmatprep.subr.bf16.mxu0 %v6651
    %7879 = vmatpush1.bf16.msra.mxu0 %v6650
    %7880 = vmatprep.subr.bf16.mxu0 %v6891
    %7881 = vmatpush2.bf16.msra.mxu0 %v6890
    %7882 = vmatprep.subr.bf16.mxu0 %v6875
    %7883 = vmatpush2.bf16.msra.mxu0 %v6874
    %7884 = vmatprep.subr.bf16.mxu0 %v6859
    %7885 = vmatpush2.bf16.msra.mxu0 %v6858
    %7886 = vmatprep.subr.bf16.mxu0 %v6843
    %7887 = vmatpush2.bf16.msra.mxu0 %v6842
    %7888 = vmatprep.subr.bf16.mxu0 %v6827
    %7889 = vmatpush2.bf16.msra.mxu0 %v6826
    %7890 = vmatprep.subr.bf16.mxu0 %v6811
    %7891 = vmatpush2.bf16.msra.mxu0 %v6810
    %7892 = vmatprep.subr.bf16.mxu0 %v6795
    %7893 = vmatpush2.bf16.msra.mxu0 %v6794
    %7894 = vmatprep.subr.bf16.mxu0 %v6779
    %7895 = vmatpush2.bf16.msra.mxu0 %v6778
    %7896 = vmatprep.mubr.bf16.mxu0 %v3930
    %7897 = vmatmul.mubr.bf16.gmra.mxu0 %v3929
    %v7898 = vpop.f32.mrf.mxu0
    %v7899 = vadd.f32 %v7858, %v7898
    %v7900 = vpop.f32.mrf.mxu0
    %v7901 = vadd.f32 %v7860, %v7900
    %v7902 = vpop.f32.mrf.mxu0
    %v7903 = vpop.f32.mrf.mxu0
    %7904 = vdwg.mxu0
    %7905 = vmatprep.subr.bf16.mxu0 0
    %7906 = vmatpush1.bf16.msra.mxu0 0
    %7907 = vmatprep.subr.bf16.mxu0 0
    %7908 = vmatpush1.bf16.msra.mxu0 0
    %7909 = vmatprep.subr.bf16.mxu0 0
    %7910 = vmatpush1.bf16.msra.mxu0 0
    %7911 = vmatprep.subr.bf16.mxu0 %v6971
    %7912 = vmatpush1.bf16.msra.mxu0 %v6970
    %7913 = vmatprep.subr.bf16.mxu0 %v6955
    %7914 = vmatpush1.bf16.msra.mxu0 %v6954
    %7915 = vmatprep.subr.bf16.mxu0 %v6939
    %7916 = vmatpush1.bf16.msra.mxu0 %v6938
    %7917 = vmatprep.subr.bf16.mxu0 %v6923
    %7918 = vmatpush1.bf16.msra.mxu0 %v6922
    %7919 = vmatprep.subr.bf16.mxu0 %v6907
    %7920 = vmatpush1.bf16.msra.mxu0 %v6906
    %7921 = vmatprep.subr.bf16.mxu0 0
    %7922 = vmatpush2.bf16.msra.mxu0 0
    %7923 = vmatprep.subr.bf16.mxu0 0
    %7924 = vmatpush2.bf16.msra.mxu0 0
    %7925 = vmatprep.subr.bf16.mxu0 0
    %7926 = vmatpush2.bf16.msra.mxu0 0
    %7927 = vmatprep.subr.bf16.mxu0 0
    %7928 = vmatpush2.bf16.msra.mxu0 0
    %7929 = vmatprep.subr.bf16.mxu0 0
    %7930 = vmatpush2.bf16.msra.mxu0 0
    %7931 = vmatprep.subr.bf16.mxu0 0
    %7932 = vmatpush2.bf16.msra.mxu0 0
    %7933 = vmatprep.subr.bf16.mxu0 0
    %7934 = vmatpush2.bf16.msra.mxu0 0
    %7935 = vmatprep.subr.bf16.mxu0 0
    %7936 = vmatpush2.bf16.msra.mxu0 0
    %7937 = vmatprep.mubr.bf16.mxu0 0
    %7938 = vmatmul.mubr.bf16.gmra.mxu0 %v7575
    %v7939 = vpop.f32.mrf.mxu0
    %v7940 = vadd.f32 %v7899, %v7939
    %v7941 = vpop.f32.mrf.mxu0
    %v7942 = vadd.f32 %v7901, %v7941
    %v7943 = vpop.f32.mrf.mxu0
    %v7944 = vpop.f32.mrf.mxu0
    %7945 = vdwg.mxu0
    %7946 = vmatprep.subr.bf16.mxu0 %v6509
    %7947 = vmatpush1.bf16.msra.mxu0 %v6508
    %7948 = vmatprep.subr.bf16.mxu0 %v6493
    %7949 = vmatpush1.bf16.msra.mxu0 %v6492
    %7950 = vmatprep.subr.bf16.mxu0 %v6477
    %7951 = vmatpush1.bf16.msra.mxu0 %v6476
    %7952 = vmatprep.subr.bf16.mxu0 %v6461
    %7953 = vmatpush1.bf16.msra.mxu0 %v6460
    %7954 = vmatprep.subr.bf16.mxu0 %v6445
    %7955 = vmatpush1.bf16.msra.mxu0 %v6444
    %7956 = vmatprep.subr.bf16.mxu0 %v6429
    %7957 = vmatpush1.bf16.msra.mxu0 %v6428
    %7958 = vmatprep.subr.bf16.mxu0 %v6413
    %7959 = vmatpush1.bf16.msra.mxu0 %v6412
    %7960 = vmatprep.subr.bf16.mxu0 %v6397
    %7961 = vmatpush1.bf16.msra.mxu0 %v6396
    %7962 = vmatprep.subr.bf16.mxu0 %v6637
    %7963 = vmatpush2.bf16.msra.mxu0 %v6636
    %7964 = vmatprep.subr.bf16.mxu0 %v6621
    %7965 = vmatpush2.bf16.msra.mxu0 %v6620
    %7966 = vmatprep.subr.bf16.mxu0 %v6605
    %7967 = vmatpush2.bf16.msra.mxu0 %v6604
    %7968 = vmatprep.subr.bf16.mxu0 %v6589
    %7969 = vmatpush2.bf16.msra.mxu0 %v6588
    %7970 = vmatprep.subr.bf16.mxu0 %v6573
    %7971 = vmatpush2.bf16.msra.mxu0 %v6572
    %7972 = vmatprep.subr.bf16.mxu0 %v6557
    %7973 = vmatpush2.bf16.msra.mxu0 %v6556
    %7974 = vmatprep.subr.bf16.mxu0 %v6541
    %7975 = vmatpush2.bf16.msra.mxu0 %v6540
    %7976 = vmatprep.subr.bf16.mxu0 %v6525
    %7977 = vmatpush2.bf16.msra.mxu0 %v6524
    %7978 = vmatprep.mubr.bf16.mxu0 %v3928
    %7979 = vmatmul.mubr.bf16.gmra.mxu0 %v3927
    %v7980 = vpop.f32.mrf.mxu0
    %v7981 = vadd.f32 %v4561, %v7980
    %v7982 = vpop.f32.mrf.mxu0
    %v7983 = vadd.f32 %v4565, %v7982
    %v7984 = vpop.f32.mrf.mxu0
    %v7985 = vpop.f32.mrf.mxu0
    %7986 = vdwg.mxu0
    %7987 = vmatprep.subr.bf16.mxu0 %v6765
    %7988 = vmatpush1.bf16.msra.mxu0 %v6764
    %7989 = vmatprep.subr.bf16.mxu0 %v6749
    %7990 = vmatpush1.bf16.msra.mxu0 %v6748
    %7991 = vmatprep.subr.bf16.mxu0 %v6733
    %7992 = vmatpush1.bf16.msra.mxu0 %v6732
    %7993 = vmatprep.subr.bf16.mxu0 %v6717
    %7994 = vmatpush1.bf16.msra.mxu0 %v6716
    %7995 = vmatprep.subr.bf16.mxu0 %v6701
    %7996 = vmatpush1.bf16.msra.mxu0 %v6700
    %7997 = vmatprep.subr.bf16.mxu0 %v6685
    %7998 = vmatpush1.bf16.msra.mxu0 %v6684
    %7999 = vmatprep.subr.bf16.mxu0 %v6669
    %8000 = vmatpush1.bf16.msra.mxu0 %v6668
    %8001 = vmatprep.subr.bf16.mxu0 %v6653
    %8002 = vmatpush1.bf16.msra.mxu0 %v6652
    %8003 = vmatprep.subr.bf16.mxu0 %v6893
    %8004 = vmatpush2.bf16.msra.mxu0 %v6892
    %8005 = vmatprep.subr.bf16.mxu0 %v6877
    %8006 = vmatpush2.bf16.msra.mxu0 %v6876
    %8007 = vmatprep.subr.bf16.mxu0 %v6861
    %8008 = vmatpush2.bf16.msra.mxu0 %v6860
    %8009 = vmatprep.subr.bf16.mxu0 %v6845
    %8010 = vmatpush2.bf16.msra.mxu0 %v6844
    %8011 = vmatprep.subr.bf16.mxu0 %v6829
    %8012 = vmatpush2.bf16.msra.mxu0 %v6828
    %8013 = vmatprep.subr.bf16.mxu0 %v6813
    %8014 = vmatpush2.bf16.msra.mxu0 %v6812
    %8015 = vmatprep.subr.bf16.mxu0 %v6797
    %8016 = vmatpush2.bf16.msra.mxu0 %v6796
    %8017 = vmatprep.subr.bf16.mxu0 %v6781
    %8018 = vmatpush2.bf16.msra.mxu0 %v6780
    %8019 = vmatprep.mubr.bf16.mxu0 %v3930
    %8020 = vmatmul.mubr.bf16.gmra.mxu0 %v3929
    %v8021 = vpop.f32.mrf.mxu0
    %v8022 = vadd.f32 %v7981, %v8021
    %v8023 = vpop.f32.mrf.mxu0
    %v8024 = vadd.f32 %v7983, %v8023
    %v8025 = vpop.f32.mrf.mxu0
    %v8026 = vpop.f32.mrf.mxu0
    %8027 = vdwg.mxu0
    %8028 = vmatprep.subr.bf16.mxu0 0
    %8029 = vmatpush1.bf16.msra.mxu0 0
    %8030 = vmatprep.subr.bf16.mxu0 0
    %8031 = vmatpush1.bf16.msra.mxu0 0
    %8032 = vmatprep.subr.bf16.mxu0 0
    %8033 = vmatpush1.bf16.msra.mxu0 0
    %8034 = vmatprep.subr.bf16.mxu0 %v6973
    %8035 = vmatpush1.bf16.msra.mxu0 %v6972
    %8036 = vmatprep.subr.bf16.mxu0 %v6957
    %8037 = vmatpush1.bf16.msra.mxu0 %v6956
    %8038 = vmatprep.subr.bf16.mxu0 %v6941
    %8039 = vmatpush1.bf16.msra.mxu0 %v6940
    %8040 = vmatprep.subr.bf16.mxu0 %v6925
    %8041 = vmatpush1.bf16.msra.mxu0 %v6924
    %8042 = vmatprep.subr.bf16.mxu0 %v6909
    %8043 = vmatpush1.bf16.msra.mxu0 %v6908
    %8044 = vmatprep.subr.bf16.mxu0 0
    %8045 = vmatpush2.bf16.msra.mxu0 0
    %8046 = vmatprep.subr.bf16.mxu0 0
    %8047 = vmatpush2.bf16.msra.mxu0 0
    %8048 = vmatprep.subr.bf16.mxu0 0
    %8049 = vmatpush2.bf16.msra.mxu0 0
    %8050 = vmatprep.subr.bf16.mxu0 0
    %8051 = vmatpush2.bf16.msra.mxu0 0
    %8052 = vmatprep.subr.bf16.mxu0 0
    %8053 = vmatpush2.bf16.msra.mxu0 0
    %8054 = vmatprep.subr.bf16.mxu0 0
    %8055 = vmatpush2.bf16.msra.mxu0 0
    %8056 = vmatprep.subr.bf16.mxu0 0
    %8057 = vmatpush2.bf16.msra.mxu0 0
    %8058 = vmatprep.subr.bf16.mxu0 0
    %8059 = vmatpush2.bf16.msra.mxu0 0
    %8060 = vmatprep.mubr.bf16.mxu0 0
    %8061 = vmatmul.mubr.bf16.gmra.mxu0 %v7575
    %v8062 = vpop.f32.mrf.mxu0
    %v8063 = vadd.f32 %v8022, %v8062
    %v8064 = vpop.f32.mrf.mxu0
    %v8065 = vadd.f32 %v8024, %v8064
    %v8066 = vpop.f32.mrf.mxu0
    %v8067 = vpop.f32.mrf.mxu0
    %8068 = vdwg.mxu0
    %8069 = vmatprep.subr.bf16.mxu0 %v6511
    %8070 = vmatpush1.bf16.msra.mxu0 %v6510
    %8071 = vmatprep.subr.bf16.mxu0 %v6495
    %8072 = vmatpush1.bf16.msra.mxu0 %v6494
    %8073 = vmatprep.subr.bf16.mxu0 %v6479
    %8074 = vmatpush1.bf16.msra.mxu0 %v6478
    %8075 = vmatprep.subr.bf16.mxu0 %v6463
    %8076 = vmatpush1.bf16.msra.mxu0 %v6462
    %8077 = vmatprep.subr.bf16.mxu0 %v6447
    %8078 = vmatpush1.bf16.msra.mxu0 %v6446
    %8079 = vmatprep.subr.bf16.mxu0 %v6431
    %8080 = vmatpush1.bf16.msra.mxu0 %v6430
    %8081 = vmatprep.subr.bf16.mxu0 %v6415
    %8082 = vmatpush1.bf16.msra.mxu0 %v6414
    %8083 = vmatprep.subr.bf16.mxu0 %v6399
    %8084 = vmatpush1.bf16.msra.mxu0 %v6398
    %8085 = vmatprep.subr.bf16.mxu0 %v6639
    %8086 = vmatpush2.bf16.msra.mxu0 %v6638
    %8087 = vmatprep.subr.bf16.mxu0 %v6623
    %8088 = vmatpush2.bf16.msra.mxu0 %v6622
    %8089 = vmatprep.subr.bf16.mxu0 %v6607
    %8090 = vmatpush2.bf16.msra.mxu0 %v6606
    %8091 = vmatprep.subr.bf16.mxu0 %v6591
    %8092 = vmatpush2.bf16.msra.mxu0 %v6590
    %8093 = vmatprep.subr.bf16.mxu0 %v6575
    %8094 = vmatpush2.bf16.msra.mxu0 %v6574
    %8095 = vmatprep.subr.bf16.mxu0 %v6559
    %8096 = vmatpush2.bf16.msra.mxu0 %v6558
    %8097 = vmatprep.subr.bf16.mxu0 %v6543
    %8098 = vmatpush2.bf16.msra.mxu0 %v6542
    %8099 = vmatprep.subr.bf16.mxu0 %v6527
    %8100 = vmatpush2.bf16.msra.mxu0 %v6526
    %8101 = vmatprep.mubr.bf16.mxu0 %v3928
    %8102 = vmatmul.mubr.bf16.gmra.mxu0 %v3927
    %v8103 = vpop.f32.mrf.mxu0
    %v8104 = vadd.f32 %v4569, %v8103
    %v8105 = vpop.f32.mrf.mxu0
    %v8106 = vadd.f32 %v4573, %v8105
    %v8107 = vpop.f32.mrf.mxu0
    %v8108 = vpop.f32.mrf.mxu0
    %8109 = vdwg.mxu0
    %8110 = vmatprep.subr.bf16.mxu0 %v6767
    %8111 = vmatpush1.bf16.msra.mxu0 %v6766
    %8112 = vmatprep.subr.bf16.mxu0 %v6751
    %8113 = vmatpush1.bf16.msra.mxu0 %v6750
    %8114 = vmatprep.subr.bf16.mxu0 %v6735
    %8115 = vmatpush1.bf16.msra.mxu0 %v6734
    %8116 = vmatprep.subr.bf16.mxu0 %v6719
    %8117 = vmatpush1.bf16.msra.mxu0 %v6718
    %8118 = vmatprep.subr.bf16.mxu0 %v6703
    %8119 = vmatpush1.bf16.msra.mxu0 %v6702
    %8120 = vmatprep.subr.bf16.mxu0 %v6687
    %8121 = vmatpush1.bf16.msra.mxu0 %v6686
    %8122 = vmatprep.subr.bf16.mxu0 %v6671
    %8123 = vmatpush1.bf16.msra.mxu0 %v6670
    %8124 = vmatprep.subr.bf16.mxu0 %v6655
    %8125 = vmatpush1.bf16.msra.mxu0 %v6654
    %8126 = vmatprep.subr.bf16.mxu0 %v6895
    %8127 = vmatpush2.bf16.msra.mxu0 %v6894
    %8128 = vmatprep.subr.bf16.mxu0 %v6879
    %8129 = vmatpush2.bf16.msra.mxu0 %v6878
    %8130 = vmatprep.subr.bf16.mxu0 %v6863
    %8131 = vmatpush2.bf16.msra.mxu0 %v6862
    %8132 = vmatprep.subr.bf16.mxu0 %v6847
    %8133 = vmatpush2.bf16.msra.mxu0 %v6846
    %8134 = vmatprep.subr.bf16.mxu0 %v6831
    %8135 = vmatpush2.bf16.msra.mxu0 %v6830
    %8136 = vmatprep.subr.bf16.mxu0 %v6815
    %8137 = vmatpush2.bf16.msra.mxu0 %v6814
    %8138 = vmatprep.subr.bf16.mxu0 %v6799
    %8139 = vmatpush2.bf16.msra.mxu0 %v6798
    %8140 = vmatprep.subr.bf16.mxu0 %v6783
    %8141 = vmatpush2.bf16.msra.mxu0 %v6782
    %8142 = vmatprep.mubr.bf16.mxu0 %v3930
    %8143 = vmatmul.mubr.bf16.gmra.mxu0 %v3929
    %v8144 = vpop.f32.mrf.mxu0
    %v8145 = vadd.f32 %v8104, %v8144
    %v8146 = vpop.f32.mrf.mxu0
    %v8147 = vadd.f32 %v8106, %v8146
    %v8148 = vpop.f32.mrf.mxu0
    %v8149 = vpop.f32.mrf.mxu0
    %8150 = vdwg.mxu0
    %8151 = vmatprep.subr.bf16.mxu0 0
    %8152 = vmatpush1.bf16.msra.mxu0 0
    %8153 = vmatprep.subr.bf16.mxu0 0
    %8154 = vmatpush1.bf16.msra.mxu0 0
    %8155 = vmatprep.subr.bf16.mxu0 0
    %8156 = vmatpush1.bf16.msra.mxu0 0
    %8157 = vmatprep.subr.bf16.mxu0 %v6975
    %8158 = vmatpush1.bf16.msra.mxu0 %v6974
    %8159 = vmatprep.subr.bf16.mxu0 %v6959
    %8160 = vmatpush1.bf16.msra.mxu0 %v6958
    %8161 = vmatprep.subr.bf16.mxu0 %v6943
    %8162 = vmatpush1.bf16.msra.mxu0 %v6942
    %8163 = vmatprep.subr.bf16.mxu0 %v6927
    %8164 = vmatpush1.bf16.msra.mxu0 %v6926
    %8165 = vmatprep.subr.bf16.mxu0 %v6911
    %8166 = vmatpush1.bf16.msra.mxu0 %v6910
    %8167 = vmatprep.subr.bf16.mxu0 0
    %8168 = vmatpush2.bf16.msra.mxu0 0
    %8169 = vmatprep.subr.bf16.mxu0 0
    %8170 = vmatpush2.bf16.msra.mxu0 0
    %8171 = vmatprep.subr.bf16.mxu0 0
    %8172 = vmatpush2.bf16.msra.mxu0 0
    %8173 = vmatprep.subr.bf16.mxu0 0
    %8174 = vmatpush2.bf16.msra.mxu0 0
    %8175 = vmatprep.subr.bf16.mxu0 0
    %8176 = vmatpush2.bf16.msra.mxu0 0
    %8177 = vmatprep.subr.bf16.mxu0 0
    %8178 = vmatpush2.bf16.msra.mxu0 0
    %8179 = vmatprep.subr.bf16.mxu0 0
    %8180 = vmatpush2.bf16.msra.mxu0 0
    %8181 = vmatprep.subr.bf16.mxu0 0
    %8182 = vmatpush2.bf16.msra.mxu0 0
    %8183 = vmatprep.mubr.bf16.mxu0 0
    %8184 = vmatmul.mubr.bf16.gmra.mxu0 %v7575
    %v8185 = vpop.f32.mrf.mxu0
    %v8186 = vadd.f32 %v8145, %v8185
    %v8187 = vpop.f32.mrf.mxu0
    %v8188 = vadd.f32 %v8147, %v8187
    %v8189 = vpop.f32.mrf.mxu0
    %v8190 = vpop.f32.mrf.mxu0
    %8191 = vdwg.mxu0
    %8192 = vmatprep.subr.bf16.mxu0 %v6513
    %8193 = vmatpush1.bf16.msra.mxu0 %v6512
    %8194 = vmatprep.subr.bf16.mxu0 %v6497
    %8195 = vmatpush1.bf16.msra.mxu0 %v6496
    %8196 = vmatprep.subr.bf16.mxu0 %v6481
    %8197 = vmatpush1.bf16.msra.mxu0 %v6480
    %8198 = vmatprep.subr.bf16.mxu0 %v6465
    %8199 = vmatpush1.bf16.msra.mxu0 %v6464
    %8200 = vmatprep.subr.bf16.mxu0 %v6449
    %8201 = vmatpush1.bf16.msra.mxu0 %v6448
    %8202 = vmatprep.subr.bf16.mxu0 %v6433
    %8203 = vmatpush1.bf16.msra.mxu0 %v6432
    %8204 = vmatprep.subr.bf16.mxu0 %v6417
    %8205 = vmatpush1.bf16.msra.mxu0 %v6416
    %8206 = vmatprep.subr.bf16.mxu0 %v6401
    %8207 = vmatpush1.bf16.msra.mxu0 %v6400
    %8208 = vmatprep.subr.bf16.mxu0 %v6641
    %8209 = vmatpush2.bf16.msra.mxu0 %v6640
    %8210 = vmatprep.subr.bf16.mxu0 %v6625
    %8211 = vmatpush2.bf16.msra.mxu0 %v6624
    %8212 = vmatprep.subr.bf16.mxu0 %v6609
    %8213 = vmatpush2.bf16.msra.mxu0 %v6608
    %8214 = vmatprep.subr.bf16.mxu0 %v6593
    %8215 = vmatpush2.bf16.msra.mxu0 %v6592
    %8216 = vmatprep.subr.bf16.mxu0 %v6577
    %8217 = vmatpush2.bf16.msra.mxu0 %v6576
    %8218 = vmatprep.subr.bf16.mxu0 %v6561
    %8219 = vmatpush2.bf16.msra.mxu0 %v6560
    %8220 = vmatprep.subr.bf16.mxu0 %v6545
    %8221 = vmatpush2.bf16.msra.mxu0 %v6544
    %8222 = vmatprep.subr.bf16.mxu0 %v6529
    %8223 = vmatpush2.bf16.msra.mxu0 %v6528
    %8224 = vmatprep.mubr.bf16.mxu0 %v3928
    %8225 = vmatmul.mubr.bf16.gmra.mxu0 %v3927
    %v8226 = vpop.f32.mrf.mxu0
    %v8227 = vadd.f32 %v4577, %v8226
    %v8228 = vpop.f32.mrf.mxu0
    %v8229 = vadd.f32 %v4581, %v8228
    %v8230 = vpop.f32.mrf.mxu0
    %v8231 = vpop.f32.mrf.mxu0
    %8232 = vdwg.mxu0
    %8233 = vmatprep.subr.bf16.mxu0 %v6769
    %8234 = vmatpush1.bf16.msra.mxu0 %v6768
    %8235 = vmatprep.subr.bf16.mxu0 %v6753
    %8236 = vmatpush1.bf16.msra.mxu0 %v6752
    %8237 = vmatprep.subr.bf16.mxu0 %v6737
    %8238 = vmatpush1.bf16.msra.mxu0 %v6736
    %8239 = vmatprep.subr.bf16.mxu0 %v6721
    %8240 = vmatpush1.bf16.msra.mxu0 %v6720
    %8241 = vmatprep.subr.bf16.mxu0 %v6705
    %8242 = vmatpush1.bf16.msra.mxu0 %v6704
    %8243 = vmatprep.subr.bf16.mxu0 %v6689
    %8244 = vmatpush1.bf16.msra.mxu0 %v6688
    %8245 = vmatprep.subr.bf16.mxu0 %v6673
    %8246 = vmatpush1.bf16.msra.mxu0 %v6672
    %8247 = vmatprep.subr.bf16.mxu0 %v6657
    %8248 = vmatpush1.bf16.msra.mxu0 %v6656
    %8249 = vmatprep.subr.bf16.mxu0 %v6897
    %8250 = vmatpush2.bf16.msra.mxu0 %v6896
    %8251 = vmatprep.subr.bf16.mxu0 %v6881
    %8252 = vmatpush2.bf16.msra.mxu0 %v6880
    %8253 = vmatprep.subr.bf16.mxu0 %v6865
    %8254 = vmatpush2.bf16.msra.mxu0 %v6864
    %8255 = vmatprep.subr.bf16.mxu0 %v6849
    %8256 = vmatpush2.bf16.msra.mxu0 %v6848
    %8257 = vmatprep.subr.bf16.mxu0 %v6833
    %8258 = vmatpush2.bf16.msra.mxu0 %v6832
    %8259 = vmatprep.subr.bf16.mxu0 %v6817
    %8260 = vmatpush2.bf16.msra.mxu0 %v6816
    %8261 = vmatprep.subr.bf16.mxu0 %v6801
    %8262 = vmatpush2.bf16.msra.mxu0 %v6800
    %8263 = vmatprep.subr.bf16.mxu0 %v6785
    %8264 = vmatpush2.bf16.msra.mxu0 %v6784
    %8265 = vmatprep.mubr.bf16.mxu0 %v3930
    %8266 = vmatmul.mubr.bf16.gmra.mxu0 %v3929
    %v8267 = vpop.f32.mrf.mxu0
    %v8268 = vadd.f32 %v8227, %v8267
    %v8269 = vpop.f32.mrf.mxu0
    %v8270 = vadd.f32 %v8229, %v8269
    %v8271 = vpop.f32.mrf.mxu0
    %v8272 = vpop.f32.mrf.mxu0
    %8273 = vdwg.mxu0
    %8274 = vmatprep.subr.bf16.mxu0 0
    %8275 = vmatpush1.bf16.msra.mxu0 0
    %8276 = vmatprep.subr.bf16.mxu0 0
    %8277 = vmatpush1.bf16.msra.mxu0 0
    %8278 = vmatprep.subr.bf16.mxu0 0
    %8279 = vmatpush1.bf16.msra.mxu0 0
    %8280 = vmatprep.subr.bf16.mxu0 %v6977
    %8281 = vmatpush1.bf16.msra.mxu0 %v6976
    %8282 = vmatprep.subr.bf16.mxu0 %v6961
    %8283 = vmatpush1.bf16.msra.mxu0 %v6960
    %8284 = vmatprep.subr.bf16.mxu0 %v6945
    %8285 = vmatpush1.bf16.msra.mxu0 %v6944
    %8286 = vmatprep.subr.bf16.mxu0 %v6929
    %8287 = vmatpush1.bf16.msra.mxu0 %v6928
    %8288 = vmatprep.subr.bf16.mxu0 %v6913
    %8289 = vmatpush1.bf16.msra.mxu0 %v6912
    %8290 = vmatprep.subr.bf16.mxu0 0
    %8291 = vmatpush2.bf16.msra.mxu0 0
    %8292 = vmatprep.subr.bf16.mxu0 0
    %8293 = vmatpush2.bf16.msra.mxu0 0
    %8294 = vmatprep.subr.bf16.mxu0 0
    %8295 = vmatpush2.bf16.msra.mxu0 0
    %8296 = vmatprep.subr.bf16.mxu0 0
    %8297 = vmatpush2.bf16.msra.mxu0 0
    %8298 = vmatprep.subr.bf16.mxu0 0
    %8299 = vmatpush2.bf16.msra.mxu0 0
    %8300 = vmatprep.subr.bf16.mxu0 0
    %8301 = vmatpush2.bf16.msra.mxu0 0
    %8302 = vmatprep.subr.bf16.mxu0 0
    %8303 = vmatpush2.bf16.msra.mxu0 0
    %8304 = vmatprep.subr.bf16.mxu0 0
    %8305 = vmatpush2.bf16.msra.mxu0 0
    %8306 = vmatprep.mubr.bf16.mxu0 0
    %8307 = vmatmul.mubr.bf16.gmra.mxu0 %v7575
    %v8308 = vpop.f32.mrf.mxu0
    %v8309 = vadd.f32 %v8268, %v8308
    %v8310 = vpop.f32.mrf.mxu0
    %v8311 = vadd.f32 %v8270, %v8310
    %v8312 = vpop.f32.mrf.mxu0
    %v8313 = vpop.f32.mrf.mxu0
    %8314 = vdwg.mxu0
    %8315 = vmatprep.subr.bf16.mxu0 %v6515
    %8316 = vmatpush1.bf16.msra.mxu0 %v6514
    %8317 = vmatprep.subr.bf16.mxu0 %v6499
    %8318 = vmatpush1.bf16.msra.mxu0 %v6498
    %8319 = vmatprep.subr.bf16.mxu0 %v6483
    %8320 = vmatpush1.bf16.msra.mxu0 %v6482
    %8321 = vmatprep.subr.bf16.mxu0 %v6467
    %8322 = vmatpush1.bf16.msra.mxu0 %v6466
    %8323 = vmatprep.subr.bf16.mxu0 %v6451
    %8324 = vmatpush1.bf16.msra.mxu0 %v6450
    %8325 = vmatprep.subr.bf16.mxu0 %v6435
    %8326 = vmatpush1.bf16.msra.mxu0 %v6434
    %8327 = vmatprep.subr.bf16.mxu0 %v6419
    %8328 = vmatpush1.bf16.msra.mxu0 %v6418
    %8329 = vmatprep.subr.bf16.mxu0 %v6403
    %8330 = vmatpush1.bf16.msra.mxu0 %v6402
    %8331 = vmatprep.subr.bf16.mxu0 %v6643
    %8332 = vmatpush2.bf16.msra.mxu0 %v6642
    %8333 = vmatprep.subr.bf16.mxu0 %v6627
    %8334 = vmatpush2.bf16.msra.mxu0 %v6626
    %8335 = vmatprep.subr.bf16.mxu0 %v6611
    %8336 = vmatpush2.bf16.msra.mxu0 %v6610
    %8337 = vmatprep.subr.bf16.mxu0 %v6595
    %8338 = vmatpush2.bf16.msra.mxu0 %v6594
    %8339 = vmatprep.subr.bf16.mxu0 %v6579
    %8340 = vmatpush2.bf16.msra.mxu0 %v6578
    %8341 = vmatprep.subr.bf16.mxu0 %v6563
    %8342 = vmatpush2.bf16.msra.mxu0 %v6562
    %8343 = vmatprep.subr.bf16.mxu0 %v6547
    %8344 = vmatpush2.bf16.msra.mxu0 %v6546
    %8345 = vmatprep.subr.bf16.mxu0 %v6531
    %8346 = vmatpush2.bf16.msra.mxu0 %v6530
    %8347 = vmatprep.mubr.bf16.mxu0 %v3928
    %8348 = vmatmul.mubr.bf16.gmra.mxu0 %v3927
    %v8349 = vpop.f32.mrf.mxu0
    %v8350 = vadd.f32 %v4585, %v8349
    %v8351 = vpop.f32.mrf.mxu0
    %v8352 = vadd.f32 %v4589, %v8351
    %v8353 = vpop.f32.mrf.mxu0
    %v8354 = vpop.f32.mrf.mxu0
    %8355 = vdwg.mxu0
    %8356 = vmatprep.subr.bf16.mxu0 %v6771
    %8357 = vmatpush1.bf16.msra.mxu0 %v6770
    %8358 = vmatprep.subr.bf16.mxu0 %v6755
    %8359 = vmatpush1.bf16.msra.mxu0 %v6754
    %8360 = vmatprep.subr.bf16.mxu0 %v6739
    %8361 = vmatpush1.bf16.msra.mxu0 %v6738
    %8362 = vmatprep.subr.bf16.mxu0 %v6723
    %8363 = vmatpush1.bf16.msra.mxu0 %v6722
    %8364 = vmatprep.subr.bf16.mxu0 %v6707
    %8365 = vmatpush1.bf16.msra.mxu0 %v6706
    %8366 = vmatprep.subr.bf16.mxu0 %v6691
    %8367 = vmatpush1.bf16.msra.mxu0 %v6690
    %8368 = vmatprep.subr.bf16.mxu0 %v6675
    %8369 = vmatpush1.bf16.msra.mxu0 %v6674
    %8370 = vmatprep.subr.bf16.mxu0 %v6659
    %8371 = vmatpush1.bf16.msra.mxu0 %v6658
    %8372 = vmatprep.subr.bf16.mxu0 %v6899
    %8373 = vmatpush2.bf16.msra.mxu0 %v6898
    %8374 = vmatprep.subr.bf16.mxu0 %v6883
    %8375 = vmatpush2.bf16.msra.mxu0 %v6882
    %8376 = vmatprep.subr.bf16.mxu0 %v6867
    %8377 = vmatpush2.bf16.msra.mxu0 %v6866
    %8378 = vmatprep.subr.bf16.mxu0 %v6851
    %8379 = vmatpush2.bf16.msra.mxu0 %v6850
    %8380 = vmatprep.subr.bf16.mxu0 %v6835
    %8381 = vmatpush2.bf16.msra.mxu0 %v6834
    %8382 = vmatprep.subr.bf16.mxu0 %v6819
    %8383 = vmatpush2.bf16.msra.mxu0 %v6818
    %8384 = vmatprep.subr.bf16.mxu0 %v6803
    %8385 = vmatpush2.bf16.msra.mxu0 %v6802
    %8386 = vmatprep.subr.bf16.mxu0 %v6787
    %8387 = vmatpush2.bf16.msra.mxu0 %v6786
    %8388 = vmatprep.mubr.bf16.mxu0 %v3930
    %8389 = vmatmul.mubr.bf16.gmra.mxu0 %v3929
    %v8390 = vpop.f32.mrf.mxu0
    %v8391 = vadd.f32 %v8350, %v8390
    %v8392 = vpop.f32.mrf.mxu0
    %v8393 = vadd.f32 %v8352, %v8392
    %v8394 = vpop.f32.mrf.mxu0
    %v8395 = vpop.f32.mrf.mxu0
    %8396 = vdwg.mxu0
    %8397 = vmatprep.subr.bf16.mxu0 0
    %8398 = vmatpush1.bf16.msra.mxu0 0
    %8399 = vmatprep.subr.bf16.mxu0 0
    %8400 = vmatpush1.bf16.msra.mxu0 0
    %8401 = vmatprep.subr.bf16.mxu0 0
    %8402 = vmatpush1.bf16.msra.mxu0 0
    %8403 = vmatprep.subr.bf16.mxu0 %v6979
    %8404 = vmatpush1.bf16.msra.mxu0 %v6978
    %8405 = vmatprep.subr.bf16.mxu0 %v6963
    %8406 = vmatpush1.bf16.msra.mxu0 %v6962
    %8407 = vmatprep.subr.bf16.mxu0 %v6947
    %8408 = vmatpush1.bf16.msra.mxu0 %v6946
    %8409 = vmatprep.subr.bf16.mxu0 %v6931
    %8410 = vmatpush1.bf16.msra.mxu0 %v6930
    %8411 = vmatprep.subr.bf16.mxu0 %v6915
    %8412 = vmatpush1.bf16.msra.mxu0 %v6914
    %8413 = vmatprep.subr.bf16.mxu0 0
    %8414 = vmatpush2.bf16.msra.mxu0 0
    %8415 = vmatprep.subr.bf16.mxu0 0
    %8416 = vmatpush2.bf16.msra.mxu0 0
    %8417 = vmatprep.subr.bf16.mxu0 0
    %8418 = vmatpush2.bf16.msra.mxu0 0
    %8419 = vmatprep.subr.bf16.mxu0 0
    %8420 = vmatpush2.bf16.msra.mxu0 0
    %8421 = vmatprep.subr.bf16.mxu0 0
    %8422 = vmatpush2.bf16.msra.mxu0 0
    %8423 = vmatprep.subr.bf16.mxu0 0
    %8424 = vmatpush2.bf16.msra.mxu0 0
    %8425 = vmatprep.subr.bf16.mxu0 0
    %8426 = vmatpush2.bf16.msra.mxu0 0
    %8427 = vmatprep.subr.bf16.mxu0 0
    %8428 = vmatpush2.bf16.msra.mxu0 0
    %8429 = vmatprep.mubr.bf16.mxu0 0
    %8430 = vmatmul.mubr.bf16.gmra.mxu0 %v7575
    %v8431 = vpop.f32.mrf.mxu0
    %v8432 = vadd.f32 %v8391, %v8431
    %v8433 = vpop.f32.mrf.mxu0
    %v8434 = vadd.f32 %v8393, %v8433
    %v8435 = vpop.f32.mrf.mxu0
    %v8436 = vpop.f32.mrf.mxu0
    %8437 = vdwg.mxu0
    %8438 = vmatprep.subr.bf16.mxu0 %v6517
    %8439 = vmatpush1.bf16.msra.mxu0 %v6516
    %8440 = vmatprep.subr.bf16.mxu0 %v6501
    %8441 = vmatpush1.bf16.msra.mxu0 %v6500
    %8442 = vmatprep.subr.bf16.mxu0 %v6485
    %8443 = vmatpush1.bf16.msra.mxu0 %v6484
    %8444 = vmatprep.subr.bf16.mxu0 %v6469
    %8445 = vmatpush1.bf16.msra.mxu0 %v6468
    %8446 = vmatprep.subr.bf16.mxu0 %v6453
    %8447 = vmatpush1.bf16.msra.mxu0 %v6452
    %8448 = vmatprep.subr.bf16.mxu0 %v6437
    %8449 = vmatpush1.bf16.msra.mxu0 %v6436
    %8450 = vmatprep.subr.bf16.mxu0 %v6421
    %8451 = vmatpush1.bf16.msra.mxu0 %v6420
    %8452 = vmatprep.subr.bf16.mxu0 %v6405
    %8453 = vmatpush1.bf16.msra.mxu0 %v6404
    %8454 = vmatprep.subr.bf16.mxu0 %v6645
    %8455 = vmatpush2.bf16.msra.mxu0 %v6644
    %8456 = vmatprep.subr.bf16.mxu0 %v6629
    %8457 = vmatpush2.bf16.msra.mxu0 %v6628
    %8458 = vmatprep.subr.bf16.mxu0 %v6613
    %8459 = vmatpush2.bf16.msra.mxu0 %v6612
    %8460 = vmatprep.subr.bf16.mxu0 %v6597
    %8461 = vmatpush2.bf16.msra.mxu0 %v6596
    %8462 = vmatprep.subr.bf16.mxu0 %v6581
    %8463 = vmatpush2.bf16.msra.mxu0 %v6580
    %8464 = vmatprep.subr.bf16.mxu0 %v6565
    %8465 = vmatpush2.bf16.msra.mxu0 %v6564
    %8466 = vmatprep.subr.bf16.mxu0 %v6549
    %8467 = vmatpush2.bf16.msra.mxu0 %v6548
    %8468 = vmatprep.subr.bf16.mxu0 %v6533
    %8469 = vmatpush2.bf16.msra.mxu0 %v6532
    %8470 = vmatprep.mubr.bf16.mxu0 %v3928
    %8471 = vmatmul.mubr.bf16.gmra.mxu0 %v3927
    %v8472 = vpop.f32.mrf.mxu0
    %v8473 = vadd.f32 %v4593, %v8472
    %v8474 = vpop.f32.mrf.mxu0
    %v8475 = vadd.f32 %v4597, %v8474
    %v8476 = vpop.f32.mrf.mxu0
    %v8477 = vpop.f32.mrf.mxu0
    %8478 = vdwg.mxu0
    %8479 = vmatprep.subr.bf16.mxu0 %v6773
    %8480 = vmatpush1.bf16.msra.mxu0 %v6772
    %8481 = vmatprep.subr.bf16.mxu0 %v6757
    %8482 = vmatpush1.bf16.msra.mxu0 %v6756
    %8483 = vmatprep.subr.bf16.mxu0 %v6741
    %8484 = vmatpush1.bf16.msra.mxu0 %v6740
    %8485 = vmatprep.subr.bf16.mxu0 %v6725
    %8486 = vmatpush1.bf16.msra.mxu0 %v6724
    %8487 = vmatprep.subr.bf16.mxu0 %v6709
    %8488 = vmatpush1.bf16.msra.mxu0 %v6708
    %8489 = vmatprep.subr.bf16.mxu0 %v6693
    %8490 = vmatpush1.bf16.msra.mxu0 %v6692
    %8491 = vmatprep.subr.bf16.mxu0 %v6677
    %8492 = vmatpush1.bf16.msra.mxu0 %v6676
    %8493 = vmatprep.subr.bf16.mxu0 %v6661
    %8494 = vmatpush1.bf16.msra.mxu0 %v6660
    %8495 = vmatprep.subr.bf16.mxu0 %v6901
    %8496 = vmatpush2.bf16.msra.mxu0 %v6900
    %8497 = vmatprep.subr.bf16.mxu0 %v6885
    %8498 = vmatpush2.bf16.msra.mxu0 %v6884
    %8499 = vmatprep.subr.bf16.mxu0 %v6869
    %8500 = vmatpush2.bf16.msra.mxu0 %v6868
    %8501 = vmatprep.subr.bf16.mxu0 %v6853
    %8502 = vmatpush2.bf16.msra.mxu0 %v6852
    %8503 = vmatprep.subr.bf16.mxu0 %v6837
    %8504 = vmatpush2.bf16.msra.mxu0 %v6836
    %8505 = vmatprep.subr.bf16.mxu0 %v6821
    %8506 = vmatpush2.bf16.msra.mxu0 %v6820
    %8507 = vmatprep.subr.bf16.mxu0 %v6805
    %8508 = vmatpush2.bf16.msra.mxu0 %v6804
    %8509 = vmatprep.subr.bf16.mxu0 %v6789
    %8510 = vmatpush2.bf16.msra.mxu0 %v6788
    %8511 = vmatprep.mubr.bf16.mxu0 %v3930
    %8512 = vmatmul.mubr.bf16.gmra.mxu0 %v3929
    %v8513 = vpop.f32.mrf.mxu0
    %v8514 = vadd.f32 %v8473, %v8513
    %v8515 = vpop.f32.mrf.mxu0
    %v8516 = vadd.f32 %v8475, %v8515
    %v8517 = vpop.f32.mrf.mxu0
    %v8518 = vpop.f32.mrf.mxu0
    %8519 = vdwg.mxu0
    %8520 = vmatprep.subr.bf16.mxu0 0
    %8521 = vmatpush1.bf16.msra.mxu0 0
    %8522 = vmatprep.subr.bf16.mxu0 0
    %8523 = vmatpush1.bf16.msra.mxu0 0
    %8524 = vmatprep.subr.bf16.mxu0 0
    %8525 = vmatpush1.bf16.msra.mxu0 0
    %8526 = vmatprep.subr.bf16.mxu0 %v6981
    %8527 = vmatpush1.bf16.msra.mxu0 %v6980
    %8528 = vmatprep.subr.bf16.mxu0 %v6965
    %8529 = vmatpush1.bf16.msra.mxu0 %v6964
    %8530 = vmatprep.subr.bf16.mxu0 %v6949
    %8531 = vmatpush1.bf16.msra.mxu0 %v6948
    %8532 = vmatprep.subr.bf16.mxu0 %v6933
    %8533 = vmatpush1.bf16.msra.mxu0 %v6932
    %8534 = vmatprep.subr.bf16.mxu0 %v6917
    %8535 = vmatpush1.bf16.msra.mxu0 %v6916
    %8536 = vmatprep.subr.bf16.mxu0 0
    %8537 = vmatpush2.bf16.msra.mxu0 0
    %8538 = vmatprep.subr.bf16.mxu0 0
    %8539 = vmatpush2.bf16.msra.mxu0 0
    %8540 = vmatprep.subr.bf16.mxu0 0
    %8541 = vmatpush2.bf16.msra.mxu0 0
    %8542 = vmatprep.subr.bf16.mxu0 0
    %8543 = vmatpush2.bf16.msra.mxu0 0
    %8544 = vmatprep.subr.bf16.mxu0 0
    %8545 = vmatpush2.bf16.msra.mxu0 0
    %8546 = vmatprep.subr.bf16.mxu0 0
    %8547 = vmatpush2.bf16.msra.mxu0 0
    %8548 = vmatprep.subr.bf16.mxu0 0
    %8549 = vmatpush2.bf16.msra.mxu0 0
    %8550 = vmatprep.subr.bf16.mxu0 0
    %8551 = vmatpush2.bf16.msra.mxu0 0
    %8552 = vmatprep.mubr.bf16.mxu0 0
    %8553 = vmatmul.mubr.bf16.gmra.mxu0 %v7575
    %v8554 = vpop.f32.mrf.mxu0
    %v8555 = vadd.f32 %v8514, %v8554
    %v8556 = vpop.f32.mrf.mxu0
    %v8557 = vadd.f32 %v8516, %v8556
    %v8558 = vpop.f32.mrf.mxu0
    %v8559 = vpop.f32.mrf.mxu0
    %8560 = vdwg.mxu0
    %v8561 = vmul.f32 %v7694, 0.5
    %v8562 = vmul.f32 %v7696, 0.5
    %v8563 = vmul.f32 %v7817, 0.5
    %v8564 = vmul.f32 %v7819, 0.5
    %v8565 = vmul.f32 %v7940, 0.5
    %v8566 = vmul.f32 %v7942, 0.5
    %v8567 = vmul.f32 %v8063, 0.5
    %v8568 = vmul.f32 %v8065, 0.5
    %v8569 = vmul.f32 %v8186, 0.5
    %v8570 = vmul.f32 %v8188, 0.5
    %v8571 = vmul.f32 %v8309, 0.5
    %v8572 = vmul.f32 %v8311, 0.5
    %v8573 = vmul.f32 %v8432, 0.5
    %v8574 = vmul.f32 %v8434, 0.5
    %v8575 = vmul.f32 %v8555, 0.5
    %v8576 = vmul.f32 %v8557, 0.5
    %v8577 = vmul.f32 %v7694, 0.70710677
    %v8578 = vmul.f32 %v7696, 0.70710677
    %v8579 = vmul.f32 %v7817, 0.70710677
    %v8580 = vmul.f32 %v7819, 0.70710677
    %v8581 = vmul.f32 %v7940, 0.70710677
    %v8582 = vmul.f32 %v7942, 0.70710677
    %v8583 = vmul.f32 %v8063, 0.70710677
    %v8584 = vmul.f32 %v8065, 0.70710677
    %v8585 = vmul.f32 %v8186, 0.70710677
    %v8586 = vmul.f32 %v8188, 0.70710677
    %v8587 = vmul.f32 %v8309, 0.70710677
    %v8588 = vmul.f32 %v8311, 0.70710677
    %v8589 = vmul.f32 %v8432, 0.70710677
    %v8590 = vmul.f32 %v8434, 0.70710677
    %v8591 = vmul.f32 %v8555, 0.70710677
    %v8592 = vmul.f32 %v8557, 0.70710677
    %vm8593 = vcmp.ge.f32.partialorder %v8577, 0.0
    %vm8594 = vcmp.ge.f32.partialorder %v8578, 0.0
    %vm8595 = vcmp.ge.f32.partialorder %v8579, 0.0
    %vm8596 = vcmp.ge.f32.partialorder %v8580, 0.0
    %vm8597 = vcmp.ge.f32.partialorder %v8581, 0.0
    %vm8598 = vcmp.ge.f32.partialorder %v8582, 0.0
    %vm8599 = vcmp.ge.f32.partialorder %v8583, 0.0
    %vm8600 = vcmp.ge.f32.partialorder %v8584, 0.0
    %vm8601 = vcmp.ge.f32.partialorder %v8585, 0.0
    %vm8602 = vcmp.ge.f32.partialorder %v8586, 0.0
    %vm8603 = vcmp.ge.f32.partialorder %v8587, 0.0
    %vm8604 = vcmp.ge.f32.partialorder %v8588, 0.0
    %vm8605 = vcmp.ge.f32.partialorder %v8589, 0.0
    %vm8606 = vcmp.ge.f32.partialorder %v8590, 0.0
    %vm8607 = vcmp.ge.f32.partialorder %v8591, 0.0
    %vm8608 = vcmp.ge.f32.partialorder %v8592, 0.0
    %v8609 = vsel %vm8593, 1.0, -1.0
    %v8610 = vsel %vm8594, 1.0, -1.0
    %v8611 = vsel %vm8595, 1.0, -1.0
    %v8612 = vsel %vm8596, 1.0, -1.0
    %v8613 = vsel %vm8597, 1.0, -1.0
    %v8614 = vsel %vm8598, 1.0, -1.0
    %v8615 = vsel %vm8599, 1.0, -1.0
    %v8616 = vsel %vm8600, 1.0, -1.0
    %v8617 = vsel %vm8601, 1.0, -1.0
    %v8618 = vsel %vm8602, 1.0, -1.0
    %v8619 = vsel %vm8603, 1.0, -1.0
    %v8620 = vsel %vm8604, 1.0, -1.0
    %v8621 = vsel %vm8605, 1.0, -1.0
    %v8622 = vsel %vm8606, 1.0, -1.0
    %v8623 = vsel %vm8607, 1.0, -1.0
    %v8624 = vsel %vm8608, 1.0, -1.0
    %v8625 = vand.u32 2147483647, %v8577
    %v8626 = vand.u32 2147483647, %v8578
    %v8627 = vand.u32 2147483647, %v8579
    %v8628 = vand.u32 2147483647, %v8580
    %v8629 = vand.u32 2147483647, %v8581
    %v8630 = vand.u32 2147483647, %v8582
    %v8631 = vand.u32 2147483647, %v8583
    %v8632 = vand.u32 2147483647, %v8584
    %v8633 = vand.u32 2147483647, %v8585
    %v8634 = vand.u32 2147483647, %v8586
    %v8635 = vand.u32 2147483647, %v8587
    %v8636 = vand.u32 2147483647, %v8588
    %v8637 = vand.u32 2147483647, %v8589
    %v8638 = vand.u32 2147483647, %v8590
    %v8639 = vand.u32 2147483647, %v8591
    %v8640 = vand.u32 2147483647, %v8592
    %v8641 = vmul.f32 %v8625, 0.3275911
    %v8642 = vmul.f32 %v8626, 0.3275911
    %v8643 = vmul.f32 %v8627, 0.3275911
    %v8644 = vmul.f32 %v8628, 0.3275911
    %v8645 = vmul.f32 %v8629, 0.3275911
    %v8646 = vmul.f32 %v8630, 0.3275911
    %v8647 = vmul.f32 %v8631, 0.3275911
    %v8648 = vmul.f32 %v8632, 0.3275911
    %v8649 = vmul.f32 %v8633, 0.3275911
    %v8650 = vmul.f32 %v8634, 0.3275911
    %v8651 = vmul.f32 %v8635, 0.3275911
    %v8652 = vmul.f32 %v8636, 0.3275911
    %v8653 = vmul.f32 %v8637, 0.3275911
    %v8654 = vmul.f32 %v8638, 0.3275911
    %v8655 = vmul.f32 %v8639, 0.3275911
    %v8656 = vmul.f32 %v8640, 0.3275911
    %v8657 = vadd.f32 %v8641, 1.0
    %v8658 = vadd.f32 %v8642, 1.0
    %v8659 = vadd.f32 %v8643, 1.0
    %v8660 = vadd.f32 %v8644, 1.0
    %v8661 = vadd.f32 %v8645, 1.0
    %v8662 = vadd.f32 %v8646, 1.0
    %v8663 = vadd.f32 %v8647, 1.0
    %v8664 = vadd.f32 %v8648, 1.0
    %v8665 = vadd.f32 %v8649, 1.0
    %v8666 = vadd.f32 %v8650, 1.0
    %v8667 = vadd.f32 %v8651, 1.0
    %v8668 = vadd.f32 %v8652, 1.0
    %v8669 = vadd.f32 %v8653, 1.0
    %v8670 = vadd.f32 %v8654, 1.0
    %v8671 = vadd.f32 %v8655, 1.0
    %v8672 = vadd.f32 %v8656, 1.0
    %v8673 = vrcp.pop %v8657
    %v8674 = vmul.f32 1.0, %v8673
    %v8675 = vrcp.pop %v8658
    %v8676 = vmul.f32 1.0, %v8675
    %v8677 = vrcp.pop %v8659
    %v8678 = vmul.f32 1.0, %v8677
    %v8679 = vrcp.pop %v8660
    %v8680 = vmul.f32 1.0, %v8679
    %v8681 = vrcp.pop %v8661
    %v8682 = vmul.f32 1.0, %v8681
    %v8683 = vrcp.pop %v8662
    %v8684 = vmul.f32 1.0, %v8683
    %v8685 = vrcp.pop %v8663
    %v8686 = vmul.f32 1.0, %v8685
    %v8687 = vrcp.pop %v8664
    %v8688 = vmul.f32 1.0, %v8687
    %v8689 = vrcp.pop %v8665
    %v8690 = vmul.f32 1.0, %v8689
    %v8691 = vrcp.pop %v8666
    %v8692 = vmul.f32 1.0, %v8691
    %v8693 = vrcp.pop %v8667
    %v8694 = vmul.f32 1.0, %v8693
    %v8695 = vrcp.pop %v8668
    %v8696 = vmul.f32 1.0, %v8695
    %v8697 = vrcp.pop %v8669
    %v8698 = vmul.f32 1.0, %v8697
    %v8699 = vrcp.pop %v8670
    %v8700 = vmul.f32 1.0, %v8699
    %v8701 = vrcp.pop %v8671
    %v8702 = vmul.f32 1.0, %v8701
    %v8703 = vrcp.pop %v8672
    %v8704 = vmul.f32 1.0, %v8703
    %v8705 = vmul.f32 %v8674, 1.0614054
    %v8706 = vmul.f32 %v8676, 1.0614054
    %v8707 = vmul.f32 %v8678, 1.0614054
    %v8708 = vmul.f32 %v8680, 1.0614054
    %v8709 = vmul.f32 %v8682, 1.0614054
    %v8710 = vmul.f32 %v8684, 1.0614054
    %v8711 = vmul.f32 %v8686, 1.0614054
    %v8712 = vmul.f32 %v8688, 1.0614054
    %v8713 = vmul.f32 %v8690, 1.0614054
    %v8714 = vmul.f32 %v8692, 1.0614054
    %v8715 = vmul.f32 %v8694, 1.0614054
    %v8716 = vmul.f32 %v8696, 1.0614054
    %v8717 = vmul.f32 %v8698, 1.0614054
    %v8718 = vmul.f32 %v8700, 1.0614054
    %v8719 = vmul.f32 %v8702, 1.0614054
    %v8720 = vmul.f32 %v8704, 1.0614054
    %v8721 = vadd.f32 %v8705, -1.4531521
    %v8722 = vadd.f32 %v8706, -1.4531521
    %v8723 = vadd.f32 %v8707, -1.4531521
    %v8724 = vadd.f32 %v8708, -1.4531521
    %v8725 = vadd.f32 %v8709, -1.4531521
    %v8726 = vadd.f32 %v8710, -1.4531521
    %v8727 = vadd.f32 %v8711, -1.4531521
    %v8728 = vadd.f32 %v8712, -1.4531521
    %v8729 = vadd.f32 %v8713, -1.4531521
    %v8730 = vadd.f32 %v8714, -1.4531521
    %v8731 = vadd.f32 %v8715, -1.4531521
    %v8732 = vadd.f32 %v8716, -1.4531521
    %v8733 = vadd.f32 %v8717, -1.4531521
    %v8734 = vadd.f32 %v8718, -1.4531521
    %v8735 = vadd.f32 %v8719, -1.4531521
    %v8736 = vadd.f32 %v8720, -1.4531521
    %v8737 = vmul.f32 %v8674, %v8721
    %v8738 = vmul.f32 %v8676, %v8722
    %v8739 = vmul.f32 %v8678, %v8723
    %v8740 = vmul.f32 %v8680, %v8724
    %v8741 = vmul.f32 %v8682, %v8725
    %v8742 = vmul.f32 %v8684, %v8726
    %v8743 = vmul.f32 %v8686, %v8727
    %v8744 = vmul.f32 %v8688, %v8728
    %v8745 = vmul.f32 %v8690, %v8729
    %v8746 = vmul.f32 %v8692, %v8730
    %v8747 = vmul.f32 %v8694, %v8731
    %v8748 = vmul.f32 %v8696, %v8732
    %v8749 = vmul.f32 %v8698, %v8733
    %v8750 = vmul.f32 %v8700, %v8734
    %v8751 = vmul.f32 %v8702, %v8735
    %v8752 = vmul.f32 %v8704, %v8736
    %v8753 = vadd.f32 %v8737, 1.4214138
    %v8754 = vadd.f32 %v8738, 1.4214138
    %v8755 = vadd.f32 %v8739, 1.4214138
    %v8756 = vadd.f32 %v8740, 1.4214138
    %v8757 = vadd.f32 %v8741, 1.4214138
    %v8758 = vadd.f32 %v8742, 1.4214138
    %v8759 = vadd.f32 %v8743, 1.4214138
    %v8760 = vadd.f32 %v8744, 1.4214138
    %v8761 = vadd.f32 %v8745, 1.4214138
    %v8762 = vadd.f32 %v8746, 1.4214138
    %v8763 = vadd.f32 %v8747, 1.4214138
    %v8764 = vadd.f32 %v8748, 1.4214138
    %v8765 = vadd.f32 %v8749, 1.4214138
    %v8766 = vadd.f32 %v8750, 1.4214138
    %v8767 = vadd.f32 %v8751, 1.4214138
    %v8768 = vadd.f32 %v8752, 1.4214138
    %v8769 = vmul.f32 %v8674, %v8753
    %v8770 = vmul.f32 %v8676, %v8754
    %v8771 = vmul.f32 %v8678, %v8755
    %v8772 = vmul.f32 %v8680, %v8756
    %v8773 = vmul.f32 %v8682, %v8757
    %v8774 = vmul.f32 %v8684, %v8758
    %v8775 = vmul.f32 %v8686, %v8759
    %v8776 = vmul.f32 %v8688, %v8760
    %v8777 = vmul.f32 %v8690, %v8761
    %v8778 = vmul.f32 %v8692, %v8762
    %v8779 = vmul.f32 %v8694, %v8763
    %v8780 = vmul.f32 %v8696, %v8764
    %v8781 = vmul.f32 %v8698, %v8765
    %v8782 = vmul.f32 %v8700, %v8766
    %v8783 = vmul.f32 %v8702, %v8767
    %v8784 = vmul.f32 %v8704, %v8768
    %v8785 = vadd.f32 %v8769, -0.28449672
    %v8786 = vadd.f32 %v8770, -0.28449672
    %v8787 = vadd.f32 %v8771, -0.28449672
    %v8788 = vadd.f32 %v8772, -0.28449672
    %v8789 = vadd.f32 %v8773, -0.28449672
    %v8790 = vadd.f32 %v8774, -0.28449672
    %v8791 = vadd.f32 %v8775, -0.28449672
    %v8792 = vadd.f32 %v8776, -0.28449672
    %v8793 = vadd.f32 %v8777, -0.28449672
    %v8794 = vadd.f32 %v8778, -0.28449672
    %v8795 = vadd.f32 %v8779, -0.28449672
    %v8796 = vadd.f32 %v8780, -0.28449672
    %v8797 = vadd.f32 %v8781, -0.28449672
    %v8798 = vadd.f32 %v8782, -0.28449672
    %v8799 = vadd.f32 %v8783, -0.28449672
    %v8800 = vadd.f32 %v8784, -0.28449672
    %v8801 = vmul.f32 %v8674, %v8785
    %v8802 = vmul.f32 %v8676, %v8786
    %v8803 = vmul.f32 %v8678, %v8787
    %v8804 = vmul.f32 %v8680, %v8788
    %v8805 = vmul.f32 %v8682, %v8789
    %v8806 = vmul.f32 %v8684, %v8790
    %v8807 = vmul.f32 %v8686, %v8791
    %v8808 = vmul.f32 %v8688, %v8792
    %v8809 = vmul.f32 %v8690, %v8793
    %v8810 = vmul.f32 %v8692, %v8794
    %v8811 = vmul.f32 %v8694, %v8795
    %v8812 = vmul.f32 %v8696, %v8796
    %v8813 = vmul.f32 %v8698, %v8797
    %v8814 = vmul.f32 %v8700, %v8798
    %v8815 = vmul.f32 %v8702, %v8799
    %v8816 = vmul.f32 %v8704, %v8800
    %v8817 = vadd.f32 %v8801, 0.2548296
    %v8818 = vadd.f32 %v8802, 0.2548296
    %v8819 = vadd.f32 %v8803, 0.2548296
    %v8820 = vadd.f32 %v8804, 0.2548296
    %v8821 = vadd.f32 %v8805, 0.2548296
    %v8822 = vadd.f32 %v8806, 0.2548296
    %v8823 = vadd.f32 %v8807, 0.2548296
    %v8824 = vadd.f32 %v8808, 0.2548296
    %v8825 = vadd.f32 %v8809, 0.2548296
    %v8826 = vadd.f32 %v8810, 0.2548296
    %v8827 = vadd.f32 %v8811, 0.2548296
    %v8828 = vadd.f32 %v8812, 0.2548296
    %v8829 = vadd.f32 %v8813, 0.2548296
    %v8830 = vadd.f32 %v8814, 0.2548296
    %v8831 = vadd.f32 %v8815, 0.2548296
    %v8832 = vadd.f32 %v8816, 0.2548296
    %v8833 = vmul.f32 %v8674, %v8817
    %v8834 = vmul.f32 %v8676, %v8818
    %v8835 = vmul.f32 %v8678, %v8819
    %v8836 = vmul.f32 %v8680, %v8820
    %v8837 = vmul.f32 %v8682, %v8821
    %v8838 = vmul.f32 %v8684, %v8822
    %v8839 = vmul.f32 %v8686, %v8823
    %v8840 = vmul.f32 %v8688, %v8824
    %v8841 = vmul.f32 %v8690, %v8825
    %v8842 = vmul.f32 %v8692, %v8826
    %v8843 = vmul.f32 %v8694, %v8827
    %v8844 = vmul.f32 %v8696, %v8828
    %v8845 = vmul.f32 %v8698, %v8829
    %v8846 = vmul.f32 %v8700, %v8830
    %v8847 = vmul.f32 %v8702, %v8831
    %v8848 = vmul.f32 %v8704, %v8832
    %v8849 = vsub.f32 0.0, %v8625
    %v8850 = vsub.f32 0.0, %v8626
    %v8851 = vsub.f32 0.0, %v8627
    %v8852 = vsub.f32 0.0, %v8628
    %v8853 = vsub.f32 0.0, %v8629
    %v8854 = vsub.f32 0.0, %v8630
    %v8855 = vsub.f32 0.0, %v8631
    %v8856 = vsub.f32 0.0, %v8632
    %v8857 = vsub.f32 0.0, %v8633
    %v8858 = vsub.f32 0.0, %v8634
    %v8859 = vsub.f32 0.0, %v8635
    %v8860 = vsub.f32 0.0, %v8636
    %v8861 = vsub.f32 0.0, %v8637
    %v8862 = vsub.f32 0.0, %v8638
    %v8863 = vsub.f32 0.0, %v8639
    %v8864 = vsub.f32 0.0, %v8640
    %v8865 = vmul.f32 %v8849, %v8625
    %v8866 = vmul.f32 %v8850, %v8626
    %v8867 = vmul.f32 %v8851, %v8627
    %v8868 = vmul.f32 %v8852, %v8628
    %v8869 = vmul.f32 %v8853, %v8629
    %v8870 = vmul.f32 %v8854, %v8630
    %v8871 = vmul.f32 %v8855, %v8631
    %v8872 = vmul.f32 %v8856, %v8632
    %v8873 = vmul.f32 %v8857, %v8633
    %v8874 = vmul.f32 %v8858, %v8634
    %v8875 = vmul.f32 %v8859, %v8635
    %v8876 = vmul.f32 %v8860, %v8636
    %v8877 = vmul.f32 %v8861, %v8637
    %v8878 = vmul.f32 %v8862, %v8638
    %v8879 = vmul.f32 %v8863, %v8639
    %v8880 = vmul.f32 %v8864, %v8640
    %v8881 = vmul.f32 %v8865, 1.442695
    %v8882 = vpow.pop %v8881
    %v8883 = vmul.f32 %v8866, 1.442695
    %v8884 = vpow.pop %v8883
    %v8885 = vmul.f32 %v8867, 1.442695
    %v8886 = vpow.pop %v8885
    %v8887 = vmul.f32 %v8868, 1.442695
    %v8888 = vpow.pop %v8887
    %v8889 = vmul.f32 %v8869, 1.442695
    %v8890 = vpow.pop %v8889
    %v8891 = vmul.f32 %v8870, 1.442695
    %v8892 = vpow.pop %v8891
    %v8893 = vmul.f32 %v8871, 1.442695
    %v8894 = vpow.pop %v8893
    %v8895 = vmul.f32 %v8872, 1.442695
    %v8896 = vpow.pop %v8895
    %v8897 = vmul.f32 %v8873, 1.442695
    %v8898 = vpow.pop %v8897
    %v8899 = vmul.f32 %v8874, 1.442695
    %v8900 = vpow.pop %v8899
    %v8901 = vmul.f32 %v8875, 1.442695
    %v8902 = vpow.pop %v8901
    %v8903 = vmul.f32 %v8876, 1.442695
    %v8904 = vpow.pop %v8903
    %v8905 = vmul.f32 %v8877, 1.442695
    %v8906 = vpow.pop %v8905
    %v8907 = vmul.f32 %v8878, 1.442695
    %v8908 = vpow.pop %v8907
    %v8909 = vmul.f32 %v8879, 1.442695
    %v8910 = vpow.pop %v8909
    %v8911 = vmul.f32 %v8880, 1.442695
    %v8912 = vpow.pop %v8911
    %v8913 = vmul.f32 %v8833, %v8882
    %v8914 = vmul.f32 %v8834, %v8884
    %v8915 = vmul.f32 %v8835, %v8886
    %v8916 = vmul.f32 %v8836, %v8888
    %v8917 = vmul.f32 %v8837, %v8890
    %v8918 = vmul.f32 %v8838, %v8892
    %v8919 = vmul.f32 %v8839, %v8894
    %v8920 = vmul.f32 %v8840, %v8896
    %v8921 = vmul.f32 %v8841, %v8898
    %v8922 = vmul.f32 %v8842, %v8900
    %v8923 = vmul.f32 %v8843, %v8902
    %v8924 = vmul.f32 %v8844, %v8904
    %v8925 = vmul.f32 %v8845, %v8906
    %v8926 = vmul.f32 %v8846, %v8908
    %v8927 = vmul.f32 %v8847, %v8910
    %v8928 = vmul.f32 %v8848, %v8912
    %v8929 = vsub.f32 1.0, %v8913
    %v8930 = vsub.f32 1.0, %v8914
    %v8931 = vsub.f32 1.0, %v8915
    %v8932 = vsub.f32 1.0, %v8916
    %v8933 = vsub.f32 1.0, %v8917
    %v8934 = vsub.f32 1.0, %v8918
    %v8935 = vsub.f32 1.0, %v8919
    %v8936 = vsub.f32 1.0, %v8920
    %v8937 = vsub.f32 1.0, %v8921
    %v8938 = vsub.f32 1.0, %v8922
    %v8939 = vsub.f32 1.0, %v8923
    %v8940 = vsub.f32 1.0, %v8924
    %v8941 = vsub.f32 1.0, %v8925
    %v8942 = vsub.f32 1.0, %v8926
    %v8943 = vsub.f32 1.0, %v8927
    %v8944 = vsub.f32 1.0, %v8928
    %v8945 = vmul.f32 %v8609, %v8929
    %v8946 = vmul.f32 %v8610, %v8930
    %v8947 = vmul.f32 %v8611, %v8931
    %v8948 = vmul.f32 %v8612, %v8932
    %v8949 = vmul.f32 %v8613, %v8933
    %v8950 = vmul.f32 %v8614, %v8934
    %v8951 = vmul.f32 %v8615, %v8935
    %v8952 = vmul.f32 %v8616, %v8936
    %v8953 = vmul.f32 %v8617, %v8937
    %v8954 = vmul.f32 %v8618, %v8938
    %v8955 = vmul.f32 %v8619, %v8939
    %v8956 = vmul.f32 %v8620, %v8940
    %v8957 = vmul.f32 %v8621, %v8941
    %v8958 = vmul.f32 %v8622, %v8942
    %v8959 = vmul.f32 %v8623, %v8943
    %v8960 = vmul.f32 %v8624, %v8944
    %v8961 = vadd.f32 %v8945, 1.0
    %v8962 = vadd.f32 %v8946, 1.0
    %v8963 = vadd.f32 %v8947, 1.0
    %v8964 = vadd.f32 %v8948, 1.0
    %v8965 = vadd.f32 %v8949, 1.0
    %v8966 = vadd.f32 %v8950, 1.0
    %v8967 = vadd.f32 %v8951, 1.0
    %v8968 = vadd.f32 %v8952, 1.0
    %v8969 = vadd.f32 %v8953, 1.0
    %v8970 = vadd.f32 %v8954, 1.0
    %v8971 = vadd.f32 %v8955, 1.0
    %v8972 = vadd.f32 %v8956, 1.0
    %v8973 = vadd.f32 %v8957, 1.0
    %v8974 = vadd.f32 %v8958, 1.0
    %v8975 = vadd.f32 %v8959, 1.0
    %v8976 = vadd.f32 %v8960, 1.0
    %v8977 = vmul.f32 %v8561, %v8961
    %v8978 = vmul.f32 %v8562, %v8962
    %v8979 = vmul.f32 %v8563, %v8963
    %v8980 = vmul.f32 %v8564, %v8964
    %v8981 = vmul.f32 %v8565, %v8965
    %v8982 = vmul.f32 %v8566, %v8966
    %v8983 = vmul.f32 %v8567, %v8967
    %v8984 = vmul.f32 %v8568, %v8968
    %v8985 = vmul.f32 %v8569, %v8969
    %v8986 = vmul.f32 %v8570, %v8970
    %v8987 = vmul.f32 %v8571, %v8971
    %v8988 = vmul.f32 %v8572, %v8972
    %v8989 = vmul.f32 %v8573, %v8973
    %v8990 = vmul.f32 %v8574, %v8974
    %v8991 = vmul.f32 %v8575, %v8975
    %v8992 = vmul.f32 %v8576, %v8976
    %v8993 = vld [vmem:[%s4] sm:$0xff]
    %v8994 = vld [vmem:[%s4 + $0x8] sm:$0xff]
    %v8995 = vld [vmem:[%s4 + $0x10] sm:$0xff]
    %v8996 = vld [vmem:[%s4 + $0x18] sm:$0xff]
    %v8997 = vld [vmem:[%s4 + $0x20] sm:$0xff]
    %v8998 = vld [vmem:[%s4 + $0x28] sm:$0xff]
    %v8999 = vld [vmem:[%s4 + $0x30] sm:$0xff]
    %v9000 = vld [vmem:[%s4 + $0x38] sm:$0xff]
    %v9001 = vld [vmem:[%s4 + $0x40] sm:$0xff]
    %v9002 = vld [vmem:[%s4 + $0x48] sm:$0xff]
    %v9003 = vld [vmem:[%s4 + $0x50] sm:$0xff]
    %v9004 = vld [vmem:[%s4 + $0x58] sm:$0xff]
    %v9005 = vld [vmem:[%s4 + $0x60] sm:$0xff]
    %v9006 = vld [vmem:[%s4 + $0x68] sm:$0xff]
    %v9007 = vld [vmem:[%s4 + $0x70] sm:$0xff]
    %v9008 = vld [vmem:[%s4 + $0x78] sm:$0xff]
    %v9009 = vld [vmem:[%s4 + $0x80] sm:$0xff]
    %v9010 = vld [vmem:[%s4 + $0x88] sm:$0xff]
    %v9011 = vld [vmem:[%s4 + $0x90] sm:$0xff]
    %v9012 = vld [vmem:[%s4 + $0x98] sm:$0xff]
    %v9013 = vld [vmem:[%s4 + $0xa0] sm:$0xff]
    %v9014 = vld [vmem:[%s4 + $0xa8] sm:$0xff]
    %v9015 = vld [vmem:[%s4 + $0xb0] sm:$0xff]
    %v9016 = vld [vmem:[%s4 + $0xb8] sm:$0xff]
    %v9017 = vld [vmem:[%s4 + $0xc0] sm:$0xff]
    %v9018 = vld [vmem:[%s4 + $0xc8] sm:$0xff]
    %v9019 = vld [vmem:[%s4 + $0xd0] sm:$0xff]
    %v9020 = vld [vmem:[%s4 + $0xd8] sm:$0xff]
    %v9021 = vld [vmem:[%s4 + $0xe0] sm:$0xff]
    %v9022 = vld [vmem:[%s4 + $0xe8] sm:$0xff]
    %v9023 = vld [vmem:[%s4 + $0xf0] sm:$0xff]
    %v9024 = vld [vmem:[%s4 + $0xf8] sm:$0xff]
    %v9025 = vld [vmem:[%s4 + $0x100] sm:$0xff]
    %v9026 = vld [vmem:[%s4 + $0x108] sm:$0xff]
    %v9027 = vld [vmem:[%s4 + $0x110] sm:$0xff]
    %v9028 = vld [vmem:[%s4 + $0x118] sm:$0xff]
    %v9029 = vld [vmem:[%s4 + $0x120] sm:$0xff]
    %v9030 = vld [vmem:[%s4 + $0x128] sm:$0xff]
    %v9031 = vld [vmem:[%s4 + $0x130] sm:$0xff]
    %v9032 = vld [vmem:[%s4 + $0x138] sm:$0xff]
    %v9033 = vld [vmem:[%s4 + $0x140] sm:$0xff]
    %v9034 = vld [vmem:[%s4 + $0x148] sm:$0xff]
    %v9035 = vld [vmem:[%s4 + $0x150] sm:$0xff]
    %v9036 = vld [vmem:[%s4 + $0x158] sm:$0xff]
    %v9037 = vld [vmem:[%s4 + $0x160] sm:$0xff]
    %v9038 = vld [vmem:[%s4 + $0x168] sm:$0xff]
    %v9039 = vld [vmem:[%s4 + $0x170] sm:$0xff]
    %v9040 = vld [vmem:[%s4 + $0x178] sm:$0xff]
    %v9041 = vld [vmem:[%s4 + $0x180] sm:$0xff]
    %v9042 = vld [vmem:[%s4 + $0x188] sm:$0xff]
    %v9043 = vld [vmem:[%s4 + $0x190] sm:$0xff]
    %v9044 = vld [vmem:[%s4 + $0x198] sm:$0xff]
    %v9045 = vld [vmem:[%s4 + $0x1a0] sm:$0xff]
    %v9046 = vld [vmem:[%s4 + $0x1a8] sm:$0xff]
    %v9047 = vld [vmem:[%s4 + $0x1b0] sm:$0xff]
    %v9048 = vld [vmem:[%s4 + $0x1b8] sm:$0xff]
    %v9049 = vld [vmem:[%s4 + $0x1c0] sm:$0xff]
    %v9050 = vld [vmem:[%s4 + $0x1c8] sm:$0xff]
    %v9051 = vld [vmem:[%s4 + $0x1d0] sm:$0xff]
    %v9052 = vld [vmem:[%s4 + $0x1d8] sm:$0xff]
    %v9053 = vld [vmem:[%s4 + $0x1e0] sm:$0xff]
    %v9054 = vld [vmem:[%s4 + $0x1e8] sm:$0xff]
    %v9055 = vld [vmem:[%s4 + $0x1f0] sm:$0xff]
    %v9056 = vld [vmem:[%s4 + $0x1f8] sm:$0xff]
    %v9057 = vld [vmem:[%s4 + $0x200] sm:$0xff]
    %v9058 = vld [vmem:[%s4 + $0x208] sm:$0xff]
    %v9059 = vld [vmem:[%s4 + $0x210] sm:$0xff]
    %v9060 = vld [vmem:[%s4 + $0x218] sm:$0xff]
    %v9061 = vld [vmem:[%s4 + $0x220] sm:$0xff]
    %v9062 = vld [vmem:[%s4 + $0x228] sm:$0xff]
    %v9063 = vld [vmem:[%s4 + $0x230] sm:$0xff]
    %v9064 = vld [vmem:[%s4 + $0x238] sm:$0xff]
    %v9065 = vld [vmem:[%s4 + $0x240] sm:$0xff]
    %v9066 = vld [vmem:[%s4 + $0x248] sm:$0xff]
    %v9067 = vld [vmem:[%s4 + $0x250] sm:$0xff]
    %v9068 = vld [vmem:[%s4 + $0x258] sm:$0xff]
    %v9069 = vld [vmem:[%s4 + $0x260] sm:$0xff]
    %v9070 = vld [vmem:[%s4 + $0x268] sm:$0xff]
    %v9071 = vld [vmem:[%s4 + $0x270] sm:$0xff]
    %v9072 = vld [vmem:[%s4 + $0x278] sm:$0xff]
    %v9073 = vld [vmem:[%s4 + $0x280] sm:$0xff]
    %v9074 = vld [vmem:[%s4 + $0x288] sm:$0xff]
    %v9075 = vld [vmem:[%s4 + $0x290] sm:$0xff]
    %v9076 = vld [vmem:[%s4 + $0x298] sm:$0xff]
    %v9077 = vld [vmem:[%s4 + $0x2a0] sm:$0xff]
    %v9078 = vld [vmem:[%s4 + $0x2a8] sm:$0xff]
    %v9079 = vld [vmem:[%s4 + $0x2b0] sm:$0xff]
    %v9080 = vld [vmem:[%s4 + $0x2b8] sm:$0xff]
    %v9081 = vld [vmem:[%s4 + $0x2c0] sm:$0xff]
    %v9082 = vld [vmem:[%s4 + $0x2c8] sm:$0xff]
    %v9083 = vld [vmem:[%s4 + $0x2d0] sm:$0xff]
    %v9084 = vld [vmem:[%s4 + $0x2d8] sm:$0xff]
    %v9085 = vld [vmem:[%s4 + $0x2e0] sm:$0xff]
    %v9086 = vld [vmem:[%s4 + $0x2e8] sm:$0xff]
    %v9087 = vld [vmem:[%s4 + $0x2f0] sm:$0xff]
    %v9088 = vld [vmem:[%s4 + $0x2f8] sm:$0xff]
    %v9089 = vld [vmem:[%s4 + $0x300] sm:$0xff]
    %v9090 = vld [vmem:[%s4 + $0x308] sm:$0xff]
    %v9091 = vld [vmem:[%s4 + $0x310] sm:$0xff]
    %v9092 = vld [vmem:[%s4 + $0x318] sm:$0xff]
    %v9093 = vld [vmem:[%s4 + $0x320] sm:$0xff]
    %v9094 = vld [vmem:[%s4 + $0x328] sm:$0xff]
    %v9095 = vld [vmem:[%s4 + $0x330] sm:$0xff]
    %v9096 = vld [vmem:[%s4 + $0x338] sm:$0xff]
    %v9097 = vld [vmem:[%s4 + $0x340] sm:$0xff]
    %v9098 = vld [vmem:[%s4 + $0x348] sm:$0xff]
    %v9099 = vld [vmem:[%s4 + $0x350] sm:$0xff]
    %v9100 = vld [vmem:[%s4 + $0x358] sm:$0xff]
    %v9101 = vld [vmem:[%s4 + $0x360] sm:$0xff]
    %v9102 = vld [vmem:[%s4 + $0x368] sm:$0xff]
    %v9103 = vld [vmem:[%s4 + $0x370] sm:$0xff]
    %v9104 = vld [vmem:[%s4 + $0x378] sm:$0xff]
    %v9105 = vld [vmem:[%s4 + $0x380] sm:$0xff]
    %v9106 = vld [vmem:[%s4 + $0x388] sm:$0xff]
    %v9107 = vld [vmem:[%s4 + $0x390] sm:$0xff]
    %v9108 = vld [vmem:[%s4 + $0x398] sm:$0xff]
    %v9109 = vld [vmem:[%s4 + $0x3a0] sm:$0xff]
    %v9110 = vld [vmem:[%s4 + $0x3a8] sm:$0xff]
    %v9111 = vld [vmem:[%s4 + $0x3b0] sm:$0xff]
    %v9112 = vld [vmem:[%s4 + $0x3b8] sm:$0xff]
    %v9113 = vld [vmem:[%s4 + $0x3c0] sm:$0xff]
    %v9114 = vld [vmem:[%s4 + $0x3c8] sm:$0xff]
    %v9115 = vld [vmem:[%s4 + $0x3d0] sm:$0xff]
    %v9116 = vld [vmem:[%s4 + $0x3d8] sm:$0xff]
    %v9117 = vld [vmem:[%s4 + $0x3e0] sm:$0xff]
    %v9118 = vld [vmem:[%s4 + $0x3e8] sm:$0xff]
    %v9119 = vld [vmem:[%s4 + $0x3f0] sm:$0xff]
    %v9120 = vld [vmem:[%s4 + $0x3f8] sm:$0xff]
    %v9121 = vld [vmem:[%s4 + $0x400] sm:$0xff]
    %v9122 = vld [vmem:[%s4 + $0x408] sm:$0xff]
    %v9123 = vld [vmem:[%s4 + $0x410] sm:$0xff]
    %v9124 = vld [vmem:[%s4 + $0x418] sm:$0xff]
    %v9125 = vld [vmem:[%s4 + $0x420] sm:$0xff]
    %v9126 = vld [vmem:[%s4 + $0x428] sm:$0xff]
    %v9127 = vld [vmem:[%s4 + $0x430] sm:$0xff]
    %v9128 = vld [vmem:[%s4 + $0x438] sm:$0xff]
    %v9129 = vld [vmem:[%s4 + $0x440] sm:$0xff]
    %v9130 = vld [vmem:[%s4 + $0x448] sm:$0xff]
    %v9131 = vld [vmem:[%s4 + $0x450] sm:$0xff]
    %v9132 = vld [vmem:[%s4 + $0x458] sm:$0xff]
    %v9133 = vld [vmem:[%s4 + $0x460] sm:$0xff]
    %v9134 = vld [vmem:[%s4 + $0x468] sm:$0xff]
    %v9135 = vld [vmem:[%s4 + $0x470] sm:$0xff]
    %v9136 = vld [vmem:[%s4 + $0x478] sm:$0xff]
    %v9137 = vld [vmem:[%s4 + $0x480] sm:$0xff]
    %v9138 = vld [vmem:[%s4 + $0x488] sm:$0xff]
    %v9139 = vld [vmem:[%s4 + $0x490] sm:$0xff]
    %v9140 = vld [vmem:[%s4 + $0x498] sm:$0xff]
    %v9141 = vld [vmem:[%s4 + $0x4a0] sm:$0xff]
    %v9142 = vld [vmem:[%s4 + $0x4a8] sm:$0xff]
    %v9143 = vld [vmem:[%s4 + $0x4b0] sm:$0xff]
    %v9144 = vld [vmem:[%s4 + $0x4b8] sm:$0xff]
    %v9145 = vld [vmem:[%s4 + $0x4c0] sm:$0xff]
    %v9146 = vld [vmem:[%s4 + $0x4c8] sm:$0xff]
    %v9147 = vld [vmem:[%s4 + $0x4d0] sm:$0xff]
    %v9148 = vld [vmem:[%s4 + $0x4d8] sm:$0xff]
    %v9149 = vld [vmem:[%s4 + $0x4e0] sm:$0xff]
    %v9150 = vld [vmem:[%s4 + $0x4e8] sm:$0xff]
    %v9151 = vld [vmem:[%s4 + $0x4f0] sm:$0xff]
    %v9152 = vld [vmem:[%s4 + $0x4f8] sm:$0xff]
    %v9153 = vld [vmem:[%s4 + $0x500] sm:$0xff]
    %v9154 = vld [vmem:[%s4 + $0x508] sm:$0xff]
    %v9155 = vld [vmem:[%s4 + $0x510] sm:$0xff]
    %v9156 = vld [vmem:[%s4 + $0x518] sm:$0xff]
    %v9157 = vld [vmem:[%s4 + $0x520] sm:$0xff]
    %v9158 = vld [vmem:[%s4 + $0x528] sm:$0xff]
    %v9159 = vld [vmem:[%s4 + $0x530] sm:$0xff]
    %v9160 = vld [vmem:[%s4 + $0x538] sm:$0xff]
    %v9161 = vld [vmem:[%s4 + $0x540] sm:$0xff]
    %v9162 = vld [vmem:[%s4 + $0x548] sm:$0xff]
    %v9163 = vld [vmem:[%s4 + $0x550] sm:$0xff]
    %v9164 = vld [vmem:[%s4 + $0x558] sm:$0xff]
    %v9165 = vld [vmem:[%s4 + $0x560] sm:$0xff]
    %v9166 = vld [vmem:[%s4 + $0x568] sm:$0xff]
    %v9167 = vld [vmem:[%s4 + $0x570] sm:$0xff]
    %v9168 = vld [vmem:[%s4 + $0x578] sm:$0xff]
    %v9169 = vld [vmem:[%s4 + $0x580] sm:$0xff]
    %v9170 = vld [vmem:[%s4 + $0x588] sm:$0xff]
    %v9171 = vld [vmem:[%s4 + $0x590] sm:$0xff]
    %v9172 = vld [vmem:[%s4 + $0x598] sm:$0xff]
    %v9173 = vld [vmem:[%s4 + $0x5a0] sm:$0xff]
    %v9174 = vld [vmem:[%s4 + $0x5a8] sm:$0xff]
    %v9175 = vld [vmem:[%s4 + $0x5b0] sm:$0xff]
    %v9176 = vld [vmem:[%s4 + $0x5b8] sm:$0xff]
    %v9177 = vld [vmem:[%s4 + $0x5c0] sm:$0xff]
    %v9178 = vld [vmem:[%s4 + $0x5c8] sm:$0xff]
    %v9179 = vld [vmem:[%s4 + $0x5d0] sm:$0xff]
    %v9180 = vld [vmem:[%s4 + $0x5d8] sm:$0xff]
    %v9181 = vld [vmem:[%s4 + $0x5e0] sm:$0xff]
    %v9182 = vld [vmem:[%s4 + $0x5e8] sm:$0xff]
    %v9183 = vld [vmem:[%s4 + $0x5f0] sm:$0xff]
    %v9184 = vld [vmem:[%s4 + $0x5f8] sm:$0xff]
    %v9185 = vld [vmem:[%s4 + $0x600] sm:$0xff]
    %v9186 = vld [vmem:[%s4 + $0x608] sm:$0xff]
    %v9187 = vld [vmem:[%s4 + $0x610] sm:$0xff]
    %v9188 = vld [vmem:[%s4 + $0x618] sm:$0xff]
    %v9189 = vld [vmem:[%s4 + $0x620] sm:$0xff]
    %v9190 = vld [vmem:[%s4 + $0x628] sm:$0xff]
    %v9191 = vld [vmem:[%s4 + $0x630] sm:$0xff]
    %v9192 = vld [vmem:[%s4 + $0x638] sm:$0xff]
    %v9193 = vld [vmem:[%s4 + $0x640] sm:$0xff]
    %v9194 = vld [vmem:[%s4 + $0x648] sm:$0xff]
    %v9195 = vld [vmem:[%s4 + $0x650] sm:$0xff]
    %v9196 = vld [vmem:[%s4 + $0x658] sm:$0xff]
    %v9197 = vld [vmem:[%s4 + $0x660] sm:$0xff]
    %v9198 = vld [vmem:[%s4 + $0x668] sm:$0xff]
    %v9199 = vld [vmem:[%s4 + $0x670] sm:$0xff]
    %v9200 = vld [vmem:[%s4 + $0x678] sm:$0xff]
    %v9201 = vld [vmem:[%s4 + $0x680] sm:$0xff]
    %v9202 = vld [vmem:[%s4 + $0x688] sm:$0xff]
    %v9203 = vld [vmem:[%s4 + $0x690] sm:$0xff]
    %v9204 = vld [vmem:[%s4 + $0x698] sm:$0xff]
    %v9205 = vld [vmem:[%s4 + $0x6a0] sm:$0xff]
    %v9206 = vld [vmem:[%s4 + $0x6a8] sm:$0xff]
    %v9207 = vld [vmem:[%s4 + $0x6b0] sm:$0xff]
    %v9208 = vld [vmem:[%s4 + $0x6b8] sm:$0xff]
    %v9209 = vld [vmem:[%s4 + $0x6c0] sm:$0xff]
    %v9210 = vld [vmem:[%s4 + $0x6c8] sm:$0xff]
    %v9211 = vld [vmem:[%s4 + $0x6d0] sm:$0xff]
    %v9212 = vld [vmem:[%s4 + $0x6d8] sm:$0xff]
    %v9213 = vld [vmem:[%s4 + $0x6e0] sm:$0xff]
    %v9214 = vld [vmem:[%s4 + $0x6e8] sm:$0xff]
    %v9215 = vld [vmem:[%s4 + $0x6f0] sm:$0xff]
    %v9216 = vld [vmem:[%s4 + $0x6f8] sm:$0xff]
    %v9217 = vld [vmem:[%s4 + $0x700] sm:$0xff]
    %v9218 = vld [vmem:[%s4 + $0x708] sm:$0xff]
    %v9219 = vld [vmem:[%s4 + $0x710] sm:$0xff]
    %v9220 = vld [vmem:[%s4 + $0x718] sm:$0xff]
    %v9221 = vld [vmem:[%s4 + $0x720] sm:$0xff]
    %v9222 = vld [vmem:[%s4 + $0x728] sm:$0xff]
    %v9223 = vld [vmem:[%s4 + $0x730] sm:$0xff]
    %v9224 = vld [vmem:[%s4 + $0x738] sm:$0xff]
    %v9225 = vld [vmem:[%s4 + $0x740] sm:$0xff]
    %v9226 = vld [vmem:[%s4 + $0x748] sm:$0xff]
    %v9227 = vld [vmem:[%s4 + $0x750] sm:$0xff]
    %v9228 = vld [vmem:[%s4 + $0x758] sm:$0xff]
    %v9229 = vld [vmem:[%s4 + $0x760] sm:$0xff]
    %v9230 = vld [vmem:[%s4 + $0x768] sm:$0xff]
    %v9231 = vld [vmem:[%s4 + $0x770] sm:$0xff]
    %v9232 = vld [vmem:[%s4 + $0x778] sm:$0xff]
    %v9233 = vld [vmem:[%s4 + $0x780] sm:$0xff]
    %v9234 = vld [vmem:[%s4 + $0x788] sm:$0xff]
    %v9235 = vld [vmem:[%s4 + $0x790] sm:$0xff]
    %v9236 = vld [vmem:[%s4 + $0x798] sm:$0xff]
    %v9237 = vld [vmem:[%s4 + $0x7a0] sm:$0xff]
    %v9238 = vld [vmem:[%s4 + $0x7a8] sm:$0xff]
    %v9239 = vld [vmem:[%s4 + $0x7b0] sm:$0xff]
    %v9240 = vld [vmem:[%s4 + $0x7b8] sm:$0xff]
    %v9241 = vld [vmem:[%s4 + $0x7c0] sm:$0xff]
    %v9242 = vld [vmem:[%s4 + $0x7c8] sm:$0xff]
    %v9243 = vld [vmem:[%s4 + $0x7d0] sm:$0xff]
    %v9244 = vld [vmem:[%s4 + $0x7d8] sm:$0xff]
    %v9245 = vld [vmem:[%s4 + $0x7e0] sm:$0xff]
    %v9246 = vld [vmem:[%s4 + $0x7e8] sm:$0xff]
    %v9247 = vld [vmem:[%s4 + $0x7f0] sm:$0xff]
    %v9248 = vld [vmem:[%s4 + $0x7f8] sm:$0xff]
    %v9249 = vld [vmem:[#allocation8 + $0x4] ss:$0 sm:$0xff]
    %9250 = vmatprep.subr.mxu0 0.0
    %9251 = vmatpush1.msra.mxu0 %v9008
    %9252 = vmatprep.subr.mxu0 0.0
    %9253 = vmatpush1.msra.mxu0 %v9007
    %9254 = vmatprep.subr.mxu0 0.0
    %9255 = vmatpush1.msra.mxu0 %v9006
    %9256 = vmatprep.subr.mxu0 0.0
    %9257 = vmatpush1.msra.mxu0 %v9005
    %9258 = vmatprep.subr.mxu0 0.0
    %9259 = vmatpush1.msra.mxu0 %v9004
    %9260 = vmatprep.subr.mxu0 0.0
    %9261 = vmatpush1.msra.mxu0 %v9003
    %9262 = vmatprep.subr.mxu0 0.0
    %9263 = vmatpush1.msra.mxu0 %v9002
    %9264 = vmatprep.subr.mxu0 0.0
    %9265 = vmatpush1.msra.mxu0 %v9001
    %9266 = vmatprep.subr.mxu0 0.0
    %9267 = vmatpush1.msra.mxu0 %v9000
    %9268 = vmatprep.subr.mxu0 0.0
    %9269 = vmatpush1.msra.mxu0 %v8999
    %9270 = vmatprep.subr.mxu0 0.0
    %9271 = vmatpush1.msra.mxu0 %v8998
    %9272 = vmatprep.subr.mxu0 0.0
    %9273 = vmatpush1.msra.mxu0 %v8997
    %9274 = vmatprep.subr.mxu0 0.0
    %9275 = vmatpush1.msra.mxu0 %v8996
    %9276 = vmatprep.subr.mxu0 0.0
    %9277 = vmatpush1.msra.mxu0 %v8995
    %9278 = vmatprep.subr.mxu0 0.0
    %9279 = vmatpush1.msra.mxu0 %v8994
    %9280 = vmatprep.subr.mxu0 0.0
    %9281 = vmatpush1.msra.mxu0 %v8993
    %9282 = vmatprep.subr.mxu0 0.0
    %9283 = vmatpush2.msra.mxu0 %v9024
    %9284 = vmatprep.subr.mxu0 0.0
    %9285 = vmatpush2.msra.mxu0 %v9023
    %9286 = vmatprep.subr.mxu0 0.0
    %9287 = vmatpush2.msra.mxu0 %v9022
    %9288 = vmatprep.subr.mxu0 0.0
    %9289 = vmatpush2.msra.mxu0 %v9021
    %9290 = vmatprep.subr.mxu0 0.0
    %9291 = vmatpush2.msra.mxu0 %v9020
    %9292 = vmatprep.subr.mxu0 0.0
    %9293 = vmatpush2.msra.mxu0 %v9019
    %9294 = vmatprep.subr.mxu0 0.0
    %9295 = vmatpush2.msra.mxu0 %v9018
    %9296 = vmatprep.subr.mxu0 0.0
    %9297 = vmatpush2.msra.mxu0 %v9017
    %9298 = vmatprep.subr.mxu0 0.0
    %9299 = vmatpush2.msra.mxu0 %v9016
    %9300 = vmatprep.subr.mxu0 0.0
    %9301 = vmatpush2.msra.mxu0 %v9015
    %9302 = vmatprep.subr.mxu0 0.0
    %9303 = vmatpush2.msra.mxu0 %v9014
    %9304 = vmatprep.subr.mxu0 0.0
    %9305 = vmatpush2.msra.mxu0 %v9013
    %9306 = vmatprep.subr.mxu0 0.0
    %9307 = vmatpush2.msra.mxu0 %v9012
    %9308 = vmatprep.subr.mxu0 0.0
    %9309 = vmatpush2.msra.mxu0 %v9011
    %9310 = vmatprep.subr.mxu0 0.0
    %9311 = vmatpush2.msra.mxu0 %v9010
    %9312 = vmatprep.subr.mxu0 0.0
    %9313 = vmatpush2.msra.mxu0 %v9009
    %9314 = vmatprep.mubr.f32.mxu0 %v8978
    %9315 = vmatmul.mubr.f32.gmra.mxu0 %v8977
    %v9316 = vpop.f32.mrf.mxu0
    %v9317 = vadd.f32 %v9249, %v9316
    %v9318 = vpop.f32.mrf.mxu0
    %9319 = vdwg.mxu0
    %9320 = vmatprep.subr.mxu0 0.0
    %9321 = vmatpush1.msra.mxu0 %v9040
    %9322 = vmatprep.subr.mxu0 0.0
    %9323 = vmatpush1.msra.mxu0 %v9039
    %9324 = vmatprep.subr.mxu0 0.0
    %9325 = vmatpush1.msra.mxu0 %v9038
    %9326 = vmatprep.subr.mxu0 0.0
    %9327 = vmatpush1.msra.mxu0 %v9037
    %9328 = vmatprep.subr.mxu0 0.0
    %9329 = vmatpush1.msra.mxu0 %v9036
    %9330 = vmatprep.subr.mxu0 0.0
    %9331 = vmatpush1.msra.mxu0 %v9035
    %9332 = vmatprep.subr.mxu0 0.0
    %9333 = vmatpush1.msra.mxu0 %v9034
    %9334 = vmatprep.subr.mxu0 0.0
    %9335 = vmatpush1.msra.mxu0 %v9033
    %9336 = vmatprep.subr.mxu0 0.0
    %9337 = vmatpush1.msra.mxu0 %v9032
    %9338 = vmatprep.subr.mxu0 0.0
    %9339 = vmatpush1.msra.mxu0 %v9031
    %9340 = vmatprep.subr.mxu0 0.0
    %9341 = vmatpush1.msra.mxu0 %v9030
    %9342 = vmatprep.subr.mxu0 0.0
    %9343 = vmatpush1.msra.mxu0 %v9029
    %9344 = vmatprep.subr.mxu0 0.0
    %9345 = vmatpush1.msra.mxu0 %v9028
    %9346 = vmatprep.subr.mxu0 0.0
    %9347 = vmatpush1.msra.mxu0 %v9027
    %9348 = vmatprep.subr.mxu0 0.0
    %9349 = vmatpush1.msra.mxu0 %v9026
    %9350 = vmatprep.subr.mxu0 0.0
    %9351 = vmatpush1.msra.mxu0 %v9025
    %9352 = vmatprep.subr.mxu0 0.0
    %9353 = vmatpush2.msra.mxu0 %v9056
    %9354 = vmatprep.subr.mxu0 0.0
    %9355 = vmatpush2.msra.mxu0 %v9055
    %9356 = vmatprep.subr.mxu0 0.0
    %9357 = vmatpush2.msra.mxu0 %v9054
    %9358 = vmatprep.subr.mxu0 0.0
    %9359 = vmatpush2.msra.mxu0 %v9053
    %9360 = vmatprep.subr.mxu0 0.0
    %9361 = vmatpush2.msra.mxu0 %v9052
    %9362 = vmatprep.subr.mxu0 0.0
    %9363 = vmatpush2.msra.mxu0 %v9051
    %9364 = vmatprep.subr.mxu0 0.0
    %9365 = vmatpush2.msra.mxu0 %v9050
    %9366 = vmatprep.subr.mxu0 0.0
    %9367 = vmatpush2.msra.mxu0 %v9049
    %9368 = vmatprep.subr.mxu0 0.0
    %9369 = vmatpush2.msra.mxu0 %v9048
    %9370 = vmatprep.subr.mxu0 0.0
    %9371 = vmatpush2.msra.mxu0 %v9047
    %9372 = vmatprep.subr.mxu0 0.0
    %9373 = vmatpush2.msra.mxu0 %v9046
    %9374 = vmatprep.subr.mxu0 0.0
    %9375 = vmatpush2.msra.mxu0 %v9045
    %9376 = vmatprep.subr.mxu0 0.0
    %9377 = vmatpush2.msra.mxu0 %v9044
    %9378 = vmatprep.subr.mxu0 0.0
    %9379 = vmatpush2.msra.mxu0 %v9043
    %9380 = vmatprep.subr.mxu0 0.0
    %9381 = vmatpush2.msra.mxu0 %v9042
    %9382 = vmatprep.subr.mxu0 0.0
    %9383 = vmatpush2.msra.mxu0 %v9041
    %9384 = vmatprep.mubr.f32.mxu0 %v8980
    %9385 = vmatmul.mubr.f32.gmra.mxu0 %v8979
    %v9386 = vpop.f32.mrf.mxu0
    %v9387 = vadd.f32 %v9317, %v9386
    %v9388 = vpop.f32.mrf.mxu0
    %9389 = vdwg.mxu0
    %9390 = vmatprep.subr.mxu0 0.0
    %9391 = vmatpush1.msra.mxu0 %v9072
    %9392 = vmatprep.subr.mxu0 0.0
    %9393 = vmatpush1.msra.mxu0 %v9071
    %9394 = vmatprep.subr.mxu0 0.0
    %9395 = vmatpush1.msra.mxu0 %v9070
    %9396 = vmatprep.subr.mxu0 0.0
    %9397 = vmatpush1.msra.mxu0 %v9069
    %9398 = vmatprep.subr.mxu0 0.0
    %9399 = vmatpush1.msra.mxu0 %v9068
    %9400 = vmatprep.subr.mxu0 0.0
    %9401 = vmatpush1.msra.mxu0 %v9067
    %9402 = vmatprep.subr.mxu0 0.0
    %9403 = vmatpush1.msra.mxu0 %v9066
    %9404 = vmatprep.subr.mxu0 0.0
    %9405 = vmatpush1.msra.mxu0 %v9065
    %9406 = vmatprep.subr.mxu0 0.0
    %9407 = vmatpush1.msra.mxu0 %v9064
    %9408 = vmatprep.subr.mxu0 0.0
    %9409 = vmatpush1.msra.mxu0 %v9063
    %9410 = vmatprep.subr.mxu0 0.0
    %9411 = vmatpush1.msra.mxu0 %v9062
    %9412 = vmatprep.subr.mxu0 0.0
    %9413 = vmatpush1.msra.mxu0 %v9061
    %9414 = vmatprep.subr.mxu0 0.0
    %9415 = vmatpush1.msra.mxu0 %v9060
    %9416 = vmatprep.subr.mxu0 0.0
    %9417 = vmatpush1.msra.mxu0 %v9059
    %9418 = vmatprep.subr.mxu0 0.0
    %9419 = vmatpush1.msra.mxu0 %v9058
    %9420 = vmatprep.subr.mxu0 0.0
    %9421 = vmatpush1.msra.mxu0 %v9057
    %9422 = vmatprep.subr.mxu0 0.0
    %9423 = vmatpush2.msra.mxu0 %v9088
    %9424 = vmatprep.subr.mxu0 0.0
    %9425 = vmatpush2.msra.mxu0 %v9087
    %9426 = vmatprep.subr.mxu0 0.0
    %9427 = vmatpush2.msra.mxu0 %v9086
    %9428 = vmatprep.subr.mxu0 0.0
    %9429 = vmatpush2.msra.mxu0 %v9085
    %9430 = vmatprep.subr.mxu0 0.0
    %9431 = vmatpush2.msra.mxu0 %v9084
    %9432 = vmatprep.subr.mxu0 0.0
    %9433 = vmatpush2.msra.mxu0 %v9083
    %9434 = vmatprep.subr.mxu0 0.0
    %9435 = vmatpush2.msra.mxu0 %v9082
    %9436 = vmatprep.subr.mxu0 0.0
    %9437 = vmatpush2.msra.mxu0 %v9081
    %9438 = vmatprep.subr.mxu0 0.0
    %9439 = vmatpush2.msra.mxu0 %v9080
    %9440 = vmatprep.subr.mxu0 0.0
    %9441 = vmatpush2.msra.mxu0 %v9079
    %9442 = vmatprep.subr.mxu0 0.0
    %9443 = vmatpush2.msra.mxu0 %v9078
    %9444 = vmatprep.subr.mxu0 0.0
    %9445 = vmatpush2.msra.mxu0 %v9077
    %9446 = vmatprep.subr.mxu0 0.0
    %9447 = vmatpush2.msra.mxu0 %v9076
    %9448 = vmatprep.subr.mxu0 0.0
    %9449 = vmatpush2.msra.mxu0 %v9075
    %9450 = vmatprep.subr.mxu0 0.0
    %9451 = vmatpush2.msra.mxu0 %v9074
    %9452 = vmatprep.subr.mxu0 0.0
    %9453 = vmatpush2.msra.mxu0 %v9073
    %9454 = vmatprep.mubr.f32.mxu0 %v8982
    %9455 = vmatmul.mubr.f32.gmra.mxu0 %v8981
    %v9456 = vpop.f32.mrf.mxu0
    %v9457 = vadd.f32 %v9387, %v9456
    %v9458 = vpop.f32.mrf.mxu0
    %9459 = vdwg.mxu0
    %9460 = vmatprep.subr.mxu0 0.0
    %9461 = vmatpush1.msra.mxu0 %v9104
    %9462 = vmatprep.subr.mxu0 0.0
    %9463 = vmatpush1.msra.mxu0 %v9103
    %9464 = vmatprep.subr.mxu0 0.0
    %9465 = vmatpush1.msra.mxu0 %v9102
    %9466 = vmatprep.subr.mxu0 0.0
    %9467 = vmatpush1.msra.mxu0 %v9101
    %9468 = vmatprep.subr.mxu0 0.0
    %9469 = vmatpush1.msra.mxu0 %v9100
    %9470 = vmatprep.subr.mxu0 0.0
    %9471 = vmatpush1.msra.mxu0 %v9099
    %9472 = vmatprep.subr.mxu0 0.0
    %9473 = vmatpush1.msra.mxu0 %v9098
    %9474 = vmatprep.subr.mxu0 0.0
    %9475 = vmatpush1.msra.mxu0 %v9097
    %9476 = vmatprep.subr.mxu0 0.0
    %9477 = vmatpush1.msra.mxu0 %v9096
    %9478 = vmatprep.subr.mxu0 0.0
    %9479 = vmatpush1.msra.mxu0 %v9095
    %9480 = vmatprep.subr.mxu0 0.0
    %9481 = vmatpush1.msra.mxu0 %v9094
    %9482 = vmatprep.subr.mxu0 0.0
    %9483 = vmatpush1.msra.mxu0 %v9093
    %9484 = vmatprep.subr.mxu0 0.0
    %9485 = vmatpush1.msra.mxu0 %v9092
    %9486 = vmatprep.subr.mxu0 0.0
    %9487 = vmatpush1.msra.mxu0 %v9091
    %9488 = vmatprep.subr.mxu0 0.0
    %9489 = vmatpush1.msra.mxu0 %v9090
    %9490 = vmatprep.subr.mxu0 0.0
    %9491 = vmatpush1.msra.mxu0 %v9089
    %9492 = vmatprep.subr.mxu0 0.0
    %9493 = vmatpush2.msra.mxu0 %v9120
    %9494 = vmatprep.subr.mxu0 0.0
    %9495 = vmatpush2.msra.mxu0 %v9119
    %9496 = vmatprep.subr.mxu0 0.0
    %9497 = vmatpush2.msra.mxu0 %v9118
    %9498 = vmatprep.subr.mxu0 0.0
    %9499 = vmatpush2.msra.mxu0 %v9117
    %9500 = vmatprep.subr.mxu0 0.0
    %9501 = vmatpush2.msra.mxu0 %v9116
    %9502 = vmatprep.subr.mxu0 0.0
    %9503 = vmatpush2.msra.mxu0 %v9115
    %9504 = vmatprep.subr.mxu0 0.0
    %9505 = vmatpush2.msra.mxu0 %v9114
    %9506 = vmatprep.subr.mxu0 0.0
    %9507 = vmatpush2.msra.mxu0 %v9113
    %9508 = vmatprep.subr.mxu0 0.0
    %9509 = vmatpush2.msra.mxu0 %v9112
    %9510 = vmatprep.subr.mxu0 0.0
    %9511 = vmatpush2.msra.mxu0 %v9111
    %9512 = vmatprep.subr.mxu0 0.0
    %9513 = vmatpush2.msra.mxu0 %v9110
    %9514 = vmatprep.subr.mxu0 0.0
    %9515 = vmatpush2.msra.mxu0 %v9109
    %9516 = vmatprep.subr.mxu0 0.0
    %9517 = vmatpush2.msra.mxu0 %v9108
    %9518 = vmatprep.subr.mxu0 0.0
    %9519 = vmatpush2.msra.mxu0 %v9107
    %9520 = vmatprep.subr.mxu0 0.0
    %9521 = vmatpush2.msra.mxu0 %v9106
    %9522 = vmatprep.subr.mxu0 0.0
    %9523 = vmatpush2.msra.mxu0 %v9105
    %9524 = vmatprep.mubr.f32.mxu0 %v8984
    %9525 = vmatmul.mubr.f32.gmra.mxu0 %v8983
    %v9526 = vpop.f32.mrf.mxu0
    %v9527 = vadd.f32 %v9457, %v9526
    %v9528 = vpop.f32.mrf.mxu0
    %9529 = vdwg.mxu0
    %9530 = vmatprep.subr.mxu0 0.0
    %9531 = vmatpush1.msra.mxu0 %v9136
    %9532 = vmatprep.subr.mxu0 0.0
    %9533 = vmatpush1.msra.mxu0 %v9135
    %9534 = vmatprep.subr.mxu0 0.0
    %9535 = vmatpush1.msra.mxu0 %v9134
    %9536 = vmatprep.subr.mxu0 0.0
    %9537 = vmatpush1.msra.mxu0 %v9133
    %9538 = vmatprep.subr.mxu0 0.0
    %9539 = vmatpush1.msra.mxu0 %v9132
    %9540 = vmatprep.subr.mxu0 0.0
    %9541 = vmatpush1.msra.mxu0 %v9131
    %9542 = vmatprep.subr.mxu0 0.0
    %9543 = vmatpush1.msra.mxu0 %v9130
    %9544 = vmatprep.subr.mxu0 0.0
    %9545 = vmatpush1.msra.mxu0 %v9129
    %9546 = vmatprep.subr.mxu0 0.0
    %9547 = vmatpush1.msra.mxu0 %v9128
    %9548 = vmatprep.subr.mxu0 0.0
    %9549 = vmatpush1.msra.mxu0 %v9127
    %9550 = vmatprep.subr.mxu0 0.0
    %9551 = vmatpush1.msra.mxu0 %v9126
    %9552 = vmatprep.subr.mxu0 0.0
    %9553 = vmatpush1.msra.mxu0 %v9125
    %9554 = vmatprep.subr.mxu0 0.0
    %9555 = vmatpush1.msra.mxu0 %v9124
    %9556 = vmatprep.subr.mxu0 0.0
    %9557 = vmatpush1.msra.mxu0 %v9123
    %9558 = vmatprep.subr.mxu0 0.0
    %9559 = vmatpush1.msra.mxu0 %v9122
    %9560 = vmatprep.subr.mxu0 0.0
    %9561 = vmatpush1.msra.mxu0 %v9121
    %9562 = vmatprep.subr.mxu0 0.0
    %9563 = vmatpush2.msra.mxu0 %v9152
    %9564 = vmatprep.subr.mxu0 0.0
    %9565 = vmatpush2.msra.mxu0 %v9151
    %9566 = vmatprep.subr.mxu0 0.0
    %9567 = vmatpush2.msra.mxu0 %v9150
    %9568 = vmatprep.subr.mxu0 0.0
    %9569 = vmatpush2.msra.mxu0 %v9149
    %9570 = vmatprep.subr.mxu0 0.0
    %9571 = vmatpush2.msra.mxu0 %v9148
    %9572 = vmatprep.subr.mxu0 0.0
    %9573 = vmatpush2.msra.mxu0 %v9147
    %9574 = vmatprep.subr.mxu0 0.0
    %9575 = vmatpush2.msra.mxu0 %v9146
    %9576 = vmatprep.subr.mxu0 0.0
    %9577 = vmatpush2.msra.mxu0 %v9145
    %9578 = vmatprep.subr.mxu0 0.0
    %9579 = vmatpush2.msra.mxu0 %v9144
    %9580 = vmatprep.subr.mxu0 0.0
    %9581 = vmatpush2.msra.mxu0 %v9143
    %9582 = vmatprep.subr.mxu0 0.0
    %9583 = vmatpush2.msra.mxu0 %v9142
    %9584 = vmatprep.subr.mxu0 0.0
    %9585 = vmatpush2.msra.mxu0 %v9141
    %9586 = vmatprep.subr.mxu0 0.0
    %9587 = vmatpush2.msra.mxu0 %v9140
    %9588 = vmatprep.subr.mxu0 0.0
    %9589 = vmatpush2.msra.mxu0 %v9139
    %9590 = vmatprep.subr.mxu0 0.0
    %9591 = vmatpush2.msra.mxu0 %v9138
    %9592 = vmatprep.subr.mxu0 0.0
    %9593 = vmatpush2.msra.mxu0 %v9137
    %9594 = vmatprep.mubr.f32.mxu0 %v8986
    %9595 = vmatmul.mubr.f32.gmra.mxu0 %v8985
    %v9596 = vpop.f32.mrf.mxu0
    %v9597 = vadd.f32 %v9527, %v9596
    %v9598 = vpop.f32.mrf.mxu0
    %9599 = vdwg.mxu0
    %9600 = vmatprep.subr.mxu0 0.0
    %9601 = vmatpush1.msra.mxu0 %v9168
    %9602 = vmatprep.subr.mxu0 0.0
    %9603 = vmatpush1.msra.mxu0 %v9167
    %9604 = vmatprep.subr.mxu0 0.0
    %9605 = vmatpush1.msra.mxu0 %v9166
    %9606 = vmatprep.subr.mxu0 0.0
    %9607 = vmatpush1.msra.mxu0 %v9165
    %9608 = vmatprep.subr.mxu0 0.0
    %9609 = vmatpush1.msra.mxu0 %v9164
    %9610 = vmatprep.subr.mxu0 0.0
    %9611 = vmatpush1.msra.mxu0 %v9163
    %9612 = vmatprep.subr.mxu0 0.0
    %9613 = vmatpush1.msra.mxu0 %v9162
    %9614 = vmatprep.subr.mxu0 0.0
    %9615 = vmatpush1.msra.mxu0 %v9161
    %9616 = vmatprep.subr.mxu0 0.0
    %9617 = vmatpush1.msra.mxu0 %v9160
    %9618 = vmatprep.subr.mxu0 0.0
    %9619 = vmatpush1.msra.mxu0 %v9159
    %9620 = vmatprep.subr.mxu0 0.0
    %9621 = vmatpush1.msra.mxu0 %v9158
    %9622 = vmatprep.subr.mxu0 0.0
    %9623 = vmatpush1.msra.mxu0 %v9157
    %9624 = vmatprep.subr.mxu0 0.0
    %9625 = vmatpush1.msra.mxu0 %v9156
    %9626 = vmatprep.subr.mxu0 0.0
    %9627 = vmatpush1.msra.mxu0 %v9155
    %9628 = vmatprep.subr.mxu0 0.0
    %9629 = vmatpush1.msra.mxu0 %v9154
    %9630 = vmatprep.subr.mxu0 0.0
    %9631 = vmatpush1.msra.mxu0 %v9153
    %9632 = vmatprep.subr.mxu0 0.0
    %9633 = vmatpush2.msra.mxu0 %v9184
    %9634 = vmatprep.subr.mxu0 0.0
    %9635 = vmatpush2.msra.mxu0 %v9183
    %9636 = vmatprep.subr.mxu0 0.0
    %9637 = vmatpush2.msra.mxu0 %v9182
    %9638 = vmatprep.subr.mxu0 0.0
    %9639 = vmatpush2.msra.mxu0 %v9181
    %9640 = vmatprep.subr.mxu0 0.0
    %9641 = vmatpush2.msra.mxu0 %v9180
    %9642 = vmatprep.subr.mxu0 0.0
    %9643 = vmatpush2.msra.mxu0 %v9179
    %9644 = vmatprep.subr.mxu0 0.0
    %9645 = vmatpush2.msra.mxu0 %v9178
    %9646 = vmatprep.subr.mxu0 0.0
    %9647 = vmatpush2.msra.mxu0 %v9177
    %9648 = vmatprep.subr.mxu0 0.0
    %9649 = vmatpush2.msra.mxu0 %v9176
    %9650 = vmatprep.subr.mxu0 0.0
    %9651 = vmatpush2.msra.mxu0 %v9175
    %9652 = vmatprep.subr.mxu0 0.0
    %9653 = vmatpush2.msra.mxu0 %v9174
    %9654 = vmatprep.subr.mxu0 0.0
    %9655 = vmatpush2.msra.mxu0 %v9173
    %9656 = vmatprep.subr.mxu0 0.0
    %9657 = vmatpush2.msra.mxu0 %v9172
    %9658 = vmatprep.subr.mxu0 0.0
    %9659 = vmatpush2.msra.mxu0 %v9171
    %9660 = vmatprep.subr.mxu0 0.0
    %9661 = vmatpush2.msra.mxu0 %v9170
    %9662 = vmatprep.subr.mxu0 0.0
    %9663 = vmatpush2.msra.mxu0 %v9169
    %9664 = vmatprep.mubr.f32.mxu0 %v8988
    %9665 = vmatmul.mubr.f32.gmra.mxu0 %v8987
    %v9666 = vpop.f32.mrf.mxu0
    %v9667 = vadd.f32 %v9597, %v9666
    %v9668 = vpop.f32.mrf.mxu0
    %9669 = vdwg.mxu0
    %9670 = vmatprep.subr.mxu0 0.0
    %9671 = vmatpush1.msra.mxu0 %v9200
    %9672 = vmatprep.subr.mxu0 0.0
    %9673 = vmatpush1.msra.mxu0 %v9199
    %9674 = vmatprep.subr.mxu0 0.0
    %9675 = vmatpush1.msra.mxu0 %v9198
    %9676 = vmatprep.subr.mxu0 0.0
    %9677 = vmatpush1.msra.mxu0 %v9197
    %9678 = vmatprep.subr.mxu0 0.0
    %9679 = vmatpush1.msra.mxu0 %v9196
    %9680 = vmatprep.subr.mxu0 0.0
    %9681 = vmatpush1.msra.mxu0 %v9195
    %9682 = vmatprep.subr.mxu0 0.0
    %9683 = vmatpush1.msra.mxu0 %v9194
    %9684 = vmatprep.subr.mxu0 0.0
    %9685 = vmatpush1.msra.mxu0 %v9193
    %9686 = vmatprep.subr.mxu0 0.0
    %9687 = vmatpush1.msra.mxu0 %v9192
    %9688 = vmatprep.subr.mxu0 0.0
    %9689 = vmatpush1.msra.mxu0 %v9191
    %9690 = vmatprep.subr.mxu0 0.0
    %9691 = vmatpush1.msra.mxu0 %v9190
    %9692 = vmatprep.subr.mxu0 0.0
    %9693 = vmatpush1.msra.mxu0 %v9189
    %9694 = vmatprep.subr.mxu0 0.0
    %9695 = vmatpush1.msra.mxu0 %v9188
    %9696 = vmatprep.subr.mxu0 0.0
    %9697 = vmatpush1.msra.mxu0 %v9187
    %9698 = vmatprep.subr.mxu0 0.0
    %9699 = vmatpush1.msra.mxu0 %v9186
    %9700 = vmatprep.subr.mxu0 0.0
    %9701 = vmatpush1.msra.mxu0 %v9185
    %9702 = vmatprep.subr.mxu0 0.0
    %9703 = vmatpush2.msra.mxu0 %v9216
    %9704 = vmatprep.subr.mxu0 0.0
    %9705 = vmatpush2.msra.mxu0 %v9215
    %9706 = vmatprep.subr.mxu0 0.0
    %9707 = vmatpush2.msra.mxu0 %v9214
    %9708 = vmatprep.subr.mxu0 0.0
    %9709 = vmatpush2.msra.mxu0 %v9213
    %9710 = vmatprep.subr.mxu0 0.0
    %9711 = vmatpush2.msra.mxu0 %v9212
    %9712 = vmatprep.subr.mxu0 0.0
    %9713 = vmatpush2.msra.mxu0 %v9211
    %9714 = vmatprep.subr.mxu0 0.0
    %9715 = vmatpush2.msra.mxu0 %v9210
    %9716 = vmatprep.subr.mxu0 0.0
    %9717 = vmatpush2.msra.mxu0 %v9209
    %9718 = vmatprep.subr.mxu0 0.0
    %9719 = vmatpush2.msra.mxu0 %v9208
    %9720 = vmatprep.subr.mxu0 0.0
    %9721 = vmatpush2.msra.mxu0 %v9207
    %9722 = vmatprep.subr.mxu0 0.0
    %9723 = vmatpush2.msra.mxu0 %v9206
    %9724 = vmatprep.subr.mxu0 0.0
    %9725 = vmatpush2.msra.mxu0 %v9205
    %9726 = vmatprep.subr.mxu0 0.0
    %9727 = vmatpush2.msra.mxu0 %v9204
    %9728 = vmatprep.subr.mxu0 0.0
    %9729 = vmatpush2.msra.mxu0 %v9203
    %9730 = vmatprep.subr.mxu0 0.0
    %9731 = vmatpush2.msra.mxu0 %v9202
    %9732 = vmatprep.subr.mxu0 0.0
    %9733 = vmatpush2.msra.mxu0 %v9201
    %9734 = vmatprep.mubr.f32.mxu0 %v8990
    %9735 = vmatmul.mubr.f32.gmra.mxu0 %v8989
    %v9736 = vpop.f32.mrf.mxu0
    %v9737 = vadd.f32 %v9667, %v9736
    %v9738 = vpop.f32.mrf.mxu0
    %9739 = vdwg.mxu0
    %9740 = vmatprep.subr.mxu0 0.0
    %9741 = vmatpush1.msra.mxu0 %v9232
    %9742 = vmatprep.subr.mxu0 0.0
    %9743 = vmatpush1.msra.mxu0 %v9231
    %9744 = vmatprep.subr.mxu0 0.0
    %9745 = vmatpush1.msra.mxu0 %v9230
    %9746 = vmatprep.subr.mxu0 0.0
    %9747 = vmatpush1.msra.mxu0 %v9229
    %9748 = vmatprep.subr.mxu0 0.0
    %9749 = vmatpush1.msra.mxu0 %v9228
    %9750 = vmatprep.subr.mxu0 0.0
    %9751 = vmatpush1.msra.mxu0 %v9227
    %9752 = vmatprep.subr.mxu0 0.0
    %9753 = vmatpush1.msra.mxu0 %v9226
    %9754 = vmatprep.subr.mxu0 0.0
    %9755 = vmatpush1.msra.mxu0 %v9225
    %9756 = vmatprep.subr.mxu0 0.0
    %9757 = vmatpush1.msra.mxu0 %v9224
    %9758 = vmatprep.subr.mxu0 0.0
    %9759 = vmatpush1.msra.mxu0 %v9223
    %9760 = vmatprep.subr.mxu0 0.0
    %9761 = vmatpush1.msra.mxu0 %v9222
    %9762 = vmatprep.subr.mxu0 0.0
    %9763 = vmatpush1.msra.mxu0 %v9221
    %9764 = vmatprep.subr.mxu0 0.0
    %9765 = vmatpush1.msra.mxu0 %v9220
    %9766 = vmatprep.subr.mxu0 0.0
    %9767 = vmatpush1.msra.mxu0 %v9219
    %9768 = vmatprep.subr.mxu0 0.0
    %9769 = vmatpush1.msra.mxu0 %v9218
    %9770 = vmatprep.subr.mxu0 0.0
    %9771 = vmatpush1.msra.mxu0 %v9217
    %9772 = vmatprep.subr.mxu0 0.0
    %9773 = vmatpush2.msra.mxu0 %v9248
    %9774 = vmatprep.subr.mxu0 0.0
    %9775 = vmatpush2.msra.mxu0 %v9247
    %9776 = vmatprep.subr.mxu0 0.0
    %9777 = vmatpush2.msra.mxu0 %v9246
    %9778 = vmatprep.subr.mxu0 0.0
    %9779 = vmatpush2.msra.mxu0 %v9245
    %9780 = vmatprep.subr.mxu0 0.0
    %9781 = vmatpush2.msra.mxu0 %v9244
    %9782 = vmatprep.subr.mxu0 0.0
    %9783 = vmatpush2.msra.mxu0 %v9243
    %9784 = vmatprep.subr.mxu0 0.0
    %9785 = vmatpush2.msra.mxu0 %v9242
    %9786 = vmatprep.subr.mxu0 0.0
    %9787 = vmatpush2.msra.mxu0 %v9241
    %9788 = vmatprep.subr.mxu0 0.0
    %9789 = vmatpush2.msra.mxu0 %v9240
    %9790 = vmatprep.subr.mxu0 0.0
    %9791 = vmatpush2.msra.mxu0 %v9239
    %9792 = vmatprep.subr.mxu0 0.0
    %9793 = vmatpush2.msra.mxu0 %v9238
    %9794 = vmatprep.subr.mxu0 0.0
    %9795 = vmatpush2.msra.mxu0 %v9237
    %9796 = vmatprep.subr.mxu0 0.0
    %9797 = vmatpush2.msra.mxu0 %v9236
    %9798 = vmatprep.subr.mxu0 0.0
    %9799 = vmatpush2.msra.mxu0 %v9235
    %9800 = vmatprep.subr.mxu0 0.0
    %9801 = vmatpush2.msra.mxu0 %v9234
    %9802 = vmatprep.subr.mxu0 0.0
    %9803 = vmatpush2.msra.mxu0 %v9233
    %9804 = vmatprep.mubr.f32.mxu0 %v8992
    %9805 = vmatmul.mubr.f32.gmra.mxu0 %v8991
    %v9806 = vpop.f32.mrf.mxu0
    %v9807 = vadd.f32 %v9737, %v9806
    %v9808 = vpop.f32.mrf.mxu0
    %9809 = vdwg.mxu0
    %vm9810 = vcmask 123904
    %9811 = vst.msk [vmem:[#allocation10] sm:$0x3] %vm9810, %v9807
    // Predicated region
    $region42: #{fno1d_forward.1} parent=1 // pred_check
      _
    $region43: #{fno1d_forward.1} parent=1 // pred_check_branch
      %9813 = sbr.rel (0) target = $region45
    $region44: #{fno1d_forward.1} parent=1 // pred_region
      %s9815 = ssub.s32 32, 32
      %9816 = vsyncadd [#allocation4], %s9815
      %s9818 = sshll.u32 [#allocation10], 4
      %s9819 = int_to_ptr.vmem [resolvable:$true] %s9818
      %9821 = dma.vmem_to_hbm [thread:$0]  %s9819, 32, %s6, [#allocation4]
    $region45: #{fno1d_forward.1} parent=1 // pred_fallthru
      _
    // Predicated region
    $region46: #{fno1d_forward.1} parent=1 // pred_check
      _
    $region47: #{fno1d_forward.1} parent=1 // pred_check_branch
      %9823 = sbr.rel (0) target = $region49
    $region48: #{fno1d_forward.1} parent=1 // pred_region
      %9824 = dma.done [#allocation4], 32
    $region49: #{fno1d_forward.1} parent=1 // pred_fallthru
      _
    %9825 = vsyncpa [#allocation3], 1
    %9826 = vsyncpa [#allocation6], 1
    %9827 = vsyncpa [#allocation9], 1
    %9828 = vsyncpa [#allocation4], 1

</llo_original>
